<compile_context>
chip_gen: v7x
topology: tpu7x:2x2x1
jax: 0.10.0
libtpu: 0.0.40
codegen_flags: <defaults>
</compile_context>

<pallas_src>
import functools

import jax
import jax.numpy as jnp
from jax.experimental import pallas as pl
from jax.experimental.pallas import tpu as pltpu


# ----------------------------------------------------------------------------
# Tiling helpers
# ----------------------------------------------------------------------------
# Tile caps keep the per-step VMEM footprint (double-buffered bf16 inputs +
# f32 accumulator) at a couple of MiB -- far under v7x's 64 MiB physical /
# 32 MiB scoped default and v5e's 16 MiB scoped default.
_TM_CAP, _TN_CAP, _TK_CAP = 256, 512, 512


def _pick_tile(dim, cap, align):
    """Largest multiple of `align` <= cap that divides `dim`; else full dim."""
    if dim <= cap:
        return dim
    t = (cap // align) * align
    while t >= align:
        if dim % t == 0:
            return t
        t -= align
    return dim


# ----------------------------------------------------------------------------
# Pallas kernels
# ----------------------------------------------------------------------------
def _mm_bias_kernel(x_ref, w_ref, b_ref, o_ref, acc_ref, *, relu):
    """acc += x @ w over the K grid axis; epilogue: + bias [, ReLU]."""
    @pl.when(pl.program_id(2) == 0)
    def _():
        acc_ref[...] = jnp.zeros_like(acc_ref)

    acc_ref[...] += jnp.dot(x_ref[...], w_ref[...],
                            preferred_element_type=jnp.float32)

    @pl.when(pl.program_id(2) == pl.num_programs(2) - 1)
    def _():
        z = acc_ref[...] + b_ref[...]
        if relu:
            z = jnp.maximum(z, 0.0)
        o_ref[...] = z.astype(o_ref.dtype)


def _mm_bias_relu_affine_kernel(x_ref, w_ref, b_ref, scale_ref, shift_ref,
                                o_ref, acc_ref, *, relu):
    """acc += x @ w; epilogue: + bias -> ReLU -> folded-BN affine."""
    @pl.when(pl.program_id(2) == 0)
    def _():
        acc_ref[...] = jnp.zeros_like(acc_ref)

    acc_ref[...] += jnp.dot(x_ref[...], w_ref[...],
                            preferred_element_type=jnp.float32)

    @pl.when(pl.program_id(2) == pl.num_programs(2) - 1)
    def _():
        z = acc_ref[...] + b_ref[...]
        if relu:
            z = jnp.maximum(z, 0.0)
        o_ref[...] = (z * scale_ref[...] + shift_ref[...]).astype(o_ref.dtype)


def fused_matmul(x, w, b, scale=None, shift=None, *, relu,
                 out_dtype=jnp.bfloat16):
    """Tiled bf16 MXU matmul with f32 accumulation and a fused epilogue."""
    M, K = x.shape
    K2, N = w.shape
    assert K == K2
    tm = _pick_tile(M, _TM_CAP, 8)
    tn = _pick_tile(N, _TN_CAP, 128)
    tk = _pick_tile(K, _TK_CAP, 128)
    grid = (M // tm, N // tn, K // tk)

    args = [x.astype(jnp.bfloat16), w.astype(jnp.bfloat16),
            b.reshape(1, N).astype(jnp.float32)]
    in_specs = [
        pl.BlockSpec((tm, tk), lambda i, j, k: (i, k)),
        pl.BlockSpec((tk, tn), lambda i, j, k: (k, j)),
        pl.BlockSpec((1, tn), lambda i, j, k: (0, j)),
    ]
    if scale is not None:
        args += [scale.reshape(1, N).astype(jnp.float32),
                 shift.reshape(1, N).astype(jnp.float32)]
        in_specs += [pl.BlockSpec((1, tn), lambda i, j, k: (0, j)),
                     pl.BlockSpec((1, tn), lambda i, j, k: (0, j))]
        kernel = functools.partial(_mm_bias_relu_affine_kernel, relu=relu)
    else:
        kernel = functools.partial(_mm_bias_kernel, relu=relu)

    return pl.pallas_call(
        kernel,
        out_shape=jax.ShapeDtypeStruct((M, N), out_dtype),
        grid=grid,
        in_specs=in_specs,
        out_specs=pl.BlockSpec((tm, tn), lambda i, j, k: (i, j)),
        scratch_shapes=[pltpu.VMEM((tm, tn), jnp.float32)],
        compiler_params=pltpu.CompilerParams(
            dimension_semantics=("parallel", "parallel", "arbitrary")),
    )(*args)


def _conv_pool_cls_kernel(x_ref, w_ref, b_ref, pool_ref, cw_ref, cb_ref,
                          o_ref, acc_ref):
    """Last conv matmul (+bias, ReLU) fused with avg-pool and the classifier.

    Grid axis 0 tiles the conv contraction (K = k*Cin); the pooled mean is a
    tiny (B, B*Lout) @ (B*Lout, C) matmul done in the epilogue, followed by
    (B, C) @ (C, 3) + bias.
    """
    @pl.when(pl.program_id(0) == 0)
    def _():
        acc_ref[...] = jnp.zeros_like(acc_ref)

    acc_ref[...] += jnp.dot(x_ref[...], w_ref[...],
                            preferred_element_type=jnp.float32)

    @pl.when(pl.program_id(0) == pl.num_programs(0) - 1)
    def _():
        z = jnp.maximum(acc_ref[...] + b_ref[...], 0.0)            # (B*L, C)
        pooled = jnp.dot(pool_ref[...], z,
                         preferred_element_type=jnp.float32)       # (B, C)
        o_ref[...] = (jnp.dot(pooled, cw_ref[...],
                              preferred_element_type=jnp.float32)
                      + cb_ref[...])


def conv_pool_classifier(patches, w, b, pool_mat, cls_w, cls_b):
    M, K = patches.shape
    K2, C = w.shape
    assert K == K2
    B = pool_mat.shape[0]
    ncls = cls_w.shape[1]
    tk = _pick_tile(K, _TK_CAP, 128)
    return pl.pallas_call(
        _conv_pool_cls_kernel,
        out_shape=jax.ShapeDtypeStruct((B, ncls), jnp.float32),
        grid=(K // tk,),
        in_specs=[
            pl.BlockSpec((M, tk), lambda k: (0, k)),
            pl.BlockSpec((tk, C), lambda k: (k, 0)),
            pl.BlockSpec((1, C), lambda k: (0, 0)),
            pl.BlockSpec((B, M), lambda k: (0, 0)),
            pl.BlockSpec((C, ncls), lambda k: (0, 0)),
            pl.BlockSpec((1, ncls), lambda k: (0, 0)),
        ],
        out_specs=pl.BlockSpec((B, ncls), lambda k: (0, 0)),
        scratch_shapes=[pltpu.VMEM((M, C), jnp.float32)],
        compiler_params=pltpu.CompilerParams(
            dimension_semantics=("arbitrary",)),
    )(patches.astype(jnp.bfloat16), w.astype(jnp.bfloat16),
      b.reshape(1, C).astype(jnp.float32),
      pool_mat.astype(jnp.float32),
      cls_w.astype(jnp.float32),
      cls_b.reshape(1, ncls).astype(jnp.float32))


# ----------------------------------------------------------------------------
# Plain-JAX glue
# ----------------------------------------------------------------------------
def im2col_1d(x, k, stride, pad):
    """x: (B, L, Cin) channels-last -> patches (B*Lout, k*Cin), Lout."""
    B, L, C = x.shape
    xp = jnp.pad(x, ((0, 0), (pad, pad), (0, 0)))
    Lp = L + 2 * pad
    Lout = (Lp - k) // stride + 1
    cols = [xp[:, t: t + stride * (Lout - 1) + 1: stride, :] for t in range(k)]
    patches = jnp.concatenate(cols, axis=-1)          # (B, Lout, k*Cin)
    return patches.reshape(B * Lout, k * C), Lout


def fold_bn(gamma, beta, rmean, rvar, eps=1e-5):
    """Eval-mode BatchNorm1d folded to a per-channel affine (scale, shift)."""
    scale = gamma / jnp.sqrt(rvar + eps)
    shift = beta - rmean * scale
    return scale, shift


def _conv_weight_matrix(w, cin_p, cout_p):
    """PyTorch Conv1d weight (Cout, Cin, k) -> im2col matrix (k*cin_p, cout_p).

    Zero-padded so channel widths are lane-dense; padded rows/cols contribute
    exactly zero.
    """
    cout, cin, k = w.shape
    wt = jnp.transpose(w, (2, 1, 0))                   # (k, Cin, Cout)
    wt = jnp.pad(wt, ((0, 0), (0, cin_p - cin), (0, cout_p - cout)))
    return wt.reshape(k * cin_p, cout_p)


# Conv stack configuration: (Cin, Cout, kernel, stride, pad, has_bn)
CONV_CFG = [
    (3, 16, 7, 2, 1, True),
    (16, 64, 5, 2, 1, True),
    (64, 256, 3, 1, 1, True),
    (256, 512, 3, 1, 1, True),
    (512, 1024, 3, 1, 1, False),
]

# Lane-dense output channel widths: Cout < 128 is zero-padded up to 128 so the
# conv kernels emit unmasked (full-lane) stores; zeros propagate exactly.
PAD_COUT = [max(cout, 128) for _, cout, _, _, _, _ in CONV_CFG]


def init_params(key, d_in, l_code):
    params = {}
    keys = iter(jax.random.split(key, 64))

    def dense(k, shape, fan_in):
        return jax.random.normal(k, shape, jnp.float32) / jnp.sqrt(fan_in)

    # model1 / model2 / model3 : synthetic Linear(d_in -> l_code) encoders.
    for i in range(3):
        params[f"enc{i}_w"] = dense(next(keys), (d_in, l_code), d_in)
        params[f"enc{i}_b"] = 0.1 * jax.random.normal(next(keys), (l_code,))

    # Conv1d layers (PyTorch weight layout (Cout, Cin, k)).
    for li, (cin, cout, k, _s, _p, has_bn) in enumerate(CONV_CFG):
        params[f"conv{li}_w"] = dense(next(keys), (cout, cin, k), cin * k)
        params[f"conv{li}_b"] = 0.05 * jax.random.normal(next(keys), (cout,))
        if has_bn:
            params[f"bn{li}_gamma"] = 1.0 + 0.1 * jax.random.normal(next(keys), (cout,))
            params[f"bn{li}_beta"] = 0.05 * jax.random.normal(next(keys), (cout,))
            params[f"bn{li}_rmean"] = 0.1 * jax.random.normal(next(keys), (cout,))
            params[f"bn{li}_rvar"] = 0.5 + 0.1 * jnp.abs(jax.random.normal(next(keys), (cout,)))

    # Classifier Linear(1024 -> 3).
    params["cls_w"] = dense(next(keys), (1024, 3), 1024)
    params["cls_b"] = 0.05 * jax.random.normal(next(keys), (3,))
    return params


def completenn_forward(params, x):
    """Pallas implementation of completenn.forward (BatchNorm in eval mode)."""
    B = x.shape[0]

    # --- model1/2/3 fused into ONE matmul ------------------------------------
    # Columns interleaved as (l0e0, l0e1, l0e2, l1e0, ...) so the (B, 3*L)
    # result reshapes directly to the channels-last activation (B, L, 3).
    w_enc = jnp.stack([params[f"enc{i}_w"] for i in range(3)], axis=-1)  # (D, L, 3)
    l_code = w_enc.shape[1]
    w_enc = w_enc.reshape(w_enc.shape[0], 3 * l_code)
    b_enc = jnp.stack([params[f"enc{i}_b"] for i in range(3)],
                      axis=-1).reshape(3 * l_code)
    codes = fused_matmul(x, w_enc, b_enc, relu=False)        # (B, 3*L) bf16
    act = codes.reshape(B, l_code, 3)                        # (B, L, C=3)

    # --- conv stack: Conv1d -> ReLU -> BatchNorm1d (eval, folded) ------------
    for li, (cin, cout, k, s, p, has_bn) in enumerate(CONV_CFG):
        cin_p = 3 if li == 0 else PAD_COUT[li - 1]
        cout_p = PAD_COUT[li]
        w_mat = _conv_weight_matrix(params[f"conv{li}_w"], cin_p, cout_p)
        bias = jnp.pad(params[f"conv{li}_b"], (0, cout_p - cout))
        patches, lout = im2col_1d(act, k, s, p)              # bf16 (B*Lout, k*cin_p)

        if li == len(CONV_CFG) - 1:
            # Last conv fused with ReLU + AdaptiveAvgPool1d(1) + Linear(1024,3)
            # -> the (B, Lout, 1024) activation never touches HBM.
            pool_mat = jnp.repeat(jnp.eye(B, dtype=jnp.float32),
                                  lout, axis=1) / lout       # (B, B*Lout)
            return conv_pool_classifier(patches, w_mat, bias, pool_mat,
                                        params["cls_w"], params["cls_b"])

        if has_bn:
            scale, shift = fold_bn(params[f"bn{li}_gamma"], params[f"bn{li}_beta"],
                                   params[f"bn{li}_rmean"], params[f"bn{li}_rvar"])
            scale = jnp.pad(scale, (0, cout_p - cout), constant_values=1.0)
            shift = jnp.pad(shift, (0, cout_p - cout))
            out = fused_matmul(patches, w_mat, bias, scale, shift, relu=True)
        else:
            out = fused_matmul(patches, w_mat, bias, relu=True)
        act = out.reshape(B, lout, cout_p)


def completenn_reference(params, x):
    """Pure-jnp f32 reference (unpadded) mirroring the original module."""
    B = x.shape[0]
    codes = [x @ params[f"enc{i}_w"] + params[f"enc{i}_b"] for i in range(3)]
    act = jnp.stack(codes, axis=-1)
    for li, (cin, cout, k, s, p, has_bn) in enumerate(CONV_CFG):
        patches, lout = im2col_1d(act, k, s, p)
        w_mat = jnp.transpose(params[f"conv{li}_w"], (2, 1, 0)).reshape(k * cin, cout)
        z = patches @ w_mat + params[f"conv{li}_b"]
        z = jnp.maximum(z, 0.0)
        if has_bn:
            scale, shift = fold_bn(params[f"bn{li}_gamma"], params[f"bn{li}_beta"],
                                   params[f"bn{li}_rmean"], params[f"bn{li}_rvar"])
            z = z * scale + shift
        act = z.reshape(B, lout, cout)
    pooled = jnp.mean(act, axis=1)
    return pooled @ params["cls_w"] + params["cls_b"]


if __name__ == "__main__":
    key = jax.random.PRNGKey(0)
    k_param, k_x = jax.random.split(key)

    B, D_IN, L_CODE = 2, 32, 64
    params = init_params(k_param, D_IN, L_CODE)
    x = jax.random.normal(k_x, (B, D_IN), jnp.float32)

    fwd = jax.jit(completenn_forward)
    out = jax.block_until_ready(fwd(params, x))
    assert out.shape == (B, 3), out.shape

    ref = jax.block_until_ready(completenn_reference(params, x))
    # bf16 MXU inputs / bf16 inter-layer activations => relaxed tolerance vs
    # the pure-f32 reference.
    assert jnp.allclose(out, ref, rtol=1e-1, atol=1e-1), (out, ref)

    print("KERNEL_OK")
</pallas_src>

<mosaic_0001>
module attributes {stable_mosaic.version = 11 : i64} {
  func.func @_mm_bias_kernel(%arg0: i32, %arg1: i32, %arg2: i32, %arg3: memref<2x32xbf16, #tpu.memory_space<vmem>>, %arg4: memref<32x192xbf16, #tpu.memory_space<vmem>>, %arg5: memref<1x192xf32, #tpu.memory_space<vmem>>, %arg6: memref<2x192xbf16, #tpu.memory_space<vmem>>, %arg7: memref<2x192xf32, #tpu.memory_space<vmem>>) attributes {dimension_semantics = [#tpu.dimension_semantics<parallel>, #tpu.dimension_semantics<parallel>, #tpu.dimension_semantics<arbitrary>], iteration_bounds = array<i64: 1, 1, 1>, scalar_prefetch = 0 : i64, scratch_operands = 1 : i64, tpu.core_type = #tpu.core_type<tc>, window_params = [{transform_indices = @transform_0, window_bounds = array<i64: 2, 32>}, {transform_indices = @transform_1, window_bounds = array<i64: 32, 192>}, {transform_indices = @transform_2, window_bounds = array<i64: 1, 192>}, {transform_indices = @transform_3, window_bounds = array<i64: 2, 192>}]} {
    %c0_i32 = arith.constant 0 : i32
    %0 = arith.cmpi eq, %arg2, %c0_i32 : i32
    %1 = arith.extui %0 : i1 to i32
    %c0_i32_0 = arith.constant 0 : i32
    %2 = arith.cmpi ne, %1, %c0_i32_0 : i32
    scf.if %2 {
      %cst_10 = arith.constant 0.000000e+00 : f32
      %12 = vector.broadcast %cst_10 : f32 to vector<2x192xf32>
      %c0_11 = arith.constant 0 : index
      %c0_12 = arith.constant 0 : index
      %13 = vector.load %arg7[%c0_11, %c0_12] : memref<2x192xf32, #tpu.memory_space<vmem>>, vector<2x192xf32>
      tpu.vector_store %arg7[%c0_11, %c0_12], %12 {strides = array<i32>} : memref<2x192xf32, #tpu.memory_space<vmem>>, vector<2x192xf32>,
    } else {
    }
    %c0 = arith.constant 0 : index
    %c0_1 = arith.constant 0 : index
    %3 = vector.load %arg7[%c0, %c0_1] : memref<2x192xf32, #tpu.memory_space<vmem>>, vector<2x192xf32>
    %c0_2 = arith.constant 0 : index
    %c0_3 = arith.constant 0 : index
    %4 = vector.load %arg3[%c0_2, %c0_3] : memref<2x32xbf16, #tpu.memory_space<vmem>>, vector<2x32xbf16>
    %c0_4 = arith.constant 0 : index
    %c0_5 = arith.constant 0 : index
    %5 = vector.load %arg4[%c0_4, %c0_5] : memref<32x192xbf16, #tpu.memory_space<vmem>>, vector<32x192xbf16>
    %cst = arith.constant dense<0.000000e+00> : vector<2x192xf32>
    %6 = tpu.matmul %4, %5, %cst {dimension_numbers = #tpu.dot_dimension_numbers<[1], [0], [0], [1], [0, 0, 1, 1], [], []>} : vector<2x32xbf16>, vector<32x192xbf16>, vector<2x192xf32> -> vector<2x192xf32>
    %7 = arith.addf %3, %6 : vector<2x192xf32>
    %c0_6 = arith.constant 0 : index
    %c0_7 = arith.constant 0 : index
    %8 = vector.load %arg7[%c0_6, %c0_7] : memref<2x192xf32, #tpu.memory_space<vmem>>, vector<2x192xf32>
    tpu.vector_store %arg7[%c0_6, %c0_7], %7 {strides = array<i32>} : memref<2x192xf32, #tpu.memory_space<vmem>>, vector<2x192xf32>,
    %c0_i32_8 = arith.constant 0 : i32
    %9 = arith.cmpi eq, %arg2, %c0_i32_8 : i32
    %10 = arith.extui %9 : i1 to i32
    %c0_i32_9 = arith.constant 0 : i32
    %11 = arith.cmpi ne, %10, %c0_i32_9 : i32
    scf.if %11 {
      %c0_10 = arith.constant 0 : index
      %c0_11 = arith.constant 0 : index
      %12 = vector.load %arg7[%c0_10, %c0_11] : memref<2x192xf32, #tpu.memory_space<vmem>>, vector<2x192xf32>
      %c0_12 = arith.constant 0 : index
      %c0_13 = arith.constant 0 : index
      %13 = vector.load %arg5[%c0_12, %c0_13] : memref<1x192xf32, #tpu.memory_space<vmem>>, vector<1x192xf32>
      %14 = vector.broadcast %13 : vector<1x192xf32> to vector<2x192xf32>
      %15 = arith.addf %12, %14 : vector<2x192xf32>
      %16 = arith.truncf %15 : vector<2x192xf32> to vector<2x192xbf16>
      %c0_14 = arith.constant 0 : index
      %c0_15 = arith.constant 0 : index
      %17 = vector.load %arg6[%c0_14, %c0_15] : memref<2x192xbf16, #tpu.memory_space<vmem>>, vector<2x192xbf16>
      tpu.vector_store %arg6[%c0_14, %c0_15], %16 {strides = array<i32>} : memref<2x192xbf16, #tpu.memory_space<vmem>>, vector<2x192xbf16>,
    } else {
    }
    return
  }
  func.func @transform_0(%arg0: i32, %arg1: i32, %arg2: i32) -> (i32, i32) {
    %c0_i32 = arith.constant 0 : i32
    return %arg0, %arg2 : i32, i32
  }
  func.func @transform_1(%arg0: i32, %arg1: i32, %arg2: i32) -> (i32, i32) {
    %c0_i32 = arith.constant 0 : i32
    return %arg2, %arg1 : i32, i32
  }
  func.func @transform_2(%arg0: i32, %arg1: i32, %arg2: i32) -> (i32, i32) {
    %c0_i32 = arith.constant 0 : i32
    %c0_i32_0 = arith.constant 0 : i32
    return %c0_i32, %arg1 : i32, i32
  }
  func.func @transform_3(%arg0: i32, %arg1: i32, %arg2: i32) -> (i32, i32) {
    %c0_i32 = arith.constant 0 : i32
    return %arg0, %arg1 : i32, i32
  }
}

module attributes {stable_mosaic.version = 11 : i64} {
  func.func @_mm_bias_relu_affine_kernel(%arg0: i32, %arg1: i32, %arg2: i32, %arg3: memref<60x21xbf16, #tpu.memory_space<vmem>>, %arg4: memref<21x128xbf16, #tpu.memory_space<vmem>>, %arg5: memref<1x128xf32, #tpu.memory_space<vmem>>, %arg6: memref<1x128xf32, #tpu.memory_space<vmem>>, %arg7: memref<1x128xf32, #tpu.memory_space<vmem>>, %arg8: memref<60x128xbf16, #tpu.memory_space<vmem>>, %arg9: memref<60x128xf32, #tpu.memory_space<vmem>>) attributes {dimension_semantics = [#tpu.dimension_semantics<parallel>, #tpu.dimension_semantics<parallel>, #tpu.dimension_semantics<arbitrary>], iteration_bounds = array<i64: 1, 1, 1>, scalar_prefetch = 0 : i64, scratch_operands = 1 : i64, tpu.core_type = #tpu.core_type<tc>, window_params = [{transform_indices = @transform_0, window_bounds = array<i64: 60, 21>}, {transform_indices = @transform_1, window_bounds = array<i64: 21, 128>}, {transform_indices = @transform_2, window_bounds = array<i64: 1, 128>}, {transform_indices = @transform_3, window_bounds = array<i64: 1, 128>}, {transform_indices = @transform_4, window_bounds = array<i64: 1, 128>}, {transform_indices = @transform_5, window_bounds = array<i64: 60, 128>}]} {
    %c0_i32 = arith.constant 0 : i32
    %0 = arith.cmpi eq, %arg2, %c0_i32 : i32
    %1 = arith.extui %0 : i1 to i32
    %c0_i32_0 = arith.constant 0 : i32
    %2 = arith.cmpi ne, %1, %c0_i32_0 : i32
    scf.if %2 {
      %cst_10 = arith.constant 0.000000e+00 : f32
      %12 = vector.broadcast %cst_10 : f32 to vector<60x128xf32>
      %c0_11 = arith.constant 0 : index
      %c0_12 = arith.constant 0 : index
      %13 = vector.load %arg9[%c0_11, %c0_12] : memref<60x128xf32, #tpu.memory_space<vmem>>, vector<60x128xf32>
      tpu.vector_store %arg9[%c0_11, %c0_12], %12 {strides = array<i32>} : memref<60x128xf32, #tpu.memory_space<vmem>>, vector<60x128xf32>,
    } else {
    }
    %c0 = arith.constant 0 : index
    %c0_1 = arith.constant 0 : index
    %3 = vector.load %arg9[%c0, %c0_1] : memref<60x128xf32, #tpu.memory_space<vmem>>, vector<60x128xf32>
    %c0_2 = arith.constant 0 : index
    %c0_3 = arith.constant 0 : index
    %4 = vector.load %arg3[%c0_2, %c0_3] : memref<60x21xbf16, #tpu.memory_space<vmem>>, vector<60x21xbf16>
    %c0_4 = arith.constant 0 : index
    %c0_5 = arith.constant 0 : index
    %5 = vector.load %arg4[%c0_4, %c0_5] : memref<21x128xbf16, #tpu.memory_space<vmem>>, vector<21x128xbf16>
    %cst = arith.constant dense<0.000000e+00> : vector<60x128xf32>
    %6 = tpu.matmul %4, %5, %cst {dimension_numbers = #tpu.dot_dimension_numbers<[1], [0], [0], [1], [0, 0, 1, 1], [], []>} : vector<60x21xbf16>, vector<21x128xbf16>, vector<60x128xf32> -> vector<60x128xf32>
    %7 = arith.addf %3, %6 : vector<60x128xf32>
    %c0_6 = arith.constant 0 : index
    %c0_7 = arith.constant 0 : index
    %8 = vector.load %arg9[%c0_6, %c0_7] : memref<60x128xf32, #tpu.memory_space<vmem>>, vector<60x128xf32>
    tpu.vector_store %arg9[%c0_6, %c0_7], %7 {strides = array<i32>} : memref<60x128xf32, #tpu.memory_space<vmem>>, vector<60x128xf32>,
    %c0_i32_8 = arith.constant 0 : i32
    %9 = arith.cmpi eq, %arg2, %c0_i32_8 : i32
    %10 = arith.extui %9 : i1 to i32
    %c0_i32_9 = arith.constant 0 : i32
    %11 = arith.cmpi ne, %10, %c0_i32_9 : i32
    scf.if %11 {
      %c0_10 = arith.constant 0 : index
      %c0_11 = arith.constant 0 : index
      %12 = vector.load %arg9[%c0_10, %c0_11] : memref<60x128xf32, #tpu.memory_space<vmem>>, vector<60x128xf32>
      %c0_12 = arith.constant 0 : index
      %c0_13 = arith.constant 0 : index
      %13 = vector.load %arg5[%c0_12, %c0_13] : memref<1x128xf32, #tpu.memory_space<vmem>>, vector<1x128xf32>
      %14 = vector.broadcast %13 : vector<1x128xf32> to vector<60x128xf32>
      %15 = arith.addf %12, %14 : vector<60x128xf32>
      %cst_14 = arith.constant 0.000000e+00 : f32
      %16 = vector.broadcast %cst_14 : f32 to vector<60x128xf32>
      %17 = arith.maximumf %15, %16 : vector<60x128xf32>
      %c0_15 = arith.constant 0 : index
      %c0_16 = arith.constant 0 : index
      %18 = vector.load %arg6[%c0_15, %c0_16] : memref<1x128xf32, #tpu.memory_space<vmem>>, vector<1x128xf32>
      %19 = vector.broadcast %18 : vector<1x128xf32> to vector<60x128xf32>
      %20 = arith.mulf %17, %19 : vector<60x128xf32>
      %c0_17 = arith.constant 0 : index
      %c0_18 = arith.constant 0 : index
      %21 = vector.load %arg7[%c0_17, %c0_18] : memref<1x128xf32, #tpu.memory_space<vmem>>, vector<1x128xf32>
      %22 = vector.broadcast %21 : vector<1x128xf32> to vector<60x128xf32>
      %23 = arith.addf %20, %22 : vector<60x128xf32>
      %24 = arith.truncf %23 : vector<60x128xf32> to vector<60x128xbf16>
      %c0_19 = arith.constant 0 : index
      %c0_20 = arith.constant 0 : index
      %25 = vector.load %arg8[%c0_19, %c0_20] : memref<60x128xbf16, #tpu.memory_space<vmem>>, vector<60x128xbf16>
      tpu.vector_store %arg8[%c0_19, %c0_20], %24 {strides = array<i32>} : memref<60x128xbf16, #tpu.memory_space<vmem>>, vector<60x128xbf16>,
    } else {
    }
    return
  }
  func.func @transform_0(%arg0: i32, %arg1: i32, %arg2: i32) -> (i32, i32) {
    %c0_i32 = arith.constant 0 : i32
    return %arg0, %arg2 : i32, i32
  }
  func.func @transform_1(%arg0: i32, %arg1: i32, %arg2: i32) -> (i32, i32) {
    %c0_i32 = arith.constant 0 : i32
    return %arg2, %arg1 : i32, i32
  }
  func.func @transform_2(%arg0: i32, %arg1: i32, %arg2: i32) -> (i32, i32) {
    %c0_i32 = arith.constant 0 : i32
    %c0_i32_0 = arith.constant 0 : i32
    return %c0_i32, %arg1 : i32, i32
  }
  func.func @transform_3(%arg0: i32, %arg1: i32, %arg2: i32) -> (i32, i32) {
    %c0_i32 = arith.constant 0 : i32
    %c0_i32_0 = arith.constant 0 : i32
    return %c0_i32, %arg1 : i32, i32
  }
  func.func @transform_4(%arg0: i32, %arg1: i32, %arg2: i32) -> (i32, i32) {
    %c0_i32 = arith.constant 0 : i32
    %c0_i32_0 = arith.constant 0 : i32
    return %c0_i32, %arg1 : i32, i32
  }
  func.func @transform_5(%arg0: i32, %arg1: i32, %arg2: i32) -> (i32, i32) {
    %c0_i32 = arith.constant 0 : i32
    return %arg0, %arg1 : i32, i32
  }
}

module attributes {stable_mosaic.version = 11 : i64} {
  func.func @_mm_bias_relu_affine_kernel(%arg0: i32, %arg1: i32, %arg2: i32, %arg3: memref<28x128xbf16, #tpu.memory_space<vmem>>, %arg4: memref<128x128xbf16, #tpu.memory_space<vmem>>, %arg5: memref<1x128xf32, #tpu.memory_space<vmem>>, %arg6: memref<1x128xf32, #tpu.memory_space<vmem>>, %arg7: memref<1x128xf32, #tpu.memory_space<vmem>>, %arg8: memref<28x128xbf16, #tpu.memory_space<vmem>>, %arg9: memref<28x128xf32, #tpu.memory_space<vmem>>) attributes {dimension_semantics = [#tpu.dimension_semantics<parallel>, #tpu.dimension_semantics<parallel>, #tpu.dimension_semantics<arbitrary>], iteration_bounds = array<i64: 1, 1, 5>, scalar_prefetch = 0 : i64, scratch_operands = 1 : i64, tpu.core_type = #tpu.core_type<tc>, window_params = [{transform_indices = @transform_0, window_bounds = array<i64: 28, 128>}, {transform_indices = @transform_1, window_bounds = array<i64: 128, 128>}, {transform_indices = @transform_2, window_bounds = array<i64: 1, 128>}, {transform_indices = @transform_3, window_bounds = array<i64: 1, 128>}, {transform_indices = @transform_4, window_bounds = array<i64: 1, 128>}, {transform_indices = @transform_5, window_bounds = array<i64: 28, 128>}]} {
    %c0_i32 = arith.constant 0 : i32
    %0 = arith.cmpi eq, %arg2, %c0_i32 : i32
    %1 = arith.extui %0 : i1 to i32
    %c0_i32_0 = arith.constant 0 : i32
    %2 = arith.cmpi ne, %1, %c0_i32_0 : i32
    scf.if %2 {
      %cst_9 = arith.constant 0.000000e+00 : f32
      %12 = vector.broadcast %cst_9 : f32 to vector<28x128xf32>
      %c0_10 = arith.constant 0 : index
      %c0_11 = arith.constant 0 : index
      %13 = vector.load %arg9[%c0_10, %c0_11] : memref<28x128xf32, #tpu.memory_space<vmem>>, vector<28x128xf32>
      tpu.vector_store %arg9[%c0_10, %c0_11], %12 {strides = array<i32>} : memref<28x128xf32, #tpu.memory_space<vmem>>, vector<28x128xf32>,
    } else {
    }
    %c0 = arith.constant 0 : index
    %c0_1 = arith.constant 0 : index
    %3 = vector.load %arg9[%c0, %c0_1] : memref<28x128xf32, #tpu.memory_space<vmem>>, vector<28x128xf32>
    %c0_2 = arith.constant 0 : index
    %c0_3 = arith.constant 0 : index
    %4 = vector.load %arg3[%c0_2, %c0_3] : memref<28x128xbf16, #tpu.memory_space<vmem>>, vector<28x128xbf16>
    %c0_4 = arith.constant 0 : index
    %c0_5 = arith.constant 0 : index
    %5 = vector.load %arg4[%c0_4, %c0_5] : memref<128x128xbf16, #tpu.memory_space<vmem>>, vector<128x128xbf16>
    %cst = arith.constant dense<0.000000e+00> : vector<28x128xf32>
    %6 = tpu.matmul %4, %5, %cst {dimension_numbers = #tpu.dot_dimension_numbers<[1], [0], [0], [1], [0, 0, 1, 1], [], []>} : vector<28x128xbf16>, vector<128x128xbf16>, vector<28x128xf32> -> vector<28x128xf32>
    %7 = arith.addf %3, %6 : vector<28x128xf32>
    %c0_6 = arith.constant 0 : index
    %c0_7 = arith.constant 0 : index
    %8 = vector.load %arg9[%c0_6, %c0_7] : memref<28x128xf32, #tpu.memory_space<vmem>>, vector<28x128xf32>
    tpu.vector_store %arg9[%c0_6, %c0_7], %7 {strides = array<i32>} : memref<28x128xf32, #tpu.memory_space<vmem>>, vector<28x128xf32>,
    %c4_i32 = arith.constant 4 : i32
    %9 = arith.cmpi eq, %arg2, %c4_i32 : i32
    %10 = arith.extui %9 : i1 to i32
    %c0_i32_8 = arith.constant 0 : i32
    %11 = arith.cmpi ne, %10, %c0_i32_8 : i32
    scf.if %11 {
      %c0_9 = arith.constant 0 : index
      %c0_10 = arith.constant 0 : index
      %12 = vector.load %arg9[%c0_9, %c0_10] : memref<28x128xf32, #tpu.memory_space<vmem>>, vector<28x128xf32>
      %c0_11 = arith.constant 0 : index
      %c0_12 = arith.constant 0 : index
      %13 = vector.load %arg5[%c0_11, %c0_12] : memref<1x128xf32, #tpu.memory_space<vmem>>, vector<1x128xf32>
      %14 = vector.broadcast %13 : vector<1x128xf32> to vector<28x128xf32>
      %15 = arith.addf %12, %14 : vector<28x128xf32>
      %cst_13 = arith.constant 0.000000e+00 : f32
      %16 = vector.broadcast %cst_13 : f32 to vector<28x128xf32>
      %17 = arith.maximumf %15, %16 : vector<28x128xf32>
      %c0_14 = arith.constant 0 : index
      %c0_15 = arith.constant 0 : index
      %18 = vector.load %arg6[%c0_14, %c0_15] : memref<1x128xf32, #tpu.memory_space<vmem>>, vector<1x128xf32>
      %19 = vector.broadcast %18 : vector<1x128xf32> to vector<28x128xf32>
      %20 = arith.mulf %17, %19 : vector<28x128xf32>
      %c0_16 = arith.constant 0 : index
      %c0_17 = arith.constant 0 : index
      %21 = vector.load %arg7[%c0_16, %c0_17] : memref<1x128xf32, #tpu.memory_space<vmem>>, vector<1x128xf32>
      %22 = vector.broadcast %21 : vector<1x128xf32> to vector<28x128xf32>
      %23 = arith.addf %20, %22 : vector<28x128xf32>
      %24 = arith.truncf %23 : vector<28x128xf32> to vector<28x128xbf16>
      %c0_18 = arith.constant 0 : index
      %c0_19 = arith.constant 0 : index
      %25 = vector.load %arg8[%c0_18, %c0_19] : memref<28x128xbf16, #tpu.memory_space<vmem>>, vector<28x128xbf16>
      tpu.vector_store %arg8[%c0_18, %c0_19], %24 {strides = array<i32>} : memref<28x128xbf16, #tpu.memory_space<vmem>>, vector<28x128xbf16>,
    } else {
    }
    return
  }
  func.func @transform_0(%arg0: i32, %arg1: i32, %arg2: i32) -> (i32, i32) {
    %c0_i32 = arith.constant 0 : i32
    return %arg0, %arg2 : i32, i32
  }
  func.func @transform_1(%arg0: i32, %arg1: i32, %arg2: i32) -> (i32, i32) {
    %c0_i32 = arith.constant 0 : i32
    return %arg2, %arg1 : i32, i32
  }
  func.func @transform_2(%arg0: i32, %arg1: i32, %arg2: i32) -> (i32, i32) {
    %c0_i32 = arith.constant 0 : i32
    %c0_i32_0 = arith.constant 0 : i32
    return %c0_i32, %arg1 : i32, i32
  }
  func.func @transform_3(%arg0: i32, %arg1: i32, %arg2: i32) -> (i32, i32) {
    %c0_i32 = arith.constant 0 : i32
    %c0_i32_0 = arith.constant 0 : i32
    return %c0_i32, %arg1 : i32, i32
  }
  func.func @transform_4(%arg0: i32, %arg1: i32, %arg2: i32) -> (i32, i32) {
    %c0_i32 = arith.constant 0 : i32
    %c0_i32_0 = arith.constant 0 : i32
    return %c0_i32, %arg1 : i32, i32
  }
  func.func @transform_5(%arg0: i32, %arg1: i32, %arg2: i32) -> (i32, i32) {
    %c0_i32 = arith.constant 0 : i32
    return %arg0, %arg1 : i32, i32
  }
}

module attributes {stable_mosaic.version = 11 : i64} {
  func.func @_mm_bias_relu_affine_kernel(%arg0: i32, %arg1: i32, %arg2: i32, %arg3: memref<28x384xbf16, #tpu.memory_space<vmem>>, %arg4: memref<384x256xbf16, #tpu.memory_space<vmem>>, %arg5: memref<1x256xf32, #tpu.memory_space<vmem>>, %arg6: memref<1x256xf32, #tpu.memory_space<vmem>>, %arg7: memref<1x256xf32, #tpu.memory_space<vmem>>, %arg8: memref<28x256xbf16, #tpu.memory_space<vmem>>, %arg9: memref<28x256xf32, #tpu.memory_space<vmem>>) attributes {dimension_semantics = [#tpu.dimension_semantics<parallel>, #tpu.dimension_semantics<parallel>, #tpu.dimension_semantics<arbitrary>], iteration_bounds = array<i64: 1, 1, 1>, scalar_prefetch = 0 : i64, scratch_operands = 1 : i64, tpu.core_type = #tpu.core_type<tc>, window_params = [{transform_indices = @transform_0, window_bounds = array<i64: 28, 384>}, {transform_indices = @transform_1, window_bounds = array<i64: 384, 256>}, {transform_indices = @transform_2, window_bounds = array<i64: 1, 256>}, {transform_indices = @transform_3, window_bounds = array<i64: 1, 256>}, {transform_indices = @transform_4, window_bounds = array<i64: 1, 256>}, {transform_indices = @transform_5, window_bounds = array<i64: 28, 256>}]} {
    %c0_i32 = arith.constant 0 : i32
    %0 = arith.cmpi eq, %arg2, %c0_i32 : i32
    %1 = arith.extui %0 : i1 to i32
    %c0_i32_0 = arith.constant 0 : i32
    %2 = arith.cmpi ne, %1, %c0_i32_0 : i32
    scf.if %2 {
      %cst_10 = arith.constant 0.000000e+00 : f32
      %12 = vector.broadcast %cst_10 : f32 to vector<28x256xf32>
      %c0_11 = arith.constant 0 : index
      %c0_12 = arith.constant 0 : index
      %13 = vector.load %arg9[%c0_11, %c0_12] : memref<28x256xf32, #tpu.memory_space<vmem>>, vector<28x256xf32>
      tpu.vector_store %arg9[%c0_11, %c0_12], %12 {strides = array<i32>} : memref<28x256xf32, #tpu.memory_space<vmem>>, vector<28x256xf32>,
    } else {
    }
    %c0 = arith.constant 0 : index
    %c0_1 = arith.constant 0 : index
    %3 = vector.load %arg9[%c0, %c0_1] : memref<28x256xf32, #tpu.memory_space<vmem>>, vector<28x256xf32>
    %c0_2 = arith.constant 0 : index
    %c0_3 = arith.constant 0 : index
    %4 = vector.load %arg3[%c0_2, %c0_3] : memref<28x384xbf16, #tpu.memory_space<vmem>>, vector<28x384xbf16>
    %c0_4 = arith.constant 0 : index
    %c0_5 = arith.constant 0 : index
    %5 = vector.load %arg4[%c0_4, %c0_5] : memref<384x256xbf16, #tpu.memory_space<vmem>>, vector<384x256xbf16>
    %cst = arith.constant dense<0.000000e+00> : vector<28x256xf32>
    %6 = tpu.matmul %4, %5, %cst {dimension_numbers = #tpu.dot_dimension_numbers<[1], [0], [0], [1], [0, 0, 1, 1], [], []>} : vector<28x384xbf16>, vector<384x256xbf16>, vector<28x256xf32> -> vector<28x256xf32>
    %7 = arith.addf %3, %6 : vector<28x256xf32>
    %c0_6 = arith.constant 0 : index
    %c0_7 = arith.constant 0 : index
    %8 = vector.load %arg9[%c0_6, %c0_7] : memref<28x256xf32, #tpu.memory_space<vmem>>, vector<28x256xf32>
    tpu.vector_store %arg9[%c0_6, %c0_7], %7 {strides = array<i32>} : memref<28x256xf32, #tpu.memory_space<vmem>>, vector<28x256xf32>,
    %c0_i32_8 = arith.constant 0 : i32
    %9 = arith.cmpi eq, %arg2, %c0_i32_8 : i32
    %10 = arith.extui %9 : i1 to i32
    %c0_i32_9 = arith.constant 0 : i32
    %11 = arith.cmpi ne, %10, %c0_i32_9 : i32
    scf.if %11 {
      %c0_10 = arith.constant 0 : index
      %c0_11 = arith.constant 0 : index
      %12 = vector.load %arg9[%c0_10, %c0_11] : memref<28x256xf32, #tpu.memory_space<vmem>>, vector<28x256xf32>
      %c0_12 = arith.constant 0 : index
      %c0_13 = arith.constant 0 : index
      %13 = vector.load %arg5[%c0_12, %c0_13] : memref<1x256xf32, #tpu.memory_space<vmem>>, vector<1x256xf32>
      %14 = vector.broadcast %13 : vector<1x256xf32> to vector<28x256xf32>
      %15 = arith.addf %12, %14 : vector<28x256xf32>
      %cst_14 = arith.constant 0.000000e+00 : f32
      %16 = vector.broadcast %cst_14 : f32 to vector<28x256xf32>
      %17 = arith.maximumf %15, %16 : vector<28x256xf32>
      %c0_15 = arith.constant 0 : index
      %c0_16 = arith.constant 0 : index
      %18 = vector.load %arg6[%c0_15, %c0_16] : memref<1x256xf32, #tpu.memory_space<vmem>>, vector<1x256xf32>
      %19 = vector.broadcast %18 : vector<1x256xf32> to vector<28x256xf32>
      %20 = arith.mulf %17, %19 : vector<28x256xf32>
      %c0_17 = arith.constant 0 : index
      %c0_18 = arith.constant 0 : index
      %21 = vector.load %arg7[%c0_17, %c0_18] : memref<1x256xf32, #tpu.memory_space<vmem>>, vector<1x256xf32>
      %22 = vector.broadcast %21 : vector<1x256xf32> to vector<28x256xf32>
      %23 = arith.addf %20, %22 : vector<28x256xf32>
      %24 = arith.truncf %23 : vector<28x256xf32> to vector<28x256xbf16>
      %c0_19 = arith.constant 0 : index
      %c0_20 = arith.constant 0 : index
      %25 = vector.load %arg8[%c0_19, %c0_20] : memref<28x256xbf16, #tpu.memory_space<vmem>>, vector<28x256xbf16>
      tpu.vector_store %arg8[%c0_19, %c0_20], %24 {strides = array<i32>} : memref<28x256xbf16, #tpu.memory_space<vmem>>, vector<28x256xbf16>,
    } else {
    }
    return
  }
  func.func @transform_0(%arg0: i32, %arg1: i32, %arg2: i32) -> (i32, i32) {
    %c0_i32 = arith.constant 0 : i32
    return %arg0, %arg2 : i32, i32
  }
  func.func @transform_1(%arg0: i32, %arg1: i32, %arg2: i32) -> (i32, i32) {
    %c0_i32 = arith.constant 0 : i32
    return %arg2, %arg1 : i32, i32
  }
  func.func @transform_2(%arg0: i32, %arg1: i32, %arg2: i32) -> (i32, i32) {
    %c0_i32 = arith.constant 0 : i32
    %c0_i32_0 = arith.constant 0 : i32
    return %c0_i32, %arg1 : i32, i32
  }
  func.func @transform_3(%arg0: i32, %arg1: i32, %arg2: i32) -> (i32, i32) {
    %c0_i32 = arith.constant 0 : i32
    %c0_i32_0 = arith.constant 0 : i32
    return %c0_i32, %arg1 : i32, i32
  }
  func.func @transform_4(%arg0: i32, %arg1: i32, %arg2: i32) -> (i32, i32) {
    %c0_i32 = arith.constant 0 : i32
    %c0_i32_0 = arith.constant 0 : i32
    return %c0_i32, %arg1 : i32, i32
  }
  func.func @transform_5(%arg0: i32, %arg1: i32, %arg2: i32) -> (i32, i32) {
    %c0_i32 = arith.constant 0 : i32
    return %arg0, %arg1 : i32, i32
  }
}

module attributes {stable_mosaic.version = 11 : i64} {
  func.func @_mm_bias_relu_affine_kernel(%arg0: i32, %arg1: i32, %arg2: i32, %arg3: memref<28x384xbf16, #tpu.memory_space<vmem>>, %arg4: memref<384x512xbf16, #tpu.memory_space<vmem>>, %arg5: memref<1x512xf32, #tpu.memory_space<vmem>>, %arg6: memref<1x512xf32, #tpu.memory_space<vmem>>, %arg7: memref<1x512xf32, #tpu.memory_space<vmem>>, %arg8: memref<28x512xbf16, #tpu.memory_space<vmem>>, %arg9: memref<28x512xf32, #tpu.memory_space<vmem>>) attributes {dimension_semantics = [#tpu.dimension_semantics<parallel>, #tpu.dimension_semantics<parallel>, #tpu.dimension_semantics<arbitrary>], iteration_bounds = array<i64: 1, 1, 2>, scalar_prefetch = 0 : i64, scratch_operands = 1 : i64, tpu.core_type = #tpu.core_type<tc>, window_params = [{transform_indices = @transform_0, window_bounds = array<i64: 28, 384>}, {transform_indices = @transform_1, window_bounds = array<i64: 384, 512>}, {transform_indices = @transform_2, window_bounds = array<i64: 1, 512>}, {transform_indices = @transform_3, window_bounds = array<i64: 1, 512>}, {transform_indices = @transform_4, window_bounds = array<i64: 1, 512>}, {transform_indices = @transform_5, window_bounds = array<i64: 28, 512>}]} {
    %c0_i32 = arith.constant 0 : i32
    %0 = arith.cmpi eq, %arg2, %c0_i32 : i32
    %1 = arith.extui %0 : i1 to i32
    %c0_i32_0 = arith.constant 0 : i32
    %2 = arith.cmpi ne, %1, %c0_i32_0 : i32
    scf.if %2 {
      %cst_9 = arith.constant 0.000000e+00 : f32
      %12 = vector.broadcast %cst_9 : f32 to vector<28x512xf32>
      %c0_10 = arith.constant 0 : index
      %c0_11 = arith.constant 0 : index
      %13 = vector.load %arg9[%c0_10, %c0_11] : memref<28x512xf32, #tpu.memory_space<vmem>>, vector<28x512xf32>
      tpu.vector_store %arg9[%c0_10, %c0_11], %12 {strides = array<i32>} : memref<28x512xf32, #tpu.memory_space<vmem>>, vector<28x512xf32>,
    } else {
    }
    %c0 = arith.constant 0 : index
    %c0_1 = arith.constant 0 : index
    %3 = vector.load %arg9[%c0, %c0_1] : memref<28x512xf32, #tpu.memory_space<vmem>>, vector<28x512xf32>
    %c0_2 = arith.constant 0 : index
    %c0_3 = arith.constant 0 : index
    %4 = vector.load %arg3[%c0_2, %c0_3] : memref<28x384xbf16, #tpu.memory_space<vmem>>, vector<28x384xbf16>
    %c0_4 = arith.constant 0 : index
    %c0_5 = arith.constant 0 : index
    %5 = vector.load %arg4[%c0_4, %c0_5] : memref<384x512xbf16, #tpu.memory_space<vmem>>, vector<384x512xbf16>
    %cst = arith.constant dense<0.000000e+00> : vector<28x512xf32>
    %6 = tpu.matmul %4, %5, %cst {dimension_numbers = #tpu.dot_dimension_numbers<[1], [0], [0], [1], [0, 0, 1, 1], [], []>} : vector<28x384xbf16>, vector<384x512xbf16>, vector<28x512xf32> -> vector<28x512xf32>
    %7 = arith.addf %3, %6 : vector<28x512xf32>
    %c0_6 = arith.constant 0 : index
    %c0_7 = arith.constant 0 : index
    %8 = vector.load %arg9[%c0_6, %c0_7] : memref<28x512xf32, #tpu.memory_space<vmem>>, vector<28x512xf32>
    tpu.vector_store %arg9[%c0_6, %c0_7], %7 {strides = array<i32>} : memref<28x512xf32, #tpu.memory_space<vmem>>, vector<28x512xf32>,
    %c1_i32 = arith.constant 1 : i32
    %9 = arith.cmpi eq, %arg2, %c1_i32 : i32
    %10 = arith.extui %9 : i1 to i32
    %c0_i32_8 = arith.constant 0 : i32
    %11 = arith.cmpi ne, %10, %c0_i32_8 : i32
    scf.if %11 {
      %c0_9 = arith.constant 0 : index
      %c0_10 = arith.constant 0 : index
      %12 = vector.load %arg9[%c0_9, %c0_10] : memref<28x512xf32, #tpu.memory_space<vmem>>, vector<28x512xf32>
      %c0_11 = arith.constant 0 : index
      %c0_12 = arith.constant 0 : index
      %13 = vector.load %arg5[%c0_11, %c0_12] : memref<1x512xf32, #tpu.memory_space<vmem>>, vector<1x512xf32>
      %14 = vector.broadcast %13 : vector<1x512xf32> to vector<28x512xf32>
      %15 = arith.addf %12, %14 : vector<28x512xf32>
      %cst_13 = arith.constant 0.000000e+00 : f32
      %16 = vector.broadcast %cst_13 : f32 to vector<28x512xf32>
      %17 = arith.maximumf %15, %16 : vector<28x512xf32>
      %c0_14 = arith.constant 0 : index
      %c0_15 = arith.constant 0 : index
      %18 = vector.load %arg6[%c0_14, %c0_15] : memref<1x512xf32, #tpu.memory_space<vmem>>, vector<1x512xf32>
      %19 = vector.broadcast %18 : vector<1x512xf32> to vector<28x512xf32>
      %20 = arith.mulf %17, %19 : vector<28x512xf32>
      %c0_16 = arith.constant 0 : index
      %c0_17 = arith.constant 0 : index
      %21 = vector.load %arg7[%c0_16, %c0_17] : memref<1x512xf32, #tpu.memory_space<vmem>>, vector<1x512xf32>
      %22 = vector.broadcast %21 : vector<1x512xf32> to vector<28x512xf32>
      %23 = arith.addf %20, %22 : vector<28x512xf32>
      %24 = arith.truncf %23 : vector<28x512xf32> to vector<28x512xbf16>
      %c0_18 = arith.constant 0 : index
      %c0_19 = arith.constant 0 : index
      %25 = vector.load %arg8[%c0_18, %c0_19] : memref<28x512xbf16, #tpu.memory_space<vmem>>, vector<28x512xbf16>
      tpu.vector_store %arg8[%c0_18, %c0_19], %24 {strides = array<i32>} : memref<28x512xbf16, #tpu.memory_space<vmem>>, vector<28x512xbf16>,
    } else {
    }
    return
  }
  func.func @transform_0(%arg0: i32, %arg1: i32, %arg2: i32) -> (i32, i32) {
    %c0_i32 = arith.constant 0 : i32
    return %arg0, %arg2 : i32, i32
  }
  func.func @transform_1(%arg0: i32, %arg1: i32, %arg2: i32) -> (i32, i32) {
    %c0_i32 = arith.constant 0 : i32
    return %arg2, %arg1 : i32, i32
  }
  func.func @transform_2(%arg0: i32, %arg1: i32, %arg2: i32) -> (i32, i32) {
    %c0_i32 = arith.constant 0 : i32
    %c0_i32_0 = arith.constant 0 : i32
    return %c0_i32, %arg1 : i32, i32
  }
  func.func @transform_3(%arg0: i32, %arg1: i32, %arg2: i32) -> (i32, i32) {
    %c0_i32 = arith.constant 0 : i32
    %c0_i32_0 = arith.constant 0 : i32
    return %c0_i32, %arg1 : i32, i32
  }
  func.func @transform_4(%arg0: i32, %arg1: i32, %arg2: i32) -> (i32, i32) {
    %c0_i32 = arith.constant 0 : i32
    %c0_i32_0 = arith.constant 0 : i32
    return %c0_i32, %arg1 : i32, i32
  }
  func.func @transform_5(%arg0: i32, %arg1: i32, %arg2: i32) -> (i32, i32) {
    %c0_i32 = arith.constant 0 : i32
    return %arg0, %arg1 : i32, i32
  }
}

module attributes {stable_mosaic.version = 11 : i64} {
  func.func @_conv_pool_cls_kernel(%arg0: i32, %arg1: memref<28x512xbf16, #tpu.memory_space<vmem>>, %arg2: memref<512x1024xbf16, #tpu.memory_space<vmem>>, %arg3: memref<1x1024xf32, #tpu.memory_space<vmem>>, %arg4: memref<2x28xf32, #tpu.memory_space<vmem>>, %arg5: memref<1024x3xf32, #tpu.memory_space<vmem>>, %arg6: memref<1x3xf32, #tpu.memory_space<vmem>>, %arg7: memref<2x3xf32, #tpu.memory_space<vmem>>, %arg8: memref<28x1024xf32, #tpu.memory_space<vmem>>) attributes {dimension_semantics = [#tpu.dimension_semantics<arbitrary>], iteration_bounds = array<i64: 3>, scalar_prefetch = 0 : i64, scratch_operands = 1 : i64, tpu.core_type = #tpu.core_type<tc>, window_params = [{transform_indices = @transform_0, window_bounds = array<i64: 28, 512>}, {transform_indices = @transform_1, window_bounds = array<i64: 512, 1024>}, {pipeline_mode = #tpu.pipeline_mode<synchronous>, transform_indices = @transform_2, window_bounds = array<i64: 1, 1024>}, {pipeline_mode = #tpu.pipeline_mode<synchronous>, transform_indices = @transform_3, window_bounds = array<i64: 2, 28>}, {pipeline_mode = #tpu.pipeline_mode<synchronous>, transform_indices = @transform_4, window_bounds = array<i64: 1024, 3>}, {pipeline_mode = #tpu.pipeline_mode<synchronous>, transform_indices = @transform_5, window_bounds = array<i64: 1, 3>}, {pipeline_mode = #tpu.pipeline_mode<synchronous>, transform_indices = @transform_6, window_bounds = array<i64: 2, 3>}]} {
    %c0_i32 = arith.constant 0 : i32
    %0 = arith.cmpi eq, %arg0, %c0_i32 : i32
    %1 = arith.extui %0 : i1 to i32
    %c0_i32_0 = arith.constant 0 : i32
    %2 = arith.cmpi ne, %1, %c0_i32_0 : i32
    scf.if %2 {
      %cst_9 = arith.constant 0.000000e+00 : f32
      %12 = vector.broadcast %cst_9 : f32 to vector<28x1024xf32>
      %c0_10 = arith.constant 0 : index
      %c0_11 = arith.constant 0 : index
      %13 = vector.load %arg8[%c0_10, %c0_11] : memref<28x1024xf32, #tpu.memory_space<vmem>>, vector<28x1024xf32>
      tpu.vector_store %arg8[%c0_10, %c0_11], %12 {strides = array<i32>} : memref<28x1024xf32, #tpu.memory_space<vmem>>, vector<28x1024xf32>,
    } else {
    }
    %c0 = arith.constant 0 : index
    %c0_1 = arith.constant 0 : index
    %3 = vector.load %arg8[%c0, %c0_1] : memref<28x1024xf32, #tpu.memory_space<vmem>>, vector<28x1024xf32>
    %c0_2 = arith.constant 0 : index
    %c0_3 = arith.constant 0 : index
    %4 = vector.load %arg1[%c0_2, %c0_3] : memref<28x512xbf16, #tpu.memory_space<vmem>>, vector<28x512xbf16>
    %c0_4 = arith.constant 0 : index
    %c0_5 = arith.constant 0 : index
    %5 = vector.load %arg2[%c0_4, %c0_5] : memref<512x1024xbf16, #tpu.memory_space<vmem>>, vector<512x1024xbf16>
    %cst = arith.constant dense<0.000000e+00> : vector<28x1024xf32>
    %6 = tpu.matmul %4, %5, %cst {dimension_numbers = #tpu.dot_dimension_numbers<[1], [0], [0], [1], [0, 0, 1, 1], [], []>} : vector<28x512xbf16>, vector<512x1024xbf16>, vector<28x1024xf32> -> vector<28x1024xf32>
    %7 = arith.addf %3, %6 : vector<28x1024xf32>
    %c0_6 = arith.constant 0 : index
    %c0_7 = arith.constant 0 : index
    %8 = vector.load %arg8[%c0_6, %c0_7] : memref<28x1024xf32, #tpu.memory_space<vmem>>, vector<28x1024xf32>
    tpu.vector_store %arg8[%c0_6, %c0_7], %7 {strides = array<i32>} : memref<28x1024xf32, #tpu.memory_space<vmem>>, vector<28x1024xf32>,
    %c2_i32 = arith.constant 2 : i32
    %9 = arith.cmpi eq, %arg0, %c2_i32 : i32
    %10 = arith.extui %9 : i1 to i32
    %c0_i32_8 = arith.constant 0 : i32
    %11 = arith.cmpi ne, %10, %c0_i32_8 : i32
    scf.if %11 {
      %c0_9 = arith.constant 0 : index
      %c0_10 = arith.constant 0 : index
      %12 = vector.load %arg8[%c0_9, %c0_10] : memref<28x1024xf32, #tpu.memory_space<vmem>>, vector<28x1024xf32>
      %c0_11 = arith.constant 0 : index
      %c0_12 = arith.constant 0 : index
      %13 = vector.load %arg3[%c0_11, %c0_12] : memref<1x1024xf32, #tpu.memory_space<vmem>>, vector<1x1024xf32>
      %14 = vector.broadcast %13 : vector<1x1024xf32> to vector<28x1024xf32>
      %15 = arith.addf %12, %14 : vector<28x1024xf32>
      %cst_13 = arith.constant 0.000000e+00 : f32
      %16 = vector.broadcast %cst_13 : f32 to vector<28x1024xf32>
      %17 = arith.maximumf %15, %16 : vector<28x1024xf32>
      %c0_14 = arith.constant 0 : index
      %c0_15 = arith.constant 0 : index
      %18 = vector.load %arg4[%c0_14, %c0_15] : memref<2x28xf32, #tpu.memory_space<vmem>>, vector<2x28xf32>
      %cst_16 = arith.constant dense<0.000000e+00> : vector<2x1024xf32>
      %19 = tpu.matmul %18, %17, %cst_16 {dimension_numbers = #tpu.dot_dimension_numbers<[1], [0], [0], [1], [0, 0, 1, 1], [], []>} : vector<2x28xf32>, vector<28x1024xf32>, vector<2x1024xf32> -> vector<2x1024xf32>
      %c0_17 = arith.constant 0 : index
      %c0_18 = arith.constant 0 : index
      %20 = vector.load %arg5[%c0_17, %c0_18] : memref<1024x3xf32, #tpu.memory_space<vmem>>, vector<1024x3xf32>
      %cst_19 = arith.constant dense<0.000000e+00> : vector<2x3xf32>
      %21 = tpu.matmul %19, %20, %cst_19 {dimension_numbers = #tpu.dot_dimension_numbers<[1], [0], [0], [1], [0, 0, 1, 1], [], []>} : vector<2x1024xf32>, vector<1024x3xf32>, vector<2x3xf32> -> vector<2x3xf32>
      %c0_20 = arith.constant 0 : index
      %c0_21 = arith.constant 0 : index
      %22 = vector.load %arg6[%c0_20, %c0_21] : memref<1x3xf32, #tpu.memory_space<vmem>>, vector<1x3xf32>
      %23 = vector.broadcast %22 : vector<1x3xf32> to vector<2x3xf32>
      %24 = arith.addf %21, %23 : vector<2x3xf32>
      %c0_22 = arith.constant 0 : index
      %c0_23 = arith.constant 0 : index
      %25 = vector.load %arg7[%c0_22, %c0_23] : memref<2x3xf32, #tpu.memory_space<vmem>>, vector<2x3xf32>
      tpu.vector_store %arg7[%c0_22, %c0_23], %24 {strides = array<i32>} : memref<2x3xf32, #tpu.memory_space<vmem>>, vector<2x3xf32>,
    } else {
    }
    return
  }
  func.func @transform_0(%arg0: i32) -> (i32, i32) {
    %c0_i32 = arith.constant 0 : i32
    %c0_i32_0 = arith.constant 0 : i32
    return %c0_i32, %arg0 : i32, i32
  }
  func.func @transform_1(%arg0: i32) -> (i32, i32) {
    %c0_i32 = arith.constant 0 : i32
    %c0_i32_0 = arith.constant 0 : i32
    return %arg0, %c0_i32 : i32, i32
  }
  func.func @transform_2(%arg0: i32) -> (i32, i32) {
    %c0_i32 = arith.constant 0 : i32
    %c0_i32_0 = arith.constant 0 : i32
    %c0_i32_1 = arith.constant 0 : i32
    return %c0_i32, %c0_i32_0 : i32, i32
  }
  func.func @transform_3(%arg0: i32) -> (i32, i32) {
    %c0_i32 = arith.constant 0 : i32
    %c0_i32_0 = arith.constant 0 : i32
    %c0_i32_1 = arith.constant 0 : i32
    return %c0_i32, %c0_i32_0 : i32, i32
  }
  func.func @transform_4(%arg0: i32) -> (i32, i32) {
    %c0_i32 = arith.constant 0 : i32
    %c0_i32_0 = arith.constant 0 : i32
    %c0_i32_1 = arith.constant 0 : i32
    return %c0_i32, %c0_i32_0 : i32, i32
  }
  func.func @transform_5(%arg0: i32) -> (i32, i32) {
    %c0_i32 = arith.constant 0 : i32
    %c0_i32_0 = arith.constant 0 : i32
    %c0_i32_1 = arith.constant 0 : i32
    return %c0_i32, %c0_i32_0 : i32, i32
  }
  func.func @transform_6(%arg0: i32) -> (i32, i32) {
    %c0_i32 = arith.constant 0 : i32
    %c0_i32_0 = arith.constant 0 : i32
    %c0_i32_1 = arith.constant 0 : i32
    return %c0_i32, %c0_i32_0 : i32, i32
  }
}

</mosaic_0001>

<llo_original>
// kernel: completenn_forward.6
$region0: #{completenn_forward.6}
  #allocation0 [shape = 'u32[]', space=smem, size = 0x4, offset = 0x4, fixed_abs, tag = 'smem constant byte address 0x4 - core index']
  #allocation1 [shape = 'u32[144,128]{1,0:T(1,128)}', space=vmem, size = 0x12000, scoped, tag = 'internal scratch']
  #allocation2 [shape = 'f32[2,192]{1,0:T(2,128)}', space=vmem, size = 0x800, scoped, tag = 'scratch operand']
  %s0 = inlined_call_operand.vmem [shape: bf16[2,32], index: 0, kind: input, shape index: {}]
  %s1 = inlined_call_operand.vmem [shape: bf16[32,192], index: 1, kind: input, shape index: {}]
  %s2 = inlined_call_operand.vmem [shape: f32[1,192], index: 2, kind: input, shape index: {}]
  %s3 = inlined_call_operand.vmem [shape: bf16[2,192], index: 3, kind: output, shape index: {}]
  %s4 = sld [smem:[#allocation0]]
  $region30: #{completenn_forward.6} parent=0
    _
  %s6 = ssub.s32 1, %s4
  %s7 = scalar_select 0, %s6, %s4
  // Predicated region
  $region2: #{completenn_forward.6} parent=0 // pred_check
    _
  $region3: #{completenn_forward.6} parent=0 // pred_check_branch
    %9 = sbr.rel (0) target = $region5
  $region4: #{completenn_forward.6} parent=0 // pred_region
    _
  $region5: #{completenn_forward.6} parent=0 // pred_fallthru
    _
  // Predicated region
  $region6: #{completenn_forward.6} parent=0 // pred_check
    _
  $region7: #{completenn_forward.6} parent=0 // pred_check_branch
    %11 = sbr.rel (0) target = $region9
  $region8: #{completenn_forward.6} parent=0 // pred_region
    _
  $region9: #{completenn_forward.6} parent=0 // pred_fallthru
    _
  // Predicated region
  $region10: #{completenn_forward.6} parent=0 // pred_check
    _
  $region11: #{completenn_forward.6} parent=0 // pred_check_branch
    %13 = sbr.rel (0) target = $region13
  $region12: #{completenn_forward.6} parent=0 // pred_region
    _
  $region13: #{completenn_forward.6} parent=0 // pred_fallthru
    _
  %p15 = scmp.eq.s32.totalorder 0, 0
  // Predicated region
  $region14: #{completenn_forward.6} parent=0 // pred_check
    %p16 = pneg %p15
  $region15: #{completenn_forward.6} parent=0 // pred_check_branch
    %18 = sbr.rel (%p16) target = $region17
  $region16: #{completenn_forward.6} parent=0 // pred_region
    %vm19 = vcmask 1041408
    %vm20 = vcmask 519170
    %vm21 = vmor %vm20, %vm19
    %22 = vst.msk [vmem:[#allocation2] sm:$0xf] %vm21, 0.0
  $region17: #{completenn_forward.6} parent=0 // pred_fallthru
    _
  %v23 = vld [vmem:[#allocation2] sm:$0xf]
  %v24 = vld [vmem:[%s0] sm:$0x1]
  %v25 = vld [vmem:[%s1] sm:$0xff]
  %v26 = vld [vmem:[%s1 + $0x8] sm:$0xff]
  %v27 = vld [vmem:[%s1 + $0x10] sm:$0xff]
  %v28 = vld [vmem:[%s1 + $0x18] sm:$0xff]
  %v33 = vunpack.c.l.b16 %v25
  %v34 = vunpack.c.h.b16 %v25
  %v35 = vunpack.c.l.b16 %v26
  %v36 = vunpack.c.h.b16 %v26
  %v37 = vunpack.c.l.b16 %v27
  %v38 = vunpack.c.h.b16 %v27
  %v39 = vunpack.c.l.b16 %v28
  %v40 = vunpack.c.h.b16 %v28
  %v41 = vpack.c.b16 %v35, %v33
  %v42 = vpack.c.b16 %v36, %v34
  %v43 = vpack.c.b16 %v39, %v37
  %v44 = vpack.c.b16 %v40, %v38
  %vm49 = vcmask 261120
  %v51 = vsel %vm49, %v24, 0
  %53 = vmatprep.subr.bf16.mxu0 %v42
  %54 = vmatpush1.bf16.msra.mxu0 %v41
  %55 = vmatprep.subr.bf16.mxu0 %v44
  %56 = vmatpush1.bf16.msra.mxu0 %v43
  %57 = vmatprep.subr.bf16.mxu0 0
  %58 = vmatpush1.bf16.msra.mxu0 0
  %59 = vmatprep.subr.bf16.mxu0 0
  %60 = vmatpush1.bf16.msra.mxu0 0
  %61 = vmatprep.subr.bf16.mxu0 0
  %62 = vmatpush1.bf16.msra.mxu0 0
  %63 = vmatprep.subr.bf16.mxu0 0
  %64 = vmatpush1.bf16.msra.mxu0 0
  %65 = vmatprep.subr.bf16.mxu0 0
  %66 = vmatpush1.bf16.msra.mxu0 0
  %67 = vmatprep.subr.bf16.mxu0 0
  %68 = vmatpush1.bf16.msra.mxu0 0
  %69 = vmatprep.subr.bf16.mxu0 0
  %70 = vmatpush1.bf16.msra.mxu0 0
  %71 = vmatprep.subr.bf16.mxu0 0
  %72 = vmatpush1.bf16.msra.mxu0 0
  %73 = vmatprep.subr.bf16.mxu0 0
  %74 = vmatpush1.bf16.msra.mxu0 0
  %75 = vmatprep.subr.bf16.mxu0 0
  %76 = vmatpush1.bf16.msra.mxu0 0
  %77 = vmatprep.subr.bf16.mxu0 0
  %78 = vmatpush1.bf16.msra.mxu0 0
  %79 = vmatprep.subr.bf16.mxu0 0
  %80 = vmatpush1.bf16.msra.mxu0 0
  %81 = vmatprep.subr.bf16.mxu0 0
  %82 = vmatpush1.bf16.msra.mxu0 0
  %83 = vmatprep.subr.bf16.mxu0 0
  %84 = vmatpush1.bf16.msra.mxu0 0
  %85 = vmatprep.mubr.bf16.mxu0 0
  %86 = vmatmul.mubr.bf16.gmra.mrb[0].mxu0 %v51
  %v87 = vpop.f32.mrb[0].mxu0
  %v88 = vadd.f32 0.0, %v87
  %v89 = vpop.f32.mrb[0].mxu0
  %v90 = vadd.f32 0.0, %v89
  %v91 = vpop.f32.mrb[0].mxu0
  %v92 = vpop.f32.mrb[0].mxu0
  %93 = vdwg.mxu0
  %v96 = vcombine.low %v88, %v90
  %v98 = vunpack.c.l.s4 1983009808
  %v99 = vunpack.c.0.s8 %v98
  %v100 = vlaneseq
  %v101 = vshrl.u32 %v100, 7
  %v102 = vsub.s32 %v99, %v101
  %v103 = vrot.slane %v96, %v102
  %v105 = vadd.f32 %v23, %v103
  %vm106 = vcmask 1041408
  %vm107 = vcmask 519170
  %vm108 = vmor %vm107, %vm106
  %109 = vst.msk [vmem:[#allocation2] sm:$0xf] %vm108, %v105
  // Predicated region
  $region18: #{completenn_forward.6} parent=0 // pred_check
    %p110 = pneg %p15
  $region19: #{completenn_forward.6} parent=0 // pred_check_branch
    %112 = sbr.rel (%p110) target = $region21
  $region20: #{completenn_forward.6} parent=0 // pred_region
    %v113 = vld [vmem:[#allocation2] sm:$0xf]
    %v114 = vld [vmem:[%s2] sm:$0x3]
    %v116 = vlaneseq
    %v117 = vshrl.u32 %v116, 7
    %v118 = vsub.s32 0, %v117
    %v119 = vrot.slane %v114, %v118
    %v120 = vlaneseq
    %v121 = vshrl.u32 %v120, 7
    %v122 = vsub.s32 1, %v121
    %v123 = vrot.slane %v114, %v122
    %v124 = vcombine.low %v119, %v123
    %v126 = vunpack.c.l.s4 1983009808
    %v127 = vunpack.c.0.s8 %v126
    %v128 = vlaneseq
    %v129 = vshrl.u32 %v128, 7
    %v130 = vsub.s32 %v127, %v129
    %v131 = vrot.slane %v124, %v130
    %v133 = vadd.f32 %v113, %v131
    %v136 = vunpack.c.l.s4 1983009808
    %v137 = vunpack.c.0.s8 %v136
    %v138 = vlaneseq
    %v139 = vshrl.u32 %v138, 7
    %v140 = vsub.s32 %v137, %v139
    %v141 = vrot.slane %v133, %v140
    %v142 = vcombine.high %v141, %v141
    %v145 = vpack.c.bf16 %v141, %v141
    %v146 = vpack.c.bf16 %v142, %v142
    %v149 = vcombine.low %v145, %v146
    %v151 = vunpack.c.l.s4 1966171168
    %v152 = vunpack.c.0.s8 %v151
    %v153 = vlaneseq
    %v154 = vshrl.u32 %v153, 7
    %v155 = vsub.s32 %v152, %v154
    %v156 = vrot.slane %v149, %v155
    %v158 = vunpack.c.l.s4 1966171168
    %v159 = vunpack.c.0.s8 %v158
    %v160 = vlaneseq
    %v161 = vshrl.u32 %v160, 7
    %v162 = vsub.s32 %v159, %v161
    %v163 = vrot.slane %v156, %v162
    %vm165 = vcmask 1040384
    %vm166 = vcmask 517121
    %vm167 = vmor %vm166, %vm165
    %168 = vst.msk [vmem:[%s3] sm:$0x3] %vm167, %v163
  $region21: #{completenn_forward.6} parent=0 // pred_fallthru
    _
  // Predicated region
  $region22: #{completenn_forward.6} parent=0 // pred_check
    _
  $region23: #{completenn_forward.6} parent=0 // pred_check_branch
    %170 = sbr.rel (0) target = $region25
  $region24: #{completenn_forward.6} parent=0 // pred_region
    _
  $region25: #{completenn_forward.6} parent=0 // pred_fallthru
    _
  // Predicated region
  $region26: #{completenn_forward.6} parent=0 // pred_check
    _
  $region27: #{completenn_forward.6} parent=0 // pred_check_branch
    %172 = sbr.rel (0) target = $region29
  $region28: #{completenn_forward.6} parent=0 // pred_region
    _
  $region29: #{completenn_forward.6} parent=0 // pred_fallthru
    _

// kernel: completenn_forward.8
$region0: #{completenn_forward.8}
  #allocation0 [shape = 'u32[]', space=smem, size = 0x4, offset = 0x4, fixed_abs, tag = 'smem constant byte address 0x4 - core index']
  #allocation1 [shape = 'u32[144,128]{1,0:T(1,128)}', space=vmem, size = 0x12000, scoped, tag = 'internal scratch']
  #allocation2 [shape = 'f32[28,128]{1,0:T(8,128)}', space=vmem, size = 0x4000, scoped, tag = 'scratch operand']
  %s0 = inlined_call_operand.vmem [shape: bf16[28,640], index: 0, kind: input, shape index: {}]
  %s1 = inlined_call_operand.vmem [shape: bf16[640,128], index: 1, kind: input, shape index: {}]
  %s2 = inlined_call_operand.vmem [shape: f32[1,128], index: 2, kind: input, shape index: {}]
  %s3 = inlined_call_operand.vmem [shape: f32[1,128], index: 3, kind: input, shape index: {}]
  %s4 = inlined_call_operand.vmem [shape: f32[1,128], index: 4, kind: input, shape index: {}]
  %s5 = inlined_call_operand.vmem [shape: bf16[28,128], index: 5, kind: output, shape index: {}]
  %s6 = sld [smem:[#allocation0]]
  $region102: #{completenn_forward.8} parent=0
    _
  %s8 = ssub.s32 1, %s6
  %s9 = scalar_select 0, %s8, %s6
  $region1: #{completenn_forward.8} parent=0
    #allocation3 [shape = 'u8[16384]{0}', space=vmem, size = 0x4000, scoped, tag = 'input window, operand 0']
    loop: start=0, step=1, limit=7
    $region2: #{completenn_forward.8} parent=1 // loop_pre_header
      _
    $region3: #{completenn_forward.8} parent=1 // loop_header
      %s11 = sphi 0, %s15
      %p12 = scmp.ge.s32.totalorder %s11, 7
      %s18 = sphi 0, %s37
      %s19 = sphi 0, %s33
      %s20 = sphi 0, %s29
      %s21 = sphi 0, %s18
      %s22 = sphi 0, %s19
      %s23 = sphi 0, %s20
      %s24 = sphi 0, %s21
      %s25 = sphi 0, %s22
      %s26 = sphi 0, %s23
      %s42 = sphi 0, %s44
      %s45 = sphi 0, %s42
      %s46 = sphi 0, %s45
      %s62 = sphi 0, %s46
      %s70 = sphi 0, %s72
      %s73 = sphi 0, %s70
      %s74 = sphi 0, %s73
      %s90 = sphi 0, %s74
      %s96 = sphi 0, %s98
      %s99 = sphi 0, %s96
      %s100 = sphi 0, %s99
      %s116 = sphi 0, %s100
      %s122 = sphi 0, %s124
      %s125 = sphi 0, %s122
      %s126 = sphi 0, %s125
      %s142 = sphi 0, %s126
      %s148 = sphi 0, %s150
      %s151 = sphi 0, %s148
      %s152 = sphi 0, %s151
      %s168 = sphi 0, %s152
      %s176 = sphi 0, %s178
      %s179 = sphi 0, %s176
      %s180 = sphi 0, %s179
      %s196 = sphi 0, %s180
    $region4: #{completenn_forward.8} parent=1 // loop_header_branch
      %14 = sbr.rel (%p12) target = $region8
    $region5: #{completenn_forward.8} parent=1 // loop_body
      %s16 = ssub.s32 %s11, 1
      %s17 = ssub.s32 %s11, 2
      %s27 = sadd.s32 1, %s20
      %p28 = scmp.ge.s32.totalorder %s27, 5
      %s29 = scalar_select %p28, 0, %s27
      %s30 = sadd.s32 1, %s19
      %s31 = scalar_select %p28, %s30, %s19
      %p32 = scmp.ge.s32.totalorder %s31, 1
      %s33 = scalar_select %p32, 0, %s31
      %s34 = sadd.s32 1, %s18
      %s35 = scalar_select %p32, %s34, %s18
      %p36 = scmp.ge.s32.totalorder %s35, 1
      %s37 = scalar_select %p36, 0, %s35
      %s38 = ssub.s32 %s18, %s37
      %s39 = ssub.s32 %s20, %s29
      %s40 = sor.u32 %s38, %s39
      %p41 = scmp.eq.s32.totalorder %s40, 0
      %s43 = sadd.s32 %s42, 1
      %s44 = scalar_select %p41, %s42, %s43
      %p47 = pneg %p41
      %p48 = scmp.eq.s32.totalorder %s11, 4
      %p49 = por %p47, %p48
      %p50 = scmp.ne.s32.totalorder %s42, %s45
      %p51 = scmp.eq.s32.totalorder %s11, 0
      %p52 = por %p50, %p51
      %p53 = scmp.ne.s32.totalorder %s42, %s45
      %p54 = scmp.eq.s32.totalorder %s16, 4
      %p55 = por %p53, %p54
      %p56 = scmp.ne.s32.totalorder %s45, %s46
      %p57 = scmp.eq.s32.totalorder %s16, 0
      %p58 = por %p56, %p57
      %p59 = scmp.ne.s32.totalorder %s45, %s46
      %p60 = scmp.eq.s32.totalorder %s17, 4
      %p61 = por %p59, %p60
      %p63 = scmp.ne.s32.totalorder %s46, %s62
      %p64 = scmp.eq.s32.totalorder %s17, 0
      %p65 = por %p63, %p64
      %s66 = ssub.s32 %s20, %s29
      %s67 = ssub.s32 %s19, %s33
      %s68 = sor.u32 %s66, %s67
      %p69 = scmp.eq.s32.totalorder %s68, 0
      %s71 = sadd.s32 %s70, 1
      %s72 = scalar_select %p69, %s70, %s71
      %p75 = pneg %p69
      %p76 = scmp.eq.s32.totalorder %s11, 4
      %p77 = por %p75, %p76
      %p78 = scmp.ne.s32.totalorder %s70, %s73
      %p79 = scmp.eq.s32.totalorder %s11, 0
      %p80 = por %p78, %p79
      %p81 = scmp.ne.s32.totalorder %s70, %s73
      %p82 = scmp.eq.s32.totalorder %s16, 4
      %p83 = por %p81, %p82
      %p84 = scmp.ne.s32.totalorder %s73, %s74
      %p85 = scmp.eq.s32.totalorder %s16, 0
      %p86 = por %p84, %p85
      %p87 = scmp.ne.s32.totalorder %s73, %s74
      %p88 = scmp.eq.s32.totalorder %s17, 4
      %p89 = por %p87, %p88
      %p91 = scmp.ne.s32.totalorder %s74, %s90
      %p92 = scmp.eq.s32.totalorder %s17, 0
      %p93 = por %p91, %p92
      %s94 = ssub.s32 %s19, %s33
      %p95 = scmp.eq.s32.totalorder %s94, 0
      %s97 = sadd.s32 %s96, 1
      %s98 = scalar_select %p95, %s96, %s97
      %p101 = pneg %p95
      %p102 = scmp.eq.s32.totalorder %s11, 4
      %p103 = por %p101, %p102
      %p104 = scmp.ne.s32.totalorder %s96, %s99
      %p105 = scmp.eq.s32.totalorder %s11, 0
      %p106 = por %p104, %p105
      %p107 = scmp.ne.s32.totalorder %s96, %s99
      %p108 = scmp.eq.s32.totalorder %s16, 4
      %p109 = por %p107, %p108
      %p110 = scmp.ne.s32.totalorder %s99, %s100
      %p111 = scmp.eq.s32.totalorder %s16, 0
      %p112 = por %p110, %p111
      %p113 = scmp.ne.s32.totalorder %s99, %s100
      %p114 = scmp.eq.s32.totalorder %s17, 4
      %p115 = por %p113, %p114
      %p117 = scmp.ne.s32.totalorder %s100, %s116
      %p118 = scmp.eq.s32.totalorder %s17, 0
      %p119 = por %p117, %p118
      %s120 = ssub.s32 %s19, %s33
      %p121 = scmp.eq.s32.totalorder %s120, 0
      %s123 = sadd.s32 %s122, 1
      %s124 = scalar_select %p121, %s122, %s123
      %p127 = pneg %p121
      %p128 = scmp.eq.s32.totalorder %s11, 4
      %p129 = por %p127, %p128
      %p130 = scmp.ne.s32.totalorder %s122, %s125
      %p131 = scmp.eq.s32.totalorder %s11, 0
      %p132 = por %p130, %p131
      %p133 = scmp.ne.s32.totalorder %s122, %s125
      %p134 = scmp.eq.s32.totalorder %s16, 4
      %p135 = por %p133, %p134
      %p136 = scmp.ne.s32.totalorder %s125, %s126
      %p137 = scmp.eq.s32.totalorder %s16, 0
      %p138 = por %p136, %p137
      %p139 = scmp.ne.s32.totalorder %s125, %s126
      %p140 = scmp.eq.s32.totalorder %s17, 4
      %p141 = por %p139, %p140
      %p143 = scmp.ne.s32.totalorder %s126, %s142
      %p144 = scmp.eq.s32.totalorder %s17, 0
      %p145 = por %p143, %p144
      %s146 = ssub.s32 %s19, %s33
      %p147 = scmp.eq.s32.totalorder %s146, 0
      %s149 = sadd.s32 %s148, 1
      %s150 = scalar_select %p147, %s148, %s149
      %p153 = pneg %p147
      %p154 = scmp.eq.s32.totalorder %s11, 4
      %p155 = por %p153, %p154
      %p156 = scmp.ne.s32.totalorder %s148, %s151
      %p157 = scmp.eq.s32.totalorder %s11, 0
      %p158 = por %p156, %p157
      %p159 = scmp.ne.s32.totalorder %s148, %s151
      %p160 = scmp.eq.s32.totalorder %s16, 4
      %p161 = por %p159, %p160
      %p162 = scmp.ne.s32.totalorder %s151, %s152
      %p163 = scmp.eq.s32.totalorder %s16, 0
      %p164 = por %p162, %p163
      %p165 = scmp.ne.s32.totalorder %s151, %s152
      %p166 = scmp.eq.s32.totalorder %s17, 4
      %p167 = por %p165, %p166
      %p169 = scmp.ne.s32.totalorder %s152, %s168
      %p170 = scmp.eq.s32.totalorder %s17, 0
      %p171 = por %p169, %p170
      %s172 = ssub.s32 %s18, %s37
      %s173 = ssub.s32 %s19, %s33
      %s174 = sor.u32 %s172, %s173
      %p175 = scmp.eq.s32.totalorder %s174, 0
      %s177 = sadd.s32 %s176, 1
      %s178 = scalar_select %p175, %s176, %s177
      %p181 = pneg %p175
      %p182 = scmp.eq.s32.totalorder %s11, 4
      %p183 = por %p181, %p182
      %p184 = scmp.ne.s32.totalorder %s176, %s179
      %p185 = scmp.eq.s32.totalorder %s11, 0
      %p186 = por %p184, %p185
      %p187 = scmp.ne.s32.totalorder %s176, %s179
      %p188 = scmp.eq.s32.totalorder %s16, 4
      %p189 = por %p187, %p188
      %p190 = scmp.ne.s32.totalorder %s179, %s180
      %p191 = scmp.eq.s32.totalorder %s16, 0
      %p192 = por %p190, %p191
      %p193 = scmp.ne.s32.totalorder %s179, %s180
      %p194 = scmp.eq.s32.totalorder %s17, 4
      %p195 = por %p193, %p194
      %p197 = scmp.ne.s32.totalorder %s180, %s196
      %p198 = scmp.eq.s32.totalorder %s17, 0
      %p199 = por %p197, %p198
      %p200 = scmp.le.s32.totalorder 1, %s11
      %p201 = scmp.lt.s32.totalorder %s11, 6
      %p202 = pnand %p200, %p201
      %p203 = pneg %p202
      // Predicated region
      $region9: #{completenn_forward.8} parent=5 // pred_check
        _
      $region10: #{completenn_forward.8} parent=5 // pred_check_branch
        %205 = sbr.rel (%p202) target = $region12
      $region11: #{completenn_forward.8} parent=5 // pred_region
        %s206 = ssub.s32 %s11, 1
        // Predicated region
        $region13: #{completenn_forward.8} parent=11 // pred_check
          %p207 = pneg %p112
        $region14: #{completenn_forward.8} parent=11 // pred_check_branch
          %209 = sbr.rel (%p207) target = $region16
        $region15: #{completenn_forward.8} parent=11 // pred_region
          %p210 = scmp.lt.s32.totalorder %s22, 0
          %s211 = scalar_select %p210, %s22, 0
          %s212 = scalar_lea.vmem %s2, %s211
        $region16: #{completenn_forward.8} parent=11 // pred_fallthru
          _
        // Predicated region
        $region17: #{completenn_forward.8} parent=11 // pred_check
          %p213 = pneg %p138
        $region18: #{completenn_forward.8} parent=11 // pred_check_branch
          %215 = sbr.rel (%p213) target = $region20
        $region19: #{completenn_forward.8} parent=11 // pred_region
          %p216 = scmp.lt.s32.totalorder %s22, 0
          %s217 = scalar_select %p216, %s22, 0
          %s218 = scalar_lea.vmem %s3, %s217
        $region20: #{completenn_forward.8} parent=11 // pred_fallthru
          _
        // Predicated region
        $region21: #{completenn_forward.8} parent=11 // pred_check
          %p219 = pneg %p164
        $region22: #{completenn_forward.8} parent=11 // pred_check_branch
          %221 = sbr.rel (%p219) target = $region24
        $region23: #{completenn_forward.8} parent=11 // pred_region
          %p222 = scmp.lt.s32.totalorder %s22, 0
          %s223 = scalar_select %p222, %s22, 0
          %s224 = scalar_lea.vmem %s4, %s223
        $region24: #{completenn_forward.8} parent=11 // pred_fallthru
          _
      $region12: #{completenn_forward.8} parent=5 // pred_fallthru
        _
      %p225 = scmp.lt.s32.totalorder %s11, 5
      // Predicated region
      $region25: #{completenn_forward.8} parent=5 // pred_check
        %p226 = pneg %p225
      $region26: #{completenn_forward.8} parent=5 // pred_check_branch
        %228 = sbr.rel (%p226) target = $region28
      $region27: #{completenn_forward.8} parent=5 // pred_region
        // Predicated region
        $region29: #{completenn_forward.8} parent=27 // pred_check
          %p229 = pneg %p52
        $region30: #{completenn_forward.8} parent=27 // pred_check_branch
          %231 = sbr.rel (%p229) target = $region32
        $region31: #{completenn_forward.8} parent=27 // pred_region
          %s232 = sand.u32 %s42, 1
          %s233 = sand.u32 %s42, 1
          %s234 = smul.addr %s233, 16
          %s235 = scalar_lea.vmem [#allocation3], %s234
          %s236 = smul.u32 4, %s18
          %s237 = smul.addr %s236, 5
          %s238 = sadd.s32 %s20, %s237
          %s239 = smul.addr %s238, 4
          %s240 = scalar_lea.vmem %s0, %s239
          // Predicated region
          $region33: #{completenn_forward.8} parent=31 // pred_check
            _
          $region34: #{completenn_forward.8} parent=31 // pred_check_branch
            %242 = sbr.rel (0) target = $region36
          $region35: #{completenn_forward.8} parent=31 // pred_region
            // Predicated region
            $region37: #{completenn_forward.8} parent=35 // pred_check
              _
            $region38: #{completenn_forward.8} parent=35 // pred_check_branch
              %244 = sbr.rel target = $region40
            $region39: #{completenn_forward.8} parent=35 // pred_region
              // Predicated region
              $region52: #{completenn_forward.8} parent=39 // pred_check
                _
              $region53: #{completenn_forward.8} parent=39 // pred_check_branch
                %265 = sbr.rel (0) target = $region55
              $region54: #{completenn_forward.8} parent=39 // pred_region
                loop: start=0, step=1, limit=1
                $region56: #{completenn_forward.8} parent=54 // loop_pre_header
                  _
                $region57: #{completenn_forward.8} parent=54 // loop_header
                  %s267 = sphi 0, %s271
                  %p268 = scmp.ge.s32.totalorder %s267, 1
                  %s272 = sphi %s240, %s240
                  %s273 = sphi %s235, %s235
                $region58: #{completenn_forward.8} parent=54 // loop_header_branch
                  %270 = sbr.rel (%p268) target = $region62
                $region59: #{completenn_forward.8} parent=54 // loop_body
                  _
                $region60: #{completenn_forward.8} parent=54 // loop_footer
                  %s271 = sadd.s32 1, %s267
                $region61: #{completenn_forward.8} parent=54 // loop_footer_branch
                  %266 = sbr.rel target = $region57
                $region62: #{completenn_forward.8} parent=54 // loop_exit
                  _
                loop: start=0, step=1, limit=1
                $region63: #{completenn_forward.8} parent=54 // loop_pre_header
                  _
                $region64: #{completenn_forward.8} parent=54 // loop_header
                  %s276 = sphi 0, %s280
                  %p277 = scmp.ge.s32.totalorder %s276, 1
                  %s281 = sphi %s240, %s240
                  %s282 = sphi %s235, %s235
                $region65: #{completenn_forward.8} parent=54 // loop_header_branch
                  %279 = sbr.rel (%p277) target = $region69
                $region66: #{completenn_forward.8} parent=54 // loop_body
                  %v283 = vld [vmem:[%s281] sm:$0xf]
                  %284 = vst [vmem:[%s282] sm:$0xf] %v283
                  %v285 = vld [vmem:[%s281 + $0x14] sm:$0xf]
                  %286 = vst [vmem:[%s282 + $0x4] sm:$0xf] %v285
                  %v287 = vld [vmem:[%s281 + $0x28] sm:$0xf]
                  %288 = vst [vmem:[%s282 + $0x8] sm:$0xf] %v287
                  %v289 = vld [vmem:[%s281 + $0x3c] sm:$0xf]
                  %290 = vst [vmem:[%s282 + $0xc] sm:$0xf] %v289
                $region67: #{completenn_forward.8} parent=54 // loop_footer
                  %s280 = sadd.s32 1, %s276
                $region68: #{completenn_forward.8} parent=54 // loop_footer_branch
                  %275 = sbr.rel target = $region64
                $region69: #{completenn_forward.8} parent=54 // loop_exit
                  _
              $region55: #{completenn_forward.8} parent=39 // pred_fallthru
                _
            $region40: #{completenn_forward.8} parent=35 // pred_fallthru
              _
            // Predicated region
            $region41: #{completenn_forward.8} parent=35 // pred_check
              _
            $region42: #{completenn_forward.8} parent=35 // pred_check_branch
              %246 = sbr.rel (0) target = $region44
            $region43: #{completenn_forward.8} parent=35 // pred_region
              loop: start=0, step=1, limit=1
              $region45: #{completenn_forward.8} parent=43 // loop_pre_header
                _
              $region46: #{completenn_forward.8} parent=43 // loop_header
                %s249 = sphi 0, %s253
                %p250 = scmp.ge.s32.totalorder %s249, 1
                %s254 = sphi %s240, %s240
                %s255 = sphi %s235, %s235
              $region47: #{completenn_forward.8} parent=43 // loop_header_branch
                %252 = sbr.rel (%p250) target = $region51
              $region48: #{completenn_forward.8} parent=43 // loop_body
                %v256 = vld [vmem:[%s254] sm:$0xf]
                %257 = vst [vmem:[%s255] sm:$0xf] %v256
                %v258 = vld [vmem:[%s254 + $0x14] sm:$0xf]
                %259 = vst [vmem:[%s255 + $0x4] sm:$0xf] %v258
                %v260 = vld [vmem:[%s254 + $0x28] sm:$0xf]
                %261 = vst [vmem:[%s255 + $0x8] sm:$0xf] %v260
                %v262 = vld [vmem:[%s254 + $0x3c] sm:$0xf]
                %263 = vst [vmem:[%s255 + $0xc] sm:$0xf] %v262
              $region49: #{completenn_forward.8} parent=43 // loop_footer
                %s253 = sadd.s32 1, %s249
              $region50: #{completenn_forward.8} parent=43 // loop_footer_branch
                %248 = sbr.rel target = $region46
              $region51: #{completenn_forward.8} parent=43 // loop_exit
                _
            $region44: #{completenn_forward.8} parent=35 // pred_fallthru
              _
          $region36: #{completenn_forward.8} parent=31 // pred_fallthru
            _
          %291 = vnop
        $region32: #{completenn_forward.8} parent=27 // pred_fallthru
          _
        // Predicated region
        $region70: #{completenn_forward.8} parent=27 // pred_check
          %p292 = pneg %p80
        $region71: #{completenn_forward.8} parent=27 // pred_check_branch
          %294 = sbr.rel (%p292) target = $region73
        $region72: #{completenn_forward.8} parent=27 // pred_region
          %s295 = smul.u32 16, %s20
          %p296 = scmp.lt.s32.totalorder %s295, 79
          %s297 = scalar_select %p296, %s295, 79
          %p298 = scmp.lt.s32.totalorder %s19, 0
          %s299 = scalar_select %p298, %s19, 0
          %s300 = sadd.s32 %s299, %s297
          %s301 = smul.addr %s300, 4
          %s302 = scalar_lea.vmem %s1, %s301
          %s303 = smul.u32 16, %s20
        $region73: #{completenn_forward.8} parent=27 // pred_fallthru
          _
      $region28: #{completenn_forward.8} parent=5 // pred_fallthru
        _
      %p304 = scmp.le.s32.totalorder 1, %s11
      %p305 = scmp.lt.s32.totalorder %s11, 6
      %p306 = pnand %p304, %p305
      %p307 = pneg %p306
      // Predicated region
      $region74: #{completenn_forward.8} parent=5 // pred_check
        _
      $region75: #{completenn_forward.8} parent=5 // pred_check_branch
        %309 = sbr.rel (%p306) target = $region77
      $region76: #{completenn_forward.8} parent=5 // pred_region
        %s310 = ssub.s32 %s11, 1
        %s311 = sand.u32 %s45, 1
        %s312 = sand.u32 %s45, 1
        %s313 = smul.addr %s312, 16
        %s314 = scalar_lea.vmem [#allocation3], %s313
        // Predicated region
        $region78: #{completenn_forward.8} parent=76 // pred_check
          %p315 = pneg %p58
        $region79: #{completenn_forward.8} parent=76 // pred_check_branch
          %317 = sbr.rel (%p315) target = $region81
        $region80: #{completenn_forward.8} parent=76 // pred_region
          _
        $region81: #{completenn_forward.8} parent=76 // pred_fallthru
          _
        %s318 = sand.u32 %s45, 1
        %s319 = sand.u32 %s45, 1
        %s320 = smul.addr %s319, 16
        %s321 = scalar_lea.vmem [#allocation3], %s320
        %p322 = pneg %p58
        %p323 = pneg %p55
        %s324 = smul.u32 16, %s23
        %p325 = scmp.lt.s32.totalorder %s324, 79
        %s326 = scalar_select %p325, %s324, 79
        %p327 = scmp.lt.s32.totalorder %s22, 0
        %s328 = scalar_select %p327, %s22, 0
        %s329 = sadd.s32 %s328, %s326
        %s330 = smul.addr %s329, 4
        %s331 = scalar_lea.vmem %s1, %s330
        %p332 = pneg %p86
        %p333 = pneg %p83
        %p334 = scmp.lt.s32.totalorder %s22, 0
        %s335 = scalar_select %p334, %s22, 0
        %s336 = scalar_lea.vmem %s2, %s335
        %p337 = pneg %p112
        %p338 = pneg %p109
        %p339 = scmp.lt.s32.totalorder %s22, 0
        %s340 = scalar_select %p339, %s22, 0
        %s341 = scalar_lea.vmem %s3, %s340
        %p342 = pneg %p138
        %p343 = pneg %p135
        %p344 = scmp.lt.s32.totalorder %s22, 0
        %s345 = scalar_select %p344, %s22, 0
        %s346 = scalar_lea.vmem %s4, %s345
        %p347 = pneg %p164
        %p348 = pneg %p161
        %p349 = pneg %p192
        %p350 = pneg %p189
        %s351 = smul.u32 4, %s21
        %p352 = scmp.lt.s32.totalorder %s351, 3
        %s353 = scalar_select %p352, %s351, 3
        %p354 = scmp.lt.s32.totalorder %s22, 0
        %s355 = scalar_select %p354, %s22, 0
        %s356 = sadd.s32 %s355, %s353
        %s357 = smul.addr %s356, 4
        %s358 = scalar_lea.vmem %s5, %s357
        %s359 = smul.u32 4, %s21
        %s360 = smul.u32 16, %s23
        %p361 = scmp.lt.s32.totalorder %s360, 79
        %s362 = scalar_select %p361, %s360, 79
        %p363 = scmp.lt.s32.totalorder %s22, 0
        %s364 = scalar_select %p363, %s22, 0
        %s365 = sadd.s32 %s364, %s362
        %s366 = smul.addr %s365, 4
        %s367 = scalar_lea.vmem %s1, %s366
        %s368 = smul.u32 16, %s23
        %p369 = scmp.lt.s32.totalorder %s22, 0
        %s370 = scalar_select %p369, %s22, 0
        %s371 = scalar_lea.vmem %s2, %s370
        %p372 = scmp.lt.s32.totalorder %s22, 0
        %s373 = scalar_select %p372, %s22, 0
        %s374 = scalar_lea.vmem %s3, %s373
        %p375 = scmp.lt.s32.totalorder %s22, 0
        %s376 = scalar_select %p375, %s22, 0
        %s377 = scalar_lea.vmem %s4, %s376
        %s378 = smul.u32 4, %s21
        %p379 = scmp.lt.s32.totalorder %s378, 3
        %s380 = scalar_select %p379, %s378, 3
        %p381 = scmp.lt.s32.totalorder %s22, 0
        %s382 = scalar_select %p381, %s22, 0
        %s383 = sadd.s32 %s382, %s380
        %s384 = smul.addr %s383, 4
        %s385 = scalar_lea.vmem %s5, %s384
        %s386 = smul.u32 4, %s21
        %p388 = scmp.eq.s32.totalorder %s23, 0
        // Predicated region
        $region82: #{completenn_forward.8} parent=76 // pred_check
          %p389 = pneg %p388
        $region83: #{completenn_forward.8} parent=76 // pred_check_branch
          %391 = sbr.rel (%p389) target = $region85
        $region84: #{completenn_forward.8} parent=76 // pred_region
          %392 = vst [vmem:[#allocation2] sm:$0xff] 0.0
          %393 = vst [vmem:[#allocation2 + $0x8] sm:$0xff] 0.0
          %394 = vst [vmem:[#allocation2 + $0x10] sm:$0xff] 0.0
          %395 = vst [vmem:[#allocation2 + $0x18] sm:$0xf] 0.0
        $region85: #{completenn_forward.8} parent=76 // pred_fallthru
          _
        %v396 = vld [vmem:[#allocation2] sm:$0xff]
        %v397 = vld [vmem:[#allocation2 + $0x8] sm:$0xff]
        %v398 = vld [vmem:[#allocation2 + $0x10] sm:$0xff]
        %v399 = vld [vmem:[#allocation2 + $0x18] sm:$0xf]
        %v400 = vld [vmem:[%s314] sm:$0xf]
        %v401 = vld [vmem:[%s314 + $0x4] sm:$0xf]
        %v402 = vld [vmem:[%s314 + $0x8] sm:$0xf]
        %v403 = vld [vmem:[%s314 + $0xc] sm:$0x3]
        %v404 = vld [vmem:[%s367] sm:$0xf]
        %v405 = vld [vmem:[%s367 + $0x4] sm:$0xf]
        %v406 = vld [vmem:[%s367 + $0x8] sm:$0xf]
        %v407 = vld [vmem:[%s367 + $0xc] sm:$0xf]
        %v408 = vld [vmem:[%s367 + $0x10] sm:$0xf]
        %v409 = vld [vmem:[%s367 + $0x14] sm:$0xf]
        %v410 = vld [vmem:[%s367 + $0x18] sm:$0xf]
        %v411 = vld [vmem:[%s367 + $0x1c] sm:$0xf]
        %v412 = vld [vmem:[%s367 + $0x20] sm:$0xf]
        %v413 = vld [vmem:[%s367 + $0x24] sm:$0xf]
        %v414 = vld [vmem:[%s367 + $0x28] sm:$0xf]
        %v415 = vld [vmem:[%s367 + $0x2c] sm:$0xf]
        %v416 = vld [vmem:[%s367 + $0x30] sm:$0xf]
        %v417 = vld [vmem:[%s367 + $0x34] sm:$0xf]
        %v418 = vld [vmem:[%s367 + $0x38] sm:$0xf]
        %v419 = vld [vmem:[%s367 + $0x3c] sm:$0xf]
        %v424 = vunpack.c.l.b16 %v400
        %v425 = vunpack.c.l.b16 %v401
        %v426 = vunpack.c.l.b16 %v402
        %v427 = vunpack.c.l.b16 %v403
        %v428 = vpack.c.b16 %v425, %v424
        %v429 = vpack.c.b16 %v427, %v426
        %v448 = vunpack.c.l.b16 %v404
        %v449 = vunpack.c.l.b16 %v405
        %v450 = vunpack.c.l.b16 %v406
        %v451 = vunpack.c.l.b16 %v407
        %v452 = vunpack.c.l.b16 %v408
        %v453 = vunpack.c.l.b16 %v409
        %v454 = vunpack.c.l.b16 %v410
        %v455 = vunpack.c.l.b16 %v411
        %v456 = vunpack.c.l.b16 %v412
        %v457 = vunpack.c.l.b16 %v413
        %v458 = vunpack.c.l.b16 %v414
        %v459 = vunpack.c.l.b16 %v415
        %v460 = vunpack.c.l.b16 %v416
        %v461 = vunpack.c.l.b16 %v417
        %v462 = vunpack.c.l.b16 %v418
        %v463 = vunpack.c.l.b16 %v419
        %v464 = vpack.c.b16 %v449, %v448
        %v465 = vpack.c.b16 %v451, %v450
        %v466 = vpack.c.b16 %v453, %v452
        %v467 = vpack.c.b16 %v455, %v454
        %v468 = vpack.c.b16 %v457, %v456
        %v469 = vpack.c.b16 %v459, %v458
        %v470 = vpack.c.b16 %v461, %v460
        %v471 = vpack.c.b16 %v463, %v462
        %480 = vmatprep.subr.bf16.mxu0 0
        %481 = vmatpush1.bf16.msra.mxu0 %v464
        %482 = vmatprep.subr.bf16.mxu0 0
        %483 = vmatpush1.bf16.msra.mxu0 %v465
        %484 = vmatprep.subr.bf16.mxu0 0
        %485 = vmatpush1.bf16.msra.mxu0 %v466
        %486 = vmatprep.subr.bf16.mxu0 0
        %487 = vmatpush1.bf16.msra.mxu0 %v467
        %488 = vmatprep.subr.bf16.mxu0 0
        %489 = vmatpush1.bf16.msra.mxu0 %v468
        %490 = vmatprep.subr.bf16.mxu0 0
        %491 = vmatpush1.bf16.msra.mxu0 %v469
        %492 = vmatprep.subr.bf16.mxu0 0
        %493 = vmatpush1.bf16.msra.mxu0 %v470
        %494 = vmatprep.subr.bf16.mxu0 0
        %495 = vmatpush1.bf16.msra.mxu0 %v471
        %496 = vmatprep.subr.bf16.mxu0 0
        %497 = vmatpush1.bf16.msra.mxu0 0
        %498 = vmatprep.subr.bf16.mxu0 0
        %499 = vmatpush1.bf16.msra.mxu0 0
        %500 = vmatprep.subr.bf16.mxu0 0
        %501 = vmatpush1.bf16.msra.mxu0 0
        %502 = vmatprep.subr.bf16.mxu0 0
        %503 = vmatpush1.bf16.msra.mxu0 0
        %504 = vmatprep.subr.bf16.mxu0 0
        %505 = vmatpush1.bf16.msra.mxu0 0
        %506 = vmatprep.subr.bf16.mxu0 0
        %507 = vmatpush1.bf16.msra.mxu0 0
        %508 = vmatprep.subr.bf16.mxu0 0
        %509 = vmatpush1.bf16.msra.mxu0 0
        %510 = vmatprep.subr.bf16.mxu0 0
        %511 = vmatpush1.bf16.msra.mxu0 0
        %512 = vmatprep.mubr.bf16.mxu0 0
        %513 = vmatmul.mubr.bf16.gmra.mrb[0].mxu0 %v428
        %v514 = vpop.f32.mrb[0].mxu0
        %v515 = vadd.f32 0.0, %v514
        %v516 = vpop.f32.mrb[0].mxu0
        %v517 = vpop.f32.mrb[0].mxu0
        %v518 = vadd.f32 0.0, %v517
        %v519 = vpop.f32.mrb[0].mxu0
        %520 = vmatprep.mubr.bf16.mxu0 0
        %521 = vmatmul.mubr.bf16.gmra.mrb[0].mxu0 %v429
        %v522 = vpop.f32.mrb[0].mxu0
        %v523 = vadd.f32 0.0, %v522
        %v524 = vpop.f32.mrb[0].mxu0
        %v525 = vpop.f32.mrb[0].mxu0
        %v526 = vadd.f32 0.0, %v525
        %v527 = vpop.f32.mrb[0].mxu0
        %528 = vdwg.mxu0
        %v529 = vadd.f32 %v396, %v515
        %v530 = vadd.f32 %v397, %v518
        %v531 = vadd.f32 %v398, %v523
        %v532 = vadd.f32 %v399, %v526
        %533 = vst [vmem:[#allocation2] sm:$0xff] %v529
        %534 = vst [vmem:[#allocation2 + $0x8] sm:$0xff] %v530
        %535 = vst [vmem:[#allocation2 + $0x10] sm:$0xff] %v531
        %536 = vst [vmem:[#allocation2 + $0x18] sm:$0xf] %v532
        %p537 = scmp.eq.s32.totalorder %s23, 4
        // Predicated region
        $region86: #{completenn_forward.8} parent=76 // pred_check
          %p538 = pneg %p537
        $region87: #{completenn_forward.8} parent=76 // pred_check_branch
          %540 = sbr.rel (%p538) target = $region89
        $region88: #{completenn_forward.8} parent=76 // pred_region
          %v541 = vld [vmem:[#allocation2] sm:$0xff]
          %v542 = vld [vmem:[#allocation2 + $0x8] sm:$0xff]
          %v543 = vld [vmem:[#allocation2 + $0x10] sm:$0xff]
          %v544 = vld [vmem:[#allocation2 + $0x18] sm:$0xf]
          %v545 = vld [vmem:[%s371] sm:$0x1]
          %v547 = vlaneseq
          %v548 = vshrl.u32 %v547, 7
          %v549 = vsub.s32 0, %v548
          %v550 = vrot.slane %v545, %v549
          %v552 = vadd.f32 %v541, %v550
          %v553 = vadd.f32 %v542, %v550
          %v554 = vadd.f32 %v543, %v550
          %v555 = vadd.f32 %v544, %v550
          %v556 = vmax.f32 %v552, 0.0
          %v557 = vmax.f32 %v553, 0.0
          %v558 = vmax.f32 %v554, 0.0
          %v559 = vmax.f32 %v555, 0.0
          %v560 = vld [vmem:[%s374] sm:$0x1]
          %v562 = vlaneseq
          %v563 = vshrl.u32 %v562, 7
          %v564 = vsub.s32 0, %v563
          %v565 = vrot.slane %v560, %v564
          %v567 = vmul.f32 %v556, %v565
          %v568 = vmul.f32 %v557, %v565
          %v569 = vmul.f32 %v558, %v565
          %v570 = vmul.f32 %v559, %v565
          %v571 = vld [vmem:[%s377] sm:$0x1]
          %v573 = vlaneseq
          %v574 = vshrl.u32 %v573, 7
          %v575 = vsub.s32 0, %v574
          %v576 = vrot.slane %v571, %v575
          %v578 = vadd.f32 %v567, %v576
          %v579 = vadd.f32 %v568, %v576
          %v580 = vadd.f32 %v569, %v576
          %v581 = vadd.f32 %v570, %v576
          %v582 = vpack.c.bf16 %v579, %v578
          %v583 = vpack.c.bf16 %v581, %v580
          %v586 = vunpack.c.l.b16 %v582
          %v587 = vunpack.c.h.b16 %v582
          %v588 = vunpack.c.l.b16 %v583
          %v589 = vunpack.c.h.b16 %v583
          %v590 = vpack.c.b16 %v586, %v586
          %v591 = vpack.c.b16 %v587, %v587
          %v592 = vpack.c.b16 %v588, %v588
          %v593 = vpack.c.b16 %v589, %v589
          %598 = vst [vmem:[%s385] sm:$0xf] %v590
          %599 = vst [vmem:[%s385 + $0x4] sm:$0xf] %v591
          %600 = vst [vmem:[%s385 + $0x8] sm:$0xf] %v592
          %601 = vst [vmem:[%s385 + $0xc] sm:$0x3] %v593
        $region89: #{completenn_forward.8} parent=76 // pred_fallthru
          _
        %s602 = smul.u32 4, %s21
        %p603 = scmp.lt.s32.totalorder %s602, 3
        %s604 = scalar_select %p603, %s602, 3
        %p605 = scmp.lt.s32.totalorder %s22, 0
        %s606 = scalar_select %p605, %s22, 0
        %s607 = sadd.s32 %s606, %s604
        %s608 = smul.addr %s607, 4
        %s609 = scalar_lea.vmem %s5, %s608
        // Predicated region
        $region90: #{completenn_forward.8} parent=76 // pred_check
          %p610 = pneg %p189
        $region91: #{completenn_forward.8} parent=76 // pred_check_branch
          %612 = sbr.rel (%p610) target = $region93
        $region92: #{completenn_forward.8} parent=76 // pred_region
          %s613 = smul.u32 4, %s21
        $region93: #{completenn_forward.8} parent=76 // pred_fallthru
          _
        // Predicated region
        $region94: #{completenn_forward.8} parent=76 // pred_check
          %p614 = pneg %p189
        $region95: #{completenn_forward.8} parent=76 // pred_check_branch
          %616 = sbr.rel (%p614) target = $region97
        $region96: #{completenn_forward.8} parent=76 // pred_region
          %s617 = smul.u32 4, %s21
          %p618 = scmp.lt.s32.totalorder %s617, 3
          %s619 = scalar_select %p618, %s617, 3
          %p620 = scmp.lt.s32.totalorder %s22, 0
          %s621 = scalar_select %p620, %s22, 0
          %s622 = sadd.s32 %s621, %s619
          %s623 = smul.addr %s622, 4
          %s624 = scalar_lea.vmem %s5, %s623
        $region97: #{completenn_forward.8} parent=76 // pred_fallthru
          _
      $region77: #{completenn_forward.8} parent=5 // pred_fallthru
        _
      %p625 = scmp.le.s32.totalorder 2, %s11
      // Predicated region
      $region98: #{completenn_forward.8} parent=5 // pred_check
        %p626 = pneg %p625
      $region99: #{completenn_forward.8} parent=5 // pred_check_branch
        %628 = sbr.rel (%p626) target = $region101
      $region100: #{completenn_forward.8} parent=5 // pred_region
        %s629 = ssub.s32 %s11, 2
      $region101: #{completenn_forward.8} parent=5 // pred_fallthru
        _
    $region6: #{completenn_forward.8} parent=1 // loop_footer
      %s15 = sadd.s32 1, %s11
    $region7: #{completenn_forward.8} parent=1 // loop_footer_branch
      %10 = sbr.rel target = $region3
    $region8: #{completenn_forward.8} parent=1 // loop_exit
      _

// kernel: completenn_forward.7
$region0: #{completenn_forward.7}
  #allocation0 [shape = 'u32[]', space=smem, size = 0x4, offset = 0x4, fixed_abs, tag = 'smem constant byte address 0x4 - core index']
  #allocation1 [shape = 'u32[144,128]{1,0:T(1,128)}', space=vmem, size = 0x12000, scoped, tag = 'internal scratch']
  #allocation2 [shape = 'f32[60,128]{1,0:T(8,128)}', space=vmem, size = 0x8000, scoped, tag = 'scratch operand']
  %s0 = inlined_call_operand.vmem [shape: bf16[60,21], index: 0, kind: input, shape index: {}]
  %s1 = inlined_call_operand.vmem [shape: bf16[21,128], index: 1, kind: input, shape index: {}]
  %s2 = inlined_call_operand.vmem [shape: f32[1,128], index: 2, kind: input, shape index: {}]
  %s3 = inlined_call_operand.vmem [shape: f32[1,128], index: 3, kind: input, shape index: {}]
  %s4 = inlined_call_operand.vmem [shape: f32[1,128], index: 4, kind: input, shape index: {}]
  %s5 = inlined_call_operand.vmem [shape: bf16[60,128], index: 5, kind: output, shape index: {}]
  %s6 = sld [smem:[#allocation0]]
  $region38: #{completenn_forward.7} parent=0
    _
  %s8 = ssub.s32 1, %s6
  %s9 = scalar_select 0, %s8, %s6
  // Predicated region
  $region2: #{completenn_forward.7} parent=0 // pred_check
    _
  $region3: #{completenn_forward.7} parent=0 // pred_check_branch
    %11 = sbr.rel (0) target = $region5
  $region4: #{completenn_forward.7} parent=0 // pred_region
    _
  $region5: #{completenn_forward.7} parent=0 // pred_fallthru
    _
  // Predicated region
  $region6: #{completenn_forward.7} parent=0 // pred_check
    _
  $region7: #{completenn_forward.7} parent=0 // pred_check_branch
    %13 = sbr.rel (0) target = $region9
  $region8: #{completenn_forward.7} parent=0 // pred_region
    _
  $region9: #{completenn_forward.7} parent=0 // pred_fallthru
    _
  // Predicated region
  $region10: #{completenn_forward.7} parent=0 // pred_check
    _
  $region11: #{completenn_forward.7} parent=0 // pred_check_branch
    %15 = sbr.rel (0) target = $region13
  $region12: #{completenn_forward.7} parent=0 // pred_region
    _
  $region13: #{completenn_forward.7} parent=0 // pred_fallthru
    _
  // Predicated region
  $region14: #{completenn_forward.7} parent=0 // pred_check
    _
  $region15: #{completenn_forward.7} parent=0 // pred_check_branch
    %17 = sbr.rel (0) target = $region17
  $region16: #{completenn_forward.7} parent=0 // pred_region
    _
  $region17: #{completenn_forward.7} parent=0 // pred_fallthru
    _
  // Predicated region
  $region18: #{completenn_forward.7} parent=0 // pred_check
    _
  $region19: #{completenn_forward.7} parent=0 // pred_check_branch
    %19 = sbr.rel (0) target = $region21
  $region20: #{completenn_forward.7} parent=0 // pred_region
    _
  $region21: #{completenn_forward.7} parent=0 // pred_fallthru
    _
  %p21 = scmp.eq.s32.totalorder 0, 0
  // Predicated region
  $region22: #{completenn_forward.7} parent=0 // pred_check
    %p22 = pneg %p21
  $region23: #{completenn_forward.7} parent=0 // pred_check_branch
    %24 = sbr.rel (%p22) target = $region25
  $region24: #{completenn_forward.7} parent=0 // pred_region
    %25 = vst [vmem:[#allocation2] sm:$0xff] 0.0
    %26 = vst [vmem:[#allocation2 + $0x8] sm:$0xff] 0.0
    %27 = vst [vmem:[#allocation2 + $0x10] sm:$0xff] 0.0
    %28 = vst [vmem:[#allocation2 + $0x18] sm:$0xff] 0.0
    %29 = vst [vmem:[#allocation2 + $0x20] sm:$0xff] 0.0
    %30 = vst [vmem:[#allocation2 + $0x28] sm:$0xff] 0.0
    %31 = vst [vmem:[#allocation2 + $0x30] sm:$0xff] 0.0
    %32 = vst [vmem:[#allocation2 + $0x38] sm:$0xf] 0.0
  $region25: #{completenn_forward.7} parent=0 // pred_fallthru
    _
  %v33 = vld [vmem:[#allocation2] sm:$0xff]
  %v34 = vld [vmem:[#allocation2 + $0x8] sm:$0xff]
  %v35 = vld [vmem:[#allocation2 + $0x10] sm:$0xff]
  %v36 = vld [vmem:[#allocation2 + $0x18] sm:$0xff]
  %v37 = vld [vmem:[#allocation2 + $0x20] sm:$0xff]
  %v38 = vld [vmem:[#allocation2 + $0x28] sm:$0xff]
  %v39 = vld [vmem:[#allocation2 + $0x30] sm:$0xff]
  %v40 = vld [vmem:[#allocation2 + $0x38] sm:$0xf]
  %v41 = vld [vmem:[%s0] sm:$0xf]
  %v42 = vld [vmem:[%s0 + $0x4] sm:$0xf]
  %v43 = vld [vmem:[%s0 + $0x8] sm:$0xf]
  %v44 = vld [vmem:[%s0 + $0xc] sm:$0xf]
  %v45 = vld [vmem:[%s0 + $0x10] sm:$0xf]
  %v46 = vld [vmem:[%s0 + $0x14] sm:$0xf]
  %v47 = vld [vmem:[%s0 + $0x18] sm:$0xf]
  %v48 = vld [vmem:[%s0 + $0x1c] sm:$0x3]
  %v49 = vld [vmem:[%s1] sm:$0xf]
  %v50 = vld [vmem:[%s1 + $0x4] sm:$0xf]
  %v51 = vld [vmem:[%s1 + $0x8] sm:$0x7]
  %v60 = vunpack.c.l.b16 %v41
  %v61 = vunpack.c.l.b16 %v42
  %v62 = vunpack.c.l.b16 %v43
  %v63 = vunpack.c.l.b16 %v44
  %v64 = vunpack.c.l.b16 %v45
  %v65 = vunpack.c.l.b16 %v46
  %v66 = vunpack.c.l.b16 %v47
  %v67 = vunpack.c.l.b16 %v48
  %v68 = vpack.c.b16 %v61, %v60
  %v69 = vpack.c.b16 %v63, %v62
  %v70 = vpack.c.b16 %v65, %v64
  %v71 = vpack.c.b16 %v67, %v66
  %v75 = vunpack.c.l.b16 %v49
  %v76 = vunpack.c.l.b16 %v50
  %v77 = vunpack.c.l.b16 %v51
  %v78 = vpack.c.b16 %v76, %v75
  %v79 = vpack.c.b16 %v77, %v77
  %vm81 = vcmask 171008
  %v83 = vsel %vm81, %v68, 0
  %v86 = vsel %vm81, %v69, 0
  %v89 = vsel %vm81, %v70, 0
  %v92 = vsel %vm81, %v71, 0
  %vm94 = vcmask 1041408
  %vm95 = vcmask 1042432
  %v96 = vsel %vm94, 4294967295, 65535
  %v97 = vsel %vm95, %v96, 0
  %v99 = vand.u32 %v79, %v97
  %101 = vmatprep.subr.bf16.mxu0 0
  %102 = vmatpush1.bf16.msra.mxu0 %v78
  %103 = vmatprep.subr.bf16.mxu0 0
  %104 = vmatpush1.bf16.msra.mxu0 %v99
  %105 = vmatprep.subr.bf16.mxu0 0
  %106 = vmatpush1.bf16.msra.mxu0 0
  %107 = vmatprep.subr.bf16.mxu0 0
  %108 = vmatpush1.bf16.msra.mxu0 0
  %109 = vmatprep.subr.bf16.mxu0 0
  %110 = vmatpush1.bf16.msra.mxu0 0
  %111 = vmatprep.subr.bf16.mxu0 0
  %112 = vmatpush1.bf16.msra.mxu0 0
  %113 = vmatprep.subr.bf16.mxu0 0
  %114 = vmatpush1.bf16.msra.mxu0 0
  %115 = vmatprep.subr.bf16.mxu0 0
  %116 = vmatpush1.bf16.msra.mxu0 0
  %117 = vmatprep.subr.bf16.mxu0 0
  %118 = vmatpush1.bf16.msra.mxu0 0
  %119 = vmatprep.subr.bf16.mxu0 0
  %120 = vmatpush1.bf16.msra.mxu0 0
  %121 = vmatprep.subr.bf16.mxu0 0
  %122 = vmatpush1.bf16.msra.mxu0 0
  %123 = vmatprep.subr.bf16.mxu0 0
  %124 = vmatpush1.bf16.msra.mxu0 0
  %125 = vmatprep.subr.bf16.mxu0 0
  %126 = vmatpush1.bf16.msra.mxu0 0
  %127 = vmatprep.subr.bf16.mxu0 0
  %128 = vmatpush1.bf16.msra.mxu0 0
  %129 = vmatprep.subr.bf16.mxu0 0
  %130 = vmatpush1.bf16.msra.mxu0 0
  %131 = vmatprep.subr.bf16.mxu0 0
  %132 = vmatpush1.bf16.msra.mxu0 0
  %133 = vmatprep.mubr.bf16.mxu0 0
  %134 = vmatmul.mubr.bf16.gmra.mrb[0].mxu0 %v83
  %v135 = vpop.f32.mrb[0].mxu0
  %v136 = vadd.f32 0.0, %v135
  %v137 = vpop.f32.mrb[0].mxu0
  %v138 = vpop.f32.mrb[0].mxu0
  %v139 = vadd.f32 0.0, %v138
  %v140 = vpop.f32.mrb[0].mxu0
  %141 = vmatprep.mubr.bf16.mxu0 0
  %142 = vmatmul.mubr.bf16.gmra.mrb[0].mxu0 %v86
  %v143 = vpop.f32.mrb[0].mxu0
  %v144 = vadd.f32 0.0, %v143
  %v145 = vpop.f32.mrb[0].mxu0
  %v146 = vpop.f32.mrb[0].mxu0
  %v147 = vadd.f32 0.0, %v146
  %v148 = vpop.f32.mrb[0].mxu0
  %149 = vmatprep.mubr.bf16.mxu0 0
  %150 = vmatmul.mubr.bf16.gmra.mrb[0].mxu0 %v89
  %v151 = vpop.f32.mrb[0].mxu0
  %v152 = vadd.f32 0.0, %v151
  %v153 = vpop.f32.mrb[0].mxu0
  %v154 = vpop.f32.mrb[0].mxu0
  %v155 = vadd.f32 0.0, %v154
  %v156 = vpop.f32.mrb[0].mxu0
  %157 = vmatprep.mubr.bf16.mxu0 0
  %158 = vmatmul.mubr.bf16.gmra.mrb[0].mxu0 %v92
  %v159 = vpop.f32.mrb[0].mxu0
  %v160 = vadd.f32 0.0, %v159
  %v161 = vpop.f32.mrb[0].mxu0
  %v162 = vpop.f32.mrb[0].mxu0
  %v163 = vadd.f32 0.0, %v162
  %v164 = vpop.f32.mrb[0].mxu0
  %165 = vdwg.mxu0
  %v166 = vadd.f32 %v33, %v136
  %v167 = vadd.f32 %v34, %v139
  %v168 = vadd.f32 %v35, %v144
  %v169 = vadd.f32 %v36, %v147
  %v170 = vadd.f32 %v37, %v152
  %v171 = vadd.f32 %v38, %v155
  %v172 = vadd.f32 %v39, %v160
  %v173 = vadd.f32 %v40, %v163
  %174 = vst [vmem:[#allocation2] sm:$0xff] %v166
  %175 = vst [vmem:[#allocation2 + $0x8] sm:$0xff] %v167
  %176 = vst [vmem:[#allocation2 + $0x10] sm:$0xff] %v168
  %177 = vst [vmem:[#allocation2 + $0x18] sm:$0xff] %v169
  %178 = vst [vmem:[#allocation2 + $0x20] sm:$0xff] %v170
  %179 = vst [vmem:[#allocation2 + $0x28] sm:$0xff] %v171
  %180 = vst [vmem:[#allocation2 + $0x30] sm:$0xff] %v172
  %181 = vst [vmem:[#allocation2 + $0x38] sm:$0xf] %v173
  // Predicated region
  $region26: #{completenn_forward.7} parent=0 // pred_check
    %p182 = pneg %p21
  $region27: #{completenn_forward.7} parent=0 // pred_check_branch
    %184 = sbr.rel (%p182) target = $region29
  $region28: #{completenn_forward.7} parent=0 // pred_region
    %v185 = vld [vmem:[#allocation2] sm:$0xff]
    %v186 = vld [vmem:[#allocation2 + $0x8] sm:$0xff]
    %v187 = vld [vmem:[#allocation2 + $0x10] sm:$0xff]
    %v188 = vld [vmem:[#allocation2 + $0x18] sm:$0xff]
    %v189 = vld [vmem:[#allocation2 + $0x20] sm:$0xff]
    %v190 = vld [vmem:[#allocation2 + $0x28] sm:$0xff]
    %v191 = vld [vmem:[#allocation2 + $0x30] sm:$0xff]
    %v192 = vld [vmem:[#allocation2 + $0x38] sm:$0xf]
    %v193 = vld [vmem:[%s2] sm:$0x1]
    %v195 = vlaneseq
    %v196 = vshrl.u32 %v195, 7
    %v197 = vsub.s32 0, %v196
    %v198 = vrot.slane %v193, %v197
    %v200 = vadd.f32 %v185, %v198
    %v201 = vadd.f32 %v186, %v198
    %v202 = vadd.f32 %v187, %v198
    %v203 = vadd.f32 %v188, %v198
    %v204 = vadd.f32 %v189, %v198
    %v205 = vadd.f32 %v190, %v198
    %v206 = vadd.f32 %v191, %v198
    %v207 = vadd.f32 %v192, %v198
    %v208 = vmax.f32 %v200, 0.0
    %v209 = vmax.f32 %v201, 0.0
    %v210 = vmax.f32 %v202, 0.0
    %v211 = vmax.f32 %v203, 0.0
    %v212 = vmax.f32 %v204, 0.0
    %v213 = vmax.f32 %v205, 0.0
    %v214 = vmax.f32 %v206, 0.0
    %v215 = vmax.f32 %v207, 0.0
    %v216 = vld [vmem:[%s3] sm:$0x1]
    %v218 = vlaneseq
    %v219 = vshrl.u32 %v218, 7
    %v220 = vsub.s32 0, %v219
    %v221 = vrot.slane %v216, %v220
    %v223 = vmul.f32 %v208, %v221
    %v224 = vmul.f32 %v209, %v221
    %v225 = vmul.f32 %v210, %v221
    %v226 = vmul.f32 %v211, %v221
    %v227 = vmul.f32 %v212, %v221
    %v228 = vmul.f32 %v213, %v221
    %v229 = vmul.f32 %v214, %v221
    %v230 = vmul.f32 %v215, %v221
    %v231 = vld [vmem:[%s4] sm:$0x1]
    %v233 = vlaneseq
    %v234 = vshrl.u32 %v233, 7
    %v235 = vsub.s32 0, %v234
    %v236 = vrot.slane %v231, %v235
    %v238 = vadd.f32 %v223, %v236
    %v239 = vadd.f32 %v224, %v236
    %v240 = vadd.f32 %v225, %v236
    %v241 = vadd.f32 %v226, %v236
    %v242 = vadd.f32 %v227, %v236
    %v243 = vadd.f32 %v228, %v236
    %v244 = vadd.f32 %v229, %v236
    %v245 = vadd.f32 %v230, %v236
    %v246 = vpack.c.bf16 %v239, %v238
    %v247 = vpack.c.bf16 %v241, %v240
    %v248 = vpack.c.bf16 %v243, %v242
    %v249 = vpack.c.bf16 %v245, %v244
    %v254 = vunpack.c.l.b16 %v246
    %v255 = vunpack.c.h.b16 %v246
    %v256 = vunpack.c.l.b16 %v247
    %v257 = vunpack.c.h.b16 %v247
    %v258 = vunpack.c.l.b16 %v248
    %v259 = vunpack.c.h.b16 %v248
    %v260 = vunpack.c.l.b16 %v249
    %v261 = vunpack.c.h.b16 %v249
    %v262 = vpack.c.b16 %v254, %v254
    %v263 = vpack.c.b16 %v255, %v255
    %v264 = vpack.c.b16 %v256, %v256
    %v265 = vpack.c.b16 %v257, %v257
    %v266 = vpack.c.b16 %v258, %v258
    %v267 = vpack.c.b16 %v259, %v259
    %v268 = vpack.c.b16 %v260, %v260
    %v269 = vpack.c.b16 %v261, %v261
    %278 = vst [vmem:[%s5] sm:$0xf] %v262
    %279 = vst [vmem:[%s5 + $0x4] sm:$0xf] %v263
    %280 = vst [vmem:[%s5 + $0x8] sm:$0xf] %v264
    %281 = vst [vmem:[%s5 + $0xc] sm:$0xf] %v265
    %282 = vst [vmem:[%s5 + $0x10] sm:$0xf] %v266
    %283 = vst [vmem:[%s5 + $0x14] sm:$0xf] %v267
    %284 = vst [vmem:[%s5 + $0x18] sm:$0xf] %v268
    %285 = vst [vmem:[%s5 + $0x1c] sm:$0x3] %v269
  $region29: #{completenn_forward.7} parent=0 // pred_fallthru
    _
  // Predicated region
  $region30: #{completenn_forward.7} parent=0 // pred_check
    _
  $region31: #{completenn_forward.7} parent=0 // pred_check_branch
    %287 = sbr.rel (0) target = $region33
  $region32: #{completenn_forward.7} parent=0 // pred_region
    _
  $region33: #{completenn_forward.7} parent=0 // pred_fallthru
    _
  // Predicated region
  $region34: #{completenn_forward.7} parent=0 // pred_check
    _
  $region35: #{completenn_forward.7} parent=0 // pred_check_branch
    %289 = sbr.rel (0) target = $region37
  $region36: #{completenn_forward.7} parent=0 // pred_region
    _
  $region37: #{completenn_forward.7} parent=0 // pred_fallthru
    _

// kernel: completenn_forward.9
$region0: #{completenn_forward.9}
  #allocation0 [shape = 'u32[]', space=smem, size = 0x4, offset = 0x4, fixed_abs, tag = 'smem constant byte address 0x4 - core index']
  #allocation1 [shape = 'u32[144,128]{1,0:T(1,128)}', space=vmem, size = 0x12000, scoped, tag = 'internal scratch']
  #allocation2 [shape = 'f32[28,256]{1,0:T(8,128)}', space=vmem, size = 0x8000, scoped, tag = 'scratch operand']
  %s0 = inlined_call_operand.vmem [shape: bf16[28,384], index: 0, kind: input, shape index: {}]
  %s1 = inlined_call_operand.vmem [shape: bf16[384,256], index: 1, kind: input, shape index: {}]
  %s2 = inlined_call_operand.hbm [shape: f32[1,256], index: 2, kind: input, shape index: {}]
  %s3 = inlined_call_operand.vmem [shape: f32[1,256], index: 3, kind: input, shape index: {}]
  %s4 = inlined_call_operand.vmem [shape: f32[1,256], index: 4, kind: input, shape index: {}]
  %s5 = inlined_call_operand.vmem [shape: bf16[28,256], index: 5, kind: output, shape index: {}]
  %s6 = sld [smem:[#allocation0]]
  $region42: #{completenn_forward.9} parent=0
    _
  %s8 = ssub.s32 1, %s6
  %s9 = scalar_select 0, %s8, %s6
  $region1: #{completenn_forward.9} parent=0
    #allocation3 [shape = 'u8[1024]{0}', space=vmem, size = 0x400, scoped, tag = 'input window, operand 2, single buffered']
    #allocation4 [shape = 's32[1]{0}', space=sflag, size = 0x4, scoped, tag = 'scoped memory for completenn_forward.9']
    %10 = vsyncpa [#allocation4], 0
    // Predicated region
    $region2: #{completenn_forward.9} parent=1 // pred_check
      _
    $region3: #{completenn_forward.9} parent=1 // pred_check_branch
      %12 = sbr.rel (0) target = $region5
    $region4: #{completenn_forward.9} parent=1 // pred_region
      _
    $region5: #{completenn_forward.9} parent=1 // pred_fallthru
      _
    // Predicated region
    $region6: #{completenn_forward.9} parent=1 // pred_check
      _
    $region7: #{completenn_forward.9} parent=1 // pred_check_branch
      %14 = sbr.rel (0) target = $region9
    $region8: #{completenn_forward.9} parent=1 // pred_region
      _
    $region9: #{completenn_forward.9} parent=1 // pred_fallthru
      _
    // Predicated region
    $region10: #{completenn_forward.9} parent=1 // pred_check
      _
    $region11: #{completenn_forward.9} parent=1 // pred_check_branch
      %16 = sbr.rel (0) target = $region13
    $region12: #{completenn_forward.9} parent=1 // pred_region
      %s18 = ssub.s32 32, 32
      %19 = vsyncadd [#allocation4], %s18
      %s21 = sshll.u32 [#allocation3], 4
      %s22 = int_to_ptr.vmem [resolvable:$true] %s21
      %24 = dma.hbm_to_vmem [thread:$0]  %s2, 32, %s22, [#allocation4]
    $region13: #{completenn_forward.9} parent=1 // pred_fallthru
      _
    // Predicated region
    $region14: #{completenn_forward.9} parent=1 // pred_check
      _
    $region15: #{completenn_forward.9} parent=1 // pred_check_branch
      %26 = sbr.rel (0) target = $region17
    $region16: #{completenn_forward.9} parent=1 // pred_region
      _
    $region17: #{completenn_forward.9} parent=1 // pred_fallthru
      _
    // Predicated region
    $region18: #{completenn_forward.9} parent=1 // pred_check
      _
    $region19: #{completenn_forward.9} parent=1 // pred_check_branch
      %28 = sbr.rel (0) target = $region21
    $region20: #{completenn_forward.9} parent=1 // pred_region
      _
    $region21: #{completenn_forward.9} parent=1 // pred_fallthru
      _
    // Predicated region
    $region22: #{completenn_forward.9} parent=1 // pred_check
      _
    $region23: #{completenn_forward.9} parent=1 // pred_check_branch
      %30 = sbr.rel (0) target = $region25
    $region24: #{completenn_forward.9} parent=1 // pred_region
      %31 = dma.done [#allocation4], 32
    $region25: #{completenn_forward.9} parent=1 // pred_fallthru
      _
    %p33 = scmp.eq.s32.totalorder 0, 0
    // Predicated region
    $region26: #{completenn_forward.9} parent=1 // pred_check
      %p34 = pneg %p33
    $region27: #{completenn_forward.9} parent=1 // pred_check_branch
      %36 = sbr.rel (%p34) target = $region29
    $region28: #{completenn_forward.9} parent=1 // pred_region
      %37 = vst [vmem:[#allocation2] sm:$0xff] 0.0
      %38 = vst [vmem:[#allocation2 + $0x8] sm:$0xff] 0.0
      %39 = vst [vmem:[#allocation2 + $0x10] sm:$0xff] 0.0
      %40 = vst [vmem:[#allocation2 + $0x18] sm:$0xff] 0.0
      %41 = vst [vmem:[#allocation2 + $0x20] sm:$0xff] 0.0
      %42 = vst [vmem:[#allocation2 + $0x28] sm:$0xff] 0.0
      %43 = vst [vmem:[#allocation2 + $0x30] sm:$0xf] 0.0
      %44 = vst [vmem:[#allocation2 + $0x38] sm:$0xf] 0.0
    $region29: #{completenn_forward.9} parent=1 // pred_fallthru
      _
    %v45 = vld [vmem:[#allocation2] sm:$0xff]
    %v46 = vld [vmem:[#allocation2 + $0x8] sm:$0xff]
    %v47 = vld [vmem:[#allocation2 + $0x10] sm:$0xff]
    %v48 = vld [vmem:[#allocation2 + $0x18] sm:$0xff]
    %v49 = vld [vmem:[#allocation2 + $0x20] sm:$0xff]
    %v50 = vld [vmem:[#allocation2 + $0x28] sm:$0xff]
    %v51 = vld [vmem:[#allocation2 + $0x30] sm:$0xf]
    %v52 = vld [vmem:[#allocation2 + $0x38] sm:$0xf]
    %v53 = vld [vmem:[%s0] sm:$0xff]
    %v54 = vld [vmem:[%s0 + $0x8] sm:$0xf]
    %v55 = vld [vmem:[%s0 + $0xc] sm:$0xff]
    %v56 = vld [vmem:[%s0 + $0x14] sm:$0xf]
    %v57 = vld [vmem:[%s0 + $0x18] sm:$0xff]
    %v58 = vld [vmem:[%s0 + $0x20] sm:$0xf]
    %v59 = vld [vmem:[%s0 + $0x24] sm:$0x33]
    %v60 = vld [vmem:[%s0 + $0x2c] sm:$0x3]
    %v61 = vld [vmem:[%s1] sm:$0xff]
    %v62 = vld [vmem:[%s1 + $0x8] sm:$0xff]
    %v63 = vld [vmem:[%s1 + $0x10] sm:$0xff]
    %v64 = vld [vmem:[%s1 + $0x18] sm:$0xff]
    %v65 = vld [vmem:[%s1 + $0x20] sm:$0xff]
    %v66 = vld [vmem:[%s1 + $0x28] sm:$0xff]
    %v67 = vld [vmem:[%s1 + $0x30] sm:$0xff]
    %v68 = vld [vmem:[%s1 + $0x38] sm:$0xff]
    %v69 = vld [vmem:[%s1 + $0x40] sm:$0xff]
    %v70 = vld [vmem:[%s1 + $0x48] sm:$0xff]
    %v71 = vld [vmem:[%s1 + $0x50] sm:$0xff]
    %v72 = vld [vmem:[%s1 + $0x58] sm:$0xff]
    %v73 = vld [vmem:[%s1 + $0x60] sm:$0xff]
    %v74 = vld [vmem:[%s1 + $0x68] sm:$0xff]
    %v75 = vld [vmem:[%s1 + $0x70] sm:$0xff]
    %v76 = vld [vmem:[%s1 + $0x78] sm:$0xff]
    %v77 = vld [vmem:[%s1 + $0x80] sm:$0xff]
    %v78 = vld [vmem:[%s1 + $0x88] sm:$0xff]
    %v79 = vld [vmem:[%s1 + $0x90] sm:$0xff]
    %v80 = vld [vmem:[%s1 + $0x98] sm:$0xff]
    %v81 = vld [vmem:[%s1 + $0xa0] sm:$0xff]
    %v82 = vld [vmem:[%s1 + $0xa8] sm:$0xff]
    %v83 = vld [vmem:[%s1 + $0xb0] sm:$0xff]
    %v84 = vld [vmem:[%s1 + $0xb8] sm:$0xff]
    %v85 = vld [vmem:[%s1 + $0xc0] sm:$0xff]
    %v86 = vld [vmem:[%s1 + $0xc8] sm:$0xff]
    %v87 = vld [vmem:[%s1 + $0xd0] sm:$0xff]
    %v88 = vld [vmem:[%s1 + $0xd8] sm:$0xff]
    %v89 = vld [vmem:[%s1 + $0xe0] sm:$0xff]
    %v90 = vld [vmem:[%s1 + $0xe8] sm:$0xff]
    %v91 = vld [vmem:[%s1 + $0xf0] sm:$0xff]
    %v92 = vld [vmem:[%s1 + $0xf8] sm:$0xff]
    %v93 = vld [vmem:[%s1 + $0x100] sm:$0xff]
    %v94 = vld [vmem:[%s1 + $0x108] sm:$0xff]
    %v95 = vld [vmem:[%s1 + $0x110] sm:$0xff]
    %v96 = vld [vmem:[%s1 + $0x118] sm:$0xff]
    %v97 = vld [vmem:[%s1 + $0x120] sm:$0xff]
    %v98 = vld [vmem:[%s1 + $0x128] sm:$0xff]
    %v99 = vld [vmem:[%s1 + $0x130] sm:$0xff]
    %v100 = vld [vmem:[%s1 + $0x138] sm:$0xff]
    %v101 = vld [vmem:[%s1 + $0x140] sm:$0xff]
    %v102 = vld [vmem:[%s1 + $0x148] sm:$0xff]
    %v103 = vld [vmem:[%s1 + $0x150] sm:$0xff]
    %v104 = vld [vmem:[%s1 + $0x158] sm:$0xff]
    %v105 = vld [vmem:[%s1 + $0x160] sm:$0xff]
    %v106 = vld [vmem:[%s1 + $0x168] sm:$0xff]
    %v107 = vld [vmem:[%s1 + $0x170] sm:$0xff]
    %v108 = vld [vmem:[%s1 + $0x178] sm:$0xff]
    %v117 = vunpack.c.l.b16 %v53
    %v118 = vunpack.c.h.b16 %v53
    %v119 = vunpack.c.l.b16 %v54
    %v120 = vunpack.c.l.b16 %v55
    %v121 = vunpack.c.h.b16 %v55
    %v122 = vunpack.c.l.b16 %v56
    %v123 = vunpack.c.l.b16 %v57
    %v124 = vunpack.c.h.b16 %v57
    %v125 = vunpack.c.l.b16 %v58
    %v126 = vunpack.c.l.b16 %v59
    %v127 = vunpack.c.h.b16 %v59
    %v128 = vunpack.c.l.b16 %v60
    %v129 = vpack.c.b16 %v120, %v117
    %v130 = vpack.c.b16 %v121, %v118
    %v131 = vpack.c.b16 %v122, %v119
    %v132 = vpack.c.b16 %v126, %v123
    %v133 = vpack.c.b16 %v127, %v124
    %v134 = vpack.c.b16 %v128, %v125
    %v189 = vunpack.c.l.b16 %v61
    %v190 = vunpack.c.h.b16 %v61
    %v191 = vunpack.c.l.b16 %v62
    %v192 = vunpack.c.h.b16 %v62
    %v193 = vunpack.c.l.b16 %v63
    %v194 = vunpack.c.h.b16 %v63
    %v195 = vunpack.c.l.b16 %v64
    %v196 = vunpack.c.h.b16 %v64
    %v197 = vunpack.c.l.b16 %v65
    %v198 = vunpack.c.h.b16 %v65
    %v199 = vunpack.c.l.b16 %v66
    %v200 = vunpack.c.h.b16 %v66
    %v201 = vunpack.c.l.b16 %v67
    %v202 = vunpack.c.h.b16 %v67
    %v203 = vunpack.c.l.b16 %v68
    %v204 = vunpack.c.h.b16 %v68
    %v205 = vunpack.c.l.b16 %v69
    %v206 = vunpack.c.h.b16 %v69
    %v207 = vunpack.c.l.b16 %v70
    %v208 = vunpack.c.h.b16 %v70
    %v209 = vunpack.c.l.b16 %v71
    %v210 = vunpack.c.h.b16 %v71
    %v211 = vunpack.c.l.b16 %v72
    %v212 = vunpack.c.h.b16 %v72
    %v213 = vunpack.c.l.b16 %v73
    %v214 = vunpack.c.h.b16 %v73
    %v215 = vunpack.c.l.b16 %v74
    %v216 = vunpack.c.h.b16 %v74
    %v217 = vunpack.c.l.b16 %v75
    %v218 = vunpack.c.h.b16 %v75
    %v219 = vunpack.c.l.b16 %v76
    %v220 = vunpack.c.h.b16 %v76
    %v221 = vunpack.c.l.b16 %v77
    %v222 = vunpack.c.h.b16 %v77
    %v223 = vunpack.c.l.b16 %v78
    %v224 = vunpack.c.h.b16 %v78
    %v225 = vunpack.c.l.b16 %v79
    %v226 = vunpack.c.h.b16 %v79
    %v227 = vunpack.c.l.b16 %v80
    %v228 = vunpack.c.h.b16 %v80
    %v229 = vunpack.c.l.b16 %v81
    %v230 = vunpack.c.h.b16 %v81
    %v231 = vunpack.c.l.b16 %v82
    %v232 = vunpack.c.h.b16 %v82
    %v233 = vunpack.c.l.b16 %v83
    %v234 = vunpack.c.h.b16 %v83
    %v235 = vunpack.c.l.b16 %v84
    %v236 = vunpack.c.h.b16 %v84
    %v237 = vunpack.c.l.b16 %v85
    %v238 = vunpack.c.h.b16 %v85
    %v239 = vunpack.c.l.b16 %v86
    %v240 = vunpack.c.h.b16 %v86
    %v241 = vunpack.c.l.b16 %v87
    %v242 = vunpack.c.h.b16 %v87
    %v243 = vunpack.c.l.b16 %v88
    %v244 = vunpack.c.h.b16 %v88
    %v245 = vunpack.c.l.b16 %v89
    %v246 = vunpack.c.h.b16 %v89
    %v247 = vunpack.c.l.b16 %v90
    %v248 = vunpack.c.h.b16 %v90
    %v249 = vunpack.c.l.b16 %v91
    %v250 = vunpack.c.h.b16 %v91
    %v251 = vunpack.c.l.b16 %v92
    %v252 = vunpack.c.h.b16 %v92
    %v253 = vunpack.c.l.b16 %v93
    %v254 = vunpack.c.h.b16 %v93
    %v255 = vunpack.c.l.b16 %v94
    %v256 = vunpack.c.h.b16 %v94
    %v257 = vunpack.c.l.b16 %v95
    %v258 = vunpack.c.h.b16 %v95
    %v259 = vunpack.c.l.b16 %v96
    %v260 = vunpack.c.h.b16 %v96
    %v261 = vunpack.c.l.b16 %v97
    %v262 = vunpack.c.h.b16 %v97
    %v263 = vunpack.c.l.b16 %v98
    %v264 = vunpack.c.h.b16 %v98
    %v265 = vunpack.c.l.b16 %v99
    %v266 = vunpack.c.h.b16 %v99
    %v267 = vunpack.c.l.b16 %v100
    %v268 = vunpack.c.h.b16 %v100
    %v269 = vunpack.c.l.b16 %v101
    %v270 = vunpack.c.h.b16 %v101
    %v271 = vunpack.c.l.b16 %v102
    %v272 = vunpack.c.h.b16 %v102
    %v273 = vunpack.c.l.b16 %v103
    %v274 = vunpack.c.h.b16 %v103
    %v275 = vunpack.c.l.b16 %v104
    %v276 = vunpack.c.h.b16 %v104
    %v277 = vunpack.c.l.b16 %v105
    %v278 = vunpack.c.h.b16 %v105
    %v279 = vunpack.c.l.b16 %v106
    %v280 = vunpack.c.h.b16 %v106
    %v281 = vunpack.c.l.b16 %v107
    %v282 = vunpack.c.h.b16 %v107
    %v283 = vunpack.c.l.b16 %v108
    %v284 = vunpack.c.h.b16 %v108
    %v285 = vpack.c.b16 %v191, %v189
    %v286 = vpack.c.b16 %v192, %v190
    %v287 = vpack.c.b16 %v195, %v193
    %v288 = vpack.c.b16 %v196, %v194
    %v289 = vpack.c.b16 %v199, %v197
    %v290 = vpack.c.b16 %v200, %v198
    %v291 = vpack.c.b16 %v203, %v201
    %v292 = vpack.c.b16 %v204, %v202
    %v293 = vpack.c.b16 %v207, %v205
    %v294 = vpack.c.b16 %v208, %v206
    %v295 = vpack.c.b16 %v211, %v209
    %v296 = vpack.c.b16 %v212, %v210
    %v297 = vpack.c.b16 %v215, %v213
    %v298 = vpack.c.b16 %v216, %v214
    %v299 = vpack.c.b16 %v219, %v217
    %v300 = vpack.c.b16 %v220, %v218
    %v301 = vpack.c.b16 %v223, %v221
    %v302 = vpack.c.b16 %v224, %v222
    %v303 = vpack.c.b16 %v227, %v225
    %v304 = vpack.c.b16 %v228, %v226
    %v305 = vpack.c.b16 %v231, %v229
    %v306 = vpack.c.b16 %v232, %v230
    %v307 = vpack.c.b16 %v235, %v233
    %v308 = vpack.c.b16 %v236, %v234
    %v309 = vpack.c.b16 %v239, %v237
    %v310 = vpack.c.b16 %v240, %v238
    %v311 = vpack.c.b16 %v243, %v241
    %v312 = vpack.c.b16 %v244, %v242
    %v313 = vpack.c.b16 %v247, %v245
    %v314 = vpack.c.b16 %v248, %v246
    %v315 = vpack.c.b16 %v251, %v249
    %v316 = vpack.c.b16 %v252, %v250
    %v317 = vpack.c.b16 %v255, %v253
    %v318 = vpack.c.b16 %v256, %v254
    %v319 = vpack.c.b16 %v259, %v257
    %v320 = vpack.c.b16 %v260, %v258
    %v321 = vpack.c.b16 %v263, %v261
    %v322 = vpack.c.b16 %v264, %v262
    %v323 = vpack.c.b16 %v267, %v265
    %v324 = vpack.c.b16 %v268, %v266
    %v325 = vpack.c.b16 %v271, %v269
    %v326 = vpack.c.b16 %v272, %v270
    %v327 = vpack.c.b16 %v275, %v273
    %v328 = vpack.c.b16 %v276, %v274
    %v329 = vpack.c.b16 %v279, %v277
    %v330 = vpack.c.b16 %v280, %v278
    %v331 = vpack.c.b16 %v283, %v281
    %v332 = vpack.c.b16 %v284, %v282
    %381 = vmatprep.subr.bf16.mxu0 %v286
    %382 = vmatpush1.bf16.msra.mxu0 %v285
    %383 = vmatprep.subr.bf16.mxu0 %v288
    %384 = vmatpush1.bf16.msra.mxu0 %v287
    %385 = vmatprep.subr.bf16.mxu0 %v290
    %386 = vmatpush1.bf16.msra.mxu0 %v289
    %387 = vmatprep.subr.bf16.mxu0 %v292
    %388 = vmatpush1.bf16.msra.mxu0 %v291
    %389 = vmatprep.subr.bf16.mxu0 %v294
    %390 = vmatpush1.bf16.msra.mxu0 %v293
    %391 = vmatprep.subr.bf16.mxu0 %v296
    %392 = vmatpush1.bf16.msra.mxu0 %v295
    %393 = vmatprep.subr.bf16.mxu0 %v298
    %394 = vmatpush1.bf16.msra.mxu0 %v297
    %395 = vmatprep.subr.bf16.mxu0 %v300
    %396 = vmatpush1.bf16.msra.mxu0 %v299
    %397 = vmatprep.subr.bf16.mxu0 %v302
    %398 = vmatpush1.bf16.msra.mxu0 %v301
    %399 = vmatprep.subr.bf16.mxu0 %v304
    %400 = vmatpush1.bf16.msra.mxu0 %v303
    %401 = vmatprep.subr.bf16.mxu0 %v306
    %402 = vmatpush1.bf16.msra.mxu0 %v305
    %403 = vmatprep.subr.bf16.mxu0 %v308
    %404 = vmatpush1.bf16.msra.mxu0 %v307
    %405 = vmatprep.subr.bf16.mxu0 %v310
    %406 = vmatpush1.bf16.msra.mxu0 %v309
    %407 = vmatprep.subr.bf16.mxu0 %v312
    %408 = vmatpush1.bf16.msra.mxu0 %v311
    %409 = vmatprep.subr.bf16.mxu0 %v314
    %410 = vmatpush1.bf16.msra.mxu0 %v313
    %411 = vmatprep.subr.bf16.mxu0 %v316
    %412 = vmatpush1.bf16.msra.mxu0 %v315
    %413 = vmatprep.mubr.bf16.mxu0 %v130
    %414 = vmatmul.mubr.bf16.gmra.mrb[0].mxu0 %v129
    %v415 = vpop.f32.mrb[0].mxu0
    %v416 = vadd.f32 0.0, %v415
    %v417 = vpop.f32.mrb[0].mxu0
    %v418 = vadd.f32 0.0, %v417
    %v419 = vpop.f32.mrb[0].mxu0
    %v420 = vadd.f32 0.0, %v419
    %v421 = vpop.f32.mrb[0].mxu0
    %v422 = vadd.f32 0.0, %v421
    %423 = vmatprep.mubr.bf16.mxu0 %v133
    %424 = vmatmul.mubr.bf16.gmra.mrb[0].mxu0 %v132
    %v425 = vpop.f32.mrb[0].mxu0
    %v426 = vadd.f32 0.0, %v425
    %v427 = vpop.f32.mrb[0].mxu0
    %v428 = vadd.f32 0.0, %v427
    %v429 = vpop.f32.mrb[0].mxu0
    %v430 = vadd.f32 0.0, %v429
    %v431 = vpop.f32.mrb[0].mxu0
    %v432 = vadd.f32 0.0, %v431
    %433 = vdwg.mxu0
    %434 = vmatprep.subr.bf16.mxu0 %v318
    %435 = vmatpush1.bf16.msra.mxu0 %v317
    %436 = vmatprep.subr.bf16.mxu0 %v320
    %437 = vmatpush1.bf16.msra.mxu0 %v319
    %438 = vmatprep.subr.bf16.mxu0 %v322
    %439 = vmatpush1.bf16.msra.mxu0 %v321
    %440 = vmatprep.subr.bf16.mxu0 %v324
    %441 = vmatpush1.bf16.msra.mxu0 %v323
    %442 = vmatprep.subr.bf16.mxu0 %v326
    %443 = vmatpush1.bf16.msra.mxu0 %v325
    %444 = vmatprep.subr.bf16.mxu0 %v328
    %445 = vmatpush1.bf16.msra.mxu0 %v327
    %446 = vmatprep.subr.bf16.mxu0 %v330
    %447 = vmatpush1.bf16.msra.mxu0 %v329
    %448 = vmatprep.subr.bf16.mxu0 %v332
    %449 = vmatpush1.bf16.msra.mxu0 %v331
    %450 = vmatprep.subr.bf16.mxu0 0
    %451 = vmatpush1.bf16.msra.mxu0 0
    %452 = vmatprep.subr.bf16.mxu0 0
    %453 = vmatpush1.bf16.msra.mxu0 0
    %454 = vmatprep.subr.bf16.mxu0 0
    %455 = vmatpush1.bf16.msra.mxu0 0
    %456 = vmatprep.subr.bf16.mxu0 0
    %457 = vmatpush1.bf16.msra.mxu0 0
    %458 = vmatprep.subr.bf16.mxu0 0
    %459 = vmatpush1.bf16.msra.mxu0 0
    %460 = vmatprep.subr.bf16.mxu0 0
    %461 = vmatpush1.bf16.msra.mxu0 0
    %462 = vmatprep.subr.bf16.mxu0 0
    %463 = vmatpush1.bf16.msra.mxu0 0
    %464 = vmatprep.subr.bf16.mxu0 0
    %465 = vmatpush1.bf16.msra.mxu0 0
    %466 = vmatprep.mubr.bf16.mxu0 0
    %467 = vmatmul.mubr.bf16.gmra.mrb[0].mxu0 %v131
    %v468 = vpop.f32.mrb[0].mxu0
    %v469 = vadd.f32 %v416, %v468
    %v470 = vpop.f32.mrb[0].mxu0
    %v471 = vadd.f32 %v418, %v470
    %v472 = vpop.f32.mrb[0].mxu0
    %v473 = vadd.f32 %v420, %v472
    %v474 = vpop.f32.mrb[0].mxu0
    %v475 = vadd.f32 %v422, %v474
    %476 = vmatprep.mubr.bf16.mxu0 0
    %477 = vmatmul.mubr.bf16.gmra.mrb[0].mxu0 %v134
    %v478 = vpop.f32.mrb[0].mxu0
    %v479 = vadd.f32 %v426, %v478
    %v480 = vpop.f32.mrb[0].mxu0
    %v481 = vadd.f32 %v428, %v480
    %v482 = vpop.f32.mrb[0].mxu0
    %v483 = vadd.f32 %v430, %v482
    %v484 = vpop.f32.mrb[0].mxu0
    %v485 = vadd.f32 %v432, %v484
    %486 = vdwg.mxu0
    %v487 = vadd.f32 %v45, %v469
    %v488 = vadd.f32 %v46, %v471
    %v489 = vadd.f32 %v47, %v473
    %v490 = vadd.f32 %v48, %v475
    %v491 = vadd.f32 %v49, %v479
    %v492 = vadd.f32 %v50, %v481
    %v493 = vadd.f32 %v51, %v483
    %v494 = vadd.f32 %v52, %v485
    %495 = vst [vmem:[#allocation2] sm:$0xff] %v487
    %496 = vst [vmem:[#allocation2 + $0x8] sm:$0xff] %v488
    %497 = vst [vmem:[#allocation2 + $0x10] sm:$0xff] %v489
    %498 = vst [vmem:[#allocation2 + $0x18] sm:$0xff] %v490
    %499 = vst [vmem:[#allocation2 + $0x20] sm:$0xff] %v491
    %500 = vst [vmem:[#allocation2 + $0x28] sm:$0xff] %v492
    %501 = vst [vmem:[#allocation2 + $0x30] sm:$0xf] %v493
    %502 = vst [vmem:[#allocation2 + $0x38] sm:$0xf] %v494
    // Predicated region
    $region30: #{completenn_forward.9} parent=1 // pred_check
      %p503 = pneg %p33
    $region31: #{completenn_forward.9} parent=1 // pred_check_branch
      %505 = sbr.rel (%p503) target = $region33
    $region32: #{completenn_forward.9} parent=1 // pred_region
      %v506 = vld [vmem:[#allocation2] sm:$0xff]
      %v507 = vld [vmem:[#allocation2 + $0x8] sm:$0xff]
      %v508 = vld [vmem:[#allocation2 + $0x10] sm:$0xff]
      %v509 = vld [vmem:[#allocation2 + $0x18] sm:$0xff]
      %v510 = vld [vmem:[#allocation2 + $0x20] sm:$0xff]
      %v511 = vld [vmem:[#allocation2 + $0x28] sm:$0xff]
      %v512 = vld [vmem:[#allocation2 + $0x30] sm:$0xf]
      %v513 = vld [vmem:[#allocation2 + $0x38] sm:$0xf]
      %v514 = vld [vmem:[#allocation3] sm:$0x3]
      %v516 = vlaneseq
      %v517 = vshrl.u32 %v516, 7
      %v518 = vsub.s32 0, %v517
      %v519 = vrot.slane %v514, %v518
      %v520 = vlaneseq
      %v521 = vshrl.u32 %v520, 7
      %v522 = vsub.s32 1, %v521
      %v523 = vrot.slane %v514, %v522
      %v526 = vadd.f32 %v506, %v519
      %v527 = vadd.f32 %v507, %v523
      %v528 = vadd.f32 %v508, %v519
      %v529 = vadd.f32 %v509, %v523
      %v530 = vadd.f32 %v510, %v519
      %v531 = vadd.f32 %v511, %v523
      %v532 = vadd.f32 %v512, %v519
      %v533 = vadd.f32 %v513, %v523
      %v534 = vmax.f32 %v526, 0.0
      %v535 = vmax.f32 %v527, 0.0
      %v536 = vmax.f32 %v528, 0.0
      %v537 = vmax.f32 %v529, 0.0
      %v538 = vmax.f32 %v530, 0.0
      %v539 = vmax.f32 %v531, 0.0
      %v540 = vmax.f32 %v532, 0.0
      %v541 = vmax.f32 %v533, 0.0
      %v542 = vld [vmem:[%s3] sm:$0x3]
      %v544 = vlaneseq
      %v545 = vshrl.u32 %v544, 7
      %v546 = vsub.s32 0, %v545
      %v547 = vrot.slane %v542, %v546
      %v548 = vlaneseq
      %v549 = vshrl.u32 %v548, 7
      %v550 = vsub.s32 1, %v549
      %v551 = vrot.slane %v542, %v550
      %v554 = vmul.f32 %v534, %v547
      %v555 = vmul.f32 %v535, %v551
      %v556 = vmul.f32 %v536, %v547
      %v557 = vmul.f32 %v537, %v551
      %v558 = vmul.f32 %v538, %v547
      %v559 = vmul.f32 %v539, %v551
      %v560 = vmul.f32 %v540, %v547
      %v561 = vmul.f32 %v541, %v551
      %v562 = vld [vmem:[%s4] sm:$0x3]
      %v564 = vlaneseq
      %v565 = vshrl.u32 %v564, 7
      %v566 = vsub.s32 0, %v565
      %v567 = vrot.slane %v562, %v566
      %v568 = vlaneseq
      %v569 = vshrl.u32 %v568, 7
      %v570 = vsub.s32 1, %v569
      %v571 = vrot.slane %v562, %v570
      %v574 = vadd.f32 %v554, %v567
      %v575 = vadd.f32 %v555, %v571
      %v576 = vadd.f32 %v556, %v567
      %v577 = vadd.f32 %v557, %v571
      %v578 = vadd.f32 %v558, %v567
      %v579 = vadd.f32 %v559, %v571
      %v580 = vadd.f32 %v560, %v567
      %v581 = vadd.f32 %v561, %v571
      %v582 = vpack.c.bf16 %v576, %v574
      %v583 = vpack.c.bf16 %v577, %v575
      %v584 = vpack.c.bf16 %v580, %v578
      %v585 = vpack.c.bf16 %v581, %v579
      %v590 = vunpack.c.l.b16 %v582
      %v591 = vunpack.c.l.b16 %v583
      %v592 = vunpack.c.h.b16 %v582
      %v593 = vunpack.c.h.b16 %v583
      %v594 = vunpack.c.l.b16 %v584
      %v595 = vunpack.c.l.b16 %v585
      %v596 = vunpack.c.h.b16 %v584
      %v597 = vunpack.c.h.b16 %v585
      %v598 = vpack.c.b16 %v591, %v590
      %v599 = vpack.c.b16 %v593, %v592
      %v600 = vpack.c.b16 %v595, %v594
      %v601 = vpack.c.b16 %v597, %v596
      %606 = vst [vmem:[%s5] sm:$0xff] %v598
      %607 = vst [vmem:[%s5 + $0x8] sm:$0xff] %v599
      %608 = vst [vmem:[%s5 + $0x10] sm:$0xff] %v600
      %609 = vst [vmem:[%s5 + $0x18] sm:$0x33] %v601
    $region33: #{completenn_forward.9} parent=1 // pred_fallthru
      _
    // Predicated region
    $region34: #{completenn_forward.9} parent=1 // pred_check
      _
    $region35: #{completenn_forward.9} parent=1 // pred_check_branch
      %611 = sbr.rel (0) target = $region37
    $region36: #{completenn_forward.9} parent=1 // pred_region
      _
    $region37: #{completenn_forward.9} parent=1 // pred_fallthru
      _
    // Predicated region
    $region38: #{completenn_forward.9} parent=1 // pred_check
      _
    $region39: #{completenn_forward.9} parent=1 // pred_check_branch
      %613 = sbr.rel (0) target = $region41
    $region40: #{completenn_forward.9} parent=1 // pred_region
      _
    $region41: #{completenn_forward.9} parent=1 // pred_fallthru
      _
    %614 = vsyncpa [#allocation4], 1

// kernel: completenn_forward.10
$region0: #{completenn_forward.10}
  #allocation0 [shape = 'u32[]', space=smem, size = 0x4, offset = 0x4, fixed_abs, tag = 'smem constant byte address 0x4 - core index']
  #allocation1 [shape = 'u32[144,128]{1,0:T(1,128)}', space=vmem, size = 0x12000, scoped, tag = 'internal scratch']
  #allocation2 [shape = 'f32[28,512]{1,0:T(8,128)}', space=vmem, size = 0x10000, scoped, tag = 'scratch operand']
  %s0 = inlined_call_operand.vmem [shape: bf16[28,768], index: 0, kind: input, shape index: {}]
  %s1 = inlined_call_operand.vmem [shape: bf16[768,512], index: 1, kind: input, shape index: {}]
  %s2 = inlined_call_operand.vmem [shape: f32[1,512], index: 2, kind: input, shape index: {}]
  %s3 = inlined_call_operand.vmem [shape: f32[1,512], index: 3, kind: input, shape index: {}]
  %s4 = inlined_call_operand.vmem [shape: f32[1,512], index: 4, kind: input, shape index: {}]
  %s5 = inlined_call_operand.vmem [shape: bf16[28,512], index: 5, kind: output, shape index: {}]
  %s6 = sld [smem:[#allocation0]]
  $region87: #{completenn_forward.10} parent=0
    _
  %s8 = ssub.s32 1, %s6
  %s9 = scalar_select 0, %s8, %s6
  $region1: #{completenn_forward.10} parent=0
    #allocation3 [shape = 'u8[49152]{0}', space=vmem, size = 0xc000, scoped, tag = 'input window, operand 0']
    loop: start=0, step=1, limit=4
    $region2: #{completenn_forward.10} parent=1 // loop_pre_header
      _
    $region3: #{completenn_forward.10} parent=1 // loop_header
      %s11 = sphi 0, %s15
      %p12 = scmp.ge.s32.totalorder %s11, 4
      %s18 = sphi 0, %s37
      %s19 = sphi 0, %s33
      %s20 = sphi 0, %s29
      %s21 = sphi 0, %s18
      %s22 = sphi 0, %s19
      %s23 = sphi 0, %s20
      %s24 = sphi 0, %s21
      %s25 = sphi 0, %s22
      %s26 = sphi 0, %s23
      %s42 = sphi 0, %s44
      %s45 = sphi 0, %s42
      %s46 = sphi 0, %s45
      %s62 = sphi 0, %s46
      %s70 = sphi 0, %s72
      %s73 = sphi 0, %s70
      %s74 = sphi 0, %s73
      %s90 = sphi 0, %s74
      %s96 = sphi 0, %s98
      %s99 = sphi 0, %s96
      %s100 = sphi 0, %s99
      %s116 = sphi 0, %s100
      %s122 = sphi 0, %s124
      %s125 = sphi 0, %s122
      %s126 = sphi 0, %s125
      %s142 = sphi 0, %s126
      %s148 = sphi 0, %s150
      %s151 = sphi 0, %s148
      %s152 = sphi 0, %s151
      %s168 = sphi 0, %s152
      %s176 = sphi 0, %s178
      %s179 = sphi 0, %s176
      %s180 = sphi 0, %s179
      %s196 = sphi 0, %s180
    $region4: #{completenn_forward.10} parent=1 // loop_header_branch
      %14 = sbr.rel (%p12) target = $region8
    $region5: #{completenn_forward.10} parent=1 // loop_body
      %s16 = ssub.s32 %s11, 1
      %s17 = ssub.s32 %s11, 2
      %s27 = sadd.s32 1, %s20
      %p28 = scmp.ge.s32.totalorder %s27, 2
      %s29 = scalar_select %p28, 0, %s27
      %s30 = sadd.s32 1, %s19
      %s31 = scalar_select %p28, %s30, %s19
      %p32 = scmp.ge.s32.totalorder %s31, 1
      %s33 = scalar_select %p32, 0, %s31
      %s34 = sadd.s32 1, %s18
      %s35 = scalar_select %p32, %s34, %s18
      %p36 = scmp.ge.s32.totalorder %s35, 1
      %s37 = scalar_select %p36, 0, %s35
      %s38 = ssub.s32 %s18, %s37
      %s39 = ssub.s32 %s20, %s29
      %s40 = sor.u32 %s38, %s39
      %p41 = scmp.eq.s32.totalorder %s40, 0
      %s43 = sadd.s32 %s42, 1
      %s44 = scalar_select %p41, %s42, %s43
      %p47 = pneg %p41
      %p48 = scmp.eq.s32.totalorder %s11, 1
      %p49 = por %p47, %p48
      %p50 = scmp.ne.s32.totalorder %s42, %s45
      %p51 = scmp.eq.s32.totalorder %s11, 0
      %p52 = por %p50, %p51
      %p53 = scmp.ne.s32.totalorder %s42, %s45
      %p54 = scmp.eq.s32.totalorder %s16, 1
      %p55 = por %p53, %p54
      %p56 = scmp.ne.s32.totalorder %s45, %s46
      %p57 = scmp.eq.s32.totalorder %s16, 0
      %p58 = por %p56, %p57
      %p59 = scmp.ne.s32.totalorder %s45, %s46
      %p60 = scmp.eq.s32.totalorder %s17, 1
      %p61 = por %p59, %p60
      %p63 = scmp.ne.s32.totalorder %s46, %s62
      %p64 = scmp.eq.s32.totalorder %s17, 0
      %p65 = por %p63, %p64
      %s66 = ssub.s32 %s20, %s29
      %s67 = ssub.s32 %s19, %s33
      %s68 = sor.u32 %s66, %s67
      %p69 = scmp.eq.s32.totalorder %s68, 0
      %s71 = sadd.s32 %s70, 1
      %s72 = scalar_select %p69, %s70, %s71
      %p75 = pneg %p69
      %p76 = scmp.eq.s32.totalorder %s11, 1
      %p77 = por %p75, %p76
      %p78 = scmp.ne.s32.totalorder %s70, %s73
      %p79 = scmp.eq.s32.totalorder %s11, 0
      %p80 = por %p78, %p79
      %p81 = scmp.ne.s32.totalorder %s70, %s73
      %p82 = scmp.eq.s32.totalorder %s16, 1
      %p83 = por %p81, %p82
      %p84 = scmp.ne.s32.totalorder %s73, %s74
      %p85 = scmp.eq.s32.totalorder %s16, 0
      %p86 = por %p84, %p85
      %p87 = scmp.ne.s32.totalorder %s73, %s74
      %p88 = scmp.eq.s32.totalorder %s17, 1
      %p89 = por %p87, %p88
      %p91 = scmp.ne.s32.totalorder %s74, %s90
      %p92 = scmp.eq.s32.totalorder %s17, 0
      %p93 = por %p91, %p92
      %s94 = ssub.s32 %s19, %s33
      %p95 = scmp.eq.s32.totalorder %s94, 0
      %s97 = sadd.s32 %s96, 1
      %s98 = scalar_select %p95, %s96, %s97
      %p101 = pneg %p95
      %p102 = scmp.eq.s32.totalorder %s11, 1
      %p103 = por %p101, %p102
      %p104 = scmp.ne.s32.totalorder %s96, %s99
      %p105 = scmp.eq.s32.totalorder %s11, 0
      %p106 = por %p104, %p105
      %p107 = scmp.ne.s32.totalorder %s96, %s99
      %p108 = scmp.eq.s32.totalorder %s16, 1
      %p109 = por %p107, %p108
      %p110 = scmp.ne.s32.totalorder %s99, %s100
      %p111 = scmp.eq.s32.totalorder %s16, 0
      %p112 = por %p110, %p111
      %p113 = scmp.ne.s32.totalorder %s99, %s100
      %p114 = scmp.eq.s32.totalorder %s17, 1
      %p115 = por %p113, %p114
      %p117 = scmp.ne.s32.totalorder %s100, %s116
      %p118 = scmp.eq.s32.totalorder %s17, 0
      %p119 = por %p117, %p118
      %s120 = ssub.s32 %s19, %s33
      %p121 = scmp.eq.s32.totalorder %s120, 0
      %s123 = sadd.s32 %s122, 1
      %s124 = scalar_select %p121, %s122, %s123
      %p127 = pneg %p121
      %p128 = scmp.eq.s32.totalorder %s11, 1
      %p129 = por %p127, %p128
      %p130 = scmp.ne.s32.totalorder %s122, %s125
      %p131 = scmp.eq.s32.totalorder %s11, 0
      %p132 = por %p130, %p131
      %p133 = scmp.ne.s32.totalorder %s122, %s125
      %p134 = scmp.eq.s32.totalorder %s16, 1
      %p135 = por %p133, %p134
      %p136 = scmp.ne.s32.totalorder %s125, %s126
      %p137 = scmp.eq.s32.totalorder %s16, 0
      %p138 = por %p136, %p137
      %p139 = scmp.ne.s32.totalorder %s125, %s126
      %p140 = scmp.eq.s32.totalorder %s17, 1
      %p141 = por %p139, %p140
      %p143 = scmp.ne.s32.totalorder %s126, %s142
      %p144 = scmp.eq.s32.totalorder %s17, 0
      %p145 = por %p143, %p144
      %s146 = ssub.s32 %s19, %s33
      %p147 = scmp.eq.s32.totalorder %s146, 0
      %s149 = sadd.s32 %s148, 1
      %s150 = scalar_select %p147, %s148, %s149
      %p153 = pneg %p147
      %p154 = scmp.eq.s32.totalorder %s11, 1
      %p155 = por %p153, %p154
      %p156 = scmp.ne.s32.totalorder %s148, %s151
      %p157 = scmp.eq.s32.totalorder %s11, 0
      %p158 = por %p156, %p157
      %p159 = scmp.ne.s32.totalorder %s148, %s151
      %p160 = scmp.eq.s32.totalorder %s16, 1
      %p161 = por %p159, %p160
      %p162 = scmp.ne.s32.totalorder %s151, %s152
      %p163 = scmp.eq.s32.totalorder %s16, 0
      %p164 = por %p162, %p163
      %p165 = scmp.ne.s32.totalorder %s151, %s152
      %p166 = scmp.eq.s32.totalorder %s17, 1
      %p167 = por %p165, %p166
      %p169 = scmp.ne.s32.totalorder %s152, %s168
      %p170 = scmp.eq.s32.totalorder %s17, 0
      %p171 = por %p169, %p170
      %s172 = ssub.s32 %s18, %s37
      %s173 = ssub.s32 %s19, %s33
      %s174 = sor.u32 %s172, %s173
      %p175 = scmp.eq.s32.totalorder %s174, 0
      %s177 = sadd.s32 %s176, 1
      %s178 = scalar_select %p175, %s176, %s177
      %p181 = pneg %p175
      %p182 = scmp.eq.s32.totalorder %s11, 1
      %p183 = por %p181, %p182
      %p184 = scmp.ne.s32.totalorder %s176, %s179
      %p185 = scmp.eq.s32.totalorder %s11, 0
      %p186 = por %p184, %p185
      %p187 = scmp.ne.s32.totalorder %s176, %s179
      %p188 = scmp.eq.s32.totalorder %s16, 1
      %p189 = por %p187, %p188
      %p190 = scmp.ne.s32.totalorder %s179, %s180
      %p191 = scmp.eq.s32.totalorder %s16, 0
      %p192 = por %p190, %p191
      %p193 = scmp.ne.s32.totalorder %s179, %s180
      %p194 = scmp.eq.s32.totalorder %s17, 1
      %p195 = por %p193, %p194
      %p197 = scmp.ne.s32.totalorder %s180, %s196
      %p198 = scmp.eq.s32.totalorder %s17, 0
      %p199 = por %p197, %p198
      %p200 = scmp.le.s32.totalorder 1, %s11
      %p201 = scmp.lt.s32.totalorder %s11, 3
      %p202 = pnand %p200, %p201
      %p203 = pneg %p202
      // Predicated region
      $region9: #{completenn_forward.10} parent=5 // pred_check
        _
      $region10: #{completenn_forward.10} parent=5 // pred_check_branch
        %205 = sbr.rel (%p202) target = $region12
      $region11: #{completenn_forward.10} parent=5 // pred_region
        %s206 = ssub.s32 %s11, 1
        // Predicated region
        $region13: #{completenn_forward.10} parent=11 // pred_check
          %p207 = pneg %p112
        $region14: #{completenn_forward.10} parent=11 // pred_check_branch
          %209 = sbr.rel (%p207) target = $region16
        $region15: #{completenn_forward.10} parent=11 // pred_region
          %s210 = smul.u32 4, %s22
          %p211 = scmp.lt.s32.totalorder %s210, 3
          %s212 = scalar_select %p211, %s210, 3
          %s213 = scalar_lea.vmem %s2, %s212
          %s214 = smul.u32 4, %s22
        $region16: #{completenn_forward.10} parent=11 // pred_fallthru
          _
        // Predicated region
        $region17: #{completenn_forward.10} parent=11 // pred_check
          %p215 = pneg %p138
        $region18: #{completenn_forward.10} parent=11 // pred_check_branch
          %217 = sbr.rel (%p215) target = $region20
        $region19: #{completenn_forward.10} parent=11 // pred_region
          %s218 = smul.u32 4, %s22
          %p219 = scmp.lt.s32.totalorder %s218, 3
          %s220 = scalar_select %p219, %s218, 3
          %s221 = scalar_lea.vmem %s3, %s220
          %s222 = smul.u32 4, %s22
        $region20: #{completenn_forward.10} parent=11 // pred_fallthru
          _
        // Predicated region
        $region21: #{completenn_forward.10} parent=11 // pred_check
          %p223 = pneg %p164
        $region22: #{completenn_forward.10} parent=11 // pred_check_branch
          %225 = sbr.rel (%p223) target = $region24
        $region23: #{completenn_forward.10} parent=11 // pred_region
          %s226 = smul.u32 4, %s22
          %p227 = scmp.lt.s32.totalorder %s226, 3
          %s228 = scalar_select %p227, %s226, 3
          %s229 = scalar_lea.vmem %s4, %s228
          %s230 = smul.u32 4, %s22
        $region24: #{completenn_forward.10} parent=11 // pred_fallthru
          _
      $region12: #{completenn_forward.10} parent=5 // pred_fallthru
        _
      %p231 = scmp.lt.s32.totalorder %s11, 2
      // Predicated region
      $region25: #{completenn_forward.10} parent=5 // pred_check
        %p232 = pneg %p231
      $region26: #{completenn_forward.10} parent=5 // pred_check_branch
        %234 = sbr.rel (%p232) target = $region28
      $region27: #{completenn_forward.10} parent=5 // pred_region
        // Predicated region
        $region29: #{completenn_forward.10} parent=27 // pred_check
          %p235 = pneg %p52
        $region30: #{completenn_forward.10} parent=27 // pred_check_branch
          %237 = sbr.rel (%p235) target = $region32
        $region31: #{completenn_forward.10} parent=27 // pred_region
          %s238 = sand.u32 %s42, 1
          %s239 = sand.u32 %s42, 1
          %s240 = smul.addr %s239, 48
          %s241 = scalar_lea.vmem [#allocation3], %s240
          %s242 = smul.u32 4, %s18
          %s243 = smul.u32 3, %s20
          %s244 = smul.addr %s242, 6
          %s245 = sadd.s32 %s243, %s244
          %s246 = smul.addr %s245, 4
          %s247 = scalar_lea.vmem %s0, %s246
          // Predicated region
          $region33: #{completenn_forward.10} parent=31 // pred_check
            _
          $region34: #{completenn_forward.10} parent=31 // pred_check_branch
            %249 = sbr.rel (0) target = $region36
          $region35: #{completenn_forward.10} parent=31 // pred_region
            // Predicated region
            $region37: #{completenn_forward.10} parent=35 // pred_check
              _
            $region38: #{completenn_forward.10} parent=35 // pred_check_branch
              %251 = sbr.rel (0) target = $region40
            $region39: #{completenn_forward.10} parent=35 // pred_region
              %s252 = scalar_lea.vmem %s247, 8
              %s253 = scalar_lea.vmem %s241, 8 [#allocation3]
              loop: start=0, step=1, limit=1
              $region41: #{completenn_forward.10} parent=39 // loop_pre_header
                _
              $region42: #{completenn_forward.10} parent=39 // loop_header
                %s255 = sphi 0, %s259
                %p256 = scmp.ge.s32.totalorder %s255, 1
                %s260 = sphi %s247, %s247
                %s261 = sphi %s241, %s241
              $region43: #{completenn_forward.10} parent=39 // loop_header_branch
                %258 = sbr.rel (%p256) target = $region47
              $region44: #{completenn_forward.10} parent=39 // loop_body
                %v262 = vld [vmem:[%s260] sm:$0xff]
                %263 = vst [vmem:[%s261] sm:$0xff] %v262
                %v264 = vld [vmem:[%s260 + $0x18] sm:$0xff]
                %265 = vst [vmem:[%s261 + $0xc] sm:$0xff] %v264
                %v266 = vld [vmem:[%s260 + $0x30] sm:$0xff]
                %267 = vst [vmem:[%s261 + $0x18] sm:$0xff] %v266
                %v268 = vld [vmem:[%s260 + $0x48] sm:$0xff]
                %269 = vst [vmem:[%s261 + $0x24] sm:$0xff] %v268
              $region45: #{completenn_forward.10} parent=39 // loop_footer
                %s259 = sadd.s32 1, %s255
              $region46: #{completenn_forward.10} parent=39 // loop_footer_branch
                %254 = sbr.rel target = $region42
              $region47: #{completenn_forward.10} parent=39 // loop_exit
                _
              loop: start=0, step=1, limit=1
              $region48: #{completenn_forward.10} parent=39 // loop_pre_header
                _
              $region49: #{completenn_forward.10} parent=39 // loop_header
                %s272 = sphi 0, %s276
                %p273 = scmp.ge.s32.totalorder %s272, 1
                %s277 = sphi %s252, %s252
                %s278 = sphi %s253, %s253
              $region50: #{completenn_forward.10} parent=39 // loop_header_branch
                %275 = sbr.rel (%p273) target = $region54
              $region51: #{completenn_forward.10} parent=39 // loop_body
                %v279 = vld [vmem:[%s277] sm:$0xf]
                %280 = vst [vmem:[%s278] sm:$0xf] %v279
                %v281 = vld [vmem:[%s277 + $0x18] sm:$0xf]
                %282 = vst [vmem:[%s278 + $0xc] sm:$0xf] %v281
                %v283 = vld [vmem:[%s277 + $0x30] sm:$0xf]
                %284 = vst [vmem:[%s278 + $0x18] sm:$0xf] %v283
                %v285 = vld [vmem:[%s277 + $0x48] sm:$0xf]
                %286 = vst [vmem:[%s278 + $0x24] sm:$0xf] %v285
              $region52: #{completenn_forward.10} parent=39 // loop_footer
                %s276 = sadd.s32 1, %s272
              $region53: #{completenn_forward.10} parent=39 // loop_footer_branch
                %271 = sbr.rel target = $region49
              $region54: #{completenn_forward.10} parent=39 // loop_exit
                _
            $region40: #{completenn_forward.10} parent=35 // pred_fallthru
              _
          $region36: #{completenn_forward.10} parent=31 // pred_fallthru
            _
          %287 = vnop
        $region32: #{completenn_forward.10} parent=27 // pred_fallthru
          _
        // Predicated region
        $region55: #{completenn_forward.10} parent=27 // pred_check
          %p288 = pneg %p80
        $region56: #{completenn_forward.10} parent=27 // pred_check_branch
          %290 = sbr.rel (%p288) target = $region58
        $region57: #{completenn_forward.10} parent=27 // pred_region
          %s291 = smul.u32 48, %s20
          %s292 = smul.u32 4, %s19
          %p293 = scmp.lt.s32.totalorder %s291, 95
          %s294 = scalar_select %p293, %s291, 95
          %p295 = scmp.lt.s32.totalorder %s292, 3
          %s296 = scalar_select %p295, %s292, 3
          %s297 = smul.addr %s294, 4
          %s298 = sadd.s32 %s296, %s297
          %s299 = smul.addr %s298, 4
          %s300 = scalar_lea.vmem %s1, %s299
          %s301 = smul.u32 48, %s20
          %s302 = smul.u32 4, %s19
        $region58: #{completenn_forward.10} parent=27 // pred_fallthru
          _
      $region28: #{completenn_forward.10} parent=5 // pred_fallthru
        _
      %p303 = scmp.le.s32.totalorder 1, %s11
      %p304 = scmp.lt.s32.totalorder %s11, 3
      %p305 = pnand %p303, %p304
      %p306 = pneg %p305
      // Predicated region
      $region59: #{completenn_forward.10} parent=5 // pred_check
        _
      $region60: #{completenn_forward.10} parent=5 // pred_check_branch
        %308 = sbr.rel (%p305) target = $region62
      $region61: #{completenn_forward.10} parent=5 // pred_region
        %s309 = ssub.s32 %s11, 1
        %s310 = sand.u32 %s45, 1
        %s311 = sand.u32 %s45, 1
        %s312 = smul.addr %s311, 48
        %s313 = scalar_lea.vmem [#allocation3], %s312
        // Predicated region
        $region63: #{completenn_forward.10} parent=61 // pred_check
          %p314 = pneg %p58
        $region64: #{completenn_forward.10} parent=61 // pred_check_branch
          %316 = sbr.rel (%p314) target = $region66
        $region65: #{completenn_forward.10} parent=61 // pred_region
          _
        $region66: #{completenn_forward.10} parent=61 // pred_fallthru
          _
        %s317 = sand.u32 %s45, 1
        %s318 = sand.u32 %s45, 1
        %s319 = smul.addr %s318, 48
        %s320 = scalar_lea.vmem [#allocation3], %s319
        %p321 = pneg %p58
        %p322 = pneg %p55
        %s323 = smul.u32 48, %s23
        %s324 = smul.u32 4, %s22
        %p325 = scmp.lt.s32.totalorder %s323, 95
        %s326 = scalar_select %p325, %s323, 95
        %p327 = scmp.lt.s32.totalorder %s324, 3
        %s328 = scalar_select %p327, %s324, 3
        %s329 = smul.addr %s326, 4
        %s330 = sadd.s32 %s328, %s329
        %s331 = smul.addr %s330, 4
        %s332 = scalar_lea.vmem %s1, %s331
        %p333 = pneg %p86
        %p334 = pneg %p83
        %s335 = smul.u32 4, %s22
        %p336 = scmp.lt.s32.totalorder %s335, 3
        %s337 = scalar_select %p336, %s335, 3
        %s338 = scalar_lea.vmem %s2, %s337
        %p339 = pneg %p112
        %p340 = pneg %p109
        %s341 = smul.u32 4, %s22
        %p342 = scmp.lt.s32.totalorder %s341, 3
        %s343 = scalar_select %p342, %s341, 3
        %s344 = scalar_lea.vmem %s3, %s343
        %p345 = pneg %p138
        %p346 = pneg %p135
        %s347 = smul.u32 4, %s22
        %p348 = scmp.lt.s32.totalorder %s347, 3
        %s349 = scalar_select %p348, %s347, 3
        %s350 = scalar_lea.vmem %s4, %s349
        %p351 = pneg %p164
        %p352 = pneg %p161
        %p353 = pneg %p192
        %p354 = pneg %p189
        %s355 = smul.u32 4, %s21
        %s356 = smul.u32 4, %s22
        %p357 = scmp.lt.s32.totalorder %s355, 3
        %s358 = scalar_select %p357, %s355, 3
        %p359 = scmp.lt.s32.totalorder %s356, 3
        %s360 = scalar_select %p359, %s356, 3
        %s361 = smul.addr %s358, 4
        %s362 = sadd.s32 %s360, %s361
        %s363 = smul.addr %s362, 4
        %s364 = scalar_lea.vmem %s5, %s363
        %s365 = smul.u32 4, %s21
        %s366 = smul.u32 3, %s23
        %s367 = smul.u32 48, %s23
        %s368 = smul.u32 4, %s22
        %p369 = scmp.lt.s32.totalorder %s367, 95
        %s370 = scalar_select %p369, %s367, 95
        %p371 = scmp.lt.s32.totalorder %s368, 3
        %s372 = scalar_select %p371, %s368, 3
        %s373 = smul.addr %s370, 4
        %s374 = sadd.s32 %s372, %s373
        %s375 = smul.addr %s374, 4
        %s376 = scalar_lea.vmem %s1, %s375
        %s377 = smul.u32 48, %s23
        %s378 = smul.u32 4, %s22
        %s379 = smul.u32 4, %s22
        %p380 = scmp.lt.s32.totalorder %s379, 3
        %s381 = scalar_select %p380, %s379, 3
        %s382 = scalar_lea.vmem %s2, %s381
        %s383 = smul.u32 4, %s22
        %s384 = smul.u32 4, %s22
        %p385 = scmp.lt.s32.totalorder %s384, 3
        %s386 = scalar_select %p385, %s384, 3
        %s387 = scalar_lea.vmem %s3, %s386
        %s388 = smul.u32 4, %s22
        %s389 = smul.u32 4, %s22
        %p390 = scmp.lt.s32.totalorder %s389, 3
        %s391 = scalar_select %p390, %s389, 3
        %s392 = scalar_lea.vmem %s4, %s391
        %s393 = smul.u32 4, %s22
        %s394 = smul.u32 4, %s21
        %s395 = smul.u32 4, %s22
        %p396 = scmp.lt.s32.totalorder %s394, 3
        %s397 = scalar_select %p396, %s394, 3
        %p398 = scmp.lt.s32.totalorder %s395, 3
        %s399 = scalar_select %p398, %s395, 3
        %s400 = smul.addr %s397, 4
        %s401 = sadd.s32 %s399, %s400
        %s402 = smul.addr %s401, 4
        %s403 = scalar_lea.vmem %s5, %s402
        %s404 = smul.u32 4, %s21
        %s405 = smul.u32 4, %s22
        %p407 = scmp.eq.s32.totalorder %s23, 0
        // Predicated region
        $region67: #{completenn_forward.10} parent=61 // pred_check
          %p408 = pneg %p407
        $region68: #{completenn_forward.10} parent=61 // pred_check_branch
          %410 = sbr.rel (%p408) target = $region70
        $region69: #{completenn_forward.10} parent=61 // pred_region
          %411 = vst [vmem:[#allocation2] sm:$0xff] 0.0
          %412 = vst [vmem:[#allocation2 + $0x8] sm:$0xff] 0.0
          %413 = vst [vmem:[#allocation2 + $0x10] sm:$0xff] 0.0
          %414 = vst [vmem:[#allocation2 + $0x18] sm:$0xff] 0.0
          %415 = vst [vmem:[#allocation2 + $0x20] sm:$0xff] 0.0
          %416 = vst [vmem:[#allocation2 + $0x28] sm:$0xff] 0.0
          %417 = vst [vmem:[#allocation2 + $0x30] sm:$0xff] 0.0
          %418 = vst [vmem:[#allocation2 + $0x38] sm:$0xff] 0.0
          %419 = vst [vmem:[#allocation2 + $0x40] sm:$0xff] 0.0
          %420 = vst [vmem:[#allocation2 + $0x48] sm:$0xff] 0.0
          %421 = vst [vmem:[#allocation2 + $0x50] sm:$0xff] 0.0
          %422 = vst [vmem:[#allocation2 + $0x58] sm:$0xff] 0.0
          %423 = vst [vmem:[#allocation2 + $0x60] sm:$0xf] 0.0
          %424 = vst [vmem:[#allocation2 + $0x68] sm:$0xf] 0.0
          %425 = vst [vmem:[#allocation2 + $0x70] sm:$0xf] 0.0
          %426 = vst [vmem:[#allocation2 + $0x78] sm:$0xf] 0.0
        $region70: #{completenn_forward.10} parent=61 // pred_fallthru
          _
        %v427 = vld [vmem:[#allocation2] sm:$0xff]
        %v428 = vld [vmem:[#allocation2 + $0x8] sm:$0xff]
        %v429 = vld [vmem:[#allocation2 + $0x10] sm:$0xff]
        %v430 = vld [vmem:[#allocation2 + $0x18] sm:$0xff]
        %v431 = vld [vmem:[#allocation2 + $0x20] sm:$0xff]
        %v432 = vld [vmem:[#allocation2 + $0x28] sm:$0xff]
        %v433 = vld [vmem:[#allocation2 + $0x30] sm:$0xff]
        %v434 = vld [vmem:[#allocation2 + $0x38] sm:$0xff]
        %v435 = vld [vmem:[#allocation2 + $0x40] sm:$0xff]
        %v436 = vld [vmem:[#allocation2 + $0x48] sm:$0xff]
        %v437 = vld [vmem:[#allocation2 + $0x50] sm:$0xff]
        %v438 = vld [vmem:[#allocation2 + $0x58] sm:$0xff]
        %v439 = vld [vmem:[#allocation2 + $0x60] sm:$0xf]
        %v440 = vld [vmem:[#allocation2 + $0x68] sm:$0xf]
        %v441 = vld [vmem:[#allocation2 + $0x70] sm:$0xf]
        %v442 = vld [vmem:[#allocation2 + $0x78] sm:$0xf]
        %v443 = vld [vmem:[%s313] sm:$0xff]
        %v444 = vld [vmem:[%s313 + $0x8] sm:$0xf]
        %v445 = vld [vmem:[%s313 + $0xc] sm:$0xff]
        %v446 = vld [vmem:[%s313 + $0x14] sm:$0xf]
        %v447 = vld [vmem:[%s313 + $0x18] sm:$0xff]
        %v448 = vld [vmem:[%s313 + $0x20] sm:$0xf]
        %v449 = vld [vmem:[%s313 + $0x24] sm:$0x33]
        %v450 = vld [vmem:[%s313 + $0x2c] sm:$0x3]
        %v451 = vld [vmem:[%s376] sm:$0xff]
        %v452 = vld [vmem:[%s376 + $0x8] sm:$0xff]
        %v453 = vld [vmem:[%s376 + $0x10] sm:$0xff]
        %v454 = vld [vmem:[%s376 + $0x18] sm:$0xff]
        %v455 = vld [vmem:[%s376 + $0x20] sm:$0xff]
        %v456 = vld [vmem:[%s376 + $0x28] sm:$0xff]
        %v457 = vld [vmem:[%s376 + $0x30] sm:$0xff]
        %v458 = vld [vmem:[%s376 + $0x38] sm:$0xff]
        %v459 = vld [vmem:[%s376 + $0x40] sm:$0xff]
        %v460 = vld [vmem:[%s376 + $0x48] sm:$0xff]
        %v461 = vld [vmem:[%s376 + $0x50] sm:$0xff]
        %v462 = vld [vmem:[%s376 + $0x58] sm:$0xff]
        %v463 = vld [vmem:[%s376 + $0x60] sm:$0xff]
        %v464 = vld [vmem:[%s376 + $0x68] sm:$0xff]
        %v465 = vld [vmem:[%s376 + $0x70] sm:$0xff]
        %v466 = vld [vmem:[%s376 + $0x78] sm:$0xff]
        %v467 = vld [vmem:[%s376 + $0x80] sm:$0xff]
        %v468 = vld [vmem:[%s376 + $0x88] sm:$0xff]
        %v469 = vld [vmem:[%s376 + $0x90] sm:$0xff]
        %v470 = vld [vmem:[%s376 + $0x98] sm:$0xff]
        %v471 = vld [vmem:[%s376 + $0xa0] sm:$0xff]
        %v472 = vld [vmem:[%s376 + $0xa8] sm:$0xff]
        %v473 = vld [vmem:[%s376 + $0xb0] sm:$0xff]
        %v474 = vld [vmem:[%s376 + $0xb8] sm:$0xff]
        %v475 = vld [vmem:[%s376 + $0xc0] sm:$0xff]
        %v476 = vld [vmem:[%s376 + $0xc8] sm:$0xff]
        %v477 = vld [vmem:[%s376 + $0xd0] sm:$0xff]
        %v478 = vld [vmem:[%s376 + $0xd8] sm:$0xff]
        %v479 = vld [vmem:[%s376 + $0xe0] sm:$0xff]
        %v480 = vld [vmem:[%s376 + $0xe8] sm:$0xff]
        %v481 = vld [vmem:[%s376 + $0xf0] sm:$0xff]
        %v482 = vld [vmem:[%s376 + $0xf8] sm:$0xff]
        %v483 = vld [vmem:[%s376 + $0x100] sm:$0xff]
        %v484 = vld [vmem:[%s376 + $0x108] sm:$0xff]
        %v485 = vld [vmem:[%s376 + $0x110] sm:$0xff]
        %v486 = vld [vmem:[%s376 + $0x118] sm:$0xff]
        %v487 = vld [vmem:[%s376 + $0x120] sm:$0xff]
        %v488 = vld [vmem:[%s376 + $0x128] sm:$0xff]
        %v489 = vld [vmem:[%s376 + $0x130] sm:$0xff]
        %v490 = vld [vmem:[%s376 + $0x138] sm:$0xff]
        %v491 = vld [vmem:[%s376 + $0x140] sm:$0xff]
        %v492 = vld [vmem:[%s376 + $0x148] sm:$0xff]
        %v493 = vld [vmem:[%s376 + $0x150] sm:$0xff]
        %v494 = vld [vmem:[%s376 + $0x158] sm:$0xff]
        %v495 = vld [vmem:[%s376 + $0x160] sm:$0xff]
        %v496 = vld [vmem:[%s376 + $0x168] sm:$0xff]
        %v497 = vld [vmem:[%s376 + $0x170] sm:$0xff]
        %v498 = vld [vmem:[%s376 + $0x178] sm:$0xff]
        %v499 = vld [vmem:[%s376 + $0x180] sm:$0xff]
        %v500 = vld [vmem:[%s376 + $0x188] sm:$0xff]
        %v501 = vld [vmem:[%s376 + $0x190] sm:$0xff]
        %v502 = vld [vmem:[%s376 + $0x198] sm:$0xff]
        %v503 = vld [vmem:[%s376 + $0x1a0] sm:$0xff]
        %v504 = vld [vmem:[%s376 + $0x1a8] sm:$0xff]
        %v505 = vld [vmem:[%s376 + $0x1b0] sm:$0xff]
        %v506 = vld [vmem:[%s376 + $0x1b8] sm:$0xff]
        %v507 = vld [vmem:[%s376 + $0x1c0] sm:$0xff]
        %v508 = vld [vmem:[%s376 + $0x1c8] sm:$0xff]
        %v509 = vld [vmem:[%s376 + $0x1d0] sm:$0xff]
        %v510 = vld [vmem:[%s376 + $0x1d8] sm:$0xff]
        %v511 = vld [vmem:[%s376 + $0x1e0] sm:$0xff]
        %v512 = vld [vmem:[%s376 + $0x1e8] sm:$0xff]
        %v513 = vld [vmem:[%s376 + $0x1f0] sm:$0xff]
        %v514 = vld [vmem:[%s376 + $0x1f8] sm:$0xff]
        %v515 = vld [vmem:[%s376 + $0x200] sm:$0xff]
        %v516 = vld [vmem:[%s376 + $0x208] sm:$0xff]
        %v517 = vld [vmem:[%s376 + $0x210] sm:$0xff]
        %v518 = vld [vmem:[%s376 + $0x218] sm:$0xff]
        %v519 = vld [vmem:[%s376 + $0x220] sm:$0xff]
        %v520 = vld [vmem:[%s376 + $0x228] sm:$0xff]
        %v521 = vld [vmem:[%s376 + $0x230] sm:$0xff]
        %v522 = vld [vmem:[%s376 + $0x238] sm:$0xff]
        %v523 = vld [vmem:[%s376 + $0x240] sm:$0xff]
        %v524 = vld [vmem:[%s376 + $0x248] sm:$0xff]
        %v525 = vld [vmem:[%s376 + $0x250] sm:$0xff]
        %v526 = vld [vmem:[%s376 + $0x258] sm:$0xff]
        %v527 = vld [vmem:[%s376 + $0x260] sm:$0xff]
        %v528 = vld [vmem:[%s376 + $0x268] sm:$0xff]
        %v529 = vld [vmem:[%s376 + $0x270] sm:$0xff]
        %v530 = vld [vmem:[%s376 + $0x278] sm:$0xff]
        %v531 = vld [vmem:[%s376 + $0x280] sm:$0xff]
        %v532 = vld [vmem:[%s376 + $0x288] sm:$0xff]
        %v533 = vld [vmem:[%s376 + $0x290] sm:$0xff]
        %v534 = vld [vmem:[%s376 + $0x298] sm:$0xff]
        %v535 = vld [vmem:[%s376 + $0x2a0] sm:$0xff]
        %v536 = vld [vmem:[%s376 + $0x2a8] sm:$0xff]
        %v537 = vld [vmem:[%s376 + $0x2b0] sm:$0xff]
        %v538 = vld [vmem:[%s376 + $0x2b8] sm:$0xff]
        %v539 = vld [vmem:[%s376 + $0x2c0] sm:$0xff]
        %v540 = vld [vmem:[%s376 + $0x2c8] sm:$0xff]
        %v541 = vld [vmem:[%s376 + $0x2d0] sm:$0xff]
        %v542 = vld [vmem:[%s376 + $0x2d8] sm:$0xff]
        %v543 = vld [vmem:[%s376 + $0x2e0] sm:$0xff]
        %v544 = vld [vmem:[%s376 + $0x2e8] sm:$0xff]
        %v545 = vld [vmem:[%s376 + $0x2f0] sm:$0xff]
        %v546 = vld [vmem:[%s376 + $0x2f8] sm:$0xff]
        %v555 = vunpack.c.l.b16 %v443
        %v556 = vunpack.c.h.b16 %v443
        %v557 = vunpack.c.l.b16 %v444
        %v558 = vunpack.c.l.b16 %v445
        %v559 = vunpack.c.h.b16 %v445
        %v560 = vunpack.c.l.b16 %v446
        %v561 = vunpack.c.l.b16 %v447
        %v562 = vunpack.c.h.b16 %v447
        %v563 = vunpack.c.l.b16 %v448
        %v564 = vunpack.c.l.b16 %v449
        %v565 = vunpack.c.h.b16 %v449
        %v566 = vunpack.c.l.b16 %v450
        %v567 = vpack.c.b16 %v558, %v555
        %v568 = vpack.c.b16 %v559, %v556
        %v569 = vpack.c.b16 %v560, %v557
        %v570 = vpack.c.b16 %v564, %v561
        %v571 = vpack.c.b16 %v565, %v562
        %v572 = vpack.c.b16 %v566, %v563
        %v675 = vunpack.c.l.b16 %v451
        %v676 = vunpack.c.h.b16 %v451
        %v677 = vunpack.c.l.b16 %v452
        %v678 = vunpack.c.h.b16 %v452
        %v679 = vunpack.c.l.b16 %v453
        %v680 = vunpack.c.h.b16 %v453
        %v681 = vunpack.c.l.b16 %v454
        %v682 = vunpack.c.h.b16 %v454
        %v683 = vunpack.c.l.b16 %v455
        %v684 = vunpack.c.h.b16 %v455
        %v685 = vunpack.c.l.b16 %v456
        %v686 = vunpack.c.h.b16 %v456
        %v687 = vunpack.c.l.b16 %v457
        %v688 = vunpack.c.h.b16 %v457
        %v689 = vunpack.c.l.b16 %v458
        %v690 = vunpack.c.h.b16 %v458
        %v691 = vunpack.c.l.b16 %v459
        %v692 = vunpack.c.h.b16 %v459
        %v693 = vunpack.c.l.b16 %v460
        %v694 = vunpack.c.h.b16 %v460
        %v695 = vunpack.c.l.b16 %v461
        %v696 = vunpack.c.h.b16 %v461
        %v697 = vunpack.c.l.b16 %v462
        %v698 = vunpack.c.h.b16 %v462
        %v699 = vunpack.c.l.b16 %v463
        %v700 = vunpack.c.h.b16 %v463
        %v701 = vunpack.c.l.b16 %v464
        %v702 = vunpack.c.h.b16 %v464
        %v703 = vunpack.c.l.b16 %v465
        %v704 = vunpack.c.h.b16 %v465
        %v705 = vunpack.c.l.b16 %v466
        %v706 = vunpack.c.h.b16 %v466
        %v707 = vunpack.c.l.b16 %v467
        %v708 = vunpack.c.h.b16 %v467
        %v709 = vunpack.c.l.b16 %v468
        %v710 = vunpack.c.h.b16 %v468
        %v711 = vunpack.c.l.b16 %v469
        %v712 = vunpack.c.h.b16 %v469
        %v713 = vunpack.c.l.b16 %v470
        %v714 = vunpack.c.h.b16 %v470
        %v715 = vunpack.c.l.b16 %v471
        %v716 = vunpack.c.h.b16 %v471
        %v717 = vunpack.c.l.b16 %v472
        %v718 = vunpack.c.h.b16 %v472
        %v719 = vunpack.c.l.b16 %v473
        %v720 = vunpack.c.h.b16 %v473
        %v721 = vunpack.c.l.b16 %v474
        %v722 = vunpack.c.h.b16 %v474
        %v723 = vunpack.c.l.b16 %v475
        %v724 = vunpack.c.h.b16 %v475
        %v725 = vunpack.c.l.b16 %v476
        %v726 = vunpack.c.h.b16 %v476
        %v727 = vunpack.c.l.b16 %v477
        %v728 = vunpack.c.h.b16 %v477
        %v729 = vunpack.c.l.b16 %v478
        %v730 = vunpack.c.h.b16 %v478
        %v731 = vunpack.c.l.b16 %v479
        %v732 = vunpack.c.h.b16 %v479
        %v733 = vunpack.c.l.b16 %v480
        %v734 = vunpack.c.h.b16 %v480
        %v735 = vunpack.c.l.b16 %v481
        %v736 = vunpack.c.h.b16 %v481
        %v737 = vunpack.c.l.b16 %v482
        %v738 = vunpack.c.h.b16 %v482
        %v739 = vunpack.c.l.b16 %v483
        %v740 = vunpack.c.h.b16 %v483
        %v741 = vunpack.c.l.b16 %v484
        %v742 = vunpack.c.h.b16 %v484
        %v743 = vunpack.c.l.b16 %v485
        %v744 = vunpack.c.h.b16 %v485
        %v745 = vunpack.c.l.b16 %v486
        %v746 = vunpack.c.h.b16 %v486
        %v747 = vunpack.c.l.b16 %v487
        %v748 = vunpack.c.h.b16 %v487
        %v749 = vunpack.c.l.b16 %v488
        %v750 = vunpack.c.h.b16 %v488
        %v751 = vunpack.c.l.b16 %v489
        %v752 = vunpack.c.h.b16 %v489
        %v753 = vunpack.c.l.b16 %v490
        %v754 = vunpack.c.h.b16 %v490
        %v755 = vunpack.c.l.b16 %v491
        %v756 = vunpack.c.h.b16 %v491
        %v757 = vunpack.c.l.b16 %v492
        %v758 = vunpack.c.h.b16 %v492
        %v759 = vunpack.c.l.b16 %v493
        %v760 = vunpack.c.h.b16 %v493
        %v761 = vunpack.c.l.b16 %v494
        %v762 = vunpack.c.h.b16 %v494
        %v763 = vunpack.c.l.b16 %v495
        %v764 = vunpack.c.h.b16 %v495
        %v765 = vunpack.c.l.b16 %v496
        %v766 = vunpack.c.h.b16 %v496
        %v767 = vunpack.c.l.b16 %v497
        %v768 = vunpack.c.h.b16 %v497
        %v769 = vunpack.c.l.b16 %v498
        %v770 = vunpack.c.h.b16 %v498
        %v771 = vunpack.c.l.b16 %v499
        %v772 = vunpack.c.h.b16 %v499
        %v773 = vunpack.c.l.b16 %v500
        %v774 = vunpack.c.h.b16 %v500
        %v775 = vunpack.c.l.b16 %v501
        %v776 = vunpack.c.h.b16 %v501
        %v777 = vunpack.c.l.b16 %v502
        %v778 = vunpack.c.h.b16 %v502
        %v779 = vunpack.c.l.b16 %v503
        %v780 = vunpack.c.h.b16 %v503
        %v781 = vunpack.c.l.b16 %v504
        %v782 = vunpack.c.h.b16 %v504
        %v783 = vunpack.c.l.b16 %v505
        %v784 = vunpack.c.h.b16 %v505
        %v785 = vunpack.c.l.b16 %v506
        %v786 = vunpack.c.h.b16 %v506
        %v787 = vunpack.c.l.b16 %v507
        %v788 = vunpack.c.h.b16 %v507
        %v789 = vunpack.c.l.b16 %v508
        %v790 = vunpack.c.h.b16 %v508
        %v791 = vunpack.c.l.b16 %v509
        %v792 = vunpack.c.h.b16 %v509
        %v793 = vunpack.c.l.b16 %v510
        %v794 = vunpack.c.h.b16 %v510
        %v795 = vunpack.c.l.b16 %v511
        %v796 = vunpack.c.h.b16 %v511
        %v797 = vunpack.c.l.b16 %v512
        %v798 = vunpack.c.h.b16 %v512
        %v799 = vunpack.c.l.b16 %v513
        %v800 = vunpack.c.h.b16 %v513
        %v801 = vunpack.c.l.b16 %v514
        %v802 = vunpack.c.h.b16 %v514
        %v803 = vunpack.c.l.b16 %v515
        %v804 = vunpack.c.h.b16 %v515
        %v805 = vunpack.c.l.b16 %v516
        %v806 = vunpack.c.h.b16 %v516
        %v807 = vunpack.c.l.b16 %v517
        %v808 = vunpack.c.h.b16 %v517
        %v809 = vunpack.c.l.b16 %v518
        %v810 = vunpack.c.h.b16 %v518
        %v811 = vunpack.c.l.b16 %v519
        %v812 = vunpack.c.h.b16 %v519
        %v813 = vunpack.c.l.b16 %v520
        %v814 = vunpack.c.h.b16 %v520
        %v815 = vunpack.c.l.b16 %v521
        %v816 = vunpack.c.h.b16 %v521
        %v817 = vunpack.c.l.b16 %v522
        %v818 = vunpack.c.h.b16 %v522
        %v819 = vunpack.c.l.b16 %v523
        %v820 = vunpack.c.h.b16 %v523
        %v821 = vunpack.c.l.b16 %v524
        %v822 = vunpack.c.h.b16 %v524
        %v823 = vunpack.c.l.b16 %v525
        %v824 = vunpack.c.h.b16 %v525
        %v825 = vunpack.c.l.b16 %v526
        %v826 = vunpack.c.h.b16 %v526
        %v827 = vunpack.c.l.b16 %v527
        %v828 = vunpack.c.h.b16 %v527
        %v829 = vunpack.c.l.b16 %v528
        %v830 = vunpack.c.h.b16 %v528
        %v831 = vunpack.c.l.b16 %v529
        %v832 = vunpack.c.h.b16 %v529
        %v833 = vunpack.c.l.b16 %v530
        %v834 = vunpack.c.h.b16 %v530
        %v835 = vunpack.c.l.b16 %v531
        %v836 = vunpack.c.h.b16 %v531
        %v837 = vunpack.c.l.b16 %v532
        %v838 = vunpack.c.h.b16 %v532
        %v839 = vunpack.c.l.b16 %v533
        %v840 = vunpack.c.h.b16 %v533
        %v841 = vunpack.c.l.b16 %v534
        %v842 = vunpack.c.h.b16 %v534
        %v843 = vunpack.c.l.b16 %v535
        %v844 = vunpack.c.h.b16 %v535
        %v845 = vunpack.c.l.b16 %v536
        %v846 = vunpack.c.h.b16 %v536
        %v847 = vunpack.c.l.b16 %v537
        %v848 = vunpack.c.h.b16 %v537
        %v849 = vunpack.c.l.b16 %v538
        %v850 = vunpack.c.h.b16 %v538
        %v851 = vunpack.c.l.b16 %v539
        %v852 = vunpack.c.h.b16 %v539
        %v853 = vunpack.c.l.b16 %v540
        %v854 = vunpack.c.h.b16 %v540
        %v855 = vunpack.c.l.b16 %v541
        %v856 = vunpack.c.h.b16 %v541
        %v857 = vunpack.c.l.b16 %v542
        %v858 = vunpack.c.h.b16 %v542
        %v859 = vunpack.c.l.b16 %v543
        %v860 = vunpack.c.h.b16 %v543
        %v861 = vunpack.c.l.b16 %v544
        %v862 = vunpack.c.h.b16 %v544
        %v863 = vunpack.c.l.b16 %v545
        %v864 = vunpack.c.h.b16 %v545
        %v865 = vunpack.c.l.b16 %v546
        %v866 = vunpack.c.h.b16 %v546
        %v867 = vpack.c.b16 %v679, %v675
        %v868 = vpack.c.b16 %v680, %v676
        %v869 = vpack.c.b16 %v681, %v677
        %v870 = vpack.c.b16 %v682, %v678
        %v871 = vpack.c.b16 %v687, %v683
        %v872 = vpack.c.b16 %v688, %v684
        %v873 = vpack.c.b16 %v689, %v685
        %v874 = vpack.c.b16 %v690, %v686
        %v875 = vpack.c.b16 %v695, %v691
        %v876 = vpack.c.b16 %v696, %v692
        %v877 = vpack.c.b16 %v697, %v693
        %v878 = vpack.c.b16 %v698, %v694
        %v879 = vpack.c.b16 %v703, %v699
        %v880 = vpack.c.b16 %v704, %v700
        %v881 = vpack.c.b16 %v705, %v701
        %v882 = vpack.c.b16 %v706, %v702
        %v883 = vpack.c.b16 %v711, %v707
        %v884 = vpack.c.b16 %v712, %v708
        %v885 = vpack.c.b16 %v713, %v709
        %v886 = vpack.c.b16 %v714, %v710
        %v887 = vpack.c.b16 %v719, %v715
        %v888 = vpack.c.b16 %v720, %v716
        %v889 = vpack.c.b16 %v721, %v717
        %v890 = vpack.c.b16 %v722, %v718
        %v891 = vpack.c.b16 %v727, %v723
        %v892 = vpack.c.b16 %v728, %v724
        %v893 = vpack.c.b16 %v729, %v725
        %v894 = vpack.c.b16 %v730, %v726
        %v895 = vpack.c.b16 %v735, %v731
        %v896 = vpack.c.b16 %v736, %v732
        %v897 = vpack.c.b16 %v737, %v733
        %v898 = vpack.c.b16 %v738, %v734
        %v899 = vpack.c.b16 %v743, %v739
        %v900 = vpack.c.b16 %v744, %v740
        %v901 = vpack.c.b16 %v745, %v741
        %v902 = vpack.c.b16 %v746, %v742
        %v903 = vpack.c.b16 %v751, %v747
        %v904 = vpack.c.b16 %v752, %v748
        %v905 = vpack.c.b16 %v753, %v749
        %v906 = vpack.c.b16 %v754, %v750
        %v907 = vpack.c.b16 %v759, %v755
        %v908 = vpack.c.b16 %v760, %v756
        %v909 = vpack.c.b16 %v761, %v757
        %v910 = vpack.c.b16 %v762, %v758
        %v911 = vpack.c.b16 %v767, %v763
        %v912 = vpack.c.b16 %v768, %v764
        %v913 = vpack.c.b16 %v769, %v765
        %v914 = vpack.c.b16 %v770, %v766
        %v915 = vpack.c.b16 %v775, %v771
        %v916 = vpack.c.b16 %v776, %v772
        %v917 = vpack.c.b16 %v777, %v773
        %v918 = vpack.c.b16 %v778, %v774
        %v919 = vpack.c.b16 %v783, %v779
        %v920 = vpack.c.b16 %v784, %v780
        %v921 = vpack.c.b16 %v785, %v781
        %v922 = vpack.c.b16 %v786, %v782
        %v923 = vpack.c.b16 %v791, %v787
        %v924 = vpack.c.b16 %v792, %v788
        %v925 = vpack.c.b16 %v793, %v789
        %v926 = vpack.c.b16 %v794, %v790
        %v927 = vpack.c.b16 %v799, %v795
        %v928 = vpack.c.b16 %v800, %v796
        %v929 = vpack.c.b16 %v801, %v797
        %v930 = vpack.c.b16 %v802, %v798
        %v931 = vpack.c.b16 %v807, %v803
        %v932 = vpack.c.b16 %v808, %v804
        %v933 = vpack.c.b16 %v809, %v805
        %v934 = vpack.c.b16 %v810, %v806
        %v935 = vpack.c.b16 %v815, %v811
        %v936 = vpack.c.b16 %v816, %v812
        %v937 = vpack.c.b16 %v817, %v813
        %v938 = vpack.c.b16 %v818, %v814
        %v939 = vpack.c.b16 %v823, %v819
        %v940 = vpack.c.b16 %v824, %v820
        %v941 = vpack.c.b16 %v825, %v821
        %v942 = vpack.c.b16 %v826, %v822
        %v943 = vpack.c.b16 %v831, %v827
        %v944 = vpack.c.b16 %v832, %v828
        %v945 = vpack.c.b16 %v833, %v829
        %v946 = vpack.c.b16 %v834, %v830
        %v947 = vpack.c.b16 %v839, %v835
        %v948 = vpack.c.b16 %v840, %v836
        %v949 = vpack.c.b16 %v841, %v837
        %v950 = vpack.c.b16 %v842, %v838
        %v951 = vpack.c.b16 %v847, %v843
        %v952 = vpack.c.b16 %v848, %v844
        %v953 = vpack.c.b16 %v849, %v845
        %v954 = vpack.c.b16 %v850, %v846
        %v955 = vpack.c.b16 %v855, %v851
        %v956 = vpack.c.b16 %v856, %v852
        %v957 = vpack.c.b16 %v857, %v853
        %v958 = vpack.c.b16 %v858, %v854
        %v959 = vpack.c.b16 %v863, %v859
        %v960 = vpack.c.b16 %v864, %v860
        %v961 = vpack.c.b16 %v865, %v861
        %v962 = vpack.c.b16 %v866, %v862
        %1059 = vmatprep.subr.bf16.mxu0 %v868
        %1060 = vmatpush1.bf16.msra.mxu0 %v867
        %1061 = vmatprep.subr.bf16.mxu0 %v872
        %1062 = vmatpush1.bf16.msra.mxu0 %v871
        %1063 = vmatprep.subr.bf16.mxu0 %v876
        %1064 = vmatpush1.bf16.msra.mxu0 %v875
        %1065 = vmatprep.subr.bf16.mxu0 %v880
        %1066 = vmatpush1.bf16.msra.mxu0 %v879
        %1067 = vmatprep.subr.bf16.mxu0 %v884
        %1068 = vmatpush1.bf16.msra.mxu0 %v883
        %1069 = vmatprep.subr.bf16.mxu0 %v888
        %1070 = vmatpush1.bf16.msra.mxu0 %v887
        %1071 = vmatprep.subr.bf16.mxu0 %v892
        %1072 = vmatpush1.bf16.msra.mxu0 %v891
        %1073 = vmatprep.subr.bf16.mxu0 %v896
        %1074 = vmatpush1.bf16.msra.mxu0 %v895
        %1075 = vmatprep.subr.bf16.mxu0 %v900
        %1076 = vmatpush1.bf16.msra.mxu0 %v899
        %1077 = vmatprep.subr.bf16.mxu0 %v904
        %1078 = vmatpush1.bf16.msra.mxu0 %v903
        %1079 = vmatprep.subr.bf16.mxu0 %v908
        %1080 = vmatpush1.bf16.msra.mxu0 %v907
        %1081 = vmatprep.subr.bf16.mxu0 %v912
        %1082 = vmatpush1.bf16.msra.mxu0 %v911
        %1083 = vmatprep.subr.bf16.mxu0 %v916
        %1084 = vmatpush1.bf16.msra.mxu0 %v915
        %1085 = vmatprep.subr.bf16.mxu0 %v920
        %1086 = vmatpush1.bf16.msra.mxu0 %v919
        %1087 = vmatprep.subr.bf16.mxu0 %v924
        %1088 = vmatpush1.bf16.msra.mxu0 %v923
        %1089 = vmatprep.subr.bf16.mxu0 %v928
        %1090 = vmatpush1.bf16.msra.mxu0 %v927
        %1091 = vmatprep.mubr.bf16.mxu0 %v568
        %1092 = vmatmul.mubr.bf16.gmra.mrb[0].mxu0 %v567
        %v1093 = vpop.f32.mrb[0].mxu0
        %v1094 = vadd.f32 0.0, %v1093
        %v1095 = vpop.f32.mrb[0].mxu0
        %v1096 = vadd.f32 0.0, %v1095
        %v1097 = vpop.f32.mrb[0].mxu0
        %v1098 = vadd.f32 0.0, %v1097
        %v1099 = vpop.f32.mrb[0].mxu0
        %v1100 = vadd.f32 0.0, %v1099
        %1101 = vmatprep.mubr.bf16.mxu0 %v571
        %1102 = vmatmul.mubr.bf16.gmra.mrb[0].mxu0 %v570
        %v1103 = vpop.f32.mrb[0].mxu0
        %v1104 = vadd.f32 0.0, %v1103
        %v1105 = vpop.f32.mrb[0].mxu0
        %v1106 = vadd.f32 0.0, %v1105
        %v1107 = vpop.f32.mrb[0].mxu0
        %v1108 = vadd.f32 0.0, %v1107
        %v1109 = vpop.f32.mrb[0].mxu0
        %v1110 = vadd.f32 0.0, %v1109
        %1111 = vdwg.mxu0
        %1112 = vmatprep.subr.bf16.mxu0 %v932
        %1113 = vmatpush1.bf16.msra.mxu0 %v931
        %1114 = vmatprep.subr.bf16.mxu0 %v936
        %1115 = vmatpush1.bf16.msra.mxu0 %v935
        %1116 = vmatprep.subr.bf16.mxu0 %v940
        %1117 = vmatpush1.bf16.msra.mxu0 %v939
        %1118 = vmatprep.subr.bf16.mxu0 %v944
        %1119 = vmatpush1.bf16.msra.mxu0 %v943
        %1120 = vmatprep.subr.bf16.mxu0 %v948
        %1121 = vmatpush1.bf16.msra.mxu0 %v947
        %1122 = vmatprep.subr.bf16.mxu0 %v952
        %1123 = vmatpush1.bf16.msra.mxu0 %v951
        %1124 = vmatprep.subr.bf16.mxu0 %v956
        %1125 = vmatpush1.bf16.msra.mxu0 %v955
        %1126 = vmatprep.subr.bf16.mxu0 %v960
        %1127 = vmatpush1.bf16.msra.mxu0 %v959
        %1128 = vmatprep.subr.bf16.mxu0 0
        %1129 = vmatpush1.bf16.msra.mxu0 0
        %1130 = vmatprep.subr.bf16.mxu0 0
        %1131 = vmatpush1.bf16.msra.mxu0 0
        %1132 = vmatprep.subr.bf16.mxu0 0
        %1133 = vmatpush1.bf16.msra.mxu0 0
        %1134 = vmatprep.subr.bf16.mxu0 0
        %1135 = vmatpush1.bf16.msra.mxu0 0
        %1136 = vmatprep.subr.bf16.mxu0 0
        %1137 = vmatpush1.bf16.msra.mxu0 0
        %1138 = vmatprep.subr.bf16.mxu0 0
        %1139 = vmatpush1.bf16.msra.mxu0 0
        %1140 = vmatprep.subr.bf16.mxu0 0
        %1141 = vmatpush1.bf16.msra.mxu0 0
        %1142 = vmatprep.subr.bf16.mxu0 0
        %1143 = vmatpush1.bf16.msra.mxu0 0
        %1144 = vmatprep.mubr.bf16.mxu0 0
        %1145 = vmatmul.mubr.bf16.gmra.mrb[0].mxu0 %v569
        %v1146 = vpop.f32.mrb[0].mxu0
        %v1147 = vadd.f32 %v1094, %v1146
        %v1148 = vpop.f32.mrb[0].mxu0
        %v1149 = vadd.f32 %v1096, %v1148
        %v1150 = vpop.f32.mrb[0].mxu0
        %v1151 = vadd.f32 %v1098, %v1150
        %v1152 = vpop.f32.mrb[0].mxu0
        %v1153 = vadd.f32 %v1100, %v1152
        %1154 = vmatprep.mubr.bf16.mxu0 0
        %1155 = vmatmul.mubr.bf16.gmra.mrb[0].mxu0 %v572
        %v1156 = vpop.f32.mrb[0].mxu0
        %v1157 = vadd.f32 %v1104, %v1156
        %v1158 = vpop.f32.mrb[0].mxu0
        %v1159 = vadd.f32 %v1106, %v1158
        %v1160 = vpop.f32.mrb[0].mxu0
        %v1161 = vadd.f32 %v1108, %v1160
        %v1162 = vpop.f32.mrb[0].mxu0
        %v1163 = vadd.f32 %v1110, %v1162
        %1164 = vdwg.mxu0
        %1165 = vmatprep.subr.bf16.mxu0 %v870
        %1166 = vmatpush1.bf16.msra.mxu0 %v869
        %1167 = vmatprep.subr.bf16.mxu0 %v874
        %1168 = vmatpush1.bf16.msra.mxu0 %v873
        %1169 = vmatprep.subr.bf16.mxu0 %v878
        %1170 = vmatpush1.bf16.msra.mxu0 %v877
        %1171 = vmatprep.subr.bf16.mxu0 %v882
        %1172 = vmatpush1.bf16.msra.mxu0 %v881
        %1173 = vmatprep.subr.bf16.mxu0 %v886
        %1174 = vmatpush1.bf16.msra.mxu0 %v885
        %1175 = vmatprep.subr.bf16.mxu0 %v890
        %1176 = vmatpush1.bf16.msra.mxu0 %v889
        %1177 = vmatprep.subr.bf16.mxu0 %v894
        %1178 = vmatpush1.bf16.msra.mxu0 %v893
        %1179 = vmatprep.subr.bf16.mxu0 %v898
        %1180 = vmatpush1.bf16.msra.mxu0 %v897
        %1181 = vmatprep.subr.bf16.mxu0 %v902
        %1182 = vmatpush1.bf16.msra.mxu0 %v901
        %1183 = vmatprep.subr.bf16.mxu0 %v906
        %1184 = vmatpush1.bf16.msra.mxu0 %v905
        %1185 = vmatprep.subr.bf16.mxu0 %v910
        %1186 = vmatpush1.bf16.msra.mxu0 %v909
        %1187 = vmatprep.subr.bf16.mxu0 %v914
        %1188 = vmatpush1.bf16.msra.mxu0 %v913
        %1189 = vmatprep.subr.bf16.mxu0 %v918
        %1190 = vmatpush1.bf16.msra.mxu0 %v917
        %1191 = vmatprep.subr.bf16.mxu0 %v922
        %1192 = vmatpush1.bf16.msra.mxu0 %v921
        %1193 = vmatprep.subr.bf16.mxu0 %v926
        %1194 = vmatpush1.bf16.msra.mxu0 %v925
        %1195 = vmatprep.subr.bf16.mxu0 %v930
        %1196 = vmatpush1.bf16.msra.mxu0 %v929
        %1197 = vmatprep.mubr.bf16.mxu0 %v568
        %1198 = vmatmul.mubr.bf16.gmra.mrb[0].mxu0 %v567
        %v1199 = vpop.f32.mrb[0].mxu0
        %v1200 = vadd.f32 0.0, %v1199
        %v1201 = vpop.f32.mrb[0].mxu0
        %v1202 = vadd.f32 0.0, %v1201
        %v1203 = vpop.f32.mrb[0].mxu0
        %v1204 = vadd.f32 0.0, %v1203
        %v1205 = vpop.f32.mrb[0].mxu0
        %v1206 = vadd.f32 0.0, %v1205
        %1207 = vmatprep.mubr.bf16.mxu0 %v571
        %1208 = vmatmul.mubr.bf16.gmra.mrb[0].mxu0 %v570
        %v1209 = vpop.f32.mrb[0].mxu0
        %v1210 = vadd.f32 0.0, %v1209
        %v1211 = vpop.f32.mrb[0].mxu0
        %v1212 = vadd.f32 0.0, %v1211
        %v1213 = vpop.f32.mrb[0].mxu0
        %v1214 = vadd.f32 0.0, %v1213
        %v1215 = vpop.f32.mrb[0].mxu0
        %v1216 = vadd.f32 0.0, %v1215
        %1217 = vdwg.mxu0
        %1218 = vmatprep.subr.bf16.mxu0 %v934
        %1219 = vmatpush1.bf16.msra.mxu0 %v933
        %1220 = vmatprep.subr.bf16.mxu0 %v938
        %1221 = vmatpush1.bf16.msra.mxu0 %v937
        %1222 = vmatprep.subr.bf16.mxu0 %v942
        %1223 = vmatpush1.bf16.msra.mxu0 %v941
        %1224 = vmatprep.subr.bf16.mxu0 %v946
        %1225 = vmatpush1.bf16.msra.mxu0 %v945
        %1226 = vmatprep.subr.bf16.mxu0 %v950
        %1227 = vmatpush1.bf16.msra.mxu0 %v949
        %1228 = vmatprep.subr.bf16.mxu0 %v954
        %1229 = vmatpush1.bf16.msra.mxu0 %v953
        %1230 = vmatprep.subr.bf16.mxu0 %v958
        %1231 = vmatpush1.bf16.msra.mxu0 %v957
        %1232 = vmatprep.subr.bf16.mxu0 %v962
        %1233 = vmatpush1.bf16.msra.mxu0 %v961
        %1234 = vmatprep.subr.bf16.mxu0 0
        %1235 = vmatpush1.bf16.msra.mxu0 0
        %1236 = vmatprep.subr.bf16.mxu0 0
        %1237 = vmatpush1.bf16.msra.mxu0 0
        %1238 = vmatprep.subr.bf16.mxu0 0
        %1239 = vmatpush1.bf16.msra.mxu0 0
        %1240 = vmatprep.subr.bf16.mxu0 0
        %1241 = vmatpush1.bf16.msra.mxu0 0
        %1242 = vmatprep.subr.bf16.mxu0 0
        %1243 = vmatpush1.bf16.msra.mxu0 0
        %1244 = vmatprep.subr.bf16.mxu0 0
        %1245 = vmatpush1.bf16.msra.mxu0 0
        %1246 = vmatprep.subr.bf16.mxu0 0
        %1247 = vmatpush1.bf16.msra.mxu0 0
        %1248 = vmatprep.subr.bf16.mxu0 0
        %1249 = vmatpush1.bf16.msra.mxu0 0
        %1250 = vmatprep.mubr.bf16.mxu0 0
        %1251 = vmatmul.mubr.bf16.gmra.mrb[0].mxu0 %v569
        %v1252 = vpop.f32.mrb[0].mxu0
        %v1253 = vadd.f32 %v1200, %v1252
        %v1254 = vpop.f32.mrb[0].mxu0
        %v1255 = vadd.f32 %v1202, %v1254
        %v1256 = vpop.f32.mrb[0].mxu0
        %v1257 = vadd.f32 %v1204, %v1256
        %v1258 = vpop.f32.mrb[0].mxu0
        %v1259 = vadd.f32 %v1206, %v1258
        %1260 = vmatprep.mubr.bf16.mxu0 0
        %1261 = vmatmul.mubr.bf16.gmra.mrb[0].mxu0 %v572
        %v1262 = vpop.f32.mrb[0].mxu0
        %v1263 = vadd.f32 %v1210, %v1262
        %v1264 = vpop.f32.mrb[0].mxu0
        %v1265 = vadd.f32 %v1212, %v1264
        %v1266 = vpop.f32.mrb[0].mxu0
        %v1267 = vadd.f32 %v1214, %v1266
        %v1268 = vpop.f32.mrb[0].mxu0
        %v1269 = vadd.f32 %v1216, %v1268
        %1270 = vdwg.mxu0
        %v1271 = vadd.f32 %v427, %v1147
        %v1272 = vadd.f32 %v428, %v1149
        %v1273 = vadd.f32 %v429, %v1253
        %v1274 = vadd.f32 %v430, %v1255
        %v1275 = vadd.f32 %v431, %v1151
        %v1276 = vadd.f32 %v432, %v1153
        %v1277 = vadd.f32 %v433, %v1257
        %v1278 = vadd.f32 %v434, %v1259
        %v1279 = vadd.f32 %v435, %v1157
        %v1280 = vadd.f32 %v436, %v1159
        %v1281 = vadd.f32 %v437, %v1263
        %v1282 = vadd.f32 %v438, %v1265
        %v1283 = vadd.f32 %v439, %v1161
        %v1284 = vadd.f32 %v440, %v1163
        %v1285 = vadd.f32 %v441, %v1267
        %v1286 = vadd.f32 %v442, %v1269
        %1287 = vst [vmem:[#allocation2] sm:$0xff] %v1271
        %1288 = vst [vmem:[#allocation2 + $0x8] sm:$0xff] %v1272
        %1289 = vst [vmem:[#allocation2 + $0x10] sm:$0xff] %v1273
        %1290 = vst [vmem:[#allocation2 + $0x18] sm:$0xff] %v1274
        %1291 = vst [vmem:[#allocation2 + $0x20] sm:$0xff] %v1275
        %1292 = vst [vmem:[#allocation2 + $0x28] sm:$0xff] %v1276
        %1293 = vst [vmem:[#allocation2 + $0x30] sm:$0xff] %v1277
        %1294 = vst [vmem:[#allocation2 + $0x38] sm:$0xff] %v1278
        %1295 = vst [vmem:[#allocation2 + $0x40] sm:$0xff] %v1279
        %1296 = vst [vmem:[#allocation2 + $0x48] sm:$0xff] %v1280
        %1297 = vst [vmem:[#allocation2 + $0x50] sm:$0xff] %v1281
        %1298 = vst [vmem:[#allocation2 + $0x58] sm:$0xff] %v1282
        %1299 = vst [vmem:[#allocation2 + $0x60] sm:$0xf] %v1283
        %1300 = vst [vmem:[#allocation2 + $0x68] sm:$0xf] %v1284
        %1301 = vst [vmem:[#allocation2 + $0x70] sm:$0xf] %v1285
        %1302 = vst [vmem:[#allocation2 + $0x78] sm:$0xf] %v1286
        %p1303 = scmp.eq.s32.totalorder %s23, 1
        // Predicated region
        $region71: #{completenn_forward.10} parent=61 // pred_check
          %p1304 = pneg %p1303
        $region72: #{completenn_forward.10} parent=61 // pred_check_branch
          %1306 = sbr.rel (%p1304) target = $region74
        $region73: #{completenn_forward.10} parent=61 // pred_region
          %v1307 = vld [vmem:[#allocation2] sm:$0xff]
          %v1308 = vld [vmem:[#allocation2 + $0x8] sm:$0xff]
          %v1309 = vld [vmem:[#allocation2 + $0x10] sm:$0xff]
          %v1310 = vld [vmem:[#allocation2 + $0x18] sm:$0xff]
          %v1311 = vld [vmem:[#allocation2 + $0x20] sm:$0xff]
          %v1312 = vld [vmem:[#allocation2 + $0x28] sm:$0xff]
          %v1313 = vld [vmem:[#allocation2 + $0x30] sm:$0xff]
          %v1314 = vld [vmem:[#allocation2 + $0x38] sm:$0xff]
          %v1315 = vld [vmem:[#allocation2 + $0x40] sm:$0xff]
          %v1316 = vld [vmem:[#allocation2 + $0x48] sm:$0xff]
          %v1317 = vld [vmem:[#allocation2 + $0x50] sm:$0xff]
          %v1318 = vld [vmem:[#allocation2 + $0x58] sm:$0xff]
          %v1319 = vld [vmem:[#allocation2 + $0x60] sm:$0xf]
          %v1320 = vld [vmem:[#allocation2 + $0x68] sm:$0xf]
          %v1321 = vld [vmem:[#allocation2 + $0x70] sm:$0xf]
          %v1322 = vld [vmem:[#allocation2 + $0x78] sm:$0xf]
          %v1323 = vld [vmem:[%s382] sm:$0xf]
          %v1325 = vlaneseq
          %v1326 = vshrl.u32 %v1325, 7
          %v1327 = vsub.s32 0, %v1326
          %v1328 = vrot.slane %v1323, %v1327
          %v1329 = vlaneseq
          %v1330 = vshrl.u32 %v1329, 7
          %v1331 = vsub.s32 1, %v1330
          %v1332 = vrot.slane %v1323, %v1331
          %v1333 = vlaneseq
          %v1334 = vshrl.u32 %v1333, 7
          %v1335 = vsub.s32 2, %v1334
          %v1336 = vrot.slane %v1323, %v1335
          %v1337 = vlaneseq
          %v1338 = vshrl.u32 %v1337, 7
          %v1339 = vsub.s32 3, %v1338
          %v1340 = vrot.slane %v1323, %v1339
          %v1345 = vadd.f32 %v1307, %v1328
          %v1346 = vadd.f32 %v1308, %v1332
          %v1347 = vadd.f32 %v1309, %v1336
          %v1348 = vadd.f32 %v1310, %v1340
          %v1349 = vadd.f32 %v1311, %v1328
          %v1350 = vadd.f32 %v1312, %v1332
          %v1351 = vadd.f32 %v1313, %v1336
          %v1352 = vadd.f32 %v1314, %v1340
          %v1353 = vadd.f32 %v1315, %v1328
          %v1354 = vadd.f32 %v1316, %v1332
          %v1355 = vadd.f32 %v1317, %v1336
          %v1356 = vadd.f32 %v1318, %v1340
          %v1357 = vadd.f32 %v1319, %v1328
          %v1358 = vadd.f32 %v1320, %v1332
          %v1359 = vadd.f32 %v1321, %v1336
          %v1360 = vadd.f32 %v1322, %v1340
          %v1361 = vmax.f32 %v1345, 0.0
          %v1362 = vmax.f32 %v1346, 0.0
          %v1363 = vmax.f32 %v1347, 0.0
          %v1364 = vmax.f32 %v1348, 0.0
          %v1365 = vmax.f32 %v1349, 0.0
          %v1366 = vmax.f32 %v1350, 0.0
          %v1367 = vmax.f32 %v1351, 0.0
          %v1368 = vmax.f32 %v1352, 0.0
          %v1369 = vmax.f32 %v1353, 0.0
          %v1370 = vmax.f32 %v1354, 0.0
          %v1371 = vmax.f32 %v1355, 0.0
          %v1372 = vmax.f32 %v1356, 0.0
          %v1373 = vmax.f32 %v1357, 0.0
          %v1374 = vmax.f32 %v1358, 0.0
          %v1375 = vmax.f32 %v1359, 0.0
          %v1376 = vmax.f32 %v1360, 0.0
          %v1377 = vld [vmem:[%s387] sm:$0xf]
          %v1379 = vlaneseq
          %v1380 = vshrl.u32 %v1379, 7
          %v1381 = vsub.s32 0, %v1380
          %v1382 = vrot.slane %v1377, %v1381
          %v1383 = vlaneseq
          %v1384 = vshrl.u32 %v1383, 7
          %v1385 = vsub.s32 1, %v1384
          %v1386 = vrot.slane %v1377, %v1385
          %v1387 = vlaneseq
          %v1388 = vshrl.u32 %v1387, 7
          %v1389 = vsub.s32 2, %v1388
          %v1390 = vrot.slane %v1377, %v1389
          %v1391 = vlaneseq
          %v1392 = vshrl.u32 %v1391, 7
          %v1393 = vsub.s32 3, %v1392
          %v1394 = vrot.slane %v1377, %v1393
          %v1399 = vmul.f32 %v1361, %v1382
          %v1400 = vmul.f32 %v1362, %v1386
          %v1401 = vmul.f32 %v1363, %v1390
          %v1402 = vmul.f32 %v1364, %v1394
          %v1403 = vmul.f32 %v1365, %v1382
          %v1404 = vmul.f32 %v1366, %v1386
          %v1405 = vmul.f32 %v1367, %v1390
          %v1406 = vmul.f32 %v1368, %v1394
          %v1407 = vmul.f32 %v1369, %v1382
          %v1408 = vmul.f32 %v1370, %v1386
          %v1409 = vmul.f32 %v1371, %v1390
          %v1410 = vmul.f32 %v1372, %v1394
          %v1411 = vmul.f32 %v1373, %v1382
          %v1412 = vmul.f32 %v1374, %v1386
          %v1413 = vmul.f32 %v1375, %v1390
          %v1414 = vmul.f32 %v1376, %v1394
          %v1415 = vld [vmem:[%s392] sm:$0xf]
          %v1417 = vlaneseq
          %v1418 = vshrl.u32 %v1417, 7
          %v1419 = vsub.s32 0, %v1418
          %v1420 = vrot.slane %v1415, %v1419
          %v1421 = vlaneseq
          %v1422 = vshrl.u32 %v1421, 7
          %v1423 = vsub.s32 1, %v1422
          %v1424 = vrot.slane %v1415, %v1423
          %v1425 = vlaneseq
          %v1426 = vshrl.u32 %v1425, 7
          %v1427 = vsub.s32 2, %v1426
          %v1428 = vrot.slane %v1415, %v1427
          %v1429 = vlaneseq
          %v1430 = vshrl.u32 %v1429, 7
          %v1431 = vsub.s32 3, %v1430
          %v1432 = vrot.slane %v1415, %v1431
          %v1437 = vadd.f32 %v1399, %v1420
          %v1438 = vadd.f32 %v1400, %v1424
          %v1439 = vadd.f32 %v1401, %v1428
          %v1440 = vadd.f32 %v1402, %v1432
          %v1441 = vadd.f32 %v1403, %v1420
          %v1442 = vadd.f32 %v1404, %v1424
          %v1443 = vadd.f32 %v1405, %v1428
          %v1444 = vadd.f32 %v1406, %v1432
          %v1445 = vadd.f32 %v1407, %v1420
          %v1446 = vadd.f32 %v1408, %v1424
          %v1447 = vadd.f32 %v1409, %v1428
          %v1448 = vadd.f32 %v1410, %v1432
          %v1449 = vadd.f32 %v1411, %v1420
          %v1450 = vadd.f32 %v1412, %v1424
          %v1451 = vadd.f32 %v1413, %v1428
          %v1452 = vadd.f32 %v1414, %v1432
          %v1453 = vpack.c.bf16 %v1441, %v1437
          %v1454 = vpack.c.bf16 %v1442, %v1438
          %v1455 = vpack.c.bf16 %v1443, %v1439
          %v1456 = vpack.c.bf16 %v1444, %v1440
          %v1457 = vpack.c.bf16 %v1449, %v1445
          %v1458 = vpack.c.bf16 %v1450, %v1446
          %v1459 = vpack.c.bf16 %v1451, %v1447
          %v1460 = vpack.c.bf16 %v1452, %v1448
          %v1469 = vunpack.c.l.b16 %v1453
          %v1470 = vunpack.c.l.b16 %v1454
          %v1471 = vunpack.c.l.b16 %v1455
          %v1472 = vunpack.c.l.b16 %v1456
          %v1473 = vunpack.c.h.b16 %v1453
          %v1474 = vunpack.c.h.b16 %v1454
          %v1475 = vunpack.c.h.b16 %v1455
          %v1476 = vunpack.c.h.b16 %v1456
          %v1477 = vunpack.c.l.b16 %v1457
          %v1478 = vunpack.c.l.b16 %v1458
          %v1479 = vunpack.c.l.b16 %v1459
          %v1480 = vunpack.c.l.b16 %v1460
          %v1481 = vunpack.c.h.b16 %v1457
          %v1482 = vunpack.c.h.b16 %v1458
          %v1483 = vunpack.c.h.b16 %v1459
          %v1484 = vunpack.c.h.b16 %v1460
          %v1485 = vpack.c.b16 %v1470, %v1469
          %v1486 = vpack.c.b16 %v1472, %v1471
          %v1487 = vpack.c.b16 %v1474, %v1473
          %v1488 = vpack.c.b16 %v1476, %v1475
          %v1489 = vpack.c.b16 %v1478, %v1477
          %v1490 = vpack.c.b16 %v1480, %v1479
          %v1491 = vpack.c.b16 %v1482, %v1481
          %v1492 = vpack.c.b16 %v1484, %v1483
          %1501 = vst [vmem:[%s403] sm:$0xff] %v1485
          %1502 = vst [vmem:[%s403 + $0x8] sm:$0xff] %v1486
          %1503 = vst [vmem:[%s403 + $0x10] sm:$0xff] %v1487
          %1504 = vst [vmem:[%s403 + $0x18] sm:$0xff] %v1488
          %1505 = vst [vmem:[%s403 + $0x20] sm:$0xff] %v1489
          %1506 = vst [vmem:[%s403 + $0x28] sm:$0xff] %v1490
          %1507 = vst [vmem:[%s403 + $0x30] sm:$0x33] %v1491
          %1508 = vst [vmem:[%s403 + $0x38] sm:$0x33] %v1492
        $region74: #{completenn_forward.10} parent=61 // pred_fallthru
          _
        %s1509 = smul.u32 4, %s21
        %s1510 = smul.u32 4, %s22
        %p1511 = scmp.lt.s32.totalorder %s1509, 3
        %s1512 = scalar_select %p1511, %s1509, 3
        %p1513 = scmp.lt.s32.totalorder %s1510, 3
        %s1514 = scalar_select %p1513, %s1510, 3
        %s1515 = smul.addr %s1512, 4
        %s1516 = sadd.s32 %s1514, %s1515
        %s1517 = smul.addr %s1516, 4
        %s1518 = scalar_lea.vmem %s5, %s1517
        // Predicated region
        $region75: #{completenn_forward.10} parent=61 // pred_check
          %p1519 = pneg %p189
        $region76: #{completenn_forward.10} parent=61 // pred_check_branch
          %1521 = sbr.rel (%p1519) target = $region78
        $region77: #{completenn_forward.10} parent=61 // pred_region
          %s1522 = smul.u32 4, %s21
          %s1523 = smul.u32 4, %s22
        $region78: #{completenn_forward.10} parent=61 // pred_fallthru
          _
        // Predicated region
        $region79: #{completenn_forward.10} parent=61 // pred_check
          %p1524 = pneg %p189
        $region80: #{completenn_forward.10} parent=61 // pred_check_branch
          %1526 = sbr.rel (%p1524) target = $region82
        $region81: #{completenn_forward.10} parent=61 // pred_region
          %s1527 = smul.u32 4, %s21
          %s1528 = smul.u32 4, %s22
          %p1529 = scmp.lt.s32.totalorder %s1527, 3
          %s1530 = scalar_select %p1529, %s1527, 3
          %p1531 = scmp.lt.s32.totalorder %s1528, 3
          %s1532 = scalar_select %p1531, %s1528, 3
          %s1533 = smul.addr %s1530, 4
          %s1534 = sadd.s32 %s1532, %s1533
          %s1535 = smul.addr %s1534, 4
          %s1536 = scalar_lea.vmem %s5, %s1535
        $region82: #{completenn_forward.10} parent=61 // pred_fallthru
          _
      $region62: #{completenn_forward.10} parent=5 // pred_fallthru
        _
      %p1537 = scmp.le.s32.totalorder 2, %s11
      // Predicated region
      $region83: #{completenn_forward.10} parent=5 // pred_check
        %p1538 = pneg %p1537
      $region84: #{completenn_forward.10} parent=5 // pred_check_branch
        %1540 = sbr.rel (%p1538) target = $region86
      $region85: #{completenn_forward.10} parent=5 // pred_region
        %s1541 = ssub.s32 %s11, 2
      $region86: #{completenn_forward.10} parent=5 // pred_fallthru
        _
    $region6: #{completenn_forward.10} parent=1 // loop_footer
      %s15 = sadd.s32 1, %s11
    $region7: #{completenn_forward.10} parent=1 // loop_footer_branch
      %10 = sbr.rel target = $region3
    $region8: #{completenn_forward.10} parent=1 // loop_exit
      _

// kernel: completenn_forward.11
$region0: #{completenn_forward.11}
  #allocation0 [shape = 'u32[]', space=smem, size = 0x4, offset = 0x4, fixed_abs, tag = 'smem constant byte address 0x4 - core index']
  #allocation1 [shape = 'u32[144,128]{1,0:T(1,128)}', space=vmem, size = 0x12000, scoped, tag = 'internal scratch']
  #allocation2 [shape = 'f32[28,1024]{1,0:T(8,128)}', space=vmem, size = 0x20000, scoped, tag = 'scratch operand']
  %s0 = inlined_call_operand.vmem [shape: bf16[28,1536], index: 0, kind: input, shape index: {}]
  %s1 = inlined_call_operand.vmem [shape: bf16[1536,1024], index: 1, kind: input, shape index: {}]
  %s2 = inlined_call_operand.vmem [shape: f32[1,1024], index: 2, kind: input, shape index: {}]
  %s3 = inlined_call_operand.vmem [shape: f32[2,28], index: 3, kind: input, shape index: {}]
  %s4 = inlined_call_operand.vmem [shape: f32[1024,3], index: 4, kind: input, shape index: {}]
  %s5 = inlined_call_operand.vmem [shape: f32[1,3], index: 5, kind: input, shape index: {}]
  %s6 = inlined_call_operand.hbm [shape: f32[2,3], index: 6, kind: output, shape index: {}]
  %s7 = sld [smem:[#allocation0]]
  $region88: #{completenn_forward.11} parent=0
    _
  %s9 = ssub.s32 1, %s7
  %s10 = scalar_select 0, %s9, %s7
  $region1: #{completenn_forward.11} parent=0
    #allocation3 [shape = 'u8[65536]{0}', space=vmem, size = 0x10000, scoped, tag = 'input window, operand 0']
    #allocation4 [shape = 'u8[1024]{0}', space=vmem, size = 0x400, scoped, tag = 'output window, operand 0, single buffered']
    #allocation5 [shape = 's32[2]{0}', space=sflag, size = 0x8, scoped, tag = 'scoped memory for completenn_forward.11']
    %11 = vsyncpa [#allocation5], 0
    loop: start=0, step=1, limit=5
    $region2: #{completenn_forward.11} parent=1 // loop_pre_header
      _
    $region3: #{completenn_forward.11} parent=1 // loop_header
      %s13 = sphi 0, %s17
      %p14 = scmp.ge.s32.totalorder %s13, 5
      %s23 = sphi 0, %s25
      %s26 = sphi 0, %s23
      %s27 = sphi 0, %s26
      %s43 = sphi 0, %s27
      %s49 = sphi 0, %s51
      %s52 = sphi 0, %s49
      %s53 = sphi 0, %s52
      %s69 = sphi 0, %s53
      %s73 = sphi 0, %s73
      %s75 = sphi 0, %s73
      %s76 = sphi 0, %s75
      %s90 = sphi 0, %s76
      %s94 = sphi 0, %s94
      %s96 = sphi 0, %s94
      %s97 = sphi 0, %s96
      %s111 = sphi 0, %s97
      %s115 = sphi 0, %s115
      %s117 = sphi 0, %s115
      %s118 = sphi 0, %s117
      %s132 = sphi 0, %s118
      %s136 = sphi 0, %s136
      %s138 = sphi 0, %s136
      %s139 = sphi 0, %s138
      %s153 = sphi 0, %s139
      %s157 = sphi 0, %s157
      %s159 = sphi 0, %s157
      %s160 = sphi 0, %s159
      %s174 = sphi 0, %s160
    $region4: #{completenn_forward.11} parent=1 // loop_header_branch
      %16 = sbr.rel (%p14) target = $region8
    $region5: #{completenn_forward.11} parent=1 // loop_body
      %s18 = ssub.s32 %s13, 1
      %s19 = ssub.s32 %s13, 2
      %s20 = sadd.s32 %s13, 1
      %s21 = ssub.s32 %s13, %s20
      %p22 = scmp.eq.s32.totalorder %s21, 0
      %s24 = sadd.s32 %s23, 1
      %s25 = scalar_select %p22, %s23, %s24
      %p28 = pneg %p22
      %p29 = scmp.eq.s32.totalorder %s13, 2
      %p30 = por %p28, %p29
      %p31 = scmp.ne.s32.totalorder %s23, %s26
      %p32 = scmp.eq.s32.totalorder %s13, 0
      %p33 = por %p31, %p32
      %p34 = scmp.ne.s32.totalorder %s23, %s26
      %p35 = scmp.eq.s32.totalorder %s18, 2
      %p36 = por %p34, %p35
      %p37 = scmp.ne.s32.totalorder %s26, %s27
      %p38 = scmp.eq.s32.totalorder %s18, 0
      %p39 = por %p37, %p38
      %p40 = scmp.ne.s32.totalorder %s26, %s27
      %p41 = scmp.eq.s32.totalorder %s19, 2
      %p42 = por %p40, %p41
      %p44 = scmp.ne.s32.totalorder %s27, %s43
      %p45 = scmp.eq.s32.totalorder %s19, 0
      %p46 = por %p44, %p45
      %s47 = ssub.s32 %s13, %s20
      %p48 = scmp.eq.s32.totalorder %s47, 0
      %s50 = sadd.s32 %s49, 1
      %s51 = scalar_select %p48, %s49, %s50
      %p54 = pneg %p48
      %p55 = scmp.eq.s32.totalorder %s13, 2
      %p56 = por %p54, %p55
      %p57 = scmp.ne.s32.totalorder %s49, %s52
      %p58 = scmp.eq.s32.totalorder %s13, 0
      %p59 = por %p57, %p58
      %p60 = scmp.ne.s32.totalorder %s49, %s52
      %p61 = scmp.eq.s32.totalorder %s18, 2
      %p62 = por %p60, %p61
      %p63 = scmp.ne.s32.totalorder %s52, %s53
      %p64 = scmp.eq.s32.totalorder %s18, 0
      %p65 = por %p63, %p64
      %p66 = scmp.ne.s32.totalorder %s52, %s53
      %p67 = scmp.eq.s32.totalorder %s19, 2
      %p68 = por %p66, %p67
      %p70 = scmp.ne.s32.totalorder %s53, %s69
      %p71 = scmp.eq.s32.totalorder %s19, 0
      %p72 = por %p70, %p71
      %s74 = sadd.s32 %s73, 1
      %p77 = scmp.eq.s32.totalorder %s13, 2
      %p78 = scmp.ne.s32.totalorder %s73, %s75
      %p79 = scmp.eq.s32.totalorder %s13, 0
      %p80 = por %p78, %p79
      %p81 = scmp.ne.s32.totalorder %s73, %s75
      %p82 = scmp.eq.s32.totalorder %s18, 2
      %p83 = por %p81, %p82
      %p84 = scmp.ne.s32.totalorder %s75, %s76
      %p85 = scmp.eq.s32.totalorder %s18, 0
      %p86 = por %p84, %p85
      %p87 = scmp.ne.s32.totalorder %s75, %s76
      %p88 = scmp.eq.s32.totalorder %s19, 2
      %p89 = por %p87, %p88
      %p91 = scmp.ne.s32.totalorder %s76, %s90
      %p92 = scmp.eq.s32.totalorder %s19, 0
      %p93 = por %p91, %p92
      %s95 = sadd.s32 %s94, 1
      %p98 = scmp.eq.s32.totalorder %s13, 2
      %p99 = scmp.ne.s32.totalorder %s94, %s96
      %p100 = scmp.eq.s32.totalorder %s13, 0
      %p101 = por %p99, %p100
      %p102 = scmp.ne.s32.totalorder %s94, %s96
      %p103 = scmp.eq.s32.totalorder %s18, 2
      %p104 = por %p102, %p103
      %p105 = scmp.ne.s32.totalorder %s96, %s97
      %p106 = scmp.eq.s32.totalorder %s18, 0
      %p107 = por %p105, %p106
      %p108 = scmp.ne.s32.totalorder %s96, %s97
      %p109 = scmp.eq.s32.totalorder %s19, 2
      %p110 = por %p108, %p109
      %p112 = scmp.ne.s32.totalorder %s97, %s111
      %p113 = scmp.eq.s32.totalorder %s19, 0
      %p114 = por %p112, %p113
      %s116 = sadd.s32 %s115, 1
      %p119 = scmp.eq.s32.totalorder %s13, 2
      %p120 = scmp.ne.s32.totalorder %s115, %s117
      %p121 = scmp.eq.s32.totalorder %s13, 0
      %p122 = por %p120, %p121
      %p123 = scmp.ne.s32.totalorder %s115, %s117
      %p124 = scmp.eq.s32.totalorder %s18, 2
      %p125 = por %p123, %p124
      %p126 = scmp.ne.s32.totalorder %s117, %s118
      %p127 = scmp.eq.s32.totalorder %s18, 0
      %p128 = por %p126, %p127
      %p129 = scmp.ne.s32.totalorder %s117, %s118
      %p130 = scmp.eq.s32.totalorder %s19, 2
      %p131 = por %p129, %p130
      %p133 = scmp.ne.s32.totalorder %s118, %s132
      %p134 = scmp.eq.s32.totalorder %s19, 0
      %p135 = por %p133, %p134
      %s137 = sadd.s32 %s136, 1
      %p140 = scmp.eq.s32.totalorder %s13, 2
      %p141 = scmp.ne.s32.totalorder %s136, %s138
      %p142 = scmp.eq.s32.totalorder %s13, 0
      %p143 = por %p141, %p142
      %p144 = scmp.ne.s32.totalorder %s136, %s138
      %p145 = scmp.eq.s32.totalorder %s18, 2
      %p146 = por %p144, %p145
      %p147 = scmp.ne.s32.totalorder %s138, %s139
      %p148 = scmp.eq.s32.totalorder %s18, 0
      %p149 = por %p147, %p148
      %p150 = scmp.ne.s32.totalorder %s138, %s139
      %p151 = scmp.eq.s32.totalorder %s19, 2
      %p152 = por %p150, %p151
      %p154 = scmp.ne.s32.totalorder %s139, %s153
      %p155 = scmp.eq.s32.totalorder %s19, 0
      %p156 = por %p154, %p155
      %s158 = sadd.s32 %s157, 1
      %p161 = scmp.eq.s32.totalorder %s13, 2
      %p162 = scmp.ne.s32.totalorder %s157, %s159
      %p163 = scmp.eq.s32.totalorder %s13, 0
      %p164 = por %p162, %p163
      %p165 = scmp.ne.s32.totalorder %s157, %s159
      %p166 = scmp.eq.s32.totalorder %s18, 2
      %p167 = por %p165, %p166
      %p168 = scmp.ne.s32.totalorder %s159, %s160
      %p169 = scmp.eq.s32.totalorder %s18, 0
      %p170 = por %p168, %p169
      %p171 = scmp.ne.s32.totalorder %s159, %s160
      %p172 = scmp.eq.s32.totalorder %s19, 2
      %p173 = por %p171, %p172
      %p175 = scmp.ne.s32.totalorder %s160, %s174
      %p176 = scmp.eq.s32.totalorder %s19, 0
      %p177 = por %p175, %p176
      %p178 = scmp.le.s32.totalorder 1, %s13
      %p179 = scmp.lt.s32.totalorder %s13, 4
      %p180 = pnand %p178, %p179
      %p181 = pneg %p180
      // Predicated region
      $region9: #{completenn_forward.11} parent=5 // pred_check
        _
      $region10: #{completenn_forward.11} parent=5 // pred_check_branch
        %183 = sbr.rel (%p180) target = $region12
      $region11: #{completenn_forward.11} parent=5 // pred_region
        %s184 = ssub.s32 %s13, 1
        // Predicated region
        $region13: #{completenn_forward.11} parent=11 // pred_check
          %p185 = pneg %p86
        $region14: #{completenn_forward.11} parent=11 // pred_check_branch
          %187 = sbr.rel (%p185) target = $region16
        $region15: #{completenn_forward.11} parent=11 // pred_region
          _
        $region16: #{completenn_forward.11} parent=11 // pred_fallthru
          _
        // Predicated region
        $region17: #{completenn_forward.11} parent=11 // pred_check
          %p188 = pneg %p107
        $region18: #{completenn_forward.11} parent=11 // pred_check_branch
          %190 = sbr.rel (%p188) target = $region20
        $region19: #{completenn_forward.11} parent=11 // pred_region
          _
        $region20: #{completenn_forward.11} parent=11 // pred_fallthru
          _
        // Predicated region
        $region21: #{completenn_forward.11} parent=11 // pred_check
          %p191 = pneg %p128
        $region22: #{completenn_forward.11} parent=11 // pred_check_branch
          %193 = sbr.rel (%p191) target = $region24
        $region23: #{completenn_forward.11} parent=11 // pred_region
          _
        $region24: #{completenn_forward.11} parent=11 // pred_fallthru
          _
        // Predicated region
        $region25: #{completenn_forward.11} parent=11 // pred_check
          %p194 = pneg %p149
        $region26: #{completenn_forward.11} parent=11 // pred_check_branch
          %196 = sbr.rel (%p194) target = $region28
        $region27: #{completenn_forward.11} parent=11 // pred_region
          _
        $region28: #{completenn_forward.11} parent=11 // pred_fallthru
          _
      $region12: #{completenn_forward.11} parent=5 // pred_fallthru
        _
      %p197 = scmp.lt.s32.totalorder %s13, 3
      // Predicated region
      $region29: #{completenn_forward.11} parent=5 // pred_check
        %p198 = pneg %p197
      $region30: #{completenn_forward.11} parent=5 // pred_check_branch
        %200 = sbr.rel (%p198) target = $region32
      $region31: #{completenn_forward.11} parent=5 // pred_region
        // Predicated region
        $region33: #{completenn_forward.11} parent=31 // pred_check
          %p201 = pneg %p33
        $region34: #{completenn_forward.11} parent=31 // pred_check_branch
          %203 = sbr.rel (%p201) target = $region36
        $region35: #{completenn_forward.11} parent=31 // pred_region
          %s204 = sand.u32 %s23, 1
          %s205 = sand.u32 %s23, 1
          %s206 = smul.addr %s205, 64
          %s207 = scalar_lea.vmem [#allocation3], %s206
          %s208 = smul.u32 4, %s13
          %s209 = smul.addr %s208, 4
          %s210 = scalar_lea.vmem %s0, %s209
          // Predicated region
          $region37: #{completenn_forward.11} parent=35 // pred_check
            _
          $region38: #{completenn_forward.11} parent=35 // pred_check_branch
            %212 = sbr.rel (0) target = $region40
          $region39: #{completenn_forward.11} parent=35 // pred_region
            // Predicated region
            $region41: #{completenn_forward.11} parent=39 // pred_check
              _
            $region42: #{completenn_forward.11} parent=39 // pred_check_branch
              %214 = sbr.rel (0) target = $region44
            $region43: #{completenn_forward.11} parent=39 // pred_region
              loop: start=0, step=1, limit=1
              $region45: #{completenn_forward.11} parent=43 // loop_pre_header
                _
              $region46: #{completenn_forward.11} parent=43 // loop_header
                %s216 = sphi 0, %s220
                %p217 = scmp.ge.s32.totalorder %s216, 1
                %s221 = sphi %s210, %s210
                %s222 = sphi %s207, %s207
              $region47: #{completenn_forward.11} parent=43 // loop_header_branch
                %219 = sbr.rel (%p217) target = $region51
              $region48: #{completenn_forward.11} parent=43 // loop_body
                %v223 = vld [vmem:[%s221] sm:$0xff]
                %224 = vst [vmem:[%s222] sm:$0xff] %v223
                %v225 = vld [vmem:[%s221 + $0x8] sm:$0xff]
                %226 = vst [vmem:[%s222 + $0x8] sm:$0xff] %v225
                %v227 = vld [vmem:[%s221 + $0x30] sm:$0xff]
                %228 = vst [vmem:[%s222 + $0x10] sm:$0xff] %v227
                %v229 = vld [vmem:[%s221 + $0x38] sm:$0xff]
                %230 = vst [vmem:[%s222 + $0x18] sm:$0xff] %v229
                %v231 = vld [vmem:[%s221 + $0x60] sm:$0xff]
                %232 = vst [vmem:[%s222 + $0x20] sm:$0xff] %v231
                %v233 = vld [vmem:[%s221 + $0x68] sm:$0xff]
                %234 = vst [vmem:[%s222 + $0x28] sm:$0xff] %v233
                %v235 = vld [vmem:[%s221 + $0x90] sm:$0xff]
                %236 = vst [vmem:[%s222 + $0x30] sm:$0xff] %v235
                %v237 = vld [vmem:[%s221 + $0x98] sm:$0xff]
                %238 = vst [vmem:[%s222 + $0x38] sm:$0xff] %v237
              $region49: #{completenn_forward.11} parent=43 // loop_footer
                %s220 = sadd.s32 1, %s216
              $region50: #{completenn_forward.11} parent=43 // loop_footer_branch
                %215 = sbr.rel target = $region46
              $region51: #{completenn_forward.11} parent=43 // loop_exit
                _
            $region44: #{completenn_forward.11} parent=39 // pred_fallthru
              _
            // Predicated region
            $region52: #{completenn_forward.11} parent=39 // pred_check
              _
            $region53: #{completenn_forward.11} parent=39 // pred_check_branch
              %240 = sbr.rel target = $region55
            $region54: #{completenn_forward.11} parent=39 // pred_region
              _
            $region55: #{completenn_forward.11} parent=39 // pred_fallthru
              _
          $region40: #{completenn_forward.11} parent=35 // pred_fallthru
            _
          %241 = vnop
        $region36: #{completenn_forward.11} parent=31 // pred_fallthru
          _
        // Predicated region
        $region56: #{completenn_forward.11} parent=31 // pred_check
          %p242 = pneg %p59
        $region57: #{completenn_forward.11} parent=31 // pred_check_branch
          %244 = sbr.rel (%p242) target = $region59
        $region58: #{completenn_forward.11} parent=31 // pred_region
          %s245 = smul.u32 64, %s13
          %p246 = scmp.lt.s32.totalorder %s245, 191
          %s247 = scalar_select %p246, %s245, 191
          %s248 = smul.addr %s247, 8
          %s249 = smul.addr %s248, 4
          %s250 = scalar_lea.vmem %s1, %s249
          %s251 = smul.u32 64, %s13
        $region59: #{completenn_forward.11} parent=31 // pred_fallthru
          _
      $region32: #{completenn_forward.11} parent=5 // pred_fallthru
        _
      %p252 = scmp.le.s32.totalorder 1, %s13
      %p253 = scmp.lt.s32.totalorder %s13, 4
      %p254 = pnand %p252, %p253
      %p255 = pneg %p254
      // Predicated region
      $region60: #{completenn_forward.11} parent=5 // pred_check
        _
      $region61: #{completenn_forward.11} parent=5 // pred_check_branch
        %257 = sbr.rel (%p254) target = $region63
      $region62: #{completenn_forward.11} parent=5 // pred_region
        %s258 = ssub.s32 %s13, 1
        %s259 = sand.u32 %s26, 1
        %s260 = sand.u32 %s26, 1
        %s261 = smul.addr %s260, 64
        %s262 = scalar_lea.vmem [#allocation3], %s261
        // Predicated region
        $region64: #{completenn_forward.11} parent=62 // pred_check
          %p263 = pneg %p39
        $region65: #{completenn_forward.11} parent=62 // pred_check_branch
          %265 = sbr.rel (%p263) target = $region67
        $region66: #{completenn_forward.11} parent=62 // pred_region
          _
        $region67: #{completenn_forward.11} parent=62 // pred_fallthru
          _
        %s266 = sand.u32 %s26, 1
        %s267 = sand.u32 %s26, 1
        %s268 = smul.addr %s267, 64
        %s269 = scalar_lea.vmem [#allocation3], %s268
        %p270 = pneg %p39
        %p271 = pneg %p36
        %s272 = smul.u32 64, %s18
        %p273 = scmp.lt.s32.totalorder %s272, 191
        %s274 = scalar_select %p273, %s272, 191
        %s275 = smul.addr %s274, 8
        %s276 = smul.addr %s275, 4
        %s277 = scalar_lea.vmem %s1, %s276
        %p278 = pneg %p65
        %p279 = pneg %p62
        %p280 = pneg %p86
        %p281 = pneg %p83
        %p282 = pneg %p107
        %p283 = pneg %p104
        %p284 = pneg %p128
        %p285 = pneg %p125
        %p286 = pneg %p149
        %p287 = pneg %p146
        %p288 = pneg %p170
        %p289 = pneg %p167
        %s290 = smul.u32 4, %s18
        %s291 = smul.u32 64, %s18
        %p292 = scmp.lt.s32.totalorder %s291, 191
        %s293 = scalar_select %p292, %s291, 191
        %s294 = smul.addr %s293, 8
        %s295 = smul.addr %s294, 4
        %s296 = scalar_lea.vmem %s1, %s295
        %s297 = smul.u32 64, %s18
        %p298 = scmp.eq.s32.totalorder %s18, 0
        // Predicated region
        $region68: #{completenn_forward.11} parent=62 // pred_check
          %p299 = pneg %p298
        $region69: #{completenn_forward.11} parent=62 // pred_check_branch
          %301 = sbr.rel (%p299) target = $region71
        $region70: #{completenn_forward.11} parent=62 // pred_region
          %302 = vst [vmem:[#allocation2] sm:$0xff] 0.0
          %303 = vst [vmem:[#allocation2 + $0x8] sm:$0xff] 0.0
          %304 = vst [vmem:[#allocation2 + $0x10] sm:$0xff] 0.0
          %305 = vst [vmem:[#allocation2 + $0x18] sm:$0xff] 0.0
          %306 = vst [vmem:[#allocation2 + $0x20] sm:$0xff] 0.0
          %307 = vst [vmem:[#allocation2 + $0x28] sm:$0xff] 0.0
          %308 = vst [vmem:[#allocation2 + $0x30] sm:$0xff] 0.0
          %309 = vst [vmem:[#allocation2 + $0x38] sm:$0xff] 0.0
          %310 = vst [vmem:[#allocation2 + $0x40] sm:$0xff] 0.0
          %311 = vst [vmem:[#allocation2 + $0x48] sm:$0xff] 0.0
          %312 = vst [vmem:[#allocation2 + $0x50] sm:$0xff] 0.0
          %313 = vst [vmem:[#allocation2 + $0x58] sm:$0xff] 0.0
          %314 = vst [vmem:[#allocation2 + $0x60] sm:$0xff] 0.0
          %315 = vst [vmem:[#allocation2 + $0x68] sm:$0xff] 0.0
          %316 = vst [vmem:[#allocation2 + $0x70] sm:$0xff] 0.0
          %317 = vst [vmem:[#allocation2 + $0x78] sm:$0xff] 0.0
          %318 = vst [vmem:[#allocation2 + $0x80] sm:$0xff] 0.0
          %319 = vst [vmem:[#allocation2 + $0x88] sm:$0xff] 0.0
          %320 = vst [vmem:[#allocation2 + $0x90] sm:$0xff] 0.0
          %321 = vst [vmem:[#allocation2 + $0x98] sm:$0xff] 0.0
          %322 = vst [vmem:[#allocation2 + $0xa0] sm:$0xff] 0.0
          %323 = vst [vmem:[#allocation2 + $0xa8] sm:$0xff] 0.0
          %324 = vst [vmem:[#allocation2 + $0xb0] sm:$0xff] 0.0
          %325 = vst [vmem:[#allocation2 + $0xb8] sm:$0xff] 0.0
          %326 = vst [vmem:[#allocation2 + $0xc0] sm:$0xf] 0.0
          %327 = vst [vmem:[#allocation2 + $0xc8] sm:$0xf] 0.0
          %328 = vst [vmem:[#allocation2 + $0xd0] sm:$0xf] 0.0
          %329 = vst [vmem:[#allocation2 + $0xd8] sm:$0xf] 0.0
          %330 = vst [vmem:[#allocation2 + $0xe0] sm:$0xf] 0.0
          %331 = vst [vmem:[#allocation2 + $0xe8] sm:$0xf] 0.0
          %332 = vst [vmem:[#allocation2 + $0xf0] sm:$0xf] 0.0
          %333 = vst [vmem:[#allocation2 + $0xf8] sm:$0xf] 0.0
        $region71: #{completenn_forward.11} parent=62 // pred_fallthru
          _
        %v334 = vld [vmem:[#allocation2] sm:$0xff]
        %v335 = vld [vmem:[#allocation2 + $0x8] sm:$0xff]
        %v336 = vld [vmem:[#allocation2 + $0x10] sm:$0xff]
        %v337 = vld [vmem:[#allocation2 + $0x18] sm:$0xff]
        %v338 = vld [vmem:[#allocation2 + $0x20] sm:$0xff]
        %v339 = vld [vmem:[#allocation2 + $0x28] sm:$0xff]
        %v340 = vld [vmem:[#allocation2 + $0x30] sm:$0xff]
        %v341 = vld [vmem:[#allocation2 + $0x38] sm:$0xff]
        %v342 = vld [vmem:[#allocation2 + $0x40] sm:$0xff]
        %v343 = vld [vmem:[#allocation2 + $0x48] sm:$0xff]
        %v344 = vld [vmem:[#allocation2 + $0x50] sm:$0xff]
        %v345 = vld [vmem:[#allocation2 + $0x58] sm:$0xff]
        %v346 = vld [vmem:[#allocation2 + $0x60] sm:$0xff]
        %v347 = vld [vmem:[#allocation2 + $0x68] sm:$0xff]
        %v348 = vld [vmem:[#allocation2 + $0x70] sm:$0xff]
        %v349 = vld [vmem:[#allocation2 + $0x78] sm:$0xff]
        %v350 = vld [vmem:[#allocation2 + $0x80] sm:$0xff]
        %v351 = vld [vmem:[#allocation2 + $0x88] sm:$0xff]
        %v352 = vld [vmem:[#allocation2 + $0x90] sm:$0xff]
        %v353 = vld [vmem:[#allocation2 + $0x98] sm:$0xff]
        %v354 = vld [vmem:[#allocation2 + $0xa0] sm:$0xff]
        %v355 = vld [vmem:[#allocation2 + $0xa8] sm:$0xff]
        %v356 = vld [vmem:[#allocation2 + $0xb0] sm:$0xff]
        %v357 = vld [vmem:[#allocation2 + $0xb8] sm:$0xff]
        %v358 = vld [vmem:[#allocation2 + $0xc0] sm:$0xf]
        %v359 = vld [vmem:[#allocation2 + $0xc8] sm:$0xf]
        %v360 = vld [vmem:[#allocation2 + $0xd0] sm:$0xf]
        %v361 = vld [vmem:[#allocation2 + $0xd8] sm:$0xf]
        %v362 = vld [vmem:[#allocation2 + $0xe0] sm:$0xf]
        %v363 = vld [vmem:[#allocation2 + $0xe8] sm:$0xf]
        %v364 = vld [vmem:[#allocation2 + $0xf0] sm:$0xf]
        %v365 = vld [vmem:[#allocation2 + $0xf8] sm:$0xf]
        %v366 = vld [vmem:[%s262] sm:$0xff]
        %v367 = vld [vmem:[%s262 + $0x8] sm:$0xff]
        %v368 = vld [vmem:[%s262 + $0x10] sm:$0xff]
        %v369 = vld [vmem:[%s262 + $0x18] sm:$0xff]
        %v370 = vld [vmem:[%s262 + $0x20] sm:$0xff]
        %v371 = vld [vmem:[%s262 + $0x28] sm:$0xff]
        %v372 = vld [vmem:[%s262 + $0x30] sm:$0x33]
        %v373 = vld [vmem:[%s262 + $0x38] sm:$0x33]
        %v374 = vld [vmem:[%s296] sm:$0xff]
        %v375 = vld [vmem:[%s296 + $0x8] sm:$0xff]
        %v376 = vld [vmem:[%s296 + $0x10] sm:$0xff]
        %v377 = vld [vmem:[%s296 + $0x18] sm:$0xff]
        %v378 = vld [vmem:[%s296 + $0x20] sm:$0xff]
        %v379 = vld [vmem:[%s296 + $0x28] sm:$0xff]
        %v380 = vld [vmem:[%s296 + $0x30] sm:$0xff]
        %v381 = vld [vmem:[%s296 + $0x38] sm:$0xff]
        %v382 = vld [vmem:[%s296 + $0x40] sm:$0xff]
        %v383 = vld [vmem:[%s296 + $0x48] sm:$0xff]
        %v384 = vld [vmem:[%s296 + $0x50] sm:$0xff]
        %v385 = vld [vmem:[%s296 + $0x58] sm:$0xff]
        %v386 = vld [vmem:[%s296 + $0x60] sm:$0xff]
        %v387 = vld [vmem:[%s296 + $0x68] sm:$0xff]
        %v388 = vld [vmem:[%s296 + $0x70] sm:$0xff]
        %v389 = vld [vmem:[%s296 + $0x78] sm:$0xff]
        %v390 = vld [vmem:[%s296 + $0x80] sm:$0xff]
        %v391 = vld [vmem:[%s296 + $0x88] sm:$0xff]
        %v392 = vld [vmem:[%s296 + $0x90] sm:$0xff]
        %v393 = vld [vmem:[%s296 + $0x98] sm:$0xff]
        %v394 = vld [vmem:[%s296 + $0xa0] sm:$0xff]
        %v395 = vld [vmem:[%s296 + $0xa8] sm:$0xff]
        %v396 = vld [vmem:[%s296 + $0xb0] sm:$0xff]
        %v397 = vld [vmem:[%s296 + $0xb8] sm:$0xff]
        %v398 = vld [vmem:[%s296 + $0xc0] sm:$0xff]
        %v399 = vld [vmem:[%s296 + $0xc8] sm:$0xff]
        %v400 = vld [vmem:[%s296 + $0xd0] sm:$0xff]
        %v401 = vld [vmem:[%s296 + $0xd8] sm:$0xff]
        %v402 = vld [vmem:[%s296 + $0xe0] sm:$0xff]
        %v403 = vld [vmem:[%s296 + $0xe8] sm:$0xff]
        %v404 = vld [vmem:[%s296 + $0xf0] sm:$0xff]
        %v405 = vld [vmem:[%s296 + $0xf8] sm:$0xff]
        %v406 = vld [vmem:[%s296 + $0x100] sm:$0xff]
        %v407 = vld [vmem:[%s296 + $0x108] sm:$0xff]
        %v408 = vld [vmem:[%s296 + $0x110] sm:$0xff]
        %v409 = vld [vmem:[%s296 + $0x118] sm:$0xff]
        %v410 = vld [vmem:[%s296 + $0x120] sm:$0xff]
        %v411 = vld [vmem:[%s296 + $0x128] sm:$0xff]
        %v412 = vld [vmem:[%s296 + $0x130] sm:$0xff]
        %v413 = vld [vmem:[%s296 + $0x138] sm:$0xff]
        %v414 = vld [vmem:[%s296 + $0x140] sm:$0xff]
        %v415 = vld [vmem:[%s296 + $0x148] sm:$0xff]
        %v416 = vld [vmem:[%s296 + $0x150] sm:$0xff]
        %v417 = vld [vmem:[%s296 + $0x158] sm:$0xff]
        %v418 = vld [vmem:[%s296 + $0x160] sm:$0xff]
        %v419 = vld [vmem:[%s296 + $0x168] sm:$0xff]
        %v420 = vld [vmem:[%s296 + $0x170] sm:$0xff]
        %v421 = vld [vmem:[%s296 + $0x178] sm:$0xff]
        %v422 = vld [vmem:[%s296 + $0x180] sm:$0xff]
        %v423 = vld [vmem:[%s296 + $0x188] sm:$0xff]
        %v424 = vld [vmem:[%s296 + $0x190] sm:$0xff]
        %v425 = vld [vmem:[%s296 + $0x198] sm:$0xff]
        %v426 = vld [vmem:[%s296 + $0x1a0] sm:$0xff]
        %v427 = vld [vmem:[%s296 + $0x1a8] sm:$0xff]
        %v428 = vld [vmem:[%s296 + $0x1b0] sm:$0xff]
        %v429 = vld [vmem:[%s296 + $0x1b8] sm:$0xff]
        %v430 = vld [vmem:[%s296 + $0x1c0] sm:$0xff]
        %v431 = vld [vmem:[%s296 + $0x1c8] sm:$0xff]
        %v432 = vld [vmem:[%s296 + $0x1d0] sm:$0xff]
        %v433 = vld [vmem:[%s296 + $0x1d8] sm:$0xff]
        %v434 = vld [vmem:[%s296 + $0x1e0] sm:$0xff]
        %v435 = vld [vmem:[%s296 + $0x1e8] sm:$0xff]
        %v436 = vld [vmem:[%s296 + $0x1f0] sm:$0xff]
        %v437 = vld [vmem:[%s296 + $0x1f8] sm:$0xff]
        %v438 = vld [vmem:[%s296 + $0x200] sm:$0xff]
        %v439 = vld [vmem:[%s296 + $0x208] sm:$0xff]
        %v440 = vld [vmem:[%s296 + $0x210] sm:$0xff]
        %v441 = vld [vmem:[%s296 + $0x218] sm:$0xff]
        %v442 = vld [vmem:[%s296 + $0x220] sm:$0xff]
        %v443 = vld [vmem:[%s296 + $0x228] sm:$0xff]
        %v444 = vld [vmem:[%s296 + $0x230] sm:$0xff]
        %v445 = vld [vmem:[%s296 + $0x238] sm:$0xff]
        %v446 = vld [vmem:[%s296 + $0x240] sm:$0xff]
        %v447 = vld [vmem:[%s296 + $0x248] sm:$0xff]
        %v448 = vld [vmem:[%s296 + $0x250] sm:$0xff]
        %v449 = vld [vmem:[%s296 + $0x258] sm:$0xff]
        %v450 = vld [vmem:[%s296 + $0x260] sm:$0xff]
        %v451 = vld [vmem:[%s296 + $0x268] sm:$0xff]
        %v452 = vld [vmem:[%s296 + $0x270] sm:$0xff]
        %v453 = vld [vmem:[%s296 + $0x278] sm:$0xff]
        %v454 = vld [vmem:[%s296 + $0x280] sm:$0xff]
        %v455 = vld [vmem:[%s296 + $0x288] sm:$0xff]
        %v456 = vld [vmem:[%s296 + $0x290] sm:$0xff]
        %v457 = vld [vmem:[%s296 + $0x298] sm:$0xff]
        %v458 = vld [vmem:[%s296 + $0x2a0] sm:$0xff]
        %v459 = vld [vmem:[%s296 + $0x2a8] sm:$0xff]
        %v460 = vld [vmem:[%s296 + $0x2b0] sm:$0xff]
        %v461 = vld [vmem:[%s296 + $0x2b8] sm:$0xff]
        %v462 = vld [vmem:[%s296 + $0x2c0] sm:$0xff]
        %v463 = vld [vmem:[%s296 + $0x2c8] sm:$0xff]
        %v464 = vld [vmem:[%s296 + $0x2d0] sm:$0xff]
        %v465 = vld [vmem:[%s296 + $0x2d8] sm:$0xff]
        %v466 = vld [vmem:[%s296 + $0x2e0] sm:$0xff]
        %v467 = vld [vmem:[%s296 + $0x2e8] sm:$0xff]
        %v468 = vld [vmem:[%s296 + $0x2f0] sm:$0xff]
        %v469 = vld [vmem:[%s296 + $0x2f8] sm:$0xff]
        %v470 = vld [vmem:[%s296 + $0x300] sm:$0xff]
        %v471 = vld [vmem:[%s296 + $0x308] sm:$0xff]
        %v472 = vld [vmem:[%s296 + $0x310] sm:$0xff]
        %v473 = vld [vmem:[%s296 + $0x318] sm:$0xff]
        %v474 = vld [vmem:[%s296 + $0x320] sm:$0xff]
        %v475 = vld [vmem:[%s296 + $0x328] sm:$0xff]
        %v476 = vld [vmem:[%s296 + $0x330] sm:$0xff]
        %v477 = vld [vmem:[%s296 + $0x338] sm:$0xff]
        %v478 = vld [vmem:[%s296 + $0x340] sm:$0xff]
        %v479 = vld [vmem:[%s296 + $0x348] sm:$0xff]
        %v480 = vld [vmem:[%s296 + $0x350] sm:$0xff]
        %v481 = vld [vmem:[%s296 + $0x358] sm:$0xff]
        %v482 = vld [vmem:[%s296 + $0x360] sm:$0xff]
        %v483 = vld [vmem:[%s296 + $0x368] sm:$0xff]
        %v484 = vld [vmem:[%s296 + $0x370] sm:$0xff]
        %v485 = vld [vmem:[%s296 + $0x378] sm:$0xff]
        %v486 = vld [vmem:[%s296 + $0x380] sm:$0xff]
        %v487 = vld [vmem:[%s296 + $0x388] sm:$0xff]
        %v488 = vld [vmem:[%s296 + $0x390] sm:$0xff]
        %v489 = vld [vmem:[%s296 + $0x398] sm:$0xff]
        %v490 = vld [vmem:[%s296 + $0x3a0] sm:$0xff]
        %v491 = vld [vmem:[%s296 + $0x3a8] sm:$0xff]
        %v492 = vld [vmem:[%s296 + $0x3b0] sm:$0xff]
        %v493 = vld [vmem:[%s296 + $0x3b8] sm:$0xff]
        %v494 = vld [vmem:[%s296 + $0x3c0] sm:$0xff]
        %v495 = vld [vmem:[%s296 + $0x3c8] sm:$0xff]
        %v496 = vld [vmem:[%s296 + $0x3d0] sm:$0xff]
        %v497 = vld [vmem:[%s296 + $0x3d8] sm:$0xff]
        %v498 = vld [vmem:[%s296 + $0x3e0] sm:$0xff]
        %v499 = vld [vmem:[%s296 + $0x3e8] sm:$0xff]
        %v500 = vld [vmem:[%s296 + $0x3f0] sm:$0xff]
        %v501 = vld [vmem:[%s296 + $0x3f8] sm:$0xff]
        %v502 = vld [vmem:[%s296 + $0x400] sm:$0xff]
        %v503 = vld [vmem:[%s296 + $0x408] sm:$0xff]
        %v504 = vld [vmem:[%s296 + $0x410] sm:$0xff]
        %v505 = vld [vmem:[%s296 + $0x418] sm:$0xff]
        %v506 = vld [vmem:[%s296 + $0x420] sm:$0xff]
        %v507 = vld [vmem:[%s296 + $0x428] sm:$0xff]
        %v508 = vld [vmem:[%s296 + $0x430] sm:$0xff]
        %v509 = vld [vmem:[%s296 + $0x438] sm:$0xff]
        %v510 = vld [vmem:[%s296 + $0x440] sm:$0xff]
        %v511 = vld [vmem:[%s296 + $0x448] sm:$0xff]
        %v512 = vld [vmem:[%s296 + $0x450] sm:$0xff]
        %v513 = vld [vmem:[%s296 + $0x458] sm:$0xff]
        %v514 = vld [vmem:[%s296 + $0x460] sm:$0xff]
        %v515 = vld [vmem:[%s296 + $0x468] sm:$0xff]
        %v516 = vld [vmem:[%s296 + $0x470] sm:$0xff]
        %v517 = vld [vmem:[%s296 + $0x478] sm:$0xff]
        %v518 = vld [vmem:[%s296 + $0x480] sm:$0xff]
        %v519 = vld [vmem:[%s296 + $0x488] sm:$0xff]
        %v520 = vld [vmem:[%s296 + $0x490] sm:$0xff]
        %v521 = vld [vmem:[%s296 + $0x498] sm:$0xff]
        %v522 = vld [vmem:[%s296 + $0x4a0] sm:$0xff]
        %v523 = vld [vmem:[%s296 + $0x4a8] sm:$0xff]
        %v524 = vld [vmem:[%s296 + $0x4b0] sm:$0xff]
        %v525 = vld [vmem:[%s296 + $0x4b8] sm:$0xff]
        %v526 = vld [vmem:[%s296 + $0x4c0] sm:$0xff]
        %v527 = vld [vmem:[%s296 + $0x4c8] sm:$0xff]
        %v528 = vld [vmem:[%s296 + $0x4d0] sm:$0xff]
        %v529 = vld [vmem:[%s296 + $0x4d8] sm:$0xff]
        %v530 = vld [vmem:[%s296 + $0x4e0] sm:$0xff]
        %v531 = vld [vmem:[%s296 + $0x4e8] sm:$0xff]
        %v532 = vld [vmem:[%s296 + $0x4f0] sm:$0xff]
        %v533 = vld [vmem:[%s296 + $0x4f8] sm:$0xff]
        %v534 = vld [vmem:[%s296 + $0x500] sm:$0xff]
        %v535 = vld [vmem:[%s296 + $0x508] sm:$0xff]
        %v536 = vld [vmem:[%s296 + $0x510] sm:$0xff]
        %v537 = vld [vmem:[%s296 + $0x518] sm:$0xff]
        %v538 = vld [vmem:[%s296 + $0x520] sm:$0xff]
        %v539 = vld [vmem:[%s296 + $0x528] sm:$0xff]
        %v540 = vld [vmem:[%s296 + $0x530] sm:$0xff]
        %v541 = vld [vmem:[%s296 + $0x538] sm:$0xff]
        %v542 = vld [vmem:[%s296 + $0x540] sm:$0xff]
        %v543 = vld [vmem:[%s296 + $0x548] sm:$0xff]
        %v544 = vld [vmem:[%s296 + $0x550] sm:$0xff]
        %v545 = vld [vmem:[%s296 + $0x558] sm:$0xff]
        %v546 = vld [vmem:[%s296 + $0x560] sm:$0xff]
        %v547 = vld [vmem:[%s296 + $0x568] sm:$0xff]
        %v548 = vld [vmem:[%s296 + $0x570] sm:$0xff]
        %v549 = vld [vmem:[%s296 + $0x578] sm:$0xff]
        %v550 = vld [vmem:[%s296 + $0x580] sm:$0xff]
        %v551 = vld [vmem:[%s296 + $0x588] sm:$0xff]
        %v552 = vld [vmem:[%s296 + $0x590] sm:$0xff]
        %v553 = vld [vmem:[%s296 + $0x598] sm:$0xff]
        %v554 = vld [vmem:[%s296 + $0x5a0] sm:$0xff]
        %v555 = vld [vmem:[%s296 + $0x5a8] sm:$0xff]
        %v556 = vld [vmem:[%s296 + $0x5b0] sm:$0xff]
        %v557 = vld [vmem:[%s296 + $0x5b8] sm:$0xff]
        %v558 = vld [vmem:[%s296 + $0x5c0] sm:$0xff]
        %v559 = vld [vmem:[%s296 + $0x5c8] sm:$0xff]
        %v560 = vld [vmem:[%s296 + $0x5d0] sm:$0xff]
        %v561 = vld [vmem:[%s296 + $0x5d8] sm:$0xff]
        %v562 = vld [vmem:[%s296 + $0x5e0] sm:$0xff]
        %v563 = vld [vmem:[%s296 + $0x5e8] sm:$0xff]
        %v564 = vld [vmem:[%s296 + $0x5f0] sm:$0xff]
        %v565 = vld [vmem:[%s296 + $0x5f8] sm:$0xff]
        %v566 = vld [vmem:[%s296 + $0x600] sm:$0xff]
        %v567 = vld [vmem:[%s296 + $0x608] sm:$0xff]
        %v568 = vld [vmem:[%s296 + $0x610] sm:$0xff]
        %v569 = vld [vmem:[%s296 + $0x618] sm:$0xff]
        %v570 = vld [vmem:[%s296 + $0x620] sm:$0xff]
        %v571 = vld [vmem:[%s296 + $0x628] sm:$0xff]
        %v572 = vld [vmem:[%s296 + $0x630] sm:$0xff]
        %v573 = vld [vmem:[%s296 + $0x638] sm:$0xff]
        %v574 = vld [vmem:[%s296 + $0x640] sm:$0xff]
        %v575 = vld [vmem:[%s296 + $0x648] sm:$0xff]
        %v576 = vld [vmem:[%s296 + $0x650] sm:$0xff]
        %v577 = vld [vmem:[%s296 + $0x658] sm:$0xff]
        %v578 = vld [vmem:[%s296 + $0x660] sm:$0xff]
        %v579 = vld [vmem:[%s296 + $0x668] sm:$0xff]
        %v580 = vld [vmem:[%s296 + $0x670] sm:$0xff]
        %v581 = vld [vmem:[%s296 + $0x678] sm:$0xff]
        %v582 = vld [vmem:[%s296 + $0x680] sm:$0xff]
        %v583 = vld [vmem:[%s296 + $0x688] sm:$0xff]
        %v584 = vld [vmem:[%s296 + $0x690] sm:$0xff]
        %v585 = vld [vmem:[%s296 + $0x698] sm:$0xff]
        %v586 = vld [vmem:[%s296 + $0x6a0] sm:$0xff]
        %v587 = vld [vmem:[%s296 + $0x6a8] sm:$0xff]
        %v588 = vld [vmem:[%s296 + $0x6b0] sm:$0xff]
        %v589 = vld [vmem:[%s296 + $0x6b8] sm:$0xff]
        %v590 = vld [vmem:[%s296 + $0x6c0] sm:$0xff]
        %v591 = vld [vmem:[%s296 + $0x6c8] sm:$0xff]
        %v592 = vld [vmem:[%s296 + $0x6d0] sm:$0xff]
        %v593 = vld [vmem:[%s296 + $0x6d8] sm:$0xff]
        %v594 = vld [vmem:[%s296 + $0x6e0] sm:$0xff]
        %v595 = vld [vmem:[%s296 + $0x6e8] sm:$0xff]
        %v596 = vld [vmem:[%s296 + $0x6f0] sm:$0xff]
        %v597 = vld [vmem:[%s296 + $0x6f8] sm:$0xff]
        %v598 = vld [vmem:[%s296 + $0x700] sm:$0xff]
        %v599 = vld [vmem:[%s296 + $0x708] sm:$0xff]
        %v600 = vld [vmem:[%s296 + $0x710] sm:$0xff]
        %v601 = vld [vmem:[%s296 + $0x718] sm:$0xff]
        %v602 = vld [vmem:[%s296 + $0x720] sm:$0xff]
        %v603 = vld [vmem:[%s296 + $0x728] sm:$0xff]
        %v604 = vld [vmem:[%s296 + $0x730] sm:$0xff]
        %v605 = vld [vmem:[%s296 + $0x738] sm:$0xff]
        %v606 = vld [vmem:[%s296 + $0x740] sm:$0xff]
        %v607 = vld [vmem:[%s296 + $0x748] sm:$0xff]
        %v608 = vld [vmem:[%s296 + $0x750] sm:$0xff]
        %v609 = vld [vmem:[%s296 + $0x758] sm:$0xff]
        %v610 = vld [vmem:[%s296 + $0x760] sm:$0xff]
        %v611 = vld [vmem:[%s296 + $0x768] sm:$0xff]
        %v612 = vld [vmem:[%s296 + $0x770] sm:$0xff]
        %v613 = vld [vmem:[%s296 + $0x778] sm:$0xff]
        %v614 = vld [vmem:[%s296 + $0x780] sm:$0xff]
        %v615 = vld [vmem:[%s296 + $0x788] sm:$0xff]
        %v616 = vld [vmem:[%s296 + $0x790] sm:$0xff]
        %v617 = vld [vmem:[%s296 + $0x798] sm:$0xff]
        %v618 = vld [vmem:[%s296 + $0x7a0] sm:$0xff]
        %v619 = vld [vmem:[%s296 + $0x7a8] sm:$0xff]
        %v620 = vld [vmem:[%s296 + $0x7b0] sm:$0xff]
        %v621 = vld [vmem:[%s296 + $0x7b8] sm:$0xff]
        %v622 = vld [vmem:[%s296 + $0x7c0] sm:$0xff]
        %v623 = vld [vmem:[%s296 + $0x7c8] sm:$0xff]
        %v624 = vld [vmem:[%s296 + $0x7d0] sm:$0xff]
        %v625 = vld [vmem:[%s296 + $0x7d8] sm:$0xff]
        %v626 = vld [vmem:[%s296 + $0x7e0] sm:$0xff]
        %v627 = vld [vmem:[%s296 + $0x7e8] sm:$0xff]
        %v628 = vld [vmem:[%s296 + $0x7f0] sm:$0xff]
        %v629 = vld [vmem:[%s296 + $0x7f8] sm:$0xff]
        %v638 = vunpack.c.l.b16 %v366
        %v639 = vunpack.c.h.b16 %v366
        %v640 = vunpack.c.l.b16 %v367
        %v641 = vunpack.c.h.b16 %v367
        %v642 = vunpack.c.l.b16 %v368
        %v643 = vunpack.c.h.b16 %v368
        %v644 = vunpack.c.l.b16 %v369
        %v645 = vunpack.c.h.b16 %v369
        %v646 = vunpack.c.l.b16 %v370
        %v647 = vunpack.c.h.b16 %v370
        %v648 = vunpack.c.l.b16 %v371
        %v649 = vunpack.c.h.b16 %v371
        %v650 = vunpack.c.l.b16 %v372
        %v651 = vunpack.c.h.b16 %v372
        %v652 = vunpack.c.l.b16 %v373
        %v653 = vunpack.c.h.b16 %v373
        %v654 = vpack.c.b16 %v642, %v638
        %v655 = vpack.c.b16 %v643, %v639
        %v656 = vpack.c.b16 %v644, %v640
        %v657 = vpack.c.b16 %v645, %v641
        %v658 = vpack.c.b16 %v650, %v646
        %v659 = vpack.c.b16 %v651, %v647
        %v660 = vpack.c.b16 %v652, %v648
        %v661 = vpack.c.b16 %v653, %v649
        %v926 = vunpack.c.l.b16 %v374
        %v927 = vunpack.c.h.b16 %v374
        %v928 = vunpack.c.l.b16 %v375
        %v929 = vunpack.c.h.b16 %v375
        %v930 = vunpack.c.l.b16 %v376
        %v931 = vunpack.c.h.b16 %v376
        %v932 = vunpack.c.l.b16 %v377
        %v933 = vunpack.c.h.b16 %v377
        %v934 = vunpack.c.l.b16 %v378
        %v935 = vunpack.c.h.b16 %v378
        %v936 = vunpack.c.l.b16 %v379
        %v937 = vunpack.c.h.b16 %v379
        %v938 = vunpack.c.l.b16 %v380
        %v939 = vunpack.c.h.b16 %v380
        %v940 = vunpack.c.l.b16 %v381
        %v941 = vunpack.c.h.b16 %v381
        %v942 = vunpack.c.l.b16 %v382
        %v943 = vunpack.c.h.b16 %v382
        %v944 = vunpack.c.l.b16 %v383
        %v945 = vunpack.c.h.b16 %v383
        %v946 = vunpack.c.l.b16 %v384
        %v947 = vunpack.c.h.b16 %v384
        %v948 = vunpack.c.l.b16 %v385
        %v949 = vunpack.c.h.b16 %v385
        %v950 = vunpack.c.l.b16 %v386
        %v951 = vunpack.c.h.b16 %v386
        %v952 = vunpack.c.l.b16 %v387
        %v953 = vunpack.c.h.b16 %v387
        %v954 = vunpack.c.l.b16 %v388
        %v955 = vunpack.c.h.b16 %v388
        %v956 = vunpack.c.l.b16 %v389
        %v957 = vunpack.c.h.b16 %v389
        %v958 = vunpack.c.l.b16 %v390
        %v959 = vunpack.c.h.b16 %v390
        %v960 = vunpack.c.l.b16 %v391
        %v961 = vunpack.c.h.b16 %v391
        %v962 = vunpack.c.l.b16 %v392
        %v963 = vunpack.c.h.b16 %v392
        %v964 = vunpack.c.l.b16 %v393
        %v965 = vunpack.c.h.b16 %v393
        %v966 = vunpack.c.l.b16 %v394
        %v967 = vunpack.c.h.b16 %v394
        %v968 = vunpack.c.l.b16 %v395
        %v969 = vunpack.c.h.b16 %v395
        %v970 = vunpack.c.l.b16 %v396
        %v971 = vunpack.c.h.b16 %v396
        %v972 = vunpack.c.l.b16 %v397
        %v973 = vunpack.c.h.b16 %v397
        %v974 = vunpack.c.l.b16 %v398
        %v975 = vunpack.c.h.b16 %v398
        %v976 = vunpack.c.l.b16 %v399
        %v977 = vunpack.c.h.b16 %v399
        %v978 = vunpack.c.l.b16 %v400
        %v979 = vunpack.c.h.b16 %v400
        %v980 = vunpack.c.l.b16 %v401
        %v981 = vunpack.c.h.b16 %v401
        %v982 = vunpack.c.l.b16 %v402
        %v983 = vunpack.c.h.b16 %v402
        %v984 = vunpack.c.l.b16 %v403
        %v985 = vunpack.c.h.b16 %v403
        %v986 = vunpack.c.l.b16 %v404
        %v987 = vunpack.c.h.b16 %v404
        %v988 = vunpack.c.l.b16 %v405
        %v989 = vunpack.c.h.b16 %v405
        %v990 = vunpack.c.l.b16 %v406
        %v991 = vunpack.c.h.b16 %v406
        %v992 = vunpack.c.l.b16 %v407
        %v993 = vunpack.c.h.b16 %v407
        %v994 = vunpack.c.l.b16 %v408
        %v995 = vunpack.c.h.b16 %v408
        %v996 = vunpack.c.l.b16 %v409
        %v997 = vunpack.c.h.b16 %v409
        %v998 = vunpack.c.l.b16 %v410
        %v999 = vunpack.c.h.b16 %v410
        %v1000 = vunpack.c.l.b16 %v411
        %v1001 = vunpack.c.h.b16 %v411
        %v1002 = vunpack.c.l.b16 %v412
        %v1003 = vunpack.c.h.b16 %v412
        %v1004 = vunpack.c.l.b16 %v413
        %v1005 = vunpack.c.h.b16 %v413
        %v1006 = vunpack.c.l.b16 %v414
        %v1007 = vunpack.c.h.b16 %v414
        %v1008 = vunpack.c.l.b16 %v415
        %v1009 = vunpack.c.h.b16 %v415
        %v1010 = vunpack.c.l.b16 %v416
        %v1011 = vunpack.c.h.b16 %v416
        %v1012 = vunpack.c.l.b16 %v417
        %v1013 = vunpack.c.h.b16 %v417
        %v1014 = vunpack.c.l.b16 %v418
        %v1015 = vunpack.c.h.b16 %v418
        %v1016 = vunpack.c.l.b16 %v419
        %v1017 = vunpack.c.h.b16 %v419
        %v1018 = vunpack.c.l.b16 %v420
        %v1019 = vunpack.c.h.b16 %v420
        %v1020 = vunpack.c.l.b16 %v421
        %v1021 = vunpack.c.h.b16 %v421
        %v1022 = vunpack.c.l.b16 %v422
        %v1023 = vunpack.c.h.b16 %v422
        %v1024 = vunpack.c.l.b16 %v423
        %v1025 = vunpack.c.h.b16 %v423
        %v1026 = vunpack.c.l.b16 %v424
        %v1027 = vunpack.c.h.b16 %v424
        %v1028 = vunpack.c.l.b16 %v425
        %v1029 = vunpack.c.h.b16 %v425
        %v1030 = vunpack.c.l.b16 %v426
        %v1031 = vunpack.c.h.b16 %v426
        %v1032 = vunpack.c.l.b16 %v427
        %v1033 = vunpack.c.h.b16 %v427
        %v1034 = vunpack.c.l.b16 %v428
        %v1035 = vunpack.c.h.b16 %v428
        %v1036 = vunpack.c.l.b16 %v429
        %v1037 = vunpack.c.h.b16 %v429
        %v1038 = vunpack.c.l.b16 %v430
        %v1039 = vunpack.c.h.b16 %v430
        %v1040 = vunpack.c.l.b16 %v431
        %v1041 = vunpack.c.h.b16 %v431
        %v1042 = vunpack.c.l.b16 %v432
        %v1043 = vunpack.c.h.b16 %v432
        %v1044 = vunpack.c.l.b16 %v433
        %v1045 = vunpack.c.h.b16 %v433
        %v1046 = vunpack.c.l.b16 %v434
        %v1047 = vunpack.c.h.b16 %v434
        %v1048 = vunpack.c.l.b16 %v435
        %v1049 = vunpack.c.h.b16 %v435
        %v1050 = vunpack.c.l.b16 %v436
        %v1051 = vunpack.c.h.b16 %v436
        %v1052 = vunpack.c.l.b16 %v437
        %v1053 = vunpack.c.h.b16 %v437
        %v1054 = vunpack.c.l.b16 %v438
        %v1055 = vunpack.c.h.b16 %v438
        %v1056 = vunpack.c.l.b16 %v439
        %v1057 = vunpack.c.h.b16 %v439
        %v1058 = vunpack.c.l.b16 %v440
        %v1059 = vunpack.c.h.b16 %v440
        %v1060 = vunpack.c.l.b16 %v441
        %v1061 = vunpack.c.h.b16 %v441
        %v1062 = vunpack.c.l.b16 %v442
        %v1063 = vunpack.c.h.b16 %v442
        %v1064 = vunpack.c.l.b16 %v443
        %v1065 = vunpack.c.h.b16 %v443
        %v1066 = vunpack.c.l.b16 %v444
        %v1067 = vunpack.c.h.b16 %v444
        %v1068 = vunpack.c.l.b16 %v445
        %v1069 = vunpack.c.h.b16 %v445
        %v1070 = vunpack.c.l.b16 %v446
        %v1071 = vunpack.c.h.b16 %v446
        %v1072 = vunpack.c.l.b16 %v447
        %v1073 = vunpack.c.h.b16 %v447
        %v1074 = vunpack.c.l.b16 %v448
        %v1075 = vunpack.c.h.b16 %v448
        %v1076 = vunpack.c.l.b16 %v449
        %v1077 = vunpack.c.h.b16 %v449
        %v1078 = vunpack.c.l.b16 %v450
        %v1079 = vunpack.c.h.b16 %v450
        %v1080 = vunpack.c.l.b16 %v451
        %v1081 = vunpack.c.h.b16 %v451
        %v1082 = vunpack.c.l.b16 %v452
        %v1083 = vunpack.c.h.b16 %v452
        %v1084 = vunpack.c.l.b16 %v453
        %v1085 = vunpack.c.h.b16 %v453
        %v1086 = vunpack.c.l.b16 %v454
        %v1087 = vunpack.c.h.b16 %v454
        %v1088 = vunpack.c.l.b16 %v455
        %v1089 = vunpack.c.h.b16 %v455
        %v1090 = vunpack.c.l.b16 %v456
        %v1091 = vunpack.c.h.b16 %v456
        %v1092 = vunpack.c.l.b16 %v457
        %v1093 = vunpack.c.h.b16 %v457
        %v1094 = vunpack.c.l.b16 %v458
        %v1095 = vunpack.c.h.b16 %v458
        %v1096 = vunpack.c.l.b16 %v459
        %v1097 = vunpack.c.h.b16 %v459
        %v1098 = vunpack.c.l.b16 %v460
        %v1099 = vunpack.c.h.b16 %v460
        %v1100 = vunpack.c.l.b16 %v461
        %v1101 = vunpack.c.h.b16 %v461
        %v1102 = vunpack.c.l.b16 %v462
        %v1103 = vunpack.c.h.b16 %v462
        %v1104 = vunpack.c.l.b16 %v463
        %v1105 = vunpack.c.h.b16 %v463
        %v1106 = vunpack.c.l.b16 %v464
        %v1107 = vunpack.c.h.b16 %v464
        %v1108 = vunpack.c.l.b16 %v465
        %v1109 = vunpack.c.h.b16 %v465
        %v1110 = vunpack.c.l.b16 %v466
        %v1111 = vunpack.c.h.b16 %v466
        %v1112 = vunpack.c.l.b16 %v467
        %v1113 = vunpack.c.h.b16 %v467
        %v1114 = vunpack.c.l.b16 %v468
        %v1115 = vunpack.c.h.b16 %v468
        %v1116 = vunpack.c.l.b16 %v469
        %v1117 = vunpack.c.h.b16 %v469
        %v1118 = vunpack.c.l.b16 %v470
        %v1119 = vunpack.c.h.b16 %v470
        %v1120 = vunpack.c.l.b16 %v471
        %v1121 = vunpack.c.h.b16 %v471
        %v1122 = vunpack.c.l.b16 %v472
        %v1123 = vunpack.c.h.b16 %v472
        %v1124 = vunpack.c.l.b16 %v473
        %v1125 = vunpack.c.h.b16 %v473
        %v1126 = vunpack.c.l.b16 %v474
        %v1127 = vunpack.c.h.b16 %v474
        %v1128 = vunpack.c.l.b16 %v475
        %v1129 = vunpack.c.h.b16 %v475
        %v1130 = vunpack.c.l.b16 %v476
        %v1131 = vunpack.c.h.b16 %v476
        %v1132 = vunpack.c.l.b16 %v477
        %v1133 = vunpack.c.h.b16 %v477
        %v1134 = vunpack.c.l.b16 %v478
        %v1135 = vunpack.c.h.b16 %v478
        %v1136 = vunpack.c.l.b16 %v479
        %v1137 = vunpack.c.h.b16 %v479
        %v1138 = vunpack.c.l.b16 %v480
        %v1139 = vunpack.c.h.b16 %v480
        %v1140 = vunpack.c.l.b16 %v481
        %v1141 = vunpack.c.h.b16 %v481
        %v1142 = vunpack.c.l.b16 %v482
        %v1143 = vunpack.c.h.b16 %v482
        %v1144 = vunpack.c.l.b16 %v483
        %v1145 = vunpack.c.h.b16 %v483
        %v1146 = vunpack.c.l.b16 %v484
        %v1147 = vunpack.c.h.b16 %v484
        %v1148 = vunpack.c.l.b16 %v485
        %v1149 = vunpack.c.h.b16 %v485
        %v1150 = vunpack.c.l.b16 %v486
        %v1151 = vunpack.c.h.b16 %v486
        %v1152 = vunpack.c.l.b16 %v487
        %v1153 = vunpack.c.h.b16 %v487
        %v1154 = vunpack.c.l.b16 %v488
        %v1155 = vunpack.c.h.b16 %v488
        %v1156 = vunpack.c.l.b16 %v489
        %v1157 = vunpack.c.h.b16 %v489
        %v1158 = vunpack.c.l.b16 %v490
        %v1159 = vunpack.c.h.b16 %v490
        %v1160 = vunpack.c.l.b16 %v491
        %v1161 = vunpack.c.h.b16 %v491
        %v1162 = vunpack.c.l.b16 %v492
        %v1163 = vunpack.c.h.b16 %v492
        %v1164 = vunpack.c.l.b16 %v493
        %v1165 = vunpack.c.h.b16 %v493
        %v1166 = vunpack.c.l.b16 %v494
        %v1167 = vunpack.c.h.b16 %v494
        %v1168 = vunpack.c.l.b16 %v495
        %v1169 = vunpack.c.h.b16 %v495
        %v1170 = vunpack.c.l.b16 %v496
        %v1171 = vunpack.c.h.b16 %v496
        %v1172 = vunpack.c.l.b16 %v497
        %v1173 = vunpack.c.h.b16 %v497
        %v1174 = vunpack.c.l.b16 %v498
        %v1175 = vunpack.c.h.b16 %v498
        %v1176 = vunpack.c.l.b16 %v499
        %v1177 = vunpack.c.h.b16 %v499
        %v1178 = vunpack.c.l.b16 %v500
        %v1179 = vunpack.c.h.b16 %v500
        %v1180 = vunpack.c.l.b16 %v501
        %v1181 = vunpack.c.h.b16 %v501
        %v1182 = vunpack.c.l.b16 %v502
        %v1183 = vunpack.c.h.b16 %v502
        %v1184 = vunpack.c.l.b16 %v503
        %v1185 = vunpack.c.h.b16 %v503
        %v1186 = vunpack.c.l.b16 %v504
        %v1187 = vunpack.c.h.b16 %v504
        %v1188 = vunpack.c.l.b16 %v505
        %v1189 = vunpack.c.h.b16 %v505
        %v1190 = vunpack.c.l.b16 %v506
        %v1191 = vunpack.c.h.b16 %v506
        %v1192 = vunpack.c.l.b16 %v507
        %v1193 = vunpack.c.h.b16 %v507
        %v1194 = vunpack.c.l.b16 %v508
        %v1195 = vunpack.c.h.b16 %v508
        %v1196 = vunpack.c.l.b16 %v509
        %v1197 = vunpack.c.h.b16 %v509
        %v1198 = vunpack.c.l.b16 %v510
        %v1199 = vunpack.c.h.b16 %v510
        %v1200 = vunpack.c.l.b16 %v511
        %v1201 = vunpack.c.h.b16 %v511
        %v1202 = vunpack.c.l.b16 %v512
        %v1203 = vunpack.c.h.b16 %v512
        %v1204 = vunpack.c.l.b16 %v513
        %v1205 = vunpack.c.h.b16 %v513
        %v1206 = vunpack.c.l.b16 %v514
        %v1207 = vunpack.c.h.b16 %v514
        %v1208 = vunpack.c.l.b16 %v515
        %v1209 = vunpack.c.h.b16 %v515
        %v1210 = vunpack.c.l.b16 %v516
        %v1211 = vunpack.c.h.b16 %v516
        %v1212 = vunpack.c.l.b16 %v517
        %v1213 = vunpack.c.h.b16 %v517
        %v1214 = vunpack.c.l.b16 %v518
        %v1215 = vunpack.c.h.b16 %v518
        %v1216 = vunpack.c.l.b16 %v519
        %v1217 = vunpack.c.h.b16 %v519
        %v1218 = vunpack.c.l.b16 %v520
        %v1219 = vunpack.c.h.b16 %v520
        %v1220 = vunpack.c.l.b16 %v521
        %v1221 = vunpack.c.h.b16 %v521
        %v1222 = vunpack.c.l.b16 %v522
        %v1223 = vunpack.c.h.b16 %v522
        %v1224 = vunpack.c.l.b16 %v523
        %v1225 = vunpack.c.h.b16 %v523
        %v1226 = vunpack.c.l.b16 %v524
        %v1227 = vunpack.c.h.b16 %v524
        %v1228 = vunpack.c.l.b16 %v525
        %v1229 = vunpack.c.h.b16 %v525
        %v1230 = vunpack.c.l.b16 %v526
        %v1231 = vunpack.c.h.b16 %v526
        %v1232 = vunpack.c.l.b16 %v527
        %v1233 = vunpack.c.h.b16 %v527
        %v1234 = vunpack.c.l.b16 %v528
        %v1235 = vunpack.c.h.b16 %v528
        %v1236 = vunpack.c.l.b16 %v529
        %v1237 = vunpack.c.h.b16 %v529
        %v1238 = vunpack.c.l.b16 %v530
        %v1239 = vunpack.c.h.b16 %v530
        %v1240 = vunpack.c.l.b16 %v531
        %v1241 = vunpack.c.h.b16 %v531
        %v1242 = vunpack.c.l.b16 %v532
        %v1243 = vunpack.c.h.b16 %v532
        %v1244 = vunpack.c.l.b16 %v533
        %v1245 = vunpack.c.h.b16 %v533
        %v1246 = vunpack.c.l.b16 %v534
        %v1247 = vunpack.c.h.b16 %v534
        %v1248 = vunpack.c.l.b16 %v535
        %v1249 = vunpack.c.h.b16 %v535
        %v1250 = vunpack.c.l.b16 %v536
        %v1251 = vunpack.c.h.b16 %v536
        %v1252 = vunpack.c.l.b16 %v537
        %v1253 = vunpack.c.h.b16 %v537
        %v1254 = vunpack.c.l.b16 %v538
        %v1255 = vunpack.c.h.b16 %v538
        %v1256 = vunpack.c.l.b16 %v539
        %v1257 = vunpack.c.h.b16 %v539
        %v1258 = vunpack.c.l.b16 %v540
        %v1259 = vunpack.c.h.b16 %v540
        %v1260 = vunpack.c.l.b16 %v541
        %v1261 = vunpack.c.h.b16 %v541
        %v1262 = vunpack.c.l.b16 %v542
        %v1263 = vunpack.c.h.b16 %v542
        %v1264 = vunpack.c.l.b16 %v543
        %v1265 = vunpack.c.h.b16 %v543
        %v1266 = vunpack.c.l.b16 %v544
        %v1267 = vunpack.c.h.b16 %v544
        %v1268 = vunpack.c.l.b16 %v545
        %v1269 = vunpack.c.h.b16 %v545
        %v1270 = vunpack.c.l.b16 %v546
        %v1271 = vunpack.c.h.b16 %v546
        %v1272 = vunpack.c.l.b16 %v547
        %v1273 = vunpack.c.h.b16 %v547
        %v1274 = vunpack.c.l.b16 %v548
        %v1275 = vunpack.c.h.b16 %v548
        %v1276 = vunpack.c.l.b16 %v549
        %v1277 = vunpack.c.h.b16 %v549
        %v1278 = vunpack.c.l.b16 %v550
        %v1279 = vunpack.c.h.b16 %v550
        %v1280 = vunpack.c.l.b16 %v551
        %v1281 = vunpack.c.h.b16 %v551
        %v1282 = vunpack.c.l.b16 %v552
        %v1283 = vunpack.c.h.b16 %v552
        %v1284 = vunpack.c.l.b16 %v553
        %v1285 = vunpack.c.h.b16 %v553
        %v1286 = vunpack.c.l.b16 %v554
        %v1287 = vunpack.c.h.b16 %v554
        %v1288 = vunpack.c.l.b16 %v555
        %v1289 = vunpack.c.h.b16 %v555
        %v1290 = vunpack.c.l.b16 %v556
        %v1291 = vunpack.c.h.b16 %v556
        %v1292 = vunpack.c.l.b16 %v557
        %v1293 = vunpack.c.h.b16 %v557
        %v1294 = vunpack.c.l.b16 %v558
        %v1295 = vunpack.c.h.b16 %v558
        %v1296 = vunpack.c.l.b16 %v559
        %v1297 = vunpack.c.h.b16 %v559
        %v1298 = vunpack.c.l.b16 %v560
        %v1299 = vunpack.c.h.b16 %v560
        %v1300 = vunpack.c.l.b16 %v561
        %v1301 = vunpack.c.h.b16 %v561
        %v1302 = vunpack.c.l.b16 %v562
        %v1303 = vunpack.c.h.b16 %v562
        %v1304 = vunpack.c.l.b16 %v563
        %v1305 = vunpack.c.h.b16 %v563
        %v1306 = vunpack.c.l.b16 %v564
        %v1307 = vunpack.c.h.b16 %v564
        %v1308 = vunpack.c.l.b16 %v565
        %v1309 = vunpack.c.h.b16 %v565
        %v1310 = vunpack.c.l.b16 %v566
        %v1311 = vunpack.c.h.b16 %v566
        %v1312 = vunpack.c.l.b16 %v567
        %v1313 = vunpack.c.h.b16 %v567
        %v1314 = vunpack.c.l.b16 %v568
        %v1315 = vunpack.c.h.b16 %v568
        %v1316 = vunpack.c.l.b16 %v569
        %v1317 = vunpack.c.h.b16 %v569
        %v1318 = vunpack.c.l.b16 %v570
        %v1319 = vunpack.c.h.b16 %v570
        %v1320 = vunpack.c.l.b16 %v571
        %v1321 = vunpack.c.h.b16 %v571
        %v1322 = vunpack.c.l.b16 %v572
        %v1323 = vunpack.c.h.b16 %v572
        %v1324 = vunpack.c.l.b16 %v573
        %v1325 = vunpack.c.h.b16 %v573
        %v1326 = vunpack.c.l.b16 %v574
        %v1327 = vunpack.c.h.b16 %v574
        %v1328 = vunpack.c.l.b16 %v575
        %v1329 = vunpack.c.h.b16 %v575
        %v1330 = vunpack.c.l.b16 %v576
        %v1331 = vunpack.c.h.b16 %v576
        %v1332 = vunpack.c.l.b16 %v577
        %v1333 = vunpack.c.h.b16 %v577
        %v1334 = vunpack.c.l.b16 %v578
        %v1335 = vunpack.c.h.b16 %v578
        %v1336 = vunpack.c.l.b16 %v579
        %v1337 = vunpack.c.h.b16 %v579
        %v1338 = vunpack.c.l.b16 %v580
        %v1339 = vunpack.c.h.b16 %v580
        %v1340 = vunpack.c.l.b16 %v581
        %v1341 = vunpack.c.h.b16 %v581
        %v1342 = vunpack.c.l.b16 %v582
        %v1343 = vunpack.c.h.b16 %v582
        %v1344 = vunpack.c.l.b16 %v583
        %v1345 = vunpack.c.h.b16 %v583
        %v1346 = vunpack.c.l.b16 %v584
        %v1347 = vunpack.c.h.b16 %v584
        %v1348 = vunpack.c.l.b16 %v585
        %v1349 = vunpack.c.h.b16 %v585
        %v1350 = vunpack.c.l.b16 %v586
        %v1351 = vunpack.c.h.b16 %v586
        %v1352 = vunpack.c.l.b16 %v587
        %v1353 = vunpack.c.h.b16 %v587
        %v1354 = vunpack.c.l.b16 %v588
        %v1355 = vunpack.c.h.b16 %v588
        %v1356 = vunpack.c.l.b16 %v589
        %v1357 = vunpack.c.h.b16 %v589
        %v1358 = vunpack.c.l.b16 %v590
        %v1359 = vunpack.c.h.b16 %v590
        %v1360 = vunpack.c.l.b16 %v591
        %v1361 = vunpack.c.h.b16 %v591
        %v1362 = vunpack.c.l.b16 %v592
        %v1363 = vunpack.c.h.b16 %v592
        %v1364 = vunpack.c.l.b16 %v593
        %v1365 = vunpack.c.h.b16 %v593
        %v1366 = vunpack.c.l.b16 %v594
        %v1367 = vunpack.c.h.b16 %v594
        %v1368 = vunpack.c.l.b16 %v595
        %v1369 = vunpack.c.h.b16 %v595
        %v1370 = vunpack.c.l.b16 %v596
        %v1371 = vunpack.c.h.b16 %v596
        %v1372 = vunpack.c.l.b16 %v597
        %v1373 = vunpack.c.h.b16 %v597
        %v1374 = vunpack.c.l.b16 %v598
        %v1375 = vunpack.c.h.b16 %v598
        %v1376 = vunpack.c.l.b16 %v599
        %v1377 = vunpack.c.h.b16 %v599
        %v1378 = vunpack.c.l.b16 %v600
        %v1379 = vunpack.c.h.b16 %v600
        %v1380 = vunpack.c.l.b16 %v601
        %v1381 = vunpack.c.h.b16 %v601
        %v1382 = vunpack.c.l.b16 %v602
        %v1383 = vunpack.c.h.b16 %v602
        %v1384 = vunpack.c.l.b16 %v603
        %v1385 = vunpack.c.h.b16 %v603
        %v1386 = vunpack.c.l.b16 %v604
        %v1387 = vunpack.c.h.b16 %v604
        %v1388 = vunpack.c.l.b16 %v605
        %v1389 = vunpack.c.h.b16 %v605
        %v1390 = vunpack.c.l.b16 %v606
        %v1391 = vunpack.c.h.b16 %v606
        %v1392 = vunpack.c.l.b16 %v607
        %v1393 = vunpack.c.h.b16 %v607
        %v1394 = vunpack.c.l.b16 %v608
        %v1395 = vunpack.c.h.b16 %v608
        %v1396 = vunpack.c.l.b16 %v609
        %v1397 = vunpack.c.h.b16 %v609
        %v1398 = vunpack.c.l.b16 %v610
        %v1399 = vunpack.c.h.b16 %v610
        %v1400 = vunpack.c.l.b16 %v611
        %v1401 = vunpack.c.h.b16 %v611
        %v1402 = vunpack.c.l.b16 %v612
        %v1403 = vunpack.c.h.b16 %v612
        %v1404 = vunpack.c.l.b16 %v613
        %v1405 = vunpack.c.h.b16 %v613
        %v1406 = vunpack.c.l.b16 %v614
        %v1407 = vunpack.c.h.b16 %v614
        %v1408 = vunpack.c.l.b16 %v615
        %v1409 = vunpack.c.h.b16 %v615
        %v1410 = vunpack.c.l.b16 %v616
        %v1411 = vunpack.c.h.b16 %v616
        %v1412 = vunpack.c.l.b16 %v617
        %v1413 = vunpack.c.h.b16 %v617
        %v1414 = vunpack.c.l.b16 %v618
        %v1415 = vunpack.c.h.b16 %v618
        %v1416 = vunpack.c.l.b16 %v619
        %v1417 = vunpack.c.h.b16 %v619
        %v1418 = vunpack.c.l.b16 %v620
        %v1419 = vunpack.c.h.b16 %v620
        %v1420 = vunpack.c.l.b16 %v621
        %v1421 = vunpack.c.h.b16 %v621
        %v1422 = vunpack.c.l.b16 %v622
        %v1423 = vunpack.c.h.b16 %v622
        %v1424 = vunpack.c.l.b16 %v623
        %v1425 = vunpack.c.h.b16 %v623
        %v1426 = vunpack.c.l.b16 %v624
        %v1427 = vunpack.c.h.b16 %v624
        %v1428 = vunpack.c.l.b16 %v625
        %v1429 = vunpack.c.h.b16 %v625
        %v1430 = vunpack.c.l.b16 %v626
        %v1431 = vunpack.c.h.b16 %v626
        %v1432 = vunpack.c.l.b16 %v627
        %v1433 = vunpack.c.h.b16 %v627
        %v1434 = vunpack.c.l.b16 %v628
        %v1435 = vunpack.c.h.b16 %v628
        %v1436 = vunpack.c.l.b16 %v629
        %v1437 = vunpack.c.h.b16 %v629
        %v1438 = vpack.c.b16 %v934, %v926
        %v1439 = vpack.c.b16 %v935, %v927
        %v1440 = vpack.c.b16 %v936, %v928
        %v1441 = vpack.c.b16 %v937, %v929
        %v1442 = vpack.c.b16 %v938, %v930
        %v1443 = vpack.c.b16 %v939, %v931
        %v1444 = vpack.c.b16 %v940, %v932
        %v1445 = vpack.c.b16 %v941, %v933
        %v1446 = vpack.c.b16 %v950, %v942
        %v1447 = vpack.c.b16 %v951, %v943
        %v1448 = vpack.c.b16 %v952, %v944
        %v1449 = vpack.c.b16 %v953, %v945
        %v1450 = vpack.c.b16 %v954, %v946
        %v1451 = vpack.c.b16 %v955, %v947
        %v1452 = vpack.c.b16 %v956, %v948
        %v1453 = vpack.c.b16 %v957, %v949
        %v1454 = vpack.c.b16 %v966, %v958
        %v1455 = vpack.c.b16 %v967, %v959
        %v1456 = vpack.c.b16 %v968, %v960
        %v1457 = vpack.c.b16 %v969, %v961
        %v1458 = vpack.c.b16 %v970, %v962
        %v1459 = vpack.c.b16 %v971, %v963
        %v1460 = vpack.c.b16 %v972, %v964
        %v1461 = vpack.c.b16 %v973, %v965
        %v1462 = vpack.c.b16 %v982, %v974
        %v1463 = vpack.c.b16 %v983, %v975
        %v1464 = vpack.c.b16 %v984, %v976
        %v1465 = vpack.c.b16 %v985, %v977
        %v1466 = vpack.c.b16 %v986, %v978
        %v1467 = vpack.c.b16 %v987, %v979
        %v1468 = vpack.c.b16 %v988, %v980
        %v1469 = vpack.c.b16 %v989, %v981
        %v1470 = vpack.c.b16 %v998, %v990
        %v1471 = vpack.c.b16 %v999, %v991
        %v1472 = vpack.c.b16 %v1000, %v992
        %v1473 = vpack.c.b16 %v1001, %v993
        %v1474 = vpack.c.b16 %v1002, %v994
        %v1475 = vpack.c.b16 %v1003, %v995
        %v1476 = vpack.c.b16 %v1004, %v996
        %v1477 = vpack.c.b16 %v1005, %v997
        %v1478 = vpack.c.b16 %v1014, %v1006
        %v1479 = vpack.c.b16 %v1015, %v1007
        %v1480 = vpack.c.b16 %v1016, %v1008
        %v1481 = vpack.c.b16 %v1017, %v1009
        %v1482 = vpack.c.b16 %v1018, %v1010
        %v1483 = vpack.c.b16 %v1019, %v1011
        %v1484 = vpack.c.b16 %v1020, %v1012
        %v1485 = vpack.c.b16 %v1021, %v1013
        %v1486 = vpack.c.b16 %v1030, %v1022
        %v1487 = vpack.c.b16 %v1031, %v1023
        %v1488 = vpack.c.b16 %v1032, %v1024
        %v1489 = vpack.c.b16 %v1033, %v1025
        %v1490 = vpack.c.b16 %v1034, %v1026
        %v1491 = vpack.c.b16 %v1035, %v1027
        %v1492 = vpack.c.b16 %v1036, %v1028
        %v1493 = vpack.c.b16 %v1037, %v1029
        %v1494 = vpack.c.b16 %v1046, %v1038
        %v1495 = vpack.c.b16 %v1047, %v1039
        %v1496 = vpack.c.b16 %v1048, %v1040
        %v1497 = vpack.c.b16 %v1049, %v1041
        %v1498 = vpack.c.b16 %v1050, %v1042
        %v1499 = vpack.c.b16 %v1051, %v1043
        %v1500 = vpack.c.b16 %v1052, %v1044
        %v1501 = vpack.c.b16 %v1053, %v1045
        %v1502 = vpack.c.b16 %v1062, %v1054
        %v1503 = vpack.c.b16 %v1063, %v1055
        %v1504 = vpack.c.b16 %v1064, %v1056
        %v1505 = vpack.c.b16 %v1065, %v1057
        %v1506 = vpack.c.b16 %v1066, %v1058
        %v1507 = vpack.c.b16 %v1067, %v1059
        %v1508 = vpack.c.b16 %v1068, %v1060
        %v1509 = vpack.c.b16 %v1069, %v1061
        %v1510 = vpack.c.b16 %v1078, %v1070
        %v1511 = vpack.c.b16 %v1079, %v1071
        %v1512 = vpack.c.b16 %v1080, %v1072
        %v1513 = vpack.c.b16 %v1081, %v1073
        %v1514 = vpack.c.b16 %v1082, %v1074
        %v1515 = vpack.c.b16 %v1083, %v1075
        %v1516 = vpack.c.b16 %v1084, %v1076
        %v1517 = vpack.c.b16 %v1085, %v1077
        %v1518 = vpack.c.b16 %v1094, %v1086
        %v1519 = vpack.c.b16 %v1095, %v1087
        %v1520 = vpack.c.b16 %v1096, %v1088
        %v1521 = vpack.c.b16 %v1097, %v1089
        %v1522 = vpack.c.b16 %v1098, %v1090
        %v1523 = vpack.c.b16 %v1099, %v1091
        %v1524 = vpack.c.b16 %v1100, %v1092
        %v1525 = vpack.c.b16 %v1101, %v1093
        %v1526 = vpack.c.b16 %v1110, %v1102
        %v1527 = vpack.c.b16 %v1111, %v1103
        %v1528 = vpack.c.b16 %v1112, %v1104
        %v1529 = vpack.c.b16 %v1113, %v1105
        %v1530 = vpack.c.b16 %v1114, %v1106
        %v1531 = vpack.c.b16 %v1115, %v1107
        %v1532 = vpack.c.b16 %v1116, %v1108
        %v1533 = vpack.c.b16 %v1117, %v1109
        %v1534 = vpack.c.b16 %v1126, %v1118
        %v1535 = vpack.c.b16 %v1127, %v1119
        %v1536 = vpack.c.b16 %v1128, %v1120
        %v1537 = vpack.c.b16 %v1129, %v1121
        %v1538 = vpack.c.b16 %v1130, %v1122
        %v1539 = vpack.c.b16 %v1131, %v1123
        %v1540 = vpack.c.b16 %v1132, %v1124
        %v1541 = vpack.c.b16 %v1133, %v1125
        %v1542 = vpack.c.b16 %v1142, %v1134
        %v1543 = vpack.c.b16 %v1143, %v1135
        %v1544 = vpack.c.b16 %v1144, %v1136
        %v1545 = vpack.c.b16 %v1145, %v1137
        %v1546 = vpack.c.b16 %v1146, %v1138
        %v1547 = vpack.c.b16 %v1147, %v1139
        %v1548 = vpack.c.b16 %v1148, %v1140
        %v1549 = vpack.c.b16 %v1149, %v1141
        %v1550 = vpack.c.b16 %v1158, %v1150
        %v1551 = vpack.c.b16 %v1159, %v1151
        %v1552 = vpack.c.b16 %v1160, %v1152
        %v1553 = vpack.c.b16 %v1161, %v1153
        %v1554 = vpack.c.b16 %v1162, %v1154
        %v1555 = vpack.c.b16 %v1163, %v1155
        %v1556 = vpack.c.b16 %v1164, %v1156
        %v1557 = vpack.c.b16 %v1165, %v1157
        %v1558 = vpack.c.b16 %v1174, %v1166
        %v1559 = vpack.c.b16 %v1175, %v1167
        %v1560 = vpack.c.b16 %v1176, %v1168
        %v1561 = vpack.c.b16 %v1177, %v1169
        %v1562 = vpack.c.b16 %v1178, %v1170
        %v1563 = vpack.c.b16 %v1179, %v1171
        %v1564 = vpack.c.b16 %v1180, %v1172
        %v1565 = vpack.c.b16 %v1181, %v1173
        %v1566 = vpack.c.b16 %v1190, %v1182
        %v1567 = vpack.c.b16 %v1191, %v1183
        %v1568 = vpack.c.b16 %v1192, %v1184
        %v1569 = vpack.c.b16 %v1193, %v1185
        %v1570 = vpack.c.b16 %v1194, %v1186
        %v1571 = vpack.c.b16 %v1195, %v1187
        %v1572 = vpack.c.b16 %v1196, %v1188
        %v1573 = vpack.c.b16 %v1197, %v1189
        %v1574 = vpack.c.b16 %v1206, %v1198
        %v1575 = vpack.c.b16 %v1207, %v1199
        %v1576 = vpack.c.b16 %v1208, %v1200
        %v1577 = vpack.c.b16 %v1209, %v1201
        %v1578 = vpack.c.b16 %v1210, %v1202
        %v1579 = vpack.c.b16 %v1211, %v1203
        %v1580 = vpack.c.b16 %v1212, %v1204
        %v1581 = vpack.c.b16 %v1213, %v1205
        %v1582 = vpack.c.b16 %v1222, %v1214
        %v1583 = vpack.c.b16 %v1223, %v1215
        %v1584 = vpack.c.b16 %v1224, %v1216
        %v1585 = vpack.c.b16 %v1225, %v1217
        %v1586 = vpack.c.b16 %v1226, %v1218
        %v1587 = vpack.c.b16 %v1227, %v1219
        %v1588 = vpack.c.b16 %v1228, %v1220
        %v1589 = vpack.c.b16 %v1229, %v1221
        %v1590 = vpack.c.b16 %v1238, %v1230
        %v1591 = vpack.c.b16 %v1239, %v1231
        %v1592 = vpack.c.b16 %v1240, %v1232
        %v1593 = vpack.c.b16 %v1241, %v1233
        %v1594 = vpack.c.b16 %v1242, %v1234
        %v1595 = vpack.c.b16 %v1243, %v1235
        %v1596 = vpack.c.b16 %v1244, %v1236
        %v1597 = vpack.c.b16 %v1245, %v1237
        %v1598 = vpack.c.b16 %v1254, %v1246
        %v1599 = vpack.c.b16 %v1255, %v1247
        %v1600 = vpack.c.b16 %v1256, %v1248
        %v1601 = vpack.c.b16 %v1257, %v1249
        %v1602 = vpack.c.b16 %v1258, %v1250
        %v1603 = vpack.c.b16 %v1259, %v1251
        %v1604 = vpack.c.b16 %v1260, %v1252
        %v1605 = vpack.c.b16 %v1261, %v1253
        %v1606 = vpack.c.b16 %v1270, %v1262
        %v1607 = vpack.c.b16 %v1271, %v1263
        %v1608 = vpack.c.b16 %v1272, %v1264
        %v1609 = vpack.c.b16 %v1273, %v1265
        %v1610 = vpack.c.b16 %v1274, %v1266
        %v1611 = vpack.c.b16 %v1275, %v1267
        %v1612 = vpack.c.b16 %v1276, %v1268
        %v1613 = vpack.c.b16 %v1277, %v1269
        %v1614 = vpack.c.b16 %v1286, %v1278
        %v1615 = vpack.c.b16 %v1287, %v1279
        %v1616 = vpack.c.b16 %v1288, %v1280
        %v1617 = vpack.c.b16 %v1289, %v1281
        %v1618 = vpack.c.b16 %v1290, %v1282
        %v1619 = vpack.c.b16 %v1291, %v1283
        %v1620 = vpack.c.b16 %v1292, %v1284
        %v1621 = vpack.c.b16 %v1293, %v1285
        %v1622 = vpack.c.b16 %v1302, %v1294
        %v1623 = vpack.c.b16 %v1303, %v1295
        %v1624 = vpack.c.b16 %v1304, %v1296
        %v1625 = vpack.c.b16 %v1305, %v1297
        %v1626 = vpack.c.b16 %v1306, %v1298
        %v1627 = vpack.c.b16 %v1307, %v1299
        %v1628 = vpack.c.b16 %v1308, %v1300
        %v1629 = vpack.c.b16 %v1309, %v1301
        %v1630 = vpack.c.b16 %v1318, %v1310
        %v1631 = vpack.c.b16 %v1319, %v1311
        %v1632 = vpack.c.b16 %v1320, %v1312
        %v1633 = vpack.c.b16 %v1321, %v1313
        %v1634 = vpack.c.b16 %v1322, %v1314
        %v1635 = vpack.c.b16 %v1323, %v1315
        %v1636 = vpack.c.b16 %v1324, %v1316
        %v1637 = vpack.c.b16 %v1325, %v1317
        %v1638 = vpack.c.b16 %v1334, %v1326
        %v1639 = vpack.c.b16 %v1335, %v1327
        %v1640 = vpack.c.b16 %v1336, %v1328
        %v1641 = vpack.c.b16 %v1337, %v1329
        %v1642 = vpack.c.b16 %v1338, %v1330
        %v1643 = vpack.c.b16 %v1339, %v1331
        %v1644 = vpack.c.b16 %v1340, %v1332
        %v1645 = vpack.c.b16 %v1341, %v1333
        %v1646 = vpack.c.b16 %v1350, %v1342
        %v1647 = vpack.c.b16 %v1351, %v1343
        %v1648 = vpack.c.b16 %v1352, %v1344
        %v1649 = vpack.c.b16 %v1353, %v1345
        %v1650 = vpack.c.b16 %v1354, %v1346
        %v1651 = vpack.c.b16 %v1355, %v1347
        %v1652 = vpack.c.b16 %v1356, %v1348
        %v1653 = vpack.c.b16 %v1357, %v1349
        %v1654 = vpack.c.b16 %v1366, %v1358
        %v1655 = vpack.c.b16 %v1367, %v1359
        %v1656 = vpack.c.b16 %v1368, %v1360
        %v1657 = vpack.c.b16 %v1369, %v1361
        %v1658 = vpack.c.b16 %v1370, %v1362
        %v1659 = vpack.c.b16 %v1371, %v1363
        %v1660 = vpack.c.b16 %v1372, %v1364
        %v1661 = vpack.c.b16 %v1373, %v1365
        %v1662 = vpack.c.b16 %v1382, %v1374
        %v1663 = vpack.c.b16 %v1383, %v1375
        %v1664 = vpack.c.b16 %v1384, %v1376
        %v1665 = vpack.c.b16 %v1385, %v1377
        %v1666 = vpack.c.b16 %v1386, %v1378
        %v1667 = vpack.c.b16 %v1387, %v1379
        %v1668 = vpack.c.b16 %v1388, %v1380
        %v1669 = vpack.c.b16 %v1389, %v1381
        %v1670 = vpack.c.b16 %v1398, %v1390
        %v1671 = vpack.c.b16 %v1399, %v1391
        %v1672 = vpack.c.b16 %v1400, %v1392
        %v1673 = vpack.c.b16 %v1401, %v1393
        %v1674 = vpack.c.b16 %v1402, %v1394
        %v1675 = vpack.c.b16 %v1403, %v1395
        %v1676 = vpack.c.b16 %v1404, %v1396
        %v1677 = vpack.c.b16 %v1405, %v1397
        %v1678 = vpack.c.b16 %v1414, %v1406
        %v1679 = vpack.c.b16 %v1415, %v1407
        %v1680 = vpack.c.b16 %v1416, %v1408
        %v1681 = vpack.c.b16 %v1417, %v1409
        %v1682 = vpack.c.b16 %v1418, %v1410
        %v1683 = vpack.c.b16 %v1419, %v1411
        %v1684 = vpack.c.b16 %v1420, %v1412
        %v1685 = vpack.c.b16 %v1421, %v1413
        %v1686 = vpack.c.b16 %v1430, %v1422
        %v1687 = vpack.c.b16 %v1431, %v1423
        %v1688 = vpack.c.b16 %v1432, %v1424
        %v1689 = vpack.c.b16 %v1433, %v1425
        %v1690 = vpack.c.b16 %v1434, %v1426
        %v1691 = vpack.c.b16 %v1435, %v1427
        %v1692 = vpack.c.b16 %v1436, %v1428
        %v1693 = vpack.c.b16 %v1437, %v1429
        %1950 = vmatprep.subr.bf16.mxu0 %v1439
        %1951 = vmatpush1.bf16.msra.mxu0 %v1438
        %1952 = vmatprep.subr.bf16.mxu0 %v1447
        %1953 = vmatpush1.bf16.msra.mxu0 %v1446
        %1954 = vmatprep.subr.bf16.mxu0 %v1455
        %1955 = vmatpush1.bf16.msra.mxu0 %v1454
        %1956 = vmatprep.subr.bf16.mxu0 %v1463
        %1957 = vmatpush1.bf16.msra.mxu0 %v1462
        %1958 = vmatprep.subr.bf16.mxu0 %v1471
        %1959 = vmatpush1.bf16.msra.mxu0 %v1470
        %1960 = vmatprep.subr.bf16.mxu0 %v1479
        %1961 = vmatpush1.bf16.msra.mxu0 %v1478
        %1962 = vmatprep.subr.bf16.mxu0 %v1487
        %1963 = vmatpush1.bf16.msra.mxu0 %v1486
        %1964 = vmatprep.subr.bf16.mxu0 %v1495
        %1965 = vmatpush1.bf16.msra.mxu0 %v1494
        %1966 = vmatprep.subr.bf16.mxu0 %v1503
        %1967 = vmatpush1.bf16.msra.mxu0 %v1502
        %1968 = vmatprep.subr.bf16.mxu0 %v1511
        %1969 = vmatpush1.bf16.msra.mxu0 %v1510
        %1970 = vmatprep.subr.bf16.mxu0 %v1519
        %1971 = vmatpush1.bf16.msra.mxu0 %v1518
        %1972 = vmatprep.subr.bf16.mxu0 %v1527
        %1973 = vmatpush1.bf16.msra.mxu0 %v1526
        %1974 = vmatprep.subr.bf16.mxu0 %v1535
        %1975 = vmatpush1.bf16.msra.mxu0 %v1534
        %1976 = vmatprep.subr.bf16.mxu0 %v1543
        %1977 = vmatpush1.bf16.msra.mxu0 %v1542
        %1978 = vmatprep.subr.bf16.mxu0 %v1551
        %1979 = vmatpush1.bf16.msra.mxu0 %v1550
        %1980 = vmatprep.subr.bf16.mxu0 %v1559
        %1981 = vmatpush1.bf16.msra.mxu0 %v1558
        %1982 = vmatprep.mubr.bf16.mxu0 %v655
        %1983 = vmatmul.mubr.bf16.gmra.mrb[0].mxu0 %v654
        %v1984 = vpop.f32.mrb[0].mxu0
        %v1985 = vadd.f32 0.0, %v1984
        %v1986 = vpop.f32.mrb[0].mxu0
        %v1987 = vadd.f32 0.0, %v1986
        %v1988 = vpop.f32.mrb[0].mxu0
        %v1989 = vadd.f32 0.0, %v1988
        %v1990 = vpop.f32.mrb[0].mxu0
        %v1991 = vadd.f32 0.0, %v1990
        %1992 = vmatprep.mubr.bf16.mxu0 %v659
        %1993 = vmatmul.mubr.bf16.gmra.mrb[0].mxu0 %v658
        %v1994 = vpop.f32.mrb[0].mxu0
        %v1995 = vadd.f32 0.0, %v1994
        %v1996 = vpop.f32.mrb[0].mxu0
        %v1997 = vadd.f32 0.0, %v1996
        %v1998 = vpop.f32.mrb[0].mxu0
        %v1999 = vadd.f32 0.0, %v1998
        %v2000 = vpop.f32.mrb[0].mxu0
        %v2001 = vadd.f32 0.0, %v2000
        %2002 = vdwg.mxu0
        %2003 = vmatprep.subr.bf16.mxu0 %v1567
        %2004 = vmatpush1.bf16.msra.mxu0 %v1566
        %2005 = vmatprep.subr.bf16.mxu0 %v1575
        %2006 = vmatpush1.bf16.msra.mxu0 %v1574
        %2007 = vmatprep.subr.bf16.mxu0 %v1583
        %2008 = vmatpush1.bf16.msra.mxu0 %v1582
        %2009 = vmatprep.subr.bf16.mxu0 %v1591
        %2010 = vmatpush1.bf16.msra.mxu0 %v1590
        %2011 = vmatprep.subr.bf16.mxu0 %v1599
        %2012 = vmatpush1.bf16.msra.mxu0 %v1598
        %2013 = vmatprep.subr.bf16.mxu0 %v1607
        %2014 = vmatpush1.bf16.msra.mxu0 %v1606
        %2015 = vmatprep.subr.bf16.mxu0 %v1615
        %2016 = vmatpush1.bf16.msra.mxu0 %v1614
        %2017 = vmatprep.subr.bf16.mxu0 %v1623
        %2018 = vmatpush1.bf16.msra.mxu0 %v1622
        %2019 = vmatprep.subr.bf16.mxu0 %v1631
        %2020 = vmatpush1.bf16.msra.mxu0 %v1630
        %2021 = vmatprep.subr.bf16.mxu0 %v1639
        %2022 = vmatpush1.bf16.msra.mxu0 %v1638
        %2023 = vmatprep.subr.bf16.mxu0 %v1647
        %2024 = vmatpush1.bf16.msra.mxu0 %v1646
        %2025 = vmatprep.subr.bf16.mxu0 %v1655
        %2026 = vmatpush1.bf16.msra.mxu0 %v1654
        %2027 = vmatprep.subr.bf16.mxu0 %v1663
        %2028 = vmatpush1.bf16.msra.mxu0 %v1662
        %2029 = vmatprep.subr.bf16.mxu0 %v1671
        %2030 = vmatpush1.bf16.msra.mxu0 %v1670
        %2031 = vmatprep.subr.bf16.mxu0 %v1679
        %2032 = vmatpush1.bf16.msra.mxu0 %v1678
        %2033 = vmatprep.subr.bf16.mxu0 %v1687
        %2034 = vmatpush1.bf16.msra.mxu0 %v1686
        %2035 = vmatprep.mubr.bf16.mxu0 %v657
        %2036 = vmatmul.mubr.bf16.gmra.mrb[0].mxu0 %v656
        %v2037 = vpop.f32.mrb[0].mxu0
        %v2038 = vadd.f32 %v1985, %v2037
        %v2039 = vpop.f32.mrb[0].mxu0
        %v2040 = vadd.f32 %v1987, %v2039
        %v2041 = vpop.f32.mrb[0].mxu0
        %v2042 = vadd.f32 %v1989, %v2041
        %v2043 = vpop.f32.mrb[0].mxu0
        %v2044 = vadd.f32 %v1991, %v2043
        %2045 = vmatprep.mubr.bf16.mxu0 %v661
        %2046 = vmatmul.mubr.bf16.gmra.mrb[0].mxu0 %v660
        %v2047 = vpop.f32.mrb[0].mxu0
        %v2048 = vadd.f32 %v1995, %v2047
        %v2049 = vpop.f32.mrb[0].mxu0
        %v2050 = vadd.f32 %v1997, %v2049
        %v2051 = vpop.f32.mrb[0].mxu0
        %v2052 = vadd.f32 %v1999, %v2051
        %v2053 = vpop.f32.mrb[0].mxu0
        %v2054 = vadd.f32 %v2001, %v2053
        %2055 = vdwg.mxu0
        %2056 = vmatprep.subr.bf16.mxu0 %v1441
        %2057 = vmatpush1.bf16.msra.mxu0 %v1440
        %2058 = vmatprep.subr.bf16.mxu0 %v1449
        %2059 = vmatpush1.bf16.msra.mxu0 %v1448
        %2060 = vmatprep.subr.bf16.mxu0 %v1457
        %2061 = vmatpush1.bf16.msra.mxu0 %v1456
        %2062 = vmatprep.subr.bf16.mxu0 %v1465
        %2063 = vmatpush1.bf16.msra.mxu0 %v1464
        %2064 = vmatprep.subr.bf16.mxu0 %v1473
        %2065 = vmatpush1.bf16.msra.mxu0 %v1472
        %2066 = vmatprep.subr.bf16.mxu0 %v1481
        %2067 = vmatpush1.bf16.msra.mxu0 %v1480
        %2068 = vmatprep.subr.bf16.mxu0 %v1489
        %2069 = vmatpush1.bf16.msra.mxu0 %v1488
        %2070 = vmatprep.subr.bf16.mxu0 %v1497
        %2071 = vmatpush1.bf16.msra.mxu0 %v1496
        %2072 = vmatprep.subr.bf16.mxu0 %v1505
        %2073 = vmatpush1.bf16.msra.mxu0 %v1504
        %2074 = vmatprep.subr.bf16.mxu0 %v1513
        %2075 = vmatpush1.bf16.msra.mxu0 %v1512
        %2076 = vmatprep.subr.bf16.mxu0 %v1521
        %2077 = vmatpush1.bf16.msra.mxu0 %v1520
        %2078 = vmatprep.subr.bf16.mxu0 %v1529
        %2079 = vmatpush1.bf16.msra.mxu0 %v1528
        %2080 = vmatprep.subr.bf16.mxu0 %v1537
        %2081 = vmatpush1.bf16.msra.mxu0 %v1536
        %2082 = vmatprep.subr.bf16.mxu0 %v1545
        %2083 = vmatpush1.bf16.msra.mxu0 %v1544
        %2084 = vmatprep.subr.bf16.mxu0 %v1553
        %2085 = vmatpush1.bf16.msra.mxu0 %v1552
        %2086 = vmatprep.subr.bf16.mxu0 %v1561
        %2087 = vmatpush1.bf16.msra.mxu0 %v1560
        %2088 = vmatprep.mubr.bf16.mxu0 %v655
        %2089 = vmatmul.mubr.bf16.gmra.mrb[0].mxu0 %v654
        %v2090 = vpop.f32.mrb[0].mxu0
        %v2091 = vadd.f32 0.0, %v2090
        %v2092 = vpop.f32.mrb[0].mxu0
        %v2093 = vadd.f32 0.0, %v2092
        %v2094 = vpop.f32.mrb[0].mxu0
        %v2095 = vadd.f32 0.0, %v2094
        %v2096 = vpop.f32.mrb[0].mxu0
        %v2097 = vadd.f32 0.0, %v2096
        %2098 = vmatprep.mubr.bf16.mxu0 %v659
        %2099 = vmatmul.mubr.bf16.gmra.mrb[0].mxu0 %v658
        %v2100 = vpop.f32.mrb[0].mxu0
        %v2101 = vadd.f32 0.0, %v2100
        %v2102 = vpop.f32.mrb[0].mxu0
        %v2103 = vadd.f32 0.0, %v2102
        %v2104 = vpop.f32.mrb[0].mxu0
        %v2105 = vadd.f32 0.0, %v2104
        %v2106 = vpop.f32.mrb[0].mxu0
        %v2107 = vadd.f32 0.0, %v2106
        %2108 = vdwg.mxu0
        %2109 = vmatprep.subr.bf16.mxu0 %v1569
        %2110 = vmatpush1.bf16.msra.mxu0 %v1568
        %2111 = vmatprep.subr.bf16.mxu0 %v1577
        %2112 = vmatpush1.bf16.msra.mxu0 %v1576
        %2113 = vmatprep.subr.bf16.mxu0 %v1585
        %2114 = vmatpush1.bf16.msra.mxu0 %v1584
        %2115 = vmatprep.subr.bf16.mxu0 %v1593
        %2116 = vmatpush1.bf16.msra.mxu0 %v1592
        %2117 = vmatprep.subr.bf16.mxu0 %v1601
        %2118 = vmatpush1.bf16.msra.mxu0 %v1600
        %2119 = vmatprep.subr.bf16.mxu0 %v1609
        %2120 = vmatpush1.bf16.msra.mxu0 %v1608
        %2121 = vmatprep.subr.bf16.mxu0 %v1617
        %2122 = vmatpush1.bf16.msra.mxu0 %v1616
        %2123 = vmatprep.subr.bf16.mxu0 %v1625
        %2124 = vmatpush1.bf16.msra.mxu0 %v1624
        %2125 = vmatprep.subr.bf16.mxu0 %v1633
        %2126 = vmatpush1.bf16.msra.mxu0 %v1632
        %2127 = vmatprep.subr.bf16.mxu0 %v1641
        %2128 = vmatpush1.bf16.msra.mxu0 %v1640
        %2129 = vmatprep.subr.bf16.mxu0 %v1649
        %2130 = vmatpush1.bf16.msra.mxu0 %v1648
        %2131 = vmatprep.subr.bf16.mxu0 %v1657
        %2132 = vmatpush1.bf16.msra.mxu0 %v1656
        %2133 = vmatprep.subr.bf16.mxu0 %v1665
        %2134 = vmatpush1.bf16.msra.mxu0 %v1664
        %2135 = vmatprep.subr.bf16.mxu0 %v1673
        %2136 = vmatpush1.bf16.msra.mxu0 %v1672
        %2137 = vmatprep.subr.bf16.mxu0 %v1681
        %2138 = vmatpush1.bf16.msra.mxu0 %v1680
        %2139 = vmatprep.subr.bf16.mxu0 %v1689
        %2140 = vmatpush1.bf16.msra.mxu0 %v1688
        %2141 = vmatprep.mubr.bf16.mxu0 %v657
        %2142 = vmatmul.mubr.bf16.gmra.mrb[0].mxu0 %v656
        %v2143 = vpop.f32.mrb[0].mxu0
        %v2144 = vadd.f32 %v2091, %v2143
        %v2145 = vpop.f32.mrb[0].mxu0
        %v2146 = vadd.f32 %v2093, %v2145
        %v2147 = vpop.f32.mrb[0].mxu0
        %v2148 = vadd.f32 %v2095, %v2147
        %v2149 = vpop.f32.mrb[0].mxu0
        %v2150 = vadd.f32 %v2097, %v2149
        %2151 = vmatprep.mubr.bf16.mxu0 %v661
        %2152 = vmatmul.mubr.bf16.gmra.mrb[0].mxu0 %v660
        %v2153 = vpop.f32.mrb[0].mxu0
        %v2154 = vadd.f32 %v2101, %v2153
        %v2155 = vpop.f32.mrb[0].mxu0
        %v2156 = vadd.f32 %v2103, %v2155
        %v2157 = vpop.f32.mrb[0].mxu0
        %v2158 = vadd.f32 %v2105, %v2157
        %v2159 = vpop.f32.mrb[0].mxu0
        %v2160 = vadd.f32 %v2107, %v2159
        %2161 = vdwg.mxu0
        %2162 = vmatprep.subr.bf16.mxu0 %v1443
        %2163 = vmatpush1.bf16.msra.mxu0 %v1442
        %2164 = vmatprep.subr.bf16.mxu0 %v1451
        %2165 = vmatpush1.bf16.msra.mxu0 %v1450
        %2166 = vmatprep.subr.bf16.mxu0 %v1459
        %2167 = vmatpush1.bf16.msra.mxu0 %v1458
        %2168 = vmatprep.subr.bf16.mxu0 %v1467
        %2169 = vmatpush1.bf16.msra.mxu0 %v1466
        %2170 = vmatprep.subr.bf16.mxu0 %v1475
        %2171 = vmatpush1.bf16.msra.mxu0 %v1474
        %2172 = vmatprep.subr.bf16.mxu0 %v1483
        %2173 = vmatpush1.bf16.msra.mxu0 %v1482
        %2174 = vmatprep.subr.bf16.mxu0 %v1491
        %2175 = vmatpush1.bf16.msra.mxu0 %v1490
        %2176 = vmatprep.subr.bf16.mxu0 %v1499
        %2177 = vmatpush1.bf16.msra.mxu0 %v1498
        %2178 = vmatprep.subr.bf16.mxu0 %v1507
        %2179 = vmatpush1.bf16.msra.mxu0 %v1506
        %2180 = vmatprep.subr.bf16.mxu0 %v1515
        %2181 = vmatpush1.bf16.msra.mxu0 %v1514
        %2182 = vmatprep.subr.bf16.mxu0 %v1523
        %2183 = vmatpush1.bf16.msra.mxu0 %v1522
        %2184 = vmatprep.subr.bf16.mxu0 %v1531
        %2185 = vmatpush1.bf16.msra.mxu0 %v1530
        %2186 = vmatprep.subr.bf16.mxu0 %v1539
        %2187 = vmatpush1.bf16.msra.mxu0 %v1538
        %2188 = vmatprep.subr.bf16.mxu0 %v1547
        %2189 = vmatpush1.bf16.msra.mxu0 %v1546
        %2190 = vmatprep.subr.bf16.mxu0 %v1555
        %2191 = vmatpush1.bf16.msra.mxu0 %v1554
        %2192 = vmatprep.subr.bf16.mxu0 %v1563
        %2193 = vmatpush1.bf16.msra.mxu0 %v1562
        %2194 = vmatprep.mubr.bf16.mxu0 %v655
        %2195 = vmatmul.mubr.bf16.gmra.mrb[0].mxu0 %v654
        %v2196 = vpop.f32.mrb[0].mxu0
        %v2197 = vadd.f32 0.0, %v2196
        %v2198 = vpop.f32.mrb[0].mxu0
        %v2199 = vadd.f32 0.0, %v2198
        %v2200 = vpop.f32.mrb[0].mxu0
        %v2201 = vadd.f32 0.0, %v2200
        %v2202 = vpop.f32.mrb[0].mxu0
        %v2203 = vadd.f32 0.0, %v2202
        %2204 = vmatprep.mubr.bf16.mxu0 %v659
        %2205 = vmatmul.mubr.bf16.gmra.mrb[0].mxu0 %v658
        %v2206 = vpop.f32.mrb[0].mxu0
        %v2207 = vadd.f32 0.0, %v2206
        %v2208 = vpop.f32.mrb[0].mxu0
        %v2209 = vadd.f32 0.0, %v2208
        %v2210 = vpop.f32.mrb[0].mxu0
        %v2211 = vadd.f32 0.0, %v2210
        %v2212 = vpop.f32.mrb[0].mxu0
        %v2213 = vadd.f32 0.0, %v2212
        %2214 = vdwg.mxu0
        %2215 = vmatprep.subr.bf16.mxu0 %v1571
        %2216 = vmatpush1.bf16.msra.mxu0 %v1570
        %2217 = vmatprep.subr.bf16.mxu0 %v1579
        %2218 = vmatpush1.bf16.msra.mxu0 %v1578
        %2219 = vmatprep.subr.bf16.mxu0 %v1587
        %2220 = vmatpush1.bf16.msra.mxu0 %v1586
        %2221 = vmatprep.subr.bf16.mxu0 %v1595
        %2222 = vmatpush1.bf16.msra.mxu0 %v1594
        %2223 = vmatprep.subr.bf16.mxu0 %v1603
        %2224 = vmatpush1.bf16.msra.mxu0 %v1602
        %2225 = vmatprep.subr.bf16.mxu0 %v1611
        %2226 = vmatpush1.bf16.msra.mxu0 %v1610
        %2227 = vmatprep.subr.bf16.mxu0 %v1619
        %2228 = vmatpush1.bf16.msra.mxu0 %v1618
        %2229 = vmatprep.subr.bf16.mxu0 %v1627
        %2230 = vmatpush1.bf16.msra.mxu0 %v1626
        %2231 = vmatprep.subr.bf16.mxu0 %v1635
        %2232 = vmatpush1.bf16.msra.mxu0 %v1634
        %2233 = vmatprep.subr.bf16.mxu0 %v1643
        %2234 = vmatpush1.bf16.msra.mxu0 %v1642
        %2235 = vmatprep.subr.bf16.mxu0 %v1651
        %2236 = vmatpush1.bf16.msra.mxu0 %v1650
        %2237 = vmatprep.subr.bf16.mxu0 %v1659
        %2238 = vmatpush1.bf16.msra.mxu0 %v1658
        %2239 = vmatprep.subr.bf16.mxu0 %v1667
        %2240 = vmatpush1.bf16.msra.mxu0 %v1666
        %2241 = vmatprep.subr.bf16.mxu0 %v1675
        %2242 = vmatpush1.bf16.msra.mxu0 %v1674
        %2243 = vmatprep.subr.bf16.mxu0 %v1683
        %2244 = vmatpush1.bf16.msra.mxu0 %v1682
        %2245 = vmatprep.subr.bf16.mxu0 %v1691
        %2246 = vmatpush1.bf16.msra.mxu0 %v1690
        %2247 = vmatprep.mubr.bf16.mxu0 %v657
        %2248 = vmatmul.mubr.bf16.gmra.mrb[0].mxu0 %v656
        %v2249 = vpop.f32.mrb[0].mxu0
        %v2250 = vadd.f32 %v2197, %v2249
        %v2251 = vpop.f32.mrb[0].mxu0
        %v2252 = vadd.f32 %v2199, %v2251
        %v2253 = vpop.f32.mrb[0].mxu0
        %v2254 = vadd.f32 %v2201, %v2253
        %v2255 = vpop.f32.mrb[0].mxu0
        %v2256 = vadd.f32 %v2203, %v2255
        %2257 = vmatprep.mubr.bf16.mxu0 %v661
        %2258 = vmatmul.mubr.bf16.gmra.mrb[0].mxu0 %v660
        %v2259 = vpop.f32.mrb[0].mxu0
        %v2260 = vadd.f32 %v2207, %v2259
        %v2261 = vpop.f32.mrb[0].mxu0
        %v2262 = vadd.f32 %v2209, %v2261
        %v2263 = vpop.f32.mrb[0].mxu0
        %v2264 = vadd.f32 %v2211, %v2263
        %v2265 = vpop.f32.mrb[0].mxu0
        %v2266 = vadd.f32 %v2213, %v2265
        %2267 = vdwg.mxu0
        %2268 = vmatprep.subr.bf16.mxu0 %v1445
        %2269 = vmatpush1.bf16.msra.mxu0 %v1444
        %2270 = vmatprep.subr.bf16.mxu0 %v1453
        %2271 = vmatpush1.bf16.msra.mxu0 %v1452
        %2272 = vmatprep.subr.bf16.mxu0 %v1461
        %2273 = vmatpush1.bf16.msra.mxu0 %v1460
        %2274 = vmatprep.subr.bf16.mxu0 %v1469
        %2275 = vmatpush1.bf16.msra.mxu0 %v1468
        %2276 = vmatprep.subr.bf16.mxu0 %v1477
        %2277 = vmatpush1.bf16.msra.mxu0 %v1476
        %2278 = vmatprep.subr.bf16.mxu0 %v1485
        %2279 = vmatpush1.bf16.msra.mxu0 %v1484
        %2280 = vmatprep.subr.bf16.mxu0 %v1493
        %2281 = vmatpush1.bf16.msra.mxu0 %v1492
        %2282 = vmatprep.subr.bf16.mxu0 %v1501
        %2283 = vmatpush1.bf16.msra.mxu0 %v1500
        %2284 = vmatprep.subr.bf16.mxu0 %v1509
        %2285 = vmatpush1.bf16.msra.mxu0 %v1508
        %2286 = vmatprep.subr.bf16.mxu0 %v1517
        %2287 = vmatpush1.bf16.msra.mxu0 %v1516
        %2288 = vmatprep.subr.bf16.mxu0 %v1525
        %2289 = vmatpush1.bf16.msra.mxu0 %v1524
        %2290 = vmatprep.subr.bf16.mxu0 %v1533
        %2291 = vmatpush1.bf16.msra.mxu0 %v1532
        %2292 = vmatprep.subr.bf16.mxu0 %v1541
        %2293 = vmatpush1.bf16.msra.mxu0 %v1540
        %2294 = vmatprep.subr.bf16.mxu0 %v1549
        %2295 = vmatpush1.bf16.msra.mxu0 %v1548
        %2296 = vmatprep.subr.bf16.mxu0 %v1557
        %2297 = vmatpush1.bf16.msra.mxu0 %v1556
        %2298 = vmatprep.subr.bf16.mxu0 %v1565
        %2299 = vmatpush1.bf16.msra.mxu0 %v1564
        %2300 = vmatprep.mubr.bf16.mxu0 %v655
        %2301 = vmatmul.mubr.bf16.gmra.mrb[0].mxu0 %v654
        %v2302 = vpop.f32.mrb[0].mxu0
        %v2303 = vadd.f32 0.0, %v2302
        %v2304 = vpop.f32.mrb[0].mxu0
        %v2305 = vadd.f32 0.0, %v2304
        %v2306 = vpop.f32.mrb[0].mxu0
        %v2307 = vadd.f32 0.0, %v2306
        %v2308 = vpop.f32.mrb[0].mxu0
        %v2309 = vadd.f32 0.0, %v2308
        %2310 = vmatprep.mubr.bf16.mxu0 %v659
        %2311 = vmatmul.mubr.bf16.gmra.mrb[0].mxu0 %v658
        %v2312 = vpop.f32.mrb[0].mxu0
        %v2313 = vadd.f32 0.0, %v2312
        %v2314 = vpop.f32.mrb[0].mxu0
        %v2315 = vadd.f32 0.0, %v2314
        %v2316 = vpop.f32.mrb[0].mxu0
        %v2317 = vadd.f32 0.0, %v2316
        %v2318 = vpop.f32.mrb[0].mxu0
        %v2319 = vadd.f32 0.0, %v2318
        %2320 = vdwg.mxu0
        %2321 = vmatprep.subr.bf16.mxu0 %v1573
        %2322 = vmatpush1.bf16.msra.mxu0 %v1572
        %2323 = vmatprep.subr.bf16.mxu0 %v1581
        %2324 = vmatpush1.bf16.msra.mxu0 %v1580
        %2325 = vmatprep.subr.bf16.mxu0 %v1589
        %2326 = vmatpush1.bf16.msra.mxu0 %v1588
        %2327 = vmatprep.subr.bf16.mxu0 %v1597
        %2328 = vmatpush1.bf16.msra.mxu0 %v1596
        %2329 = vmatprep.subr.bf16.mxu0 %v1605
        %2330 = vmatpush1.bf16.msra.mxu0 %v1604
        %2331 = vmatprep.subr.bf16.mxu0 %v1613
        %2332 = vmatpush1.bf16.msra.mxu0 %v1612
        %2333 = vmatprep.subr.bf16.mxu0 %v1621
        %2334 = vmatpush1.bf16.msra.mxu0 %v1620
        %2335 = vmatprep.subr.bf16.mxu0 %v1629
        %2336 = vmatpush1.bf16.msra.mxu0 %v1628
        %2337 = vmatprep.subr.bf16.mxu0 %v1637
        %2338 = vmatpush1.bf16.msra.mxu0 %v1636
        %2339 = vmatprep.subr.bf16.mxu0 %v1645
        %2340 = vmatpush1.bf16.msra.mxu0 %v1644
        %2341 = vmatprep.subr.bf16.mxu0 %v1653
        %2342 = vmatpush1.bf16.msra.mxu0 %v1652
        %2343 = vmatprep.subr.bf16.mxu0 %v1661
        %2344 = vmatpush1.bf16.msra.mxu0 %v1660
        %2345 = vmatprep.subr.bf16.mxu0 %v1669
        %2346 = vmatpush1.bf16.msra.mxu0 %v1668
        %2347 = vmatprep.subr.bf16.mxu0 %v1677
        %2348 = vmatpush1.bf16.msra.mxu0 %v1676
        %2349 = vmatprep.subr.bf16.mxu0 %v1685
        %2350 = vmatpush1.bf16.msra.mxu0 %v1684
        %2351 = vmatprep.subr.bf16.mxu0 %v1693
        %2352 = vmatpush1.bf16.msra.mxu0 %v1692
        %2353 = vmatprep.mubr.bf16.mxu0 %v657
        %2354 = vmatmul.mubr.bf16.gmra.mrb[0].mxu0 %v656
        %v2355 = vpop.f32.mrb[0].mxu0
        %v2356 = vadd.f32 %v2303, %v2355
        %v2357 = vpop.f32.mrb[0].mxu0
        %v2358 = vadd.f32 %v2305, %v2357
        %v2359 = vpop.f32.mrb[0].mxu0
        %v2360 = vadd.f32 %v2307, %v2359
        %v2361 = vpop.f32.mrb[0].mxu0
        %v2362 = vadd.f32 %v2309, %v2361
        %2363 = vmatprep.mubr.bf16.mxu0 %v661
        %2364 = vmatmul.mubr.bf16.gmra.mrb[0].mxu0 %v660
        %v2365 = vpop.f32.mrb[0].mxu0
        %v2366 = vadd.f32 %v2313, %v2365
        %v2367 = vpop.f32.mrb[0].mxu0
        %v2368 = vadd.f32 %v2315, %v2367
        %v2369 = vpop.f32.mrb[0].mxu0
        %v2370 = vadd.f32 %v2317, %v2369
        %v2371 = vpop.f32.mrb[0].mxu0
        %v2372 = vadd.f32 %v2319, %v2371
        %2373 = vdwg.mxu0
        %v2374 = vadd.f32 %v334, %v2038
        %v2375 = vadd.f32 %v335, %v2040
        %v2376 = vadd.f32 %v336, %v2144
        %v2377 = vadd.f32 %v337, %v2146
        %v2378 = vadd.f32 %v338, %v2250
        %v2379 = vadd.f32 %v339, %v2252
        %v2380 = vadd.f32 %v340, %v2356
        %v2381 = vadd.f32 %v341, %v2358
        %v2382 = vadd.f32 %v342, %v2042
        %v2383 = vadd.f32 %v343, %v2044
        %v2384 = vadd.f32 %v344, %v2148
        %v2385 = vadd.f32 %v345, %v2150
        %v2386 = vadd.f32 %v346, %v2254
        %v2387 = vadd.f32 %v347, %v2256
        %v2388 = vadd.f32 %v348, %v2360
        %v2389 = vadd.f32 %v349, %v2362
        %v2390 = vadd.f32 %v350, %v2048
        %v2391 = vadd.f32 %v351, %v2050
        %v2392 = vadd.f32 %v352, %v2154
        %v2393 = vadd.f32 %v353, %v2156
        %v2394 = vadd.f32 %v354, %v2260
        %v2395 = vadd.f32 %v355, %v2262
        %v2396 = vadd.f32 %v356, %v2366
        %v2397 = vadd.f32 %v357, %v2368
        %v2398 = vadd.f32 %v358, %v2052
        %v2399 = vadd.f32 %v359, %v2054
        %v2400 = vadd.f32 %v360, %v2158
        %v2401 = vadd.f32 %v361, %v2160
        %v2402 = vadd.f32 %v362, %v2264
        %v2403 = vadd.f32 %v363, %v2266
        %v2404 = vadd.f32 %v364, %v2370
        %v2405 = vadd.f32 %v365, %v2372
        %2406 = vst [vmem:[#allocation2] sm:$0xff] %v2374
        %2407 = vst [vmem:[#allocation2 + $0x8] sm:$0xff] %v2375
        %2408 = vst [vmem:[#allocation2 + $0x10] sm:$0xff] %v2376
        %2409 = vst [vmem:[#allocation2 + $0x18] sm:$0xff] %v2377
        %2410 = vst [vmem:[#allocation2 + $0x20] sm:$0xff] %v2378
        %2411 = vst [vmem:[#allocation2 + $0x28] sm:$0xff] %v2379
        %2412 = vst [vmem:[#allocation2 + $0x30] sm:$0xff] %v2380
        %2413 = vst [vmem:[#allocation2 + $0x38] sm:$0xff] %v2381
        %2414 = vst [vmem:[#allocation2 + $0x40] sm:$0xff] %v2382
        %2415 = vst [vmem:[#allocation2 + $0x48] sm:$0xff] %v2383
        %2416 = vst [vmem:[#allocation2 + $0x50] sm:$0xff] %v2384
        %2417 = vst [vmem:[#allocation2 + $0x58] sm:$0xff] %v2385
        %2418 = vst [vmem:[#allocation2 + $0x60] sm:$0xff] %v2386
        %2419 = vst [vmem:[#allocation2 + $0x68] sm:$0xff] %v2387
        %2420 = vst [vmem:[#allocation2 + $0x70] sm:$0xff] %v2388
        %2421 = vst [vmem:[#allocation2 + $0x78] sm:$0xff] %v2389
        %2422 = vst [vmem:[#allocation2 + $0x80] sm:$0xff] %v2390
        %2423 = vst [vmem:[#allocation2 + $0x88] sm:$0xff] %v2391
        %2424 = vst [vmem:[#allocation2 + $0x90] sm:$0xff] %v2392
        %2425 = vst [vmem:[#allocation2 + $0x98] sm:$0xff] %v2393
        %2426 = vst [vmem:[#allocation2 + $0xa0] sm:$0xff] %v2394
        %2427 = vst [vmem:[#allocation2 + $0xa8] sm:$0xff] %v2395
        %2428 = vst [vmem:[#allocation2 + $0xb0] sm:$0xff] %v2396
        %2429 = vst [vmem:[#allocation2 + $0xb8] sm:$0xff] %v2397
        %2430 = vst [vmem:[#allocation2 + $0xc0] sm:$0xf] %v2398
        %2431 = vst [vmem:[#allocation2 + $0xc8] sm:$0xf] %v2399
        %2432 = vst [vmem:[#allocation2 + $0xd0] sm:$0xf] %v2400
        %2433 = vst [vmem:[#allocation2 + $0xd8] sm:$0xf] %v2401
        %2434 = vst [vmem:[#allocation2 + $0xe0] sm:$0xf] %v2402
        %2435 = vst [vmem:[#allocation2 + $0xe8] sm:$0xf] %v2403
        %2436 = vst [vmem:[#allocation2 + $0xf0] sm:$0xf] %v2404
        %2437 = vst [vmem:[#allocation2 + $0xf8] sm:$0xf] %v2405
        %p2438 = scmp.eq.s32.totalorder %s18, 2
        // Predicated region
        $region72: #{completenn_forward.11} parent=62 // pred_check
          %p2439 = pneg %p2438
        $region73: #{completenn_forward.11} parent=62 // pred_check_branch
          %2441 = sbr.rel (%p2439) target = $region75
        $region74: #{completenn_forward.11} parent=62 // pred_region
          %v2442 = vld [vmem:[#allocation2] sm:$0xff]
          %v2443 = vld [vmem:[#allocation2 + $0x8] sm:$0xff]
          %v2444 = vld [vmem:[#allocation2 + $0x10] sm:$0xff]
          %v2445 = vld [vmem:[#allocation2 + $0x18] sm:$0xff]
          %v2446 = vld [vmem:[#allocation2 + $0x20] sm:$0xff]
          %v2447 = vld [vmem:[#allocation2 + $0x28] sm:$0xff]
          %v2448 = vld [vmem:[#allocation2 + $0x30] sm:$0xff]
          %v2449 = vld [vmem:[#allocation2 + $0x38] sm:$0xff]
          %v2450 = vld [vmem:[#allocation2 + $0x40] sm:$0xff]
          %v2451 = vld [vmem:[#allocation2 + $0x48] sm:$0xff]
          %v2452 = vld [vmem:[#allocation2 + $0x50] sm:$0xff]
          %v2453 = vld [vmem:[#allocation2 + $0x58] sm:$0xff]
          %v2454 = vld [vmem:[#allocation2 + $0x60] sm:$0xff]
          %v2455 = vld [vmem:[#allocation2 + $0x68] sm:$0xff]
          %v2456 = vld [vmem:[#allocation2 + $0x70] sm:$0xff]
          %v2457 = vld [vmem:[#allocation2 + $0x78] sm:$0xff]
          %v2458 = vld [vmem:[#allocation2 + $0x80] sm:$0xff]
          %v2459 = vld [vmem:[#allocation2 + $0x88] sm:$0xff]
          %v2460 = vld [vmem:[#allocation2 + $0x90] sm:$0xff]
          %v2461 = vld [vmem:[#allocation2 + $0x98] sm:$0xff]
          %v2462 = vld [vmem:[#allocation2 + $0xa0] sm:$0xff]
          %v2463 = vld [vmem:[#allocation2 + $0xa8] sm:$0xff]
          %v2464 = vld [vmem:[#allocation2 + $0xb0] sm:$0xff]
          %v2465 = vld [vmem:[#allocation2 + $0xb8] sm:$0xff]
          %v2466 = vld [vmem:[#allocation2 + $0xc0] sm:$0xf]
          %v2467 = vld [vmem:[#allocation2 + $0xc8] sm:$0xf]
          %v2468 = vld [vmem:[#allocation2 + $0xd0] sm:$0xf]
          %v2469 = vld [vmem:[#allocation2 + $0xd8] sm:$0xf]
          %v2470 = vld [vmem:[#allocation2 + $0xe0] sm:$0xf]
          %v2471 = vld [vmem:[#allocation2 + $0xe8] sm:$0xf]
          %v2472 = vld [vmem:[#allocation2 + $0xf0] sm:$0xf]
          %v2473 = vld [vmem:[#allocation2 + $0xf8] sm:$0xf]
          %v2474 = vld [vmem:[%s2] sm:$0xff]
          %v2476 = vlaneseq
          %v2477 = vshrl.u32 %v2476, 7
          %v2478 = vsub.s32 0, %v2477
          %v2479 = vrot.slane %v2474, %v2478
          %v2480 = vlaneseq
          %v2481 = vshrl.u32 %v2480, 7
          %v2482 = vsub.s32 1, %v2481
          %v2483 = vrot.slane %v2474, %v2482
          %v2484 = vlaneseq
          %v2485 = vshrl.u32 %v2484, 7
          %v2486 = vsub.s32 2, %v2485
          %v2487 = vrot.slane %v2474, %v2486
          %v2488 = vlaneseq
          %v2489 = vshrl.u32 %v2488, 7
          %v2490 = vsub.s32 3, %v2489
          %v2491 = vrot.slane %v2474, %v2490
          %v2492 = vlaneseq
          %v2493 = vshrl.u32 %v2492, 7
          %v2494 = vsub.s32 4, %v2493
          %v2495 = vrot.slane %v2474, %v2494
          %v2496 = vlaneseq
          %v2497 = vshrl.u32 %v2496, 7
          %v2498 = vsub.s32 5, %v2497
          %v2499 = vrot.slane %v2474, %v2498
          %v2500 = vlaneseq
          %v2501 = vshrl.u32 %v2500, 7
          %v2502 = vsub.s32 6, %v2501
          %v2503 = vrot.slane %v2474, %v2502
          %v2504 = vlaneseq
          %v2505 = vshrl.u32 %v2504, 7
          %v2506 = vsub.s32 7, %v2505
          %v2507 = vrot.slane %v2474, %v2506
          %v2516 = vadd.f32 %v2442, %v2479
          %v2517 = vadd.f32 %v2443, %v2483
          %v2518 = vadd.f32 %v2444, %v2487
          %v2519 = vadd.f32 %v2445, %v2491
          %v2520 = vadd.f32 %v2446, %v2495
          %v2521 = vadd.f32 %v2447, %v2499
          %v2522 = vadd.f32 %v2448, %v2503
          %v2523 = vadd.f32 %v2449, %v2507
          %v2524 = vadd.f32 %v2450, %v2479
          %v2525 = vadd.f32 %v2451, %v2483
          %v2526 = vadd.f32 %v2452, %v2487
          %v2527 = vadd.f32 %v2453, %v2491
          %v2528 = vadd.f32 %v2454, %v2495
          %v2529 = vadd.f32 %v2455, %v2499
          %v2530 = vadd.f32 %v2456, %v2503
          %v2531 = vadd.f32 %v2457, %v2507
          %v2532 = vadd.f32 %v2458, %v2479
          %v2533 = vadd.f32 %v2459, %v2483
          %v2534 = vadd.f32 %v2460, %v2487
          %v2535 = vadd.f32 %v2461, %v2491
          %v2536 = vadd.f32 %v2462, %v2495
          %v2537 = vadd.f32 %v2463, %v2499
          %v2538 = vadd.f32 %v2464, %v2503
          %v2539 = vadd.f32 %v2465, %v2507
          %v2540 = vadd.f32 %v2466, %v2479
          %v2541 = vadd.f32 %v2467, %v2483
          %v2542 = vadd.f32 %v2468, %v2487
          %v2543 = vadd.f32 %v2469, %v2491
          %v2544 = vadd.f32 %v2470, %v2495
          %v2545 = vadd.f32 %v2471, %v2499
          %v2546 = vadd.f32 %v2472, %v2503
          %v2547 = vadd.f32 %v2473, %v2507
          %v2548 = vmax.f32 %v2516, 0.0
          %v2549 = vmax.f32 %v2517, 0.0
          %v2550 = vmax.f32 %v2518, 0.0
          %v2551 = vmax.f32 %v2519, 0.0
          %v2552 = vmax.f32 %v2520, 0.0
          %v2553 = vmax.f32 %v2521, 0.0
          %v2554 = vmax.f32 %v2522, 0.0
          %v2555 = vmax.f32 %v2523, 0.0
          %v2556 = vmax.f32 %v2524, 0.0
          %v2557 = vmax.f32 %v2525, 0.0
          %v2558 = vmax.f32 %v2526, 0.0
          %v2559 = vmax.f32 %v2527, 0.0
          %v2560 = vmax.f32 %v2528, 0.0
          %v2561 = vmax.f32 %v2529, 0.0
          %v2562 = vmax.f32 %v2530, 0.0
          %v2563 = vmax.f32 %v2531, 0.0
          %v2564 = vmax.f32 %v2532, 0.0
          %v2565 = vmax.f32 %v2533, 0.0
          %v2566 = vmax.f32 %v2534, 0.0
          %v2567 = vmax.f32 %v2535, 0.0
          %v2568 = vmax.f32 %v2536, 0.0
          %v2569 = vmax.f32 %v2537, 0.0
          %v2570 = vmax.f32 %v2538, 0.0
          %v2571 = vmax.f32 %v2539, 0.0
          %v2572 = vmax.f32 %v2540, 0.0
          %v2573 = vmax.f32 %v2541, 0.0
          %v2574 = vmax.f32 %v2542, 0.0
          %v2575 = vmax.f32 %v2543, 0.0
          %v2576 = vmax.f32 %v2544, 0.0
          %v2577 = vmax.f32 %v2545, 0.0
          %v2578 = vmax.f32 %v2546, 0.0
          %v2579 = vmax.f32 %v2547, 0.0
          %v2580 = vld [vmem:[%s3] sm:$0x3]
          %vm2581 = vcmask 228352
          %v2583 = vsel %vm2581, %v2580, 0
          %vm2585 = vcmask 1043456
          %v2587 = vsel %vm2585, %v2572, 0
          %v2590 = vsel %vm2585, %v2573, 0
          %v2593 = vsel %vm2585, %v2574, 0
          %v2596 = vsel %vm2585, %v2575, 0
          %v2599 = vsel %vm2585, %v2576, 0
          %v2602 = vsel %vm2585, %v2577, 0
          %v2605 = vsel %vm2585, %v2578, 0
          %v2608 = vsel %vm2585, %v2579, 0
          %2610 = vmatprep.subr.mxu0 %v2549
          %2611 = vmatpush1.msra.mxu0 %v2548
          %2612 = vmatprep.subr.mxu0 %v2557
          %2613 = vmatpush1.msra.mxu0 %v2556
          %2614 = vmatprep.subr.mxu0 %v2565
          %2615 = vmatpush1.msra.mxu0 %v2564
          %2616 = vmatprep.subr.mxu0 %v2590
          %2617 = vmatpush1.msra.mxu0 %v2587
          %2618 = vmatprep.subr.mxu0 0.0
          %2619 = vmatpush1.msra.mxu0 0.0
          %2620 = vmatprep.subr.mxu0 0.0
          %2621 = vmatpush1.msra.mxu0 0.0
          %2622 = vmatprep.subr.mxu0 0.0
          %2623 = vmatpush1.msra.mxu0 0.0
          %2624 = vmatprep.subr.mxu0 0.0
          %2625 = vmatpush1.msra.mxu0 0.0
          %2626 = vmatprep.subr.mxu0 0.0
          %2627 = vmatpush1.msra.mxu0 0.0
          %2628 = vmatprep.subr.mxu0 0.0
          %2629 = vmatpush1.msra.mxu0 0.0
          %2630 = vmatprep.subr.mxu0 0.0
          %2631 = vmatpush1.msra.mxu0 0.0
          %2632 = vmatprep.subr.mxu0 0.0
          %2633 = vmatpush1.msra.mxu0 0.0
          %2634 = vmatprep.subr.mxu0 0.0
          %2635 = vmatpush1.msra.mxu0 0.0
          %2636 = vmatprep.subr.mxu0 0.0
          %2637 = vmatpush1.msra.mxu0 0.0
          %2638 = vmatprep.subr.mxu0 0.0
          %2639 = vmatpush1.msra.mxu0 0.0
          %2640 = vmatprep.subr.mxu0 0.0
          %2641 = vmatpush1.msra.mxu0 0.0
          %2642 = vmatprep.subr.mxu0 0.0
          %2643 = vmatpush1.msra.mxu0 0.0
          %2644 = vmatprep.subr.mxu0 0.0
          %2645 = vmatpush1.msra.mxu0 0.0
          %2646 = vmatprep.subr.mxu0 0.0
          %2647 = vmatpush1.msra.mxu0 0.0
          %2648 = vmatprep.subr.mxu0 0.0
          %2649 = vmatpush1.msra.mxu0 0.0
          %2650 = vmatprep.subr.mxu0 0.0
          %2651 = vmatpush1.msra.mxu0 0.0
          %2652 = vmatprep.subr.mxu0 0.0
          %2653 = vmatpush1.msra.mxu0 0.0
          %2654 = vmatprep.subr.mxu0 0.0
          %2655 = vmatpush1.msra.mxu0 0.0
          %2656 = vmatprep.subr.mxu0 0.0
          %2657 = vmatpush1.msra.mxu0 0.0
          %2658 = vmatprep.subr.mxu0 0.0
          %2659 = vmatpush1.msra.mxu0 0.0
          %2660 = vmatprep.subr.mxu0 0.0
          %2661 = vmatpush1.msra.mxu0 0.0
          %2662 = vmatprep.subr.mxu0 0.0
          %2663 = vmatpush1.msra.mxu0 0.0
          %2664 = vmatprep.subr.mxu0 0.0
          %2665 = vmatpush1.msra.mxu0 0.0
          %2666 = vmatprep.subr.mxu0 0.0
          %2667 = vmatpush1.msra.mxu0 0.0
          %2668 = vmatprep.subr.mxu0 0.0
          %2669 = vmatpush1.msra.mxu0 0.0
          %2670 = vmatprep.subr.mxu0 0.0
          %2671 = vmatpush1.msra.mxu0 0.0
          %2672 = vmatprep.subr.mxu0 0.0
          %2673 = vmatpush1.msra.mxu0 0.0
          %2674 = vmatprep.mubr.f32.mxu0 0.0
          %2675 = vmatmul.mubr.f32.gmra.mrb[0].mxu0 %v2583
          %v2676 = vpop.f32.mrb[0].mxu0
          %v2677 = vadd.f32 0.0, %v2676
          %v2678 = vpop.f32.mrb[0].mxu0
          %v2679 = vadd.f32 0.0, %v2678
          %2680 = vdwg.mxu0
          %2681 = vmatprep.subr.mxu0 %v2551
          %2682 = vmatpush1.msra.mxu0 %v2550
          %2683 = vmatprep.subr.mxu0 %v2559
          %2684 = vmatpush1.msra.mxu0 %v2558
          %2685 = vmatprep.subr.mxu0 %v2567
          %2686 = vmatpush1.msra.mxu0 %v2566
          %2687 = vmatprep.subr.mxu0 %v2596
          %2688 = vmatpush1.msra.mxu0 %v2593
          %2689 = vmatprep.subr.mxu0 0.0
          %2690 = vmatpush1.msra.mxu0 0.0
          %2691 = vmatprep.subr.mxu0 0.0
          %2692 = vmatpush1.msra.mxu0 0.0
          %2693 = vmatprep.subr.mxu0 0.0
          %2694 = vmatpush1.msra.mxu0 0.0
          %2695 = vmatprep.subr.mxu0 0.0
          %2696 = vmatpush1.msra.mxu0 0.0
          %2697 = vmatprep.subr.mxu0 0.0
          %2698 = vmatpush1.msra.mxu0 0.0
          %2699 = vmatprep.subr.mxu0 0.0
          %2700 = vmatpush1.msra.mxu0 0.0
          %2701 = vmatprep.subr.mxu0 0.0
          %2702 = vmatpush1.msra.mxu0 0.0
          %2703 = vmatprep.subr.mxu0 0.0
          %2704 = vmatpush1.msra.mxu0 0.0
          %2705 = vmatprep.subr.mxu0 0.0
          %2706 = vmatpush1.msra.mxu0 0.0
          %2707 = vmatprep.subr.mxu0 0.0
          %2708 = vmatpush1.msra.mxu0 0.0
          %2709 = vmatprep.subr.mxu0 0.0
          %2710 = vmatpush1.msra.mxu0 0.0
          %2711 = vmatprep.subr.mxu0 0.0
          %2712 = vmatpush1.msra.mxu0 0.0
          %2713 = vmatprep.subr.mxu0 0.0
          %2714 = vmatpush1.msra.mxu0 0.0
          %2715 = vmatprep.subr.mxu0 0.0
          %2716 = vmatpush1.msra.mxu0 0.0
          %2717 = vmatprep.subr.mxu0 0.0
          %2718 = vmatpush1.msra.mxu0 0.0
          %2719 = vmatprep.subr.mxu0 0.0
          %2720 = vmatpush1.msra.mxu0 0.0
          %2721 = vmatprep.subr.mxu0 0.0
          %2722 = vmatpush1.msra.mxu0 0.0
          %2723 = vmatprep.subr.mxu0 0.0
          %2724 = vmatpush1.msra.mxu0 0.0
          %2725 = vmatprep.subr.mxu0 0.0
          %2726 = vmatpush1.msra.mxu0 0.0
          %2727 = vmatprep.subr.mxu0 0.0
          %2728 = vmatpush1.msra.mxu0 0.0
          %2729 = vmatprep.subr.mxu0 0.0
          %2730 = vmatpush1.msra.mxu0 0.0
          %2731 = vmatprep.subr.mxu0 0.0
          %2732 = vmatpush1.msra.mxu0 0.0
          %2733 = vmatprep.subr.mxu0 0.0
          %2734 = vmatpush1.msra.mxu0 0.0
          %2735 = vmatprep.subr.mxu0 0.0
          %2736 = vmatpush1.msra.mxu0 0.0
          %2737 = vmatprep.subr.mxu0 0.0
          %2738 = vmatpush1.msra.mxu0 0.0
          %2739 = vmatprep.subr.mxu0 0.0
          %2740 = vmatpush1.msra.mxu0 0.0
          %2741 = vmatprep.subr.mxu0 0.0
          %2742 = vmatpush1.msra.mxu0 0.0
          %2743 = vmatprep.subr.mxu0 0.0
          %2744 = vmatpush1.msra.mxu0 0.0
          %2745 = vmatprep.mubr.f32.mxu0 0.0
          %2746 = vmatmul.mubr.f32.gmra.mrb[0].mxu0 %v2583
          %v2747 = vpop.f32.mrb[0].mxu0
          %v2748 = vadd.f32 0.0, %v2747
          %v2749 = vpop.f32.mrb[0].mxu0
          %v2750 = vadd.f32 0.0, %v2749
          %2751 = vdwg.mxu0
          %2752 = vmatprep.subr.mxu0 %v2553
          %2753 = vmatpush1.msra.mxu0 %v2552
          %2754 = vmatprep.subr.mxu0 %v2561
          %2755 = vmatpush1.msra.mxu0 %v2560
          %2756 = vmatprep.subr.mxu0 %v2569
          %2757 = vmatpush1.msra.mxu0 %v2568
          %2758 = vmatprep.subr.mxu0 %v2602
          %2759 = vmatpush1.msra.mxu0 %v2599
          %2760 = vmatprep.subr.mxu0 0.0
          %2761 = vmatpush1.msra.mxu0 0.0
          %2762 = vmatprep.subr.mxu0 0.0
          %2763 = vmatpush1.msra.mxu0 0.0
          %2764 = vmatprep.subr.mxu0 0.0
          %2765 = vmatpush1.msra.mxu0 0.0
          %2766 = vmatprep.subr.mxu0 0.0
          %2767 = vmatpush1.msra.mxu0 0.0
          %2768 = vmatprep.subr.mxu0 0.0
          %2769 = vmatpush1.msra.mxu0 0.0
          %2770 = vmatprep.subr.mxu0 0.0
          %2771 = vmatpush1.msra.mxu0 0.0
          %2772 = vmatprep.subr.mxu0 0.0
          %2773 = vmatpush1.msra.mxu0 0.0
          %2774 = vmatprep.subr.mxu0 0.0
          %2775 = vmatpush1.msra.mxu0 0.0
          %2776 = vmatprep.subr.mxu0 0.0
          %2777 = vmatpush1.msra.mxu0 0.0
          %2778 = vmatprep.subr.mxu0 0.0
          %2779 = vmatpush1.msra.mxu0 0.0
          %2780 = vmatprep.subr.mxu0 0.0
          %2781 = vmatpush1.msra.mxu0 0.0
          %2782 = vmatprep.subr.mxu0 0.0
          %2783 = vmatpush1.msra.mxu0 0.0
          %2784 = vmatprep.subr.mxu0 0.0
          %2785 = vmatpush1.msra.mxu0 0.0
          %2786 = vmatprep.subr.mxu0 0.0
          %2787 = vmatpush1.msra.mxu0 0.0
          %2788 = vmatprep.subr.mxu0 0.0
          %2789 = vmatpush1.msra.mxu0 0.0
          %2790 = vmatprep.subr.mxu0 0.0
          %2791 = vmatpush1.msra.mxu0 0.0
          %2792 = vmatprep.subr.mxu0 0.0
          %2793 = vmatpush1.msra.mxu0 0.0
          %2794 = vmatprep.subr.mxu0 0.0
          %2795 = vmatpush1.msra.mxu0 0.0
          %2796 = vmatprep.subr.mxu0 0.0
          %2797 = vmatpush1.msra.mxu0 0.0
          %2798 = vmatprep.subr.mxu0 0.0
          %2799 = vmatpush1.msra.mxu0 0.0
          %2800 = vmatprep.subr.mxu0 0.0
          %2801 = vmatpush1.msra.mxu0 0.0
          %2802 = vmatprep.subr.mxu0 0.0
          %2803 = vmatpush1.msra.mxu0 0.0
          %2804 = vmatprep.subr.mxu0 0.0
          %2805 = vmatpush1.msra.mxu0 0.0
          %2806 = vmatprep.subr.mxu0 0.0
          %2807 = vmatpush1.msra.mxu0 0.0
          %2808 = vmatprep.subr.mxu0 0.0
          %2809 = vmatpush1.msra.mxu0 0.0
          %2810 = vmatprep.subr.mxu0 0.0
          %2811 = vmatpush1.msra.mxu0 0.0
          %2812 = vmatprep.subr.mxu0 0.0
          %2813 = vmatpush1.msra.mxu0 0.0
          %2814 = vmatprep.subr.mxu0 0.0
          %2815 = vmatpush1.msra.mxu0 0.0
          %2816 = vmatprep.mubr.f32.mxu0 0.0
          %2817 = vmatmul.mubr.f32.gmra.mrb[0].mxu0 %v2583
          %v2818 = vpop.f32.mrb[0].mxu0
          %v2819 = vadd.f32 0.0, %v2818
          %v2820 = vpop.f32.mrb[0].mxu0
          %v2821 = vadd.f32 0.0, %v2820
          %2822 = vdwg.mxu0
          %2823 = vmatprep.subr.mxu0 %v2555
          %2824 = vmatpush1.msra.mxu0 %v2554
          %2825 = vmatprep.subr.mxu0 %v2563
          %2826 = vmatpush1.msra.mxu0 %v2562
          %2827 = vmatprep.subr.mxu0 %v2571
          %2828 = vmatpush1.msra.mxu0 %v2570
          %2829 = vmatprep.subr.mxu0 %v2608
          %2830 = vmatpush1.msra.mxu0 %v2605
          %2831 = vmatprep.subr.mxu0 0.0
          %2832 = vmatpush1.msra.mxu0 0.0
          %2833 = vmatprep.subr.mxu0 0.0
          %2834 = vmatpush1.msra.mxu0 0.0
          %2835 = vmatprep.subr.mxu0 0.0
          %2836 = vmatpush1.msra.mxu0 0.0
          %2837 = vmatprep.subr.mxu0 0.0
          %2838 = vmatpush1.msra.mxu0 0.0
          %2839 = vmatprep.subr.mxu0 0.0
          %2840 = vmatpush1.msra.mxu0 0.0
          %2841 = vmatprep.subr.mxu0 0.0
          %2842 = vmatpush1.msra.mxu0 0.0
          %2843 = vmatprep.subr.mxu0 0.0
          %2844 = vmatpush1.msra.mxu0 0.0
          %2845 = vmatprep.subr.mxu0 0.0
          %2846 = vmatpush1.msra.mxu0 0.0
          %2847 = vmatprep.subr.mxu0 0.0
          %2848 = vmatpush1.msra.mxu0 0.0
          %2849 = vmatprep.subr.mxu0 0.0
          %2850 = vmatpush1.msra.mxu0 0.0
          %2851 = vmatprep.subr.mxu0 0.0
          %2852 = vmatpush1.msra.mxu0 0.0
          %2853 = vmatprep.subr.mxu0 0.0
          %2854 = vmatpush1.msra.mxu0 0.0
          %2855 = vmatprep.subr.mxu0 0.0
          %2856 = vmatpush1.msra.mxu0 0.0
          %2857 = vmatprep.subr.mxu0 0.0
          %2858 = vmatpush1.msra.mxu0 0.0
          %2859 = vmatprep.subr.mxu0 0.0
          %2860 = vmatpush1.msra.mxu0 0.0
          %2861 = vmatprep.subr.mxu0 0.0
          %2862 = vmatpush1.msra.mxu0 0.0
          %2863 = vmatprep.subr.mxu0 0.0
          %2864 = vmatpush1.msra.mxu0 0.0
          %2865 = vmatprep.subr.mxu0 0.0
          %2866 = vmatpush1.msra.mxu0 0.0
          %2867 = vmatprep.subr.mxu0 0.0
          %2868 = vmatpush1.msra.mxu0 0.0
          %2869 = vmatprep.subr.mxu0 0.0
          %2870 = vmatpush1.msra.mxu0 0.0
          %2871 = vmatprep.subr.mxu0 0.0
          %2872 = vmatpush1.msra.mxu0 0.0
          %2873 = vmatprep.subr.mxu0 0.0
          %2874 = vmatpush1.msra.mxu0 0.0
          %2875 = vmatprep.subr.mxu0 0.0
          %2876 = vmatpush1.msra.mxu0 0.0
          %2877 = vmatprep.subr.mxu0 0.0
          %2878 = vmatpush1.msra.mxu0 0.0
          %2879 = vmatprep.subr.mxu0 0.0
          %2880 = vmatpush1.msra.mxu0 0.0
          %2881 = vmatprep.subr.mxu0 0.0
          %2882 = vmatpush1.msra.mxu0 0.0
          %2883 = vmatprep.subr.mxu0 0.0
          %2884 = vmatpush1.msra.mxu0 0.0
          %2885 = vmatprep.subr.mxu0 0.0
          %2886 = vmatpush1.msra.mxu0 0.0
          %2887 = vmatprep.mubr.f32.mxu0 0.0
          %2888 = vmatmul.mubr.f32.gmra.mrb[0].mxu0 %v2583
          %v2889 = vpop.f32.mrb[0].mxu0
          %v2890 = vadd.f32 0.0, %v2889
          %v2891 = vpop.f32.mrb[0].mxu0
          %v2892 = vadd.f32 0.0, %v2891
          %2893 = vdwg.mxu0
          %v2894 = vld [vmem:[%s4] sm:$0xff]
          %v2895 = vld [vmem:[%s4 + $0x8] sm:$0xff]
          %v2896 = vld [vmem:[%s4 + $0x10] sm:$0xff]
          %v2897 = vld [vmem:[%s4 + $0x18] sm:$0xff]
          %v2898 = vld [vmem:[%s4 + $0x20] sm:$0xff]
          %v2899 = vld [vmem:[%s4 + $0x28] sm:$0xff]
          %v2900 = vld [vmem:[%s4 + $0x30] sm:$0xff]
          %v2901 = vld [vmem:[%s4 + $0x38] sm:$0xff]
          %v2902 = vld [vmem:[%s4 + $0x40] sm:$0xff]
          %v2903 = vld [vmem:[%s4 + $0x48] sm:$0xff]
          %v2904 = vld [vmem:[%s4 + $0x50] sm:$0xff]
          %v2905 = vld [vmem:[%s4 + $0x58] sm:$0xff]
          %v2906 = vld [vmem:[%s4 + $0x60] sm:$0xff]
          %v2907 = vld [vmem:[%s4 + $0x68] sm:$0xff]
          %v2908 = vld [vmem:[%s4 + $0x70] sm:$0xff]
          %v2909 = vld [vmem:[%s4 + $0x78] sm:$0xff]
          %v2910 = vld [vmem:[%s4 + $0x80] sm:$0xff]
          %v2911 = vld [vmem:[%s4 + $0x88] sm:$0xff]
          %v2912 = vld [vmem:[%s4 + $0x90] sm:$0xff]
          %v2913 = vld [vmem:[%s4 + $0x98] sm:$0xff]
          %v2914 = vld [vmem:[%s4 + $0xa0] sm:$0xff]
          %v2915 = vld [vmem:[%s4 + $0xa8] sm:$0xff]
          %v2916 = vld [vmem:[%s4 + $0xb0] sm:$0xff]
          %v2917 = vld [vmem:[%s4 + $0xb8] sm:$0xff]
          %v2918 = vld [vmem:[%s4 + $0xc0] sm:$0xff]
          %v2919 = vld [vmem:[%s4 + $0xc8] sm:$0xff]
          %v2920 = vld [vmem:[%s4 + $0xd0] sm:$0xff]
          %v2921 = vld [vmem:[%s4 + $0xd8] sm:$0xff]
          %v2922 = vld [vmem:[%s4 + $0xe0] sm:$0xff]
          %v2923 = vld [vmem:[%s4 + $0xe8] sm:$0xff]
          %v2924 = vld [vmem:[%s4 + $0xf0] sm:$0xff]
          %v2925 = vld [vmem:[%s4 + $0xf8] sm:$0xff]
          %v2926 = vld [vmem:[%s4 + $0x100] sm:$0xff]
          %v2927 = vld [vmem:[%s4 + $0x108] sm:$0xff]
          %v2928 = vld [vmem:[%s4 + $0x110] sm:$0xff]
          %v2929 = vld [vmem:[%s4 + $0x118] sm:$0xff]
          %v2930 = vld [vmem:[%s4 + $0x120] sm:$0xff]
          %v2931 = vld [vmem:[%s4 + $0x128] sm:$0xff]
          %v2932 = vld [vmem:[%s4 + $0x130] sm:$0xff]
          %v2933 = vld [vmem:[%s4 + $0x138] sm:$0xff]
          %v2934 = vld [vmem:[%s4 + $0x140] sm:$0xff]
          %v2935 = vld [vmem:[%s4 + $0x148] sm:$0xff]
          %v2936 = vld [vmem:[%s4 + $0x150] sm:$0xff]
          %v2937 = vld [vmem:[%s4 + $0x158] sm:$0xff]
          %v2938 = vld [vmem:[%s4 + $0x160] sm:$0xff]
          %v2939 = vld [vmem:[%s4 + $0x168] sm:$0xff]
          %v2940 = vld [vmem:[%s4 + $0x170] sm:$0xff]
          %v2941 = vld [vmem:[%s4 + $0x178] sm:$0xff]
          %v2942 = vld [vmem:[%s4 + $0x180] sm:$0xff]
          %v2943 = vld [vmem:[%s4 + $0x188] sm:$0xff]
          %v2944 = vld [vmem:[%s4 + $0x190] sm:$0xff]
          %v2945 = vld [vmem:[%s4 + $0x198] sm:$0xff]
          %v2946 = vld [vmem:[%s4 + $0x1a0] sm:$0xff]
          %v2947 = vld [vmem:[%s4 + $0x1a8] sm:$0xff]
          %v2948 = vld [vmem:[%s4 + $0x1b0] sm:$0xff]
          %v2949 = vld [vmem:[%s4 + $0x1b8] sm:$0xff]
          %v2950 = vld [vmem:[%s4 + $0x1c0] sm:$0xff]
          %v2951 = vld [vmem:[%s4 + $0x1c8] sm:$0xff]
          %v2952 = vld [vmem:[%s4 + $0x1d0] sm:$0xff]
          %v2953 = vld [vmem:[%s4 + $0x1d8] sm:$0xff]
          %v2954 = vld [vmem:[%s4 + $0x1e0] sm:$0xff]
          %v2955 = vld [vmem:[%s4 + $0x1e8] sm:$0xff]
          %v2956 = vld [vmem:[%s4 + $0x1f0] sm:$0xff]
          %v2957 = vld [vmem:[%s4 + $0x1f8] sm:$0xff]
          %v2958 = vld [vmem:[%s4 + $0x200] sm:$0xff]
          %v2959 = vld [vmem:[%s4 + $0x208] sm:$0xff]
          %v2960 = vld [vmem:[%s4 + $0x210] sm:$0xff]
          %v2961 = vld [vmem:[%s4 + $0x218] sm:$0xff]
          %v2962 = vld [vmem:[%s4 + $0x220] sm:$0xff]
          %v2963 = vld [vmem:[%s4 + $0x228] sm:$0xff]
          %v2964 = vld [vmem:[%s4 + $0x230] sm:$0xff]
          %v2965 = vld [vmem:[%s4 + $0x238] sm:$0xff]
          %v2966 = vld [vmem:[%s4 + $0x240] sm:$0xff]
          %v2967 = vld [vmem:[%s4 + $0x248] sm:$0xff]
          %v2968 = vld [vmem:[%s4 + $0x250] sm:$0xff]
          %v2969 = vld [vmem:[%s4 + $0x258] sm:$0xff]
          %v2970 = vld [vmem:[%s4 + $0x260] sm:$0xff]
          %v2971 = vld [vmem:[%s4 + $0x268] sm:$0xff]
          %v2972 = vld [vmem:[%s4 + $0x270] sm:$0xff]
          %v2973 = vld [vmem:[%s4 + $0x278] sm:$0xff]
          %v2974 = vld [vmem:[%s4 + $0x280] sm:$0xff]
          %v2975 = vld [vmem:[%s4 + $0x288] sm:$0xff]
          %v2976 = vld [vmem:[%s4 + $0x290] sm:$0xff]
          %v2977 = vld [vmem:[%s4 + $0x298] sm:$0xff]
          %v2978 = vld [vmem:[%s4 + $0x2a0] sm:$0xff]
          %v2979 = vld [vmem:[%s4 + $0x2a8] sm:$0xff]
          %v2980 = vld [vmem:[%s4 + $0x2b0] sm:$0xff]
          %v2981 = vld [vmem:[%s4 + $0x2b8] sm:$0xff]
          %v2982 = vld [vmem:[%s4 + $0x2c0] sm:$0xff]
          %v2983 = vld [vmem:[%s4 + $0x2c8] sm:$0xff]
          %v2984 = vld [vmem:[%s4 + $0x2d0] sm:$0xff]
          %v2985 = vld [vmem:[%s4 + $0x2d8] sm:$0xff]
          %v2986 = vld [vmem:[%s4 + $0x2e0] sm:$0xff]
          %v2987 = vld [vmem:[%s4 + $0x2e8] sm:$0xff]
          %v2988 = vld [vmem:[%s4 + $0x2f0] sm:$0xff]
          %v2989 = vld [vmem:[%s4 + $0x2f8] sm:$0xff]
          %v2990 = vld [vmem:[%s4 + $0x300] sm:$0xff]
          %v2991 = vld [vmem:[%s4 + $0x308] sm:$0xff]
          %v2992 = vld [vmem:[%s4 + $0x310] sm:$0xff]
          %v2993 = vld [vmem:[%s4 + $0x318] sm:$0xff]
          %v2994 = vld [vmem:[%s4 + $0x320] sm:$0xff]
          %v2995 = vld [vmem:[%s4 + $0x328] sm:$0xff]
          %v2996 = vld [vmem:[%s4 + $0x330] sm:$0xff]
          %v2997 = vld [vmem:[%s4 + $0x338] sm:$0xff]
          %v2998 = vld [vmem:[%s4 + $0x340] sm:$0xff]
          %v2999 = vld [vmem:[%s4 + $0x348] sm:$0xff]
          %v3000 = vld [vmem:[%s4 + $0x350] sm:$0xff]
          %v3001 = vld [vmem:[%s4 + $0x358] sm:$0xff]
          %v3002 = vld [vmem:[%s4 + $0x360] sm:$0xff]
          %v3003 = vld [vmem:[%s4 + $0x368] sm:$0xff]
          %v3004 = vld [vmem:[%s4 + $0x370] sm:$0xff]
          %v3005 = vld [vmem:[%s4 + $0x378] sm:$0xff]
          %v3006 = vld [vmem:[%s4 + $0x380] sm:$0xff]
          %v3007 = vld [vmem:[%s4 + $0x388] sm:$0xff]
          %v3008 = vld [vmem:[%s4 + $0x390] sm:$0xff]
          %v3009 = vld [vmem:[%s4 + $0x398] sm:$0xff]
          %v3010 = vld [vmem:[%s4 + $0x3a0] sm:$0xff]
          %v3011 = vld [vmem:[%s4 + $0x3a8] sm:$0xff]
          %v3012 = vld [vmem:[%s4 + $0x3b0] sm:$0xff]
          %v3013 = vld [vmem:[%s4 + $0x3b8] sm:$0xff]
          %v3014 = vld [vmem:[%s4 + $0x3c0] sm:$0xff]
          %v3015 = vld [vmem:[%s4 + $0x3c8] sm:$0xff]
          %v3016 = vld [vmem:[%s4 + $0x3d0] sm:$0xff]
          %v3017 = vld [vmem:[%s4 + $0x3d8] sm:$0xff]
          %v3018 = vld [vmem:[%s4 + $0x3e0] sm:$0xff]
          %v3019 = vld [vmem:[%s4 + $0x3e8] sm:$0xff]
          %v3020 = vld [vmem:[%s4 + $0x3f0] sm:$0xff]
          %v3021 = vld [vmem:[%s4 + $0x3f8] sm:$0xff]
          %v3022 = vld [vmem:[%s5] sm:$0x1]
          %v3024 = vlaneseq
          %v3025 = vshrl.u32 %v3024, 7
          %v3026 = vsub.s32 0, %v3025
          %v3027 = vrot.slane %v3022, %v3026
          %3029 = vmatprep.subr.mxu0 0.0
          %3030 = vmatpush1.msra.mxu0 %v2894
          %3031 = vmatprep.subr.mxu0 0.0
          %3032 = vmatpush1.msra.mxu0 %v2895
          %3033 = vmatprep.subr.mxu0 0.0
          %3034 = vmatpush1.msra.mxu0 %v2896
          %3035 = vmatprep.subr.mxu0 0.0
          %3036 = vmatpush1.msra.mxu0 %v2897
          %3037 = vmatprep.subr.mxu0 0.0
          %3038 = vmatpush1.msra.mxu0 %v2898
          %3039 = vmatprep.subr.mxu0 0.0
          %3040 = vmatpush1.msra.mxu0 %v2899
          %3041 = vmatprep.subr.mxu0 0.0
          %3042 = vmatpush1.msra.mxu0 %v2900
          %3043 = vmatprep.subr.mxu0 0.0
          %3044 = vmatpush1.msra.mxu0 %v2901
          %3045 = vmatprep.subr.mxu0 0.0
          %3046 = vmatpush1.msra.mxu0 %v2902
          %3047 = vmatprep.subr.mxu0 0.0
          %3048 = vmatpush1.msra.mxu0 %v2903
          %3049 = vmatprep.subr.mxu0 0.0
          %3050 = vmatpush1.msra.mxu0 %v2904
          %3051 = vmatprep.subr.mxu0 0.0
          %3052 = vmatpush1.msra.mxu0 %v2905
          %3053 = vmatprep.subr.mxu0 0.0
          %3054 = vmatpush1.msra.mxu0 %v2906
          %3055 = vmatprep.subr.mxu0 0.0
          %3056 = vmatpush1.msra.mxu0 %v2907
          %3057 = vmatprep.subr.mxu0 0.0
          %3058 = vmatpush1.msra.mxu0 %v2908
          %3059 = vmatprep.subr.mxu0 0.0
          %3060 = vmatpush1.msra.mxu0 %v2909
          %3061 = vmatprep.subr.mxu0 0.0
          %3062 = vmatpush1.msra.mxu0 %v2910
          %3063 = vmatprep.subr.mxu0 0.0
          %3064 = vmatpush1.msra.mxu0 %v2911
          %3065 = vmatprep.subr.mxu0 0.0
          %3066 = vmatpush1.msra.mxu0 %v2912
          %3067 = vmatprep.subr.mxu0 0.0
          %3068 = vmatpush1.msra.mxu0 %v2913
          %3069 = vmatprep.subr.mxu0 0.0
          %3070 = vmatpush1.msra.mxu0 %v2914
          %3071 = vmatprep.subr.mxu0 0.0
          %3072 = vmatpush1.msra.mxu0 %v2915
          %3073 = vmatprep.subr.mxu0 0.0
          %3074 = vmatpush1.msra.mxu0 %v2916
          %3075 = vmatprep.subr.mxu0 0.0
          %3076 = vmatpush1.msra.mxu0 %v2917
          %3077 = vmatprep.subr.mxu0 0.0
          %3078 = vmatpush1.msra.mxu0 %v2918
          %3079 = vmatprep.subr.mxu0 0.0
          %3080 = vmatpush1.msra.mxu0 %v2919
          %3081 = vmatprep.subr.mxu0 0.0
          %3082 = vmatpush1.msra.mxu0 %v2920
          %3083 = vmatprep.subr.mxu0 0.0
          %3084 = vmatpush1.msra.mxu0 %v2921
          %3085 = vmatprep.subr.mxu0 0.0
          %3086 = vmatpush1.msra.mxu0 %v2922
          %3087 = vmatprep.subr.mxu0 0.0
          %3088 = vmatpush1.msra.mxu0 %v2923
          %3089 = vmatprep.subr.mxu0 0.0
          %3090 = vmatpush1.msra.mxu0 %v2924
          %3091 = vmatprep.subr.mxu0 0.0
          %3092 = vmatpush1.msra.mxu0 %v2925
          %3093 = vmatprep.mubr.f32.mxu0 %v2679
          %3094 = vmatmul.mubr.f32.gmra.mrb[0].mxu0 %v2677
          %v3095 = vpop.f32.mrb[0].mxu0
          %v3096 = vadd.f32 %v3027, %v3095
          %v3097 = vpop.f32.mrb[0].mxu0
          %3098 = vdwg.mxu0
          %3099 = vmatprep.subr.mxu0 0.0
          %3100 = vmatpush1.msra.mxu0 %v2926
          %3101 = vmatprep.subr.mxu0 0.0
          %3102 = vmatpush1.msra.mxu0 %v2927
          %3103 = vmatprep.subr.mxu0 0.0
          %3104 = vmatpush1.msra.mxu0 %v2928
          %3105 = vmatprep.subr.mxu0 0.0
          %3106 = vmatpush1.msra.mxu0 %v2929
          %3107 = vmatprep.subr.mxu0 0.0
          %3108 = vmatpush1.msra.mxu0 %v2930
          %3109 = vmatprep.subr.mxu0 0.0
          %3110 = vmatpush1.msra.mxu0 %v2931
          %3111 = vmatprep.subr.mxu0 0.0
          %3112 = vmatpush1.msra.mxu0 %v2932
          %3113 = vmatprep.subr.mxu0 0.0
          %3114 = vmatpush1.msra.mxu0 %v2933
          %3115 = vmatprep.subr.mxu0 0.0
          %3116 = vmatpush1.msra.mxu0 %v2934
          %3117 = vmatprep.subr.mxu0 0.0
          %3118 = vmatpush1.msra.mxu0 %v2935
          %3119 = vmatprep.subr.mxu0 0.0
          %3120 = vmatpush1.msra.mxu0 %v2936
          %3121 = vmatprep.subr.mxu0 0.0
          %3122 = vmatpush1.msra.mxu0 %v2937
          %3123 = vmatprep.subr.mxu0 0.0
          %3124 = vmatpush1.msra.mxu0 %v2938
          %3125 = vmatprep.subr.mxu0 0.0
          %3126 = vmatpush1.msra.mxu0 %v2939
          %3127 = vmatprep.subr.mxu0 0.0
          %3128 = vmatpush1.msra.mxu0 %v2940
          %3129 = vmatprep.subr.mxu0 0.0
          %3130 = vmatpush1.msra.mxu0 %v2941
          %3131 = vmatprep.subr.mxu0 0.0
          %3132 = vmatpush1.msra.mxu0 %v2942
          %3133 = vmatprep.subr.mxu0 0.0
          %3134 = vmatpush1.msra.mxu0 %v2943
          %3135 = vmatprep.subr.mxu0 0.0
          %3136 = vmatpush1.msra.mxu0 %v2944
          %3137 = vmatprep.subr.mxu0 0.0
          %3138 = vmatpush1.msra.mxu0 %v2945
          %3139 = vmatprep.subr.mxu0 0.0
          %3140 = vmatpush1.msra.mxu0 %v2946
          %3141 = vmatprep.subr.mxu0 0.0
          %3142 = vmatpush1.msra.mxu0 %v2947
          %3143 = vmatprep.subr.mxu0 0.0
          %3144 = vmatpush1.msra.mxu0 %v2948
          %3145 = vmatprep.subr.mxu0 0.0
          %3146 = vmatpush1.msra.mxu0 %v2949
          %3147 = vmatprep.subr.mxu0 0.0
          %3148 = vmatpush1.msra.mxu0 %v2950
          %3149 = vmatprep.subr.mxu0 0.0
          %3150 = vmatpush1.msra.mxu0 %v2951
          %3151 = vmatprep.subr.mxu0 0.0
          %3152 = vmatpush1.msra.mxu0 %v2952
          %3153 = vmatprep.subr.mxu0 0.0
          %3154 = vmatpush1.msra.mxu0 %v2953
          %3155 = vmatprep.subr.mxu0 0.0
          %3156 = vmatpush1.msra.mxu0 %v2954
          %3157 = vmatprep.subr.mxu0 0.0
          %3158 = vmatpush1.msra.mxu0 %v2955
          %3159 = vmatprep.subr.mxu0 0.0
          %3160 = vmatpush1.msra.mxu0 %v2956
          %3161 = vmatprep.subr.mxu0 0.0
          %3162 = vmatpush1.msra.mxu0 %v2957
          %3163 = vmatprep.mubr.f32.mxu0 %v2750
          %3164 = vmatmul.mubr.f32.gmra.mrb[0].mxu0 %v2748
          %v3165 = vpop.f32.mrb[0].mxu0
          %v3166 = vadd.f32 %v3096, %v3165
          %v3167 = vpop.f32.mrb[0].mxu0
          %3168 = vdwg.mxu0
          %3169 = vmatprep.subr.mxu0 0.0
          %3170 = vmatpush1.msra.mxu0 %v2958
          %3171 = vmatprep.subr.mxu0 0.0
          %3172 = vmatpush1.msra.mxu0 %v2959
          %3173 = vmatprep.subr.mxu0 0.0
          %3174 = vmatpush1.msra.mxu0 %v2960
          %3175 = vmatprep.subr.mxu0 0.0
          %3176 = vmatpush1.msra.mxu0 %v2961
          %3177 = vmatprep.subr.mxu0 0.0
          %3178 = vmatpush1.msra.mxu0 %v2962
          %3179 = vmatprep.subr.mxu0 0.0
          %3180 = vmatpush1.msra.mxu0 %v2963
          %3181 = vmatprep.subr.mxu0 0.0
          %3182 = vmatpush1.msra.mxu0 %v2964
          %3183 = vmatprep.subr.mxu0 0.0
          %3184 = vmatpush1.msra.mxu0 %v2965
          %3185 = vmatprep.subr.mxu0 0.0
          %3186 = vmatpush1.msra.mxu0 %v2966
          %3187 = vmatprep.subr.mxu0 0.0
          %3188 = vmatpush1.msra.mxu0 %v2967
          %3189 = vmatprep.subr.mxu0 0.0
          %3190 = vmatpush1.msra.mxu0 %v2968
          %3191 = vmatprep.subr.mxu0 0.0
          %3192 = vmatpush1.msra.mxu0 %v2969
          %3193 = vmatprep.subr.mxu0 0.0
          %3194 = vmatpush1.msra.mxu0 %v2970
          %3195 = vmatprep.subr.mxu0 0.0
          %3196 = vmatpush1.msra.mxu0 %v2971
          %3197 = vmatprep.subr.mxu0 0.0
          %3198 = vmatpush1.msra.mxu0 %v2972
          %3199 = vmatprep.subr.mxu0 0.0
          %3200 = vmatpush1.msra.mxu0 %v2973
          %3201 = vmatprep.subr.mxu0 0.0
          %3202 = vmatpush1.msra.mxu0 %v2974
          %3203 = vmatprep.subr.mxu0 0.0
          %3204 = vmatpush1.msra.mxu0 %v2975
          %3205 = vmatprep.subr.mxu0 0.0
          %3206 = vmatpush1.msra.mxu0 %v2976
          %3207 = vmatprep.subr.mxu0 0.0
          %3208 = vmatpush1.msra.mxu0 %v2977
          %3209 = vmatprep.subr.mxu0 0.0
          %3210 = vmatpush1.msra.mxu0 %v2978
          %3211 = vmatprep.subr.mxu0 0.0
          %3212 = vmatpush1.msra.mxu0 %v2979
          %3213 = vmatprep.subr.mxu0 0.0
          %3214 = vmatpush1.msra.mxu0 %v2980
          %3215 = vmatprep.subr.mxu0 0.0
          %3216 = vmatpush1.msra.mxu0 %v2981
          %3217 = vmatprep.subr.mxu0 0.0
          %3218 = vmatpush1.msra.mxu0 %v2982
          %3219 = vmatprep.subr.mxu0 0.0
          %3220 = vmatpush1.msra.mxu0 %v2983
          %3221 = vmatprep.subr.mxu0 0.0
          %3222 = vmatpush1.msra.mxu0 %v2984
          %3223 = vmatprep.subr.mxu0 0.0
          %3224 = vmatpush1.msra.mxu0 %v2985
          %3225 = vmatprep.subr.mxu0 0.0
          %3226 = vmatpush1.msra.mxu0 %v2986
          %3227 = vmatprep.subr.mxu0 0.0
          %3228 = vmatpush1.msra.mxu0 %v2987
          %3229 = vmatprep.subr.mxu0 0.0
          %3230 = vmatpush1.msra.mxu0 %v2988
          %3231 = vmatprep.subr.mxu0 0.0
          %3232 = vmatpush1.msra.mxu0 %v2989
          %3233 = vmatprep.mubr.f32.mxu0 %v2821
          %3234 = vmatmul.mubr.f32.gmra.mrb[0].mxu0 %v2819
          %v3235 = vpop.f32.mrb[0].mxu0
          %v3236 = vadd.f32 %v3166, %v3235
          %v3237 = vpop.f32.mrb[0].mxu0
          %3238 = vdwg.mxu0
          %3239 = vmatprep.subr.mxu0 0.0
          %3240 = vmatpush1.msra.mxu0 %v2990
          %3241 = vmatprep.subr.mxu0 0.0
          %3242 = vmatpush1.msra.mxu0 %v2991
          %3243 = vmatprep.subr.mxu0 0.0
          %3244 = vmatpush1.msra.mxu0 %v2992
          %3245 = vmatprep.subr.mxu0 0.0
          %3246 = vmatpush1.msra.mxu0 %v2993
          %3247 = vmatprep.subr.mxu0 0.0
          %3248 = vmatpush1.msra.mxu0 %v2994
          %3249 = vmatprep.subr.mxu0 0.0
          %3250 = vmatpush1.msra.mxu0 %v2995
          %3251 = vmatprep.subr.mxu0 0.0
          %3252 = vmatpush1.msra.mxu0 %v2996
          %3253 = vmatprep.subr.mxu0 0.0
          %3254 = vmatpush1.msra.mxu0 %v2997
          %3255 = vmatprep.subr.mxu0 0.0
          %3256 = vmatpush1.msra.mxu0 %v2998
          %3257 = vmatprep.subr.mxu0 0.0
          %3258 = vmatpush1.msra.mxu0 %v2999
          %3259 = vmatprep.subr.mxu0 0.0
          %3260 = vmatpush1.msra.mxu0 %v3000
          %3261 = vmatprep.subr.mxu0 0.0
          %3262 = vmatpush1.msra.mxu0 %v3001
          %3263 = vmatprep.subr.mxu0 0.0
          %3264 = vmatpush1.msra.mxu0 %v3002
          %3265 = vmatprep.subr.mxu0 0.0
          %3266 = vmatpush1.msra.mxu0 %v3003
          %3267 = vmatprep.subr.mxu0 0.0
          %3268 = vmatpush1.msra.mxu0 %v3004
          %3269 = vmatprep.subr.mxu0 0.0
          %3270 = vmatpush1.msra.mxu0 %v3005
          %3271 = vmatprep.subr.mxu0 0.0
          %3272 = vmatpush1.msra.mxu0 %v3006
          %3273 = vmatprep.subr.mxu0 0.0
          %3274 = vmatpush1.msra.mxu0 %v3007
          %3275 = vmatprep.subr.mxu0 0.0
          %3276 = vmatpush1.msra.mxu0 %v3008
          %3277 = vmatprep.subr.mxu0 0.0
          %3278 = vmatpush1.msra.mxu0 %v3009
          %3279 = vmatprep.subr.mxu0 0.0
          %3280 = vmatpush1.msra.mxu0 %v3010
          %3281 = vmatprep.subr.mxu0 0.0
          %3282 = vmatpush1.msra.mxu0 %v3011
          %3283 = vmatprep.subr.mxu0 0.0
          %3284 = vmatpush1.msra.mxu0 %v3012
          %3285 = vmatprep.subr.mxu0 0.0
          %3286 = vmatpush1.msra.mxu0 %v3013
          %3287 = vmatprep.subr.mxu0 0.0
          %3288 = vmatpush1.msra.mxu0 %v3014
          %3289 = vmatprep.subr.mxu0 0.0
          %3290 = vmatpush1.msra.mxu0 %v3015
          %3291 = vmatprep.subr.mxu0 0.0
          %3292 = vmatpush1.msra.mxu0 %v3016
          %3293 = vmatprep.subr.mxu0 0.0
          %3294 = vmatpush1.msra.mxu0 %v3017
          %3295 = vmatprep.subr.mxu0 0.0
          %3296 = vmatpush1.msra.mxu0 %v3018
          %3297 = vmatprep.subr.mxu0 0.0
          %3298 = vmatpush1.msra.mxu0 %v3019
          %3299 = vmatprep.subr.mxu0 0.0
          %3300 = vmatpush1.msra.mxu0 %v3020
          %3301 = vmatprep.subr.mxu0 0.0
          %3302 = vmatpush1.msra.mxu0 %v3021
          %3303 = vmatprep.mubr.f32.mxu0 %v2892
          %3304 = vmatmul.mubr.f32.gmra.mrb[0].mxu0 %v2890
          %v3305 = vpop.f32.mrb[0].mxu0
          %v3306 = vadd.f32 %v3236, %v3305
          %v3307 = vpop.f32.mrb[0].mxu0
          %3308 = vdwg.mxu0
          %vm3309 = vcmask 17408
          %3310 = vst.msk [vmem:[#allocation4] sm:$0x3] %vm3309, %v3306
        $region75: #{completenn_forward.11} parent=62 // pred_fallthru
          _
        // Predicated region
        $region76: #{completenn_forward.11} parent=62 // pred_check
          %p3311 = pneg %p167
        $region77: #{completenn_forward.11} parent=62 // pred_check_branch
          %3313 = sbr.rel (%p3311) target = $region79
        $region78: #{completenn_forward.11} parent=62 // pred_region
          %s3315 = ssub.s32 32, 32
          %3316 = vsyncadd [#allocation5], %s3315
          %s3318 = sshll.u32 [#allocation4], 4
          %s3319 = int_to_ptr.vmem [resolvable:$true] %s3318
          %3321 = dma.vmem_to_hbm [thread:$0]  %s3319, 32, %s6, [#allocation5]
        $region79: #{completenn_forward.11} parent=62 // pred_fallthru
          _
        // Predicated region
        $region80: #{completenn_forward.11} parent=62 // pred_check
          %p3322 = pneg %p167
        $region81: #{completenn_forward.11} parent=62 // pred_check_branch
          %3324 = sbr.rel (%p3322) target = $region83
        $region82: #{completenn_forward.11} parent=62 // pred_region
          %3325 = dma.done [#allocation5], 32
        $region83: #{completenn_forward.11} parent=62 // pred_fallthru
          _
      $region63: #{completenn_forward.11} parent=5 // pred_fallthru
        _
      %p3326 = scmp.le.s32.totalorder 2, %s13
      // Predicated region
      $region84: #{completenn_forward.11} parent=5 // pred_check
        %p3327 = pneg %p3326
      $region85: #{completenn_forward.11} parent=5 // pred_check_branch
        %3329 = sbr.rel (%p3327) target = $region87
      $region86: #{completenn_forward.11} parent=5 // pred_region
        %s3330 = ssub.s32 %s13, 2
      $region87: #{completenn_forward.11} parent=5 // pred_fallthru
        _
    $region6: #{completenn_forward.11} parent=1 // loop_footer
      %s17 = sadd.s32 1, %s13
    $region7: #{completenn_forward.11} parent=1 // loop_footer_branch
      %12 = sbr.rel target = $region3
    $region8: #{completenn_forward.11} parent=1 // loop_exit
      _
    %3331 = vsyncpa [#allocation5], 1
    %s3332 = scalar_lea.sflag [#allocation5], 1
    %3333 = vsyncpa %s3332, 1

</llo_original>
